<compile_context>
chip_gen: v7x
topology: tpu7x:2x2x1
jax: 0.10.0
libtpu: 0.0.40
codegen_flags: <defaults>
</compile_context>

<pallas_src>
import jax
import jax.numpy as jnp
from jax import lax
from jax.experimental import pallas as pl
from jax.experimental.pallas import tpu as pltpu

_LANES = 128
_TB = 8          # images per grid step (batch block)


# ---------------------------------------------------------------------------
# Fused forward kernel: conv1 -> conv2 -> maxpool+avgpool -> FC1 -> FC2 -> FC3
# ---------------------------------------------------------------------------
def _fused_kernel(x_ref, w1_ref, b1_ref, w2_ref, b2_ref, w3_ref, b3_ref,
                  w4_ref, b4_ref, w5_ref, b5_ref, o_ref, h1p_ref, acc2_ref):
    f32, bf16 = jnp.float32, jnp.bfloat16
    tb = x_ref.shape[0]

    # ---- h1p padding ring (conv2's padding=1).  Only the ring is zeroed, and
    #      it is zeroed every step so the kernel stays correct under any grid
    #      sharding ("parallel").  The interior [1:15,1:15] is fully rewritten
    #      below; rows/cols >= 16 feed only conv2 outputs pooling never reads.
    h1p_ref[:, 0:1, 0:16, :] = jnp.zeros((tb, 1, 16, _LANES), f32)
    h1p_ref[:, 15:16, 0:16, :] = jnp.zeros((tb, 1, 16, _LANES), f32)
    h1p_ref[:, 1:15, 0:1, :] = jnp.zeros((tb, 14, 1, _LANES), f32)
    h1p_ref[:, 1:15, 15:16, :] = jnp.zeros((tb, 14, 1, _LANES), f32)

    # ---- per-image: conv1 (VPU broadcast taps) + conv2 (MXU, register acc) ---
    def per_image(b, carry):
        # conv1: Conv2d(1, 16, 3x3) + ReLU, 9 shifted broadcast-MAC taps.
        acc1 = None
        for t in range(9):
            ky, kx = divmod(t, 3)
            xs = x_ref[b, ky:ky + 14, kx:kx + 14, :]        # (14,14,1) f32
            term = xs * w1_ref[t]                           # -> (14,14,128)
            acc1 = term if acc1 is None else acc1 + term
        h1p_ref[b, 1:15, 1:15, :] = jnp.maximum(acc1 + b1_ref[0], 0.0)

        # conv2: Conv2d(16, 42, 4x4, padding=1) + ReLU.  Two 8-output-row
        # halves; each half is 4 chained K=512 MXU dots accumulated in
        # registers (no VMEM read-modify-write of the accumulator).
        for y0 in (0, 8):
            acc = jnp.zeros((128, _LANES), f32)
            for ky in range(4):
                parts = []
                for kx in range(4):
                    sl = h1p_ref[b, y0 + ky:y0 + ky + 8, kx:kx + 16, :]
                    parts.append(sl.reshape(128, _LANES).astype(bf16))
                lhs = jnp.concatenate(parts, axis=-1)        # (128, 512) bf16
                acc = acc + jnp.dot(lhs, w2_ref[ky],
                                    preferred_element_type=f32)
            res = jnp.maximum(acc + b2_ref[0], 0.0)          # ReLU
            acc2_ref[b, y0:y0 + 8, :, :] = res.reshape(8, 16, _LANES)
        return carry

    lax.fori_loop(0, tb, per_image, 0)

    # ---- MaxPool2d(2,2) -> AdaptiveAvgPool2d((2,2)), vectorized over the
    #      batch block.  pooled quadrant (p,q) = sum_{3x3} max_{2x2} conv2.
    #      (1/9 scale + NCHW flatten order are folded into w3 at pack time.)
    def quad_pool(p, q):
        acc = None
        for ii in range(3):                                  # maxpool rows
            r0 = acc2_ref[:, 6 * p + 2 * ii, 6 * q:6 * q + 7, :]      # (tb,7,128)
            r1 = acc2_ref[:, 6 * p + 2 * ii + 1, 6 * q:6 * q + 7, :]
            ym = jnp.maximum(r0, r1)                                   # (tb,7,128)
            mm = jnp.maximum(ym[:, 0:6, :], ym[:, 1:7, :])             # (tb,6,128)
            row = mm[:, 0, :] + mm[:, 2, :] + mm[:, 4, :]              # (tb,128)
            acc = row if acc is None else acc + row
        return acc

    pooled = jnp.concatenate(
        [quad_pool(0, 0), quad_pool(0, 1), quad_pool(1, 0), quad_pool(1, 1)],
        axis=-1)                                             # (tb, 512) f32

    # ---- classifier: FC1 -> ReLU -> Dropout -> FC2 -> ReLU -> Dropout -> FC3
    # TODO(synk): Dropout(p=0.5) is identity in inference mode; training-mode
    # RNG masking is not emitted.
    z3 = jnp.maximum(b3_ref[...] + jnp.dot(pooled.astype(bf16), w3_ref[...],
                                           preferred_element_type=f32), 0.0)
    z4 = jnp.maximum(b4_ref[...] + jnp.dot(z3.astype(bf16), w4_ref[...],
                                           preferred_element_type=f32), 0.0)
    z5 = b5_ref[...] + jnp.dot(z4.astype(bf16), w5_ref[...],
                               preferred_element_type=f32)
    o_ref[...] = z5                                          # (tb, 128) f32


# ---------------------------------------------------------------------------
# pallas_call wrapper
# ---------------------------------------------------------------------------
def _fused_forward(params, x_nhwc):
    Bp = x_nhwc.shape[0]
    assert Bp % _TB == 0 and x_nhwc.shape[1:] == (16, 16, 1), \
        "kernel is specialized to 16x16x1 input and batch multiple of _TB"

    def whole(arr):
        nd = arr.ndim
        return pl.BlockSpec(arr.shape, lambda i, nd=nd: (0,) * nd)

    weight_keys = ("w1", "b1", "w2", "b2", "w3", "b3", "w4", "b4", "w5", "b5")
    in_specs = [pl.BlockSpec((_TB, 16, 16, 1), lambda i: (i, 0, 0, 0))]
    in_specs += [whole(params[k]) for k in weight_keys]

    return pl.pallas_call(
        _fused_kernel,
        out_shape=jax.ShapeDtypeStruct((Bp, _LANES), jnp.float32),
        grid=(Bp // _TB,),
        in_specs=in_specs,
        out_specs=pl.BlockSpec((_TB, _LANES), lambda i: (i, 0)),
        scratch_shapes=[
            pltpu.VMEM((_TB, 19, 19, _LANES), jnp.float32),   # zero-padded conv1 out
            pltpu.VMEM((_TB, 16, 16, _LANES), jnp.float32),   # conv2 ReLU out
        ],
        compiler_params=pltpu.CompilerParams(
            dimension_semantics=("parallel",)),
    )(x_nhwc, *(params[k] for k in weight_keys))


# ---------------------------------------------------------------------------
# Parameter construction / packing (one-time; padding + folding done here)
# ---------------------------------------------------------------------------
def pack_params(raw):
    """Zero-pad channel dims to 128 lanes, cast MXU weights to bf16, repack
    conv2 weights for K=512 dots, and fold the 1/9 adaptive-avg-pool scale and
    the PyTorch NCHW flatten order into w3.
    NOTE: raw conv weights are expected in (kh,kw,cin,cout)/(kh,kw,cout)
    layout; a real PyTorch state_dict ((cout,cin,kh,kw)) needs a transpose."""
    f32, bf16 = jnp.float32, jnp.bfloat16
    p = {}
    # conv1: (3,3,16) -> (9 taps, 128 channels), f32 (used on the VPU)
    p["w1"] = jnp.zeros((9, _LANES), f32).at[:, :16].set(raw["w1"].reshape(9, 16))
    p["b1"] = jnp.zeros((1, _LANES), f32).at[0, :16].set(raw["b1"])
    # conv2: (4,4,16,42) -> (ky, kx*128 + cin, cout) = (4, 512, 128), bf16 (MXU)
    w2 = jnp.zeros((4, 4, _LANES, _LANES), f32).at[:, :, :16, :42].set(raw["w2"])
    p["w2"] = w2.reshape(4, 4 * _LANES, _LANES).astype(bf16)
    p["b2"] = jnp.zeros((1, _LANES), f32).at[0, :42].set(raw["b2"])
    # fc1: rows ordered f = c*4 + 2*p + q (PyTorch NCHW flatten); fold 1/9 avg;
    # repack to (512,128) with row = (2p+q)*128 + c.
    w3 = raw["w3"].reshape(42, 4, 72).transpose(1, 0, 2) / 9.0       # (4,42,72)
    w3p = jnp.zeros((4, _LANES, _LANES), f32).at[:, :42, :72].set(w3)
    p["w3"] = w3p.reshape(4 * _LANES, _LANES).astype(bf16)
    p["b3"] = jnp.zeros((1, _LANES), f32).at[0, :72].set(raw["b3"])
    p["w4"] = jnp.zeros((_LANES, _LANES), f32).at[:72, :36].set(raw["w4"]).astype(bf16)
    p["b4"] = jnp.zeros((1, _LANES), f32).at[0, :36].set(raw["b4"])
    p["w5"] = jnp.zeros((_LANES, _LANES), f32).at[:36, :2].set(raw["w5"]).astype(bf16)
    p["b5"] = jnp.zeros((1, _LANES), f32).at[0, :2].set(raw["b5"])
    return p


def init_params(key):
    ks = jax.random.split(key, 8)

    def rnd(k, fan_in, shape):
        return jax.random.normal(k, shape, jnp.float32) / jnp.sqrt(fan_in)

    raw = dict(
        w1=rnd(ks[0], 1 * 3 * 3, (3, 3, 16)),             # (kh, kw, cout)
        b1=jnp.zeros((16,), jnp.float32),
        w2=rnd(ks[1], 16 * 4 * 4, (4, 4, 16, 42)),         # (kh, kw, cin, cout)
        b2=jnp.zeros((42,), jnp.float32),
        w3=rnd(ks[2], 168, (168, 72)),                     # rows in NCHW flatten order
        b3=rnd(ks[3], 168, (72,)),
        w4=rnd(ks[4], 72, (72, 36)),
        b4=rnd(ks[5], 72, (36,)),
        w5=rnd(ks[6], 36, (36, 2)),
        b5=rnd(ks[7], 36, (2,)),
    )
    return pack_params(raw)


# ---------------------------------------------------------------------------
# Public entry point (PyTorch NCHW convention)
# ---------------------------------------------------------------------------
def equivalent_net_mnist(params, x_nchw):
    """x_nchw: (B, 1, 16, 16) float32.  Returns (B, 2) float32 logits."""
    B = x_nchw.shape[0]
    x = jnp.transpose(x_nchw, (0, 2, 3, 1)).astype(jnp.float32)   # NHWC, C=1
    pad = (-B) % _TB
    if pad:
        x = jnp.concatenate(
            [x, jnp.zeros((pad,) + x.shape[1:], jnp.float32)], axis=0)
    out = _fused_forward(params, x)                               # (B+pad, 128)
    return out[:B, :2]


if __name__ == "__main__":
    key = jax.random.PRNGKey(0)
    kx, kp = jax.random.split(key)
    # 16 images -> 2 grid steps of 8 images each (keeps both v7x cores busy).
    x = jax.random.normal(kx, (16, 1, 16, 16), jnp.float32)
    params = init_params(kp)

    out = jax.block_until_ready(jax.jit(equivalent_net_mnist)(params, x))
    assert out.shape == (16, 2) and out.dtype == jnp.float32
    assert bool(jnp.all(jnp.isfinite(out)))
    print("KERNEL_OK")
</pallas_src>

<mosaic_0001>
module attributes {stable_mosaic.version = 11 : i64} {
  func.func @_fused_kernel(%arg0: i32, %arg1: memref<8x16x16x1xf32, #tpu.memory_space<vmem>>, %arg2: memref<9x128xf32, #tpu.memory_space<vmem>>, %arg3: memref<1x128xf32, #tpu.memory_space<vmem>>, %arg4: memref<4x512x128xbf16, #tpu.memory_space<vmem>>, %arg5: memref<1x128xf32, #tpu.memory_space<vmem>>, %arg6: memref<512x128xbf16, #tpu.memory_space<vmem>>, %arg7: memref<1x128xf32, #tpu.memory_space<vmem>>, %arg8: memref<128x128xbf16, #tpu.memory_space<vmem>>, %arg9: memref<1x128xf32, #tpu.memory_space<vmem>>, %arg10: memref<128x128xbf16, #tpu.memory_space<vmem>>, %arg11: memref<1x128xf32, #tpu.memory_space<vmem>>, %arg12: memref<8x128xf32, #tpu.memory_space<vmem>>, %arg13: memref<8x19x19x128xf32, #tpu.memory_space<vmem>>, %arg14: memref<8x16x16x128xf32, #tpu.memory_space<vmem>>) attributes {dimension_semantics = [#tpu.dimension_semantics<parallel>], iteration_bounds = array<i64: 2>, scalar_prefetch = 0 : i64, scratch_operands = 2 : i64, tpu.core_type = #tpu.core_type<tc>, window_params = [{transform_indices = @transform_0, window_bounds = array<i64: 8, 16, 16, 1>}, {pipeline_mode = #tpu.pipeline_mode<synchronous>, transform_indices = @transform_1, window_bounds = array<i64: 9, 128>}, {pipeline_mode = #tpu.pipeline_mode<synchronous>, transform_indices = @transform_2, window_bounds = array<i64: 1, 128>}, {pipeline_mode = #tpu.pipeline_mode<synchronous>, transform_indices = @transform_3, window_bounds = array<i64: 4, 512, 128>}, {pipeline_mode = #tpu.pipeline_mode<synchronous>, transform_indices = @transform_4, window_bounds = array<i64: 1, 128>}, {pipeline_mode = #tpu.pipeline_mode<synchronous>, transform_indices = @transform_5, window_bounds = array<i64: 512, 128>}, {pipeline_mode = #tpu.pipeline_mode<synchronous>, transform_indices = @transform_6, window_bounds = array<i64: 1, 128>}, {pipeline_mode = #tpu.pipeline_mode<synchronous>, transform_indices = @transform_7, window_bounds = array<i64: 128, 128>}, {pipeline_mode = #tpu.pipeline_mode<synchronous>, transform_indices = @transform_8, window_bounds = array<i64: 1, 128>}, {pipeline_mode = #tpu.pipeline_mode<synchronous>, transform_indices = @transform_9, window_bounds = array<i64: 128, 128>}, {pipeline_mode = #tpu.pipeline_mode<synchronous>, transform_indices = @transform_10, window_bounds = array<i64: 1, 128>}, {transform_indices = @transform_11, window_bounds = array<i64: 8, 128>}]} {
    %cst = arith.constant 0.000000e+00 : f32
    %0 = vector.broadcast %cst : f32 to vector<8x1x16x128xf32>
    %c0 = arith.constant 0 : index
    %c0_0 = arith.constant 0 : index
    %c0_1 = arith.constant 0 : index
    %c0_2 = arith.constant 0 : index
    %1 = vector.load %arg13[%c0, %c0_0, %c0_1, %c0_2] : memref<8x19x19x128xf32, #tpu.memory_space<vmem>>, vector<8x1x16x128xf32>
    tpu.vector_store %arg13[%c0, %c0_0, %c0_1, %c0_2], %0 {strides = array<i32>} : memref<8x19x19x128xf32, #tpu.memory_space<vmem>>, vector<8x1x16x128xf32>,
    %cst_3 = arith.constant 0.000000e+00 : f32
    %2 = vector.broadcast %cst_3 : f32 to vector<8x1x16x128xf32>
    %c0_4 = arith.constant 0 : index
    %c15 = arith.constant 15 : index
    %c0_5 = arith.constant 0 : index
    %c0_6 = arith.constant 0 : index
    %3 = vector.load %arg13[%c0_4, %c15, %c0_5, %c0_6] : memref<8x19x19x128xf32, #tpu.memory_space<vmem>>, vector<8x1x16x128xf32>
    tpu.vector_store %arg13[%c0_4, %c15, %c0_5, %c0_6], %2 {strides = array<i32>} : memref<8x19x19x128xf32, #tpu.memory_space<vmem>>, vector<8x1x16x128xf32>,
    %cst_7 = arith.constant 0.000000e+00 : f32
    %4 = vector.broadcast %cst_7 : f32 to vector<8x14x1x128xf32>
    %c0_8 = arith.constant 0 : index
    %c1 = arith.constant 1 : index
    %c0_9 = arith.constant 0 : index
    %c0_10 = arith.constant 0 : index
    %5 = vector.load %arg13[%c0_8, %c1, %c0_9, %c0_10] : memref<8x19x19x128xf32, #tpu.memory_space<vmem>>, vector<8x14x1x128xf32>
    tpu.vector_store %arg13[%c0_8, %c1, %c0_9, %c0_10], %4 {strides = array<i32>} : memref<8x19x19x128xf32, #tpu.memory_space<vmem>>, vector<8x14x1x128xf32>,
    %cst_11 = arith.constant 0.000000e+00 : f32
    %6 = vector.broadcast %cst_11 : f32 to vector<8x14x1x128xf32>
    %c0_12 = arith.constant 0 : index
    %c1_13 = arith.constant 1 : index
    %c15_14 = arith.constant 15 : index
    %c0_15 = arith.constant 0 : index
    %7 = vector.load %arg13[%c0_12, %c1_13, %c15_14, %c0_15] : memref<8x19x19x128xf32, #tpu.memory_space<vmem>>, vector<8x14x1x128xf32>
    tpu.vector_store %arg13[%c0_12, %c1_13, %c15_14, %c0_15], %6 {strides = array<i32>} : memref<8x19x19x128xf32, #tpu.memory_space<vmem>>, vector<8x14x1x128xf32>,
    %c0_i32 = arith.constant 0 : i32
    %c8_i32 = arith.constant 8 : i32
    %8 = arith.addi %c0_i32, %c8_i32 : i32
    %c1_i32 = arith.constant 1 : i32
    scf.for %arg15 = %c0_i32 to %8 step %c1_i32  : i32 {
      %233 = arith.index_cast %arg15 : i32 to index
      %c0_122 = arith.constant 0 : index
      %c0_123 = arith.constant 0 : index
      %c0_124 = arith.constant 0 : index
      %234 = vector.load %arg1[%233, %c0_122, %c0_123, %c0_124] : memref<8x16x16x1xf32, #tpu.memory_space<vmem>>, vector<1x14x14x1xf32>
      %235 = vector.shape_cast %234 : vector<1x14x14x1xf32> to vector<14x14x1xf32>
      %c0_125 = arith.constant 0 : index
      %c0_126 = arith.constant 0 : index
      %236 = vector.load %arg2[%c0_125, %c0_126] : memref<9x128xf32, #tpu.memory_space<vmem>>, vector<1x128xf32>
      %237 = vector.shape_cast %236 : vector<1x128xf32> to vector<128xf32>
      %238 = vector.shape_cast %237 : vector<128xf32> to vector<1x1x128xf32>
      %239 = vector.broadcast %235 : vector<14x14x1xf32> to vector<14x14x128xf32>
      %240 = vector.broadcast %238 : vector<1x1x128xf32> to vector<14x14x128xf32>
      %241 = arith.mulf %239, %240 : vector<14x14x128xf32>
      %242 = arith.index_cast %arg15 : i32 to index
      %c0_127 = arith.constant 0 : index
      %c1_128 = arith.constant 1 : index
      %c0_129 = arith.constant 0 : index
      %243 = vector.load %arg1[%242, %c0_127, %c1_128, %c0_129] : memref<8x16x16x1xf32, #tpu.memory_space<vmem>>, vector<1x14x14x1xf32>
      %244 = vector.shape_cast %243 : vector<1x14x14x1xf32> to vector<14x14x1xf32>
      %c1_130 = arith.constant 1 : index
      %c0_131 = arith.constant 0 : index
      %245 = vector.load %arg2[%c1_130, %c0_131] : memref<9x128xf32, #tpu.memory_space<vmem>>, vector<1x128xf32>
      %246 = vector.shape_cast %245 : vector<1x128xf32> to vector<128xf32>
      %247 = vector.shape_cast %246 : vector<128xf32> to vector<1x1x128xf32>
      %248 = vector.broadcast %244 : vector<14x14x1xf32> to vector<14x14x128xf32>
      %249 = vector.broadcast %247 : vector<1x1x128xf32> to vector<14x14x128xf32>
      %250 = arith.mulf %248, %249 : vector<14x14x128xf32>
      %251 = arith.addf %241, %250 : vector<14x14x128xf32>
      %252 = arith.index_cast %arg15 : i32 to index
      %c0_132 = arith.constant 0 : index
      %c2_133 = arith.constant 2 : index
      %c0_134 = arith.constant 0 : index
      %253 = vector.load %arg1[%252, %c0_132, %c2_133, %c0_134] : memref<8x16x16x1xf32, #tpu.memory_space<vmem>>, vector<1x14x14x1xf32>
      %254 = vector.shape_cast %253 : vector<1x14x14x1xf32> to vector<14x14x1xf32>
      %c2_135 = arith.constant 2 : index
      %c0_136 = arith.constant 0 : index
      %255 = vector.load %arg2[%c2_135, %c0_136] : memref<9x128xf32, #tpu.memory_space<vmem>>, vector<1x128xf32>
      %256 = vector.shape_cast %255 : vector<1x128xf32> to vector<128xf32>
      %257 = vector.shape_cast %256 : vector<128xf32> to vector<1x1x128xf32>
      %258 = vector.broadcast %254 : vector<14x14x1xf32> to vector<14x14x128xf32>
      %259 = vector.broadcast %257 : vector<1x1x128xf32> to vector<14x14x128xf32>
      %260 = arith.mulf %258, %259 : vector<14x14x128xf32>
      %261 = arith.addf %251, %260 : vector<14x14x128xf32>
      %262 = arith.index_cast %arg15 : i32 to index
      %c1_137 = arith.constant 1 : index
      %c0_138 = arith.constant 0 : index
      %c0_139 = arith.constant 0 : index
      %263 = vector.load %arg1[%262, %c1_137, %c0_138, %c0_139] : memref<8x16x16x1xf32, #tpu.memory_space<vmem>>, vector<1x14x14x1xf32>
      %264 = vector.shape_cast %263 : vector<1x14x14x1xf32> to vector<14x14x1xf32>
      %c3_140 = arith.constant 3 : index
      %c0_141 = arith.constant 0 : index
      %265 = vector.load %arg2[%c3_140, %c0_141] : memref<9x128xf32, #tpu.memory_space<vmem>>, vector<1x128xf32>
      %266 = vector.shape_cast %265 : vector<1x128xf32> to vector<128xf32>
      %267 = vector.shape_cast %266 : vector<128xf32> to vector<1x1x128xf32>
      %268 = vector.broadcast %264 : vector<14x14x1xf32> to vector<14x14x128xf32>
      %269 = vector.broadcast %267 : vector<1x1x128xf32> to vector<14x14x128xf32>
      %270 = arith.mulf %268, %269 : vector<14x14x128xf32>
      %271 = arith.addf %261, %270 : vector<14x14x128xf32>
      %272 = arith.index_cast %arg15 : i32 to index
      %c1_142 = arith.constant 1 : index
      %c1_143 = arith.constant 1 : index
      %c0_144 = arith.constant 0 : index
      %273 = vector.load %arg1[%272, %c1_142, %c1_143, %c0_144] : memref<8x16x16x1xf32, #tpu.memory_space<vmem>>, vector<1x14x14x1xf32>
      %274 = vector.shape_cast %273 : vector<1x14x14x1xf32> to vector<14x14x1xf32>
      %c4_145 = arith.constant 4 : index
      %c0_146 = arith.constant 0 : index
      %275 = vector.load %arg2[%c4_145, %c0_146] : memref<9x128xf32, #tpu.memory_space<vmem>>, vector<1x128xf32>
      %276 = vector.shape_cast %275 : vector<1x128xf32> to vector<128xf32>
      %277 = vector.shape_cast %276 : vector<128xf32> to vector<1x1x128xf32>
      %278 = vector.broadcast %274 : vector<14x14x1xf32> to vector<14x14x128xf32>
      %279 = vector.broadcast %277 : vector<1x1x128xf32> to vector<14x14x128xf32>
      %280 = arith.mulf %278, %279 : vector<14x14x128xf32>
      %281 = arith.addf %271, %280 : vector<14x14x128xf32>
      %282 = arith.index_cast %arg15 : i32 to index
      %c1_147 = arith.constant 1 : index
      %c2_148 = arith.constant 2 : index
      %c0_149 = arith.constant 0 : index
      %283 = vector.load %arg1[%282, %c1_147, %c2_148, %c0_149] : memref<8x16x16x1xf32, #tpu.memory_space<vmem>>, vector<1x14x14x1xf32>
      %284 = vector.shape_cast %283 : vector<1x14x14x1xf32> to vector<14x14x1xf32>
      %c5_150 = arith.constant 5 : index
      %c0_151 = arith.constant 0 : index
      %285 = vector.load %arg2[%c5_150, %c0_151] : memref<9x128xf32, #tpu.memory_space<vmem>>, vector<1x128xf32>
      %286 = vector.shape_cast %285 : vector<1x128xf32> to vector<128xf32>
      %287 = vector.shape_cast %286 : vector<128xf32> to vector<1x1x128xf32>
      %288 = vector.broadcast %284 : vector<14x14x1xf32> to vector<14x14x128xf32>
      %289 = vector.broadcast %287 : vector<1x1x128xf32> to vector<14x14x128xf32>
      %290 = arith.mulf %288, %289 : vector<14x14x128xf32>
      %291 = arith.addf %281, %290 : vector<14x14x128xf32>
      %292 = arith.index_cast %arg15 : i32 to index
      %c2_152 = arith.constant 2 : index
      %c0_153 = arith.constant 0 : index
      %c0_154 = arith.constant 0 : index
      %293 = vector.load %arg1[%292, %c2_152, %c0_153, %c0_154] : memref<8x16x16x1xf32, #tpu.memory_space<vmem>>, vector<1x14x14x1xf32>
      %294 = vector.shape_cast %293 : vector<1x14x14x1xf32> to vector<14x14x1xf32>
      %c6_155 = arith.constant 6 : index
      %c0_156 = arith.constant 0 : index
      %295 = vector.load %arg2[%c6_155, %c0_156] : memref<9x128xf32, #tpu.memory_space<vmem>>, vector<1x128xf32>
      %296 = vector.shape_cast %295 : vector<1x128xf32> to vector<128xf32>
      %297 = vector.shape_cast %296 : vector<128xf32> to vector<1x1x128xf32>
      %298 = vector.broadcast %294 : vector<14x14x1xf32> to vector<14x14x128xf32>
      %299 = vector.broadcast %297 : vector<1x1x128xf32> to vector<14x14x128xf32>
      %300 = arith.mulf %298, %299 : vector<14x14x128xf32>
      %301 = arith.addf %291, %300 : vector<14x14x128xf32>
      %302 = arith.index_cast %arg15 : i32 to index
      %c2_157 = arith.constant 2 : index
      %c1_158 = arith.constant 1 : index
      %c0_159 = arith.constant 0 : index
      %303 = vector.load %arg1[%302, %c2_157, %c1_158, %c0_159] : memref<8x16x16x1xf32, #tpu.memory_space<vmem>>, vector<1x14x14x1xf32>
      %304 = vector.shape_cast %303 : vector<1x14x14x1xf32> to vector<14x14x1xf32>
      %c7_160 = arith.constant 7 : index
      %c0_161 = arith.constant 0 : index
      %305 = vector.load %arg2[%c7_160, %c0_161] : memref<9x128xf32, #tpu.memory_space<vmem>>, vector<1x128xf32>
      %306 = vector.shape_cast %305 : vector<1x128xf32> to vector<128xf32>
      %307 = vector.shape_cast %306 : vector<128xf32> to vector<1x1x128xf32>
      %308 = vector.broadcast %304 : vector<14x14x1xf32> to vector<14x14x128xf32>
      %309 = vector.broadcast %307 : vector<1x1x128xf32> to vector<14x14x128xf32>
      %310 = arith.mulf %308, %309 : vector<14x14x128xf32>
      %311 = arith.addf %301, %310 : vector<14x14x128xf32>
      %312 = arith.index_cast %arg15 : i32 to index
      %c2_162 = arith.constant 2 : index
      %c2_163 = arith.constant 2 : index
      %c0_164 = arith.constant 0 : index
      %313 = vector.load %arg1[%312, %c2_162, %c2_163, %c0_164] : memref<8x16x16x1xf32, #tpu.memory_space<vmem>>, vector<1x14x14x1xf32>
      %314 = vector.shape_cast %313 : vector<1x14x14x1xf32> to vector<14x14x1xf32>
      %c8_165 = arith.constant 8 : index
      %c0_166 = arith.constant 0 : index
      %315 = vector.load %arg2[%c8_165, %c0_166] : memref<9x128xf32, #tpu.memory_space<vmem>>, vector<1x128xf32>
      %316 = vector.shape_cast %315 : vector<1x128xf32> to vector<128xf32>
      %317 = vector.shape_cast %316 : vector<128xf32> to vector<1x1x128xf32>
      %318 = vector.broadcast %314 : vector<14x14x1xf32> to vector<14x14x128xf32>
      %319 = vector.broadcast %317 : vector<1x1x128xf32> to vector<14x14x128xf32>
      %320 = arith.mulf %318, %319 : vector<14x14x128xf32>
      %321 = arith.addf %311, %320 : vector<14x14x128xf32>
      %c0_167 = arith.constant 0 : index
      %c0_168 = arith.constant 0 : index
      %322 = vector.load %arg3[%c0_167, %c0_168] : memref<1x128xf32, #tpu.memory_space<vmem>>, vector<1x128xf32>
      %323 = vector.shape_cast %322 : vector<1x128xf32> to vector<128xf32>
      %324 = vector.shape_cast %323 : vector<128xf32> to vector<1x1x128xf32>
      %325 = vector.broadcast %324 : vector<1x1x128xf32> to vector<14x14x128xf32>
      %326 = arith.addf %321, %325 : vector<14x14x128xf32>
      %cst_169 = arith.constant 0.000000e+00 : f32
      %327 = vector.broadcast %cst_169 : f32 to vector<14x14x128xf32>
      %328 = arith.maximumf %326, %327 : vector<14x14x128xf32>
      %329 = arith.index_cast %arg15 : i32 to index
      %c1_170 = arith.constant 1 : index
      %c1_171 = arith.constant 1 : index
      %c0_172 = arith.constant 0 : index
      %330 = vector.load %arg13[%329, %c1_170, %c1_171, %c0_172] : memref<8x19x19x128xf32, #tpu.memory_space<vmem>>, vector<1x14x14x128xf32>
      %331 = vector.shape_cast %330 : vector<1x14x14x128xf32> to vector<14x14x128xf32>
      %332 = vector.shape_cast %328 : vector<14x14x128xf32> to vector<1x14x14x128xf32>
      tpu.vector_store %arg13[%329, %c1_170, %c1_171, %c0_172], %332 {strides = array<i32>} : memref<8x19x19x128xf32, #tpu.memory_space<vmem>>, vector<1x14x14x128xf32>,
      %cst_173 = arith.constant 0.000000e+00 : f32
      %333 = vector.broadcast %cst_173 : f32 to vector<128x128xf32>
      %334 = arith.index_cast %arg15 : i32 to index
      %c0_174 = arith.constant 0 : index
      %c0_175 = arith.constant 0 : index
      %c0_176 = arith.constant 0 : index
      %335 = vector.load %arg13[%334, %c0_174, %c0_175, %c0_176] : memref<8x19x19x128xf32, #tpu.memory_space<vmem>>, vector<1x8x16x128xf32>
      %336 = vector.shape_cast %335 : vector<1x8x16x128xf32> to vector<8x16x128xf32>
      %337 = vector.shape_cast %336 : vector<8x16x128xf32> to vector<128x128xf32>
      %338 = arith.truncf %337 : vector<128x128xf32> to vector<128x128xbf16>
      %339 = arith.index_cast %arg15 : i32 to index
      %c0_177 = arith.constant 0 : index
      %c1_178 = arith.constant 1 : index
      %c0_179 = arith.constant 0 : index
      %340 = vector.load %arg13[%339, %c0_177, %c1_178, %c0_179] : memref<8x19x19x128xf32, #tpu.memory_space<vmem>>, vector<1x8x16x128xf32>
      %341 = vector.shape_cast %340 : vector<1x8x16x128xf32> to vector<8x16x128xf32>
      %342 = vector.shape_cast %341 : vector<8x16x128xf32> to vector<128x128xf32>
      %343 = arith.truncf %342 : vector<128x128xf32> to vector<128x128xbf16>
      %344 = arith.index_cast %arg15 : i32 to index
      %c0_180 = arith.constant 0 : index
      %c2_181 = arith.constant 2 : index
      %c0_182 = arith.constant 0 : index
      %345 = vector.load %arg13[%344, %c0_180, %c2_181, %c0_182] : memref<8x19x19x128xf32, #tpu.memory_space<vmem>>, vector<1x8x16x128xf32>
      %346 = vector.shape_cast %345 : vector<1x8x16x128xf32> to vector<8x16x128xf32>
      %347 = vector.shape_cast %346 : vector<8x16x128xf32> to vector<128x128xf32>
      %348 = arith.truncf %347 : vector<128x128xf32> to vector<128x128xbf16>
      %349 = arith.index_cast %arg15 : i32 to index
      %c0_183 = arith.constant 0 : index
      %c3_184 = arith.constant 3 : index
      %c0_185 = arith.constant 0 : index
      %350 = vector.load %arg13[%349, %c0_183, %c3_184, %c0_185] : memref<8x19x19x128xf32, #tpu.memory_space<vmem>>, vector<1x8x16x128xf32>
      %351 = vector.shape_cast %350 : vector<1x8x16x128xf32> to vector<8x16x128xf32>
      %352 = vector.shape_cast %351 : vector<8x16x128xf32> to vector<128x128xf32>
      %353 = arith.truncf %352 : vector<128x128xf32> to vector<128x128xbf16>
      %354 = tpu.concatenate %338, %343, %348, %353 in 1 : vector<128x128xbf16>, vector<128x128xbf16>, vector<128x128xbf16>, vector<128x128xbf16> -> vector<128x512xbf16>
      %c0_186 = arith.constant 0 : index
      %c0_187 = arith.constant 0 : index
      %c0_188 = arith.constant 0 : index
      %355 = vector.load %arg4[%c0_186, %c0_187, %c0_188] : memref<4x512x128xbf16, #tpu.memory_space<vmem>>, vector<1x512x128xbf16>
      %356 = vector.shape_cast %355 : vector<1x512x128xbf16> to vector<512x128xbf16>
      %cst_189 = arith.constant dense<0.000000e+00> : vector<128x128xf32>
      %357 = tpu.matmul %354, %356, %cst_189 {dimension_numbers = #tpu.dot_dimension_numbers<[1], [0], [0], [1], [0, 0, 1, 1], [], []>} : vector<128x512xbf16>, vector<512x128xbf16>, vector<128x128xf32> -> vector<128x128xf32>
      %358 = arith.addf %333, %357 : vector<128x128xf32>
      %359 = arith.index_cast %arg15 : i32 to index
      %c1_190 = arith.constant 1 : index
      %c0_191 = arith.constant 0 : index
      %c0_192 = arith.constant 0 : index
      %360 = vector.load %arg13[%359, %c1_190, %c0_191, %c0_192] : memref<8x19x19x128xf32, #tpu.memory_space<vmem>>, vector<1x8x16x128xf32>
      %361 = vector.shape_cast %360 : vector<1x8x16x128xf32> to vector<8x16x128xf32>
      %362 = vector.shape_cast %361 : vector<8x16x128xf32> to vector<128x128xf32>
      %363 = arith.truncf %362 : vector<128x128xf32> to vector<128x128xbf16>
      %364 = arith.index_cast %arg15 : i32 to index
      %c1_193 = arith.constant 1 : index
      %c1_194 = arith.constant 1 : index
      %c0_195 = arith.constant 0 : index
      %365 = vector.load %arg13[%364, %c1_193, %c1_194, %c0_195] : memref<8x19x19x128xf32, #tpu.memory_space<vmem>>, vector<1x8x16x128xf32>
      %366 = vector.shape_cast %365 : vector<1x8x16x128xf32> to vector<8x16x128xf32>
      %367 = vector.shape_cast %366 : vector<8x16x128xf32> to vector<128x128xf32>
      %368 = arith.truncf %367 : vector<128x128xf32> to vector<128x128xbf16>
      %369 = arith.index_cast %arg15 : i32 to index
      %c1_196 = arith.constant 1 : index
      %c2_197 = arith.constant 2 : index
      %c0_198 = arith.constant 0 : index
      %370 = vector.load %arg13[%369, %c1_196, %c2_197, %c0_198] : memref<8x19x19x128xf32, #tpu.memory_space<vmem>>, vector<1x8x16x128xf32>
      %371 = vector.shape_cast %370 : vector<1x8x16x128xf32> to vector<8x16x128xf32>
      %372 = vector.shape_cast %371 : vector<8x16x128xf32> to vector<128x128xf32>
      %373 = arith.truncf %372 : vector<128x128xf32> to vector<128x128xbf16>
      %374 = arith.index_cast %arg15 : i32 to index
      %c1_199 = arith.constant 1 : index
      %c3_200 = arith.constant 3 : index
      %c0_201 = arith.constant 0 : index
      %375 = vector.load %arg13[%374, %c1_199, %c3_200, %c0_201] : memref<8x19x19x128xf32, #tpu.memory_space<vmem>>, vector<1x8x16x128xf32>
      %376 = vector.shape_cast %375 : vector<1x8x16x128xf32> to vector<8x16x128xf32>
      %377 = vector.shape_cast %376 : vector<8x16x128xf32> to vector<128x128xf32>
      %378 = arith.truncf %377 : vector<128x128xf32> to vector<128x128xbf16>
      %379 = tpu.concatenate %363, %368, %373, %378 in 1 : vector<128x128xbf16>, vector<128x128xbf16>, vector<128x128xbf16>, vector<128x128xbf16> -> vector<128x512xbf16>
      %c1_202 = arith.constant 1 : index
      %c0_203 = arith.constant 0 : index
      %c0_204 = arith.constant 0 : index
      %380 = vector.load %arg4[%c1_202, %c0_203, %c0_204] : memref<4x512x128xbf16, #tpu.memory_space<vmem>>, vector<1x512x128xbf16>
      %381 = vector.shape_cast %380 : vector<1x512x128xbf16> to vector<512x128xbf16>
      %cst_205 = arith.constant dense<0.000000e+00> : vector<128x128xf32>
      %382 = tpu.matmul %379, %381, %cst_205 {dimension_numbers = #tpu.dot_dimension_numbers<[1], [0], [0], [1], [0, 0, 1, 1], [], []>} : vector<128x512xbf16>, vector<512x128xbf16>, vector<128x128xf32> -> vector<128x128xf32>
      %383 = arith.addf %358, %382 : vector<128x128xf32>
      %384 = arith.index_cast %arg15 : i32 to index
      %c2_206 = arith.constant 2 : index
      %c0_207 = arith.constant 0 : index
      %c0_208 = arith.constant 0 : index
      %385 = vector.load %arg13[%384, %c2_206, %c0_207, %c0_208] : memref<8x19x19x128xf32, #tpu.memory_space<vmem>>, vector<1x8x16x128xf32>
      %386 = vector.shape_cast %385 : vector<1x8x16x128xf32> to vector<8x16x128xf32>
      %387 = vector.shape_cast %386 : vector<8x16x128xf32> to vector<128x128xf32>
      %388 = arith.truncf %387 : vector<128x128xf32> to vector<128x128xbf16>
      %389 = arith.index_cast %arg15 : i32 to index
      %c2_209 = arith.constant 2 : index
      %c1_210 = arith.constant 1 : index
      %c0_211 = arith.constant 0 : index
      %390 = vector.load %arg13[%389, %c2_209, %c1_210, %c0_211] : memref<8x19x19x128xf32, #tpu.memory_space<vmem>>, vector<1x8x16x128xf32>
      %391 = vector.shape_cast %390 : vector<1x8x16x128xf32> to vector<8x16x128xf32>
      %392 = vector.shape_cast %391 : vector<8x16x128xf32> to vector<128x128xf32>
      %393 = arith.truncf %392 : vector<128x128xf32> to vector<128x128xbf16>
      %394 = arith.index_cast %arg15 : i32 to index
      %c2_212 = arith.constant 2 : index
      %c2_213 = arith.constant 2 : index
      %c0_214 = arith.constant 0 : index
      %395 = vector.load %arg13[%394, %c2_212, %c2_213, %c0_214] : memref<8x19x19x128xf32, #tpu.memory_space<vmem>>, vector<1x8x16x128xf32>
      %396 = vector.shape_cast %395 : vector<1x8x16x128xf32> to vector<8x16x128xf32>
      %397 = vector.shape_cast %396 : vector<8x16x128xf32> to vector<128x128xf32>
      %398 = arith.truncf %397 : vector<128x128xf32> to vector<128x128xbf16>
      %399 = arith.index_cast %arg15 : i32 to index
      %c2_215 = arith.constant 2 : index
      %c3_216 = arith.constant 3 : index
      %c0_217 = arith.constant 0 : index
      %400 = vector.load %arg13[%399, %c2_215, %c3_216, %c0_217] : memref<8x19x19x128xf32, #tpu.memory_space<vmem>>, vector<1x8x16x128xf32>
      %401 = vector.shape_cast %400 : vector<1x8x16x128xf32> to vector<8x16x128xf32>
      %402 = vector.shape_cast %401 : vector<8x16x128xf32> to vector<128x128xf32>
      %403 = arith.truncf %402 : vector<128x128xf32> to vector<128x128xbf16>
      %404 = tpu.concatenate %388, %393, %398, %403 in 1 : vector<128x128xbf16>, vector<128x128xbf16>, vector<128x128xbf16>, vector<128x128xbf16> -> vector<128x512xbf16>
      %c2_218 = arith.constant 2 : index
      %c0_219 = arith.constant 0 : index
      %c0_220 = arith.constant 0 : index
      %405 = vector.load %arg4[%c2_218, %c0_219, %c0_220] : memref<4x512x128xbf16, #tpu.memory_space<vmem>>, vector<1x512x128xbf16>
      %406 = vector.shape_cast %405 : vector<1x512x128xbf16> to vector<512x128xbf16>
      %cst_221 = arith.constant dense<0.000000e+00> : vector<128x128xf32>
      %407 = tpu.matmul %404, %406, %cst_221 {dimension_numbers = #tpu.dot_dimension_numbers<[1], [0], [0], [1], [0, 0, 1, 1], [], []>} : vector<128x512xbf16>, vector<512x128xbf16>, vector<128x128xf32> -> vector<128x128xf32>
      %408 = arith.addf %383, %407 : vector<128x128xf32>
      %409 = arith.index_cast %arg15 : i32 to index
      %c3_222 = arith.constant 3 : index
      %c0_223 = arith.constant 0 : index
      %c0_224 = arith.constant 0 : index
      %410 = vector.load %arg13[%409, %c3_222, %c0_223, %c0_224] : memref<8x19x19x128xf32, #tpu.memory_space<vmem>>, vector<1x8x16x128xf32>
      %411 = vector.shape_cast %410 : vector<1x8x16x128xf32> to vector<8x16x128xf32>
      %412 = vector.shape_cast %411 : vector<8x16x128xf32> to vector<128x128xf32>
      %413 = arith.truncf %412 : vector<128x128xf32> to vector<128x128xbf16>
      %414 = arith.index_cast %arg15 : i32 to index
      %c3_225 = arith.constant 3 : index
      %c1_226 = arith.constant 1 : index
      %c0_227 = arith.constant 0 : index
      %415 = vector.load %arg13[%414, %c3_225, %c1_226, %c0_227] : memref<8x19x19x128xf32, #tpu.memory_space<vmem>>, vector<1x8x16x128xf32>
      %416 = vector.shape_cast %415 : vector<1x8x16x128xf32> to vector<8x16x128xf32>
      %417 = vector.shape_cast %416 : vector<8x16x128xf32> to vector<128x128xf32>
      %418 = arith.truncf %417 : vector<128x128xf32> to vector<128x128xbf16>
      %419 = arith.index_cast %arg15 : i32 to index
      %c3_228 = arith.constant 3 : index
      %c2_229 = arith.constant 2 : index
      %c0_230 = arith.constant 0 : index
      %420 = vector.load %arg13[%419, %c3_228, %c2_229, %c0_230] : memref<8x19x19x128xf32, #tpu.memory_space<vmem>>, vector<1x8x16x128xf32>
      %421 = vector.shape_cast %420 : vector<1x8x16x128xf32> to vector<8x16x128xf32>
      %422 = vector.shape_cast %421 : vector<8x16x128xf32> to vector<128x128xf32>
      %423 = arith.truncf %422 : vector<128x128xf32> to vector<128x128xbf16>
      %424 = arith.index_cast %arg15 : i32 to index
      %c3_231 = arith.constant 3 : index
      %c3_232 = arith.constant 3 : index
      %c0_233 = arith.constant 0 : index
      %425 = vector.load %arg13[%424, %c3_231, %c3_232, %c0_233] : memref<8x19x19x128xf32, #tpu.memory_space<vmem>>, vector<1x8x16x128xf32>
      %426 = vector.shape_cast %425 : vector<1x8x16x128xf32> to vector<8x16x128xf32>
      %427 = vector.shape_cast %426 : vector<8x16x128xf32> to vector<128x128xf32>
      %428 = arith.truncf %427 : vector<128x128xf32> to vector<128x128xbf16>
      %429 = tpu.concatenate %413, %418, %423, %428 in 1 : vector<128x128xbf16>, vector<128x128xbf16>, vector<128x128xbf16>, vector<128x128xbf16> -> vector<128x512xbf16>
      %c3_234 = arith.constant 3 : index
      %c0_235 = arith.constant 0 : index
      %c0_236 = arith.constant 0 : index
      %430 = vector.load %arg4[%c3_234, %c0_235, %c0_236] : memref<4x512x128xbf16, #tpu.memory_space<vmem>>, vector<1x512x128xbf16>
      %431 = vector.shape_cast %430 : vector<1x512x128xbf16> to vector<512x128xbf16>
      %cst_237 = arith.constant dense<0.000000e+00> : vector<128x128xf32>
      %432 = tpu.matmul %429, %431, %cst_237 {dimension_numbers = #tpu.dot_dimension_numbers<[1], [0], [0], [1], [0, 0, 1, 1], [], []>} : vector<128x512xbf16>, vector<512x128xbf16>, vector<128x128xf32> -> vector<128x128xf32>
      %433 = arith.addf %408, %432 : vector<128x128xf32>
      %c0_238 = arith.constant 0 : index
      %c0_239 = arith.constant 0 : index
      %434 = vector.load %arg5[%c0_238, %c0_239] : memref<1x128xf32, #tpu.memory_space<vmem>>, vector<1x128xf32>
      %435 = vector.shape_cast %434 : vector<1x128xf32> to vector<128xf32>
      %436 = vector.shape_cast %435 : vector<128xf32> to vector<1x128xf32>
      %437 = vector.broadcast %436 : vector<1x128xf32> to vector<128x128xf32>
      %438 = arith.addf %433, %437 : vector<128x128xf32>
      %cst_240 = arith.constant 0.000000e+00 : f32
      %439 = vector.broadcast %cst_240 : f32 to vector<128x128xf32>
      %440 = arith.maximumf %438, %439 : vector<128x128xf32>
      %441 = vector.shape_cast %440 : vector<128x128xf32> to vector<8x16x128xf32>
      %442 = arith.index_cast %arg15 : i32 to index
      %c0_241 = arith.constant 0 : index
      %c0_242 = arith.constant 0 : index
      %c0_243 = arith.constant 0 : index
      %443 = vector.load %arg14[%442, %c0_241, %c0_242, %c0_243] : memref<8x16x16x128xf32, #tpu.memory_space<vmem>>, vector<1x8x16x128xf32>
      %444 = vector.shape_cast %443 : vector<1x8x16x128xf32> to vector<8x16x128xf32>
      %445 = vector.shape_cast %441 : vector<8x16x128xf32> to vector<1x8x16x128xf32>
      tpu.vector_store %arg14[%442, %c0_241, %c0_242, %c0_243], %445 {strides = array<i32>} : memref<8x16x16x128xf32, #tpu.memory_space<vmem>>, vector<1x8x16x128xf32>,
      %cst_244 = arith.constant 0.000000e+00 : f32
      %446 = vector.broadcast %cst_244 : f32 to vector<128x128xf32>
      %447 = arith.index_cast %arg15 : i32 to index
      %c8_245 = arith.constant 8 : index
      %c0_246 = arith.constant 0 : index
      %c0_247 = arith.constant 0 : index
      %448 = vector.load %arg13[%447, %c8_245, %c0_246, %c0_247] : memref<8x19x19x128xf32, #tpu.memory_space<vmem>>, vector<1x8x16x128xf32>
      %449 = vector.shape_cast %448 : vector<1x8x16x128xf32> to vector<8x16x128xf32>
      %450 = vector.shape_cast %449 : vector<8x16x128xf32> to vector<128x128xf32>
      %451 = arith.truncf %450 : vector<128x128xf32> to vector<128x128xbf16>
      %452 = arith.index_cast %arg15 : i32 to index
      %c8_248 = arith.constant 8 : index
      %c1_249 = arith.constant 1 : index
      %c0_250 = arith.constant 0 : index
      %453 = vector.load %arg13[%452, %c8_248, %c1_249, %c0_250] : memref<8x19x19x128xf32, #tpu.memory_space<vmem>>, vector<1x8x16x128xf32>
      %454 = vector.shape_cast %453 : vector<1x8x16x128xf32> to vector<8x16x128xf32>
      %455 = vector.shape_cast %454 : vector<8x16x128xf32> to vector<128x128xf32>
      %456 = arith.truncf %455 : vector<128x128xf32> to vector<128x128xbf16>
      %457 = arith.index_cast %arg15 : i32 to index
      %c8_251 = arith.constant 8 : index
      %c2_252 = arith.constant 2 : index
      %c0_253 = arith.constant 0 : index
      %458 = vector.load %arg13[%457, %c8_251, %c2_252, %c0_253] : memref<8x19x19x128xf32, #tpu.memory_space<vmem>>, vector<1x8x16x128xf32>
      %459 = vector.shape_cast %458 : vector<1x8x16x128xf32> to vector<8x16x128xf32>
      %460 = vector.shape_cast %459 : vector<8x16x128xf32> to vector<128x128xf32>
      %461 = arith.truncf %460 : vector<128x128xf32> to vector<128x128xbf16>
      %462 = arith.index_cast %arg15 : i32 to index
      %c8_254 = arith.constant 8 : index
      %c3_255 = arith.constant 3 : index
      %c0_256 = arith.constant 0 : index
      %463 = vector.load %arg13[%462, %c8_254, %c3_255, %c0_256] : memref<8x19x19x128xf32, #tpu.memory_space<vmem>>, vector<1x8x16x128xf32>
      %464 = vector.shape_cast %463 : vector<1x8x16x128xf32> to vector<8x16x128xf32>
      %465 = vector.shape_cast %464 : vector<8x16x128xf32> to vector<128x128xf32>
      %466 = arith.truncf %465 : vector<128x128xf32> to vector<128x128xbf16>
      %467 = tpu.concatenate %451, %456, %461, %466 in 1 : vector<128x128xbf16>, vector<128x128xbf16>, vector<128x128xbf16>, vector<128x128xbf16> -> vector<128x512xbf16>
      %c0_257 = arith.constant 0 : index
      %c0_258 = arith.constant 0 : index
      %c0_259 = arith.constant 0 : index
      %468 = vector.load %arg4[%c0_257, %c0_258, %c0_259] : memref<4x512x128xbf16, #tpu.memory_space<vmem>>, vector<1x512x128xbf16>
      %469 = vector.shape_cast %468 : vector<1x512x128xbf16> to vector<512x128xbf16>
      %cst_260 = arith.constant dense<0.000000e+00> : vector<128x128xf32>
      %470 = tpu.matmul %467, %469, %cst_260 {dimension_numbers = #tpu.dot_dimension_numbers<[1], [0], [0], [1], [0, 0, 1, 1], [], []>} : vector<128x512xbf16>, vector<512x128xbf16>, vector<128x128xf32> -> vector<128x128xf32>
      %471 = arith.addf %446, %470 : vector<128x128xf32>
      %472 = arith.index_cast %arg15 : i32 to index
      %c9_261 = arith.constant 9 : index
      %c0_262 = arith.constant 0 : index
      %c0_263 = arith.constant 0 : index
      %473 = vector.load %arg13[%472, %c9_261, %c0_262, %c0_263] : memref<8x19x19x128xf32, #tpu.memory_space<vmem>>, vector<1x8x16x128xf32>
      %474 = vector.shape_cast %473 : vector<1x8x16x128xf32> to vector<8x16x128xf32>
      %475 = vector.shape_cast %474 : vector<8x16x128xf32> to vector<128x128xf32>
      %476 = arith.truncf %475 : vector<128x128xf32> to vector<128x128xbf16>
      %477 = arith.index_cast %arg15 : i32 to index
      %c9_264 = arith.constant 9 : index
      %c1_265 = arith.constant 1 : index
      %c0_266 = arith.constant 0 : index
      %478 = vector.load %arg13[%477, %c9_264, %c1_265, %c0_266] : memref<8x19x19x128xf32, #tpu.memory_space<vmem>>, vector<1x8x16x128xf32>
      %479 = vector.shape_cast %478 : vector<1x8x16x128xf32> to vector<8x16x128xf32>
      %480 = vector.shape_cast %479 : vector<8x16x128xf32> to vector<128x128xf32>
      %481 = arith.truncf %480 : vector<128x128xf32> to vector<128x128xbf16>
      %482 = arith.index_cast %arg15 : i32 to index
      %c9_267 = arith.constant 9 : index
      %c2_268 = arith.constant 2 : index
      %c0_269 = arith.constant 0 : index
      %483 = vector.load %arg13[%482, %c9_267, %c2_268, %c0_269] : memref<8x19x19x128xf32, #tpu.memory_space<vmem>>, vector<1x8x16x128xf32>
      %484 = vector.shape_cast %483 : vector<1x8x16x128xf32> to vector<8x16x128xf32>
      %485 = vector.shape_cast %484 : vector<8x16x128xf32> to vector<128x128xf32>
      %486 = arith.truncf %485 : vector<128x128xf32> to vector<128x128xbf16>
      %487 = arith.index_cast %arg15 : i32 to index
      %c9_270 = arith.constant 9 : index
      %c3_271 = arith.constant 3 : index
      %c0_272 = arith.constant 0 : index
      %488 = vector.load %arg13[%487, %c9_270, %c3_271, %c0_272] : memref<8x19x19x128xf32, #tpu.memory_space<vmem>>, vector<1x8x16x128xf32>
      %489 = vector.shape_cast %488 : vector<1x8x16x128xf32> to vector<8x16x128xf32>
      %490 = vector.shape_cast %489 : vector<8x16x128xf32> to vector<128x128xf32>
      %491 = arith.truncf %490 : vector<128x128xf32> to vector<128x128xbf16>
      %492 = tpu.concatenate %476, %481, %486, %491 in 1 : vector<128x128xbf16>, vector<128x128xbf16>, vector<128x128xbf16>, vector<128x128xbf16> -> vector<128x512xbf16>
      %c1_273 = arith.constant 1 : index
      %c0_274 = arith.constant 0 : index
      %c0_275 = arith.constant 0 : index
      %493 = vector.load %arg4[%c1_273, %c0_274, %c0_275] : memref<4x512x128xbf16, #tpu.memory_space<vmem>>, vector<1x512x128xbf16>
      %494 = vector.shape_cast %493 : vector<1x512x128xbf16> to vector<512x128xbf16>
      %cst_276 = arith.constant dense<0.000000e+00> : vector<128x128xf32>
      %495 = tpu.matmul %492, %494, %cst_276 {dimension_numbers = #tpu.dot_dimension_numbers<[1], [0], [0], [1], [0, 0, 1, 1], [], []>} : vector<128x512xbf16>, vector<512x128xbf16>, vector<128x128xf32> -> vector<128x128xf32>
      %496 = arith.addf %471, %495 : vector<128x128xf32>
      %497 = arith.index_cast %arg15 : i32 to index
      %c10_277 = arith.constant 10 : index
      %c0_278 = arith.constant 0 : index
      %c0_279 = arith.constant 0 : index
      %498 = vector.load %arg13[%497, %c10_277, %c0_278, %c0_279] : memref<8x19x19x128xf32, #tpu.memory_space<vmem>>, vector<1x8x16x128xf32>
      %499 = vector.shape_cast %498 : vector<1x8x16x128xf32> to vector<8x16x128xf32>
      %500 = vector.shape_cast %499 : vector<8x16x128xf32> to vector<128x128xf32>
      %501 = arith.truncf %500 : vector<128x128xf32> to vector<128x128xbf16>
      %502 = arith.index_cast %arg15 : i32 to index
      %c10_280 = arith.constant 10 : index
      %c1_281 = arith.constant 1 : index
      %c0_282 = arith.constant 0 : index
      %503 = vector.load %arg13[%502, %c10_280, %c1_281, %c0_282] : memref<8x19x19x128xf32, #tpu.memory_space<vmem>>, vector<1x8x16x128xf32>
      %504 = vector.shape_cast %503 : vector<1x8x16x128xf32> to vector<8x16x128xf32>
      %505 = vector.shape_cast %504 : vector<8x16x128xf32> to vector<128x128xf32>
      %506 = arith.truncf %505 : vector<128x128xf32> to vector<128x128xbf16>
      %507 = arith.index_cast %arg15 : i32 to index
      %c10_283 = arith.constant 10 : index
      %c2_284 = arith.constant 2 : index
      %c0_285 = arith.constant 0 : index
      %508 = vector.load %arg13[%507, %c10_283, %c2_284, %c0_285] : memref<8x19x19x128xf32, #tpu.memory_space<vmem>>, vector<1x8x16x128xf32>
      %509 = vector.shape_cast %508 : vector<1x8x16x128xf32> to vector<8x16x128xf32>
      %510 = vector.shape_cast %509 : vector<8x16x128xf32> to vector<128x128xf32>
      %511 = arith.truncf %510 : vector<128x128xf32> to vector<128x128xbf16>
      %512 = arith.index_cast %arg15 : i32 to index
      %c10_286 = arith.constant 10 : index
      %c3_287 = arith.constant 3 : index
      %c0_288 = arith.constant 0 : index
      %513 = vector.load %arg13[%512, %c10_286, %c3_287, %c0_288] : memref<8x19x19x128xf32, #tpu.memory_space<vmem>>, vector<1x8x16x128xf32>
      %514 = vector.shape_cast %513 : vector<1x8x16x128xf32> to vector<8x16x128xf32>
      %515 = vector.shape_cast %514 : vector<8x16x128xf32> to vector<128x128xf32>
      %516 = arith.truncf %515 : vector<128x128xf32> to vector<128x128xbf16>
      %517 = tpu.concatenate %501, %506, %511, %516 in 1 : vector<128x128xbf16>, vector<128x128xbf16>, vector<128x128xbf16>, vector<128x128xbf16> -> vector<128x512xbf16>
      %c2_289 = arith.constant 2 : index
      %c0_290 = arith.constant 0 : index
      %c0_291 = arith.constant 0 : index
      %518 = vector.load %arg4[%c2_289, %c0_290, %c0_291] : memref<4x512x128xbf16, #tpu.memory_space<vmem>>, vector<1x512x128xbf16>
      %519 = vector.shape_cast %518 : vector<1x512x128xbf16> to vector<512x128xbf16>
      %cst_292 = arith.constant dense<0.000000e+00> : vector<128x128xf32>
      %520 = tpu.matmul %517, %519, %cst_292 {dimension_numbers = #tpu.dot_dimension_numbers<[1], [0], [0], [1], [0, 0, 1, 1], [], []>} : vector<128x512xbf16>, vector<512x128xbf16>, vector<128x128xf32> -> vector<128x128xf32>
      %521 = arith.addf %496, %520 : vector<128x128xf32>
      %522 = arith.index_cast %arg15 : i32 to index
      %c11_293 = arith.constant 11 : index
      %c0_294 = arith.constant 0 : index
      %c0_295 = arith.constant 0 : index
      %523 = vector.load %arg13[%522, %c11_293, %c0_294, %c0_295] : memref<8x19x19x128xf32, #tpu.memory_space<vmem>>, vector<1x8x16x128xf32>
      %524 = vector.shape_cast %523 : vector<1x8x16x128xf32> to vector<8x16x128xf32>
      %525 = vector.shape_cast %524 : vector<8x16x128xf32> to vector<128x128xf32>
      %526 = arith.truncf %525 : vector<128x128xf32> to vector<128x128xbf16>
      %527 = arith.index_cast %arg15 : i32 to index
      %c11_296 = arith.constant 11 : index
      %c1_297 = arith.constant 1 : index
      %c0_298 = arith.constant 0 : index
      %528 = vector.load %arg13[%527, %c11_296, %c1_297, %c0_298] : memref<8x19x19x128xf32, #tpu.memory_space<vmem>>, vector<1x8x16x128xf32>
      %529 = vector.shape_cast %528 : vector<1x8x16x128xf32> to vector<8x16x128xf32>
      %530 = vector.shape_cast %529 : vector<8x16x128xf32> to vector<128x128xf32>
      %531 = arith.truncf %530 : vector<128x128xf32> to vector<128x128xbf16>
      %532 = arith.index_cast %arg15 : i32 to index
      %c11_299 = arith.constant 11 : index
      %c2_300 = arith.constant 2 : index
      %c0_301 = arith.constant 0 : index
      %533 = vector.load %arg13[%532, %c11_299, %c2_300, %c0_301] : memref<8x19x19x128xf32, #tpu.memory_space<vmem>>, vector<1x8x16x128xf32>
      %534 = vector.shape_cast %533 : vector<1x8x16x128xf32> to vector<8x16x128xf32>
      %535 = vector.shape_cast %534 : vector<8x16x128xf32> to vector<128x128xf32>
      %536 = arith.truncf %535 : vector<128x128xf32> to vector<128x128xbf16>
      %537 = arith.index_cast %arg15 : i32 to index
      %c11_302 = arith.constant 11 : index
      %c3_303 = arith.constant 3 : index
      %c0_304 = arith.constant 0 : index
      %538 = vector.load %arg13[%537, %c11_302, %c3_303, %c0_304] : memref<8x19x19x128xf32, #tpu.memory_space<vmem>>, vector<1x8x16x128xf32>
      %539 = vector.shape_cast %538 : vector<1x8x16x128xf32> to vector<8x16x128xf32>
      %540 = vector.shape_cast %539 : vector<8x16x128xf32> to vector<128x128xf32>
      %541 = arith.truncf %540 : vector<128x128xf32> to vector<128x128xbf16>
      %542 = tpu.concatenate %526, %531, %536, %541 in 1 : vector<128x128xbf16>, vector<128x128xbf16>, vector<128x128xbf16>, vector<128x128xbf16> -> vector<128x512xbf16>
      %c3_305 = arith.constant 3 : index
      %c0_306 = arith.constant 0 : index
      %c0_307 = arith.constant 0 : index
      %543 = vector.load %arg4[%c3_305, %c0_306, %c0_307] : memref<4x512x128xbf16, #tpu.memory_space<vmem>>, vector<1x512x128xbf16>
      %544 = vector.shape_cast %543 : vector<1x512x128xbf16> to vector<512x128xbf16>
      %cst_308 = arith.constant dense<0.000000e+00> : vector<128x128xf32>
      %545 = tpu.matmul %542, %544, %cst_308 {dimension_numbers = #tpu.dot_dimension_numbers<[1], [0], [0], [1], [0, 0, 1, 1], [], []>} : vector<128x512xbf16>, vector<512x128xbf16>, vector<128x128xf32> -> vector<128x128xf32>
      %546 = arith.addf %521, %545 : vector<128x128xf32>
      %c0_309 = arith.constant 0 : index
      %c0_310 = arith.constant 0 : index
      %547 = vector.load %arg5[%c0_309, %c0_310] : memref<1x128xf32, #tpu.memory_space<vmem>>, vector<1x128xf32>
      %548 = vector.shape_cast %547 : vector<1x128xf32> to vector<128xf32>
      %549 = vector.shape_cast %548 : vector<128xf32> to vector<1x128xf32>
      %550 = vector.broadcast %549 : vector<1x128xf32> to vector<128x128xf32>
      %551 = arith.addf %546, %550 : vector<128x128xf32>
      %cst_311 = arith.constant 0.000000e+00 : f32
      %552 = vector.broadcast %cst_311 : f32 to vector<128x128xf32>
      %553 = arith.maximumf %551, %552 : vector<128x128xf32>
      %554 = vector.shape_cast %553 : vector<128x128xf32> to vector<8x16x128xf32>
      %555 = arith.index_cast %arg15 : i32 to index
      %c8_312 = arith.constant 8 : index
      %c0_313 = arith.constant 0 : index
      %c0_314 = arith.constant 0 : index
      %556 = vector.load %arg14[%555, %c8_312, %c0_313, %c0_314] : memref<8x16x16x128xf32, #tpu.memory_space<vmem>>, vector<1x8x16x128xf32>
      %557 = vector.shape_cast %556 : vector<1x8x16x128xf32> to vector<8x16x128xf32>
      %558 = vector.shape_cast %554 : vector<8x16x128xf32> to vector<1x8x16x128xf32>
      tpu.vector_store %arg14[%555, %c8_312, %c0_313, %c0_314], %558 {strides = array<i32>} : memref<8x16x16x128xf32, #tpu.memory_space<vmem>>, vector<1x8x16x128xf32>,
    }
    %c8_i32_16 = arith.constant 8 : i32
    %c0_17 = arith.constant 0 : index
    %c0_18 = arith.constant 0 : index
    %c0_19 = arith.constant 0 : index
    %c0_20 = arith.constant 0 : index
    %9 = vector.load %arg14[%c0_17, %c0_18, %c0_19, %c0_20] : memref<8x16x16x128xf32, #tpu.memory_space<vmem>>, vector<8x1x7x128xf32>
    %10 = vector.shape_cast %9 : vector<8x1x7x128xf32> to vector<8x7x128xf32>
    %c0_21 = arith.constant 0 : index
    %c1_22 = arith.constant 1 : index
    %c0_23 = arith.constant 0 : index
    %c0_24 = arith.constant 0 : index
    %11 = vector.load %arg14[%c0_21, %c1_22, %c0_23, %c0_24] : memref<8x16x16x128xf32, #tpu.memory_space<vmem>>, vector<8x1x7x128xf32>
    %12 = vector.shape_cast %11 : vector<8x1x7x128xf32> to vector<8x7x128xf32>
    %13 = arith.maximumf %10, %12 : vector<8x7x128xf32>
    %14 = vector.extract_strided_slice %13 {offsets = [0, 0, 0], sizes = [8, 6, 128], strides = [1, 1, 1]} : vector<8x7x128xf32> to vector<8x6x128xf32>
    %15 = vector.extract_strided_slice %13 {offsets = [0, 1, 0], sizes = [8, 6, 128], strides = [1, 1, 1]} : vector<8x7x128xf32> to vector<8x6x128xf32>
    %16 = arith.maximumf %14, %15 : vector<8x6x128xf32>
    %17 = vector.extract_strided_slice %16 {offsets = [0, 0, 0], sizes = [8, 1, 128], strides = [1, 1, 1]} : vector<8x6x128xf32> to vector<8x1x128xf32>
    %18 = vector.shape_cast %17 : vector<8x1x128xf32> to vector<8x128xf32>
    %19 = vector.extract_strided_slice %16 {offsets = [0, 2, 0], sizes = [8, 1, 128], strides = [1, 1, 1]} : vector<8x6x128xf32> to vector<8x1x128xf32>
    %20 = vector.shape_cast %19 : vector<8x1x128xf32> to vector<8x128xf32>
    %21 = arith.addf %18, %20 : vector<8x128xf32>
    %22 = vector.extract_strided_slice %16 {offsets = [0, 4, 0], sizes = [8, 1, 128], strides = [1, 1, 1]} : vector<8x6x128xf32> to vector<8x1x128xf32>
    %23 = vector.shape_cast %22 : vector<8x1x128xf32> to vector<8x128xf32>
    %24 = arith.addf %21, %23 : vector<8x128xf32>
    %c0_25 = arith.constant 0 : index
    %c2 = arith.constant 2 : index
    %c0_26 = arith.constant 0 : index
    %c0_27 = arith.constant 0 : index
    %25 = vector.load %arg14[%c0_25, %c2, %c0_26, %c0_27] : memref<8x16x16x128xf32, #tpu.memory_space<vmem>>, vector<8x1x7x128xf32>
    %26 = vector.shape_cast %25 : vector<8x1x7x128xf32> to vector<8x7x128xf32>
    %c0_28 = arith.constant 0 : index
    %c3 = arith.constant 3 : index
    %c0_29 = arith.constant 0 : index
    %c0_30 = arith.constant 0 : index
    %27 = vector.load %arg14[%c0_28, %c3, %c0_29, %c0_30] : memref<8x16x16x128xf32, #tpu.memory_space<vmem>>, vector<8x1x7x128xf32>
    %28 = vector.shape_cast %27 : vector<8x1x7x128xf32> to vector<8x7x128xf32>
    %29 = arith.maximumf %26, %28 : vector<8x7x128xf32>
    %30 = vector.extract_strided_slice %29 {offsets = [0, 0, 0], sizes = [8, 6, 128], strides = [1, 1, 1]} : vector<8x7x128xf32> to vector<8x6x128xf32>
    %31 = vector.extract_strided_slice %29 {offsets = [0, 1, 0], sizes = [8, 6, 128], strides = [1, 1, 1]} : vector<8x7x128xf32> to vector<8x6x128xf32>
    %32 = arith.maximumf %30, %31 : vector<8x6x128xf32>
    %33 = vector.extract_strided_slice %32 {offsets = [0, 0, 0], sizes = [8, 1, 128], strides = [1, 1, 1]} : vector<8x6x128xf32> to vector<8x1x128xf32>
    %34 = vector.shape_cast %33 : vector<8x1x128xf32> to vector<8x128xf32>
    %35 = vector.extract_strided_slice %32 {offsets = [0, 2, 0], sizes = [8, 1, 128], strides = [1, 1, 1]} : vector<8x6x128xf32> to vector<8x1x128xf32>
    %36 = vector.shape_cast %35 : vector<8x1x128xf32> to vector<8x128xf32>
    %37 = arith.addf %34, %36 : vector<8x128xf32>
    %38 = vector.extract_strided_slice %32 {offsets = [0, 4, 0], sizes = [8, 1, 128], strides = [1, 1, 1]} : vector<8x6x128xf32> to vector<8x1x128xf32>
    %39 = vector.shape_cast %38 : vector<8x1x128xf32> to vector<8x128xf32>
    %40 = arith.addf %37, %39 : vector<8x128xf32>
    %41 = arith.addf %24, %40 : vector<8x128xf32>
    %c0_31 = arith.constant 0 : index
    %c4 = arith.constant 4 : index
    %c0_32 = arith.constant 0 : index
    %c0_33 = arith.constant 0 : index
    %42 = vector.load %arg14[%c0_31, %c4, %c0_32, %c0_33] : memref<8x16x16x128xf32, #tpu.memory_space<vmem>>, vector<8x1x7x128xf32>
    %43 = vector.shape_cast %42 : vector<8x1x7x128xf32> to vector<8x7x128xf32>
    %c0_34 = arith.constant 0 : index
    %c5 = arith.constant 5 : index
    %c0_35 = arith.constant 0 : index
    %c0_36 = arith.constant 0 : index
    %44 = vector.load %arg14[%c0_34, %c5, %c0_35, %c0_36] : memref<8x16x16x128xf32, #tpu.memory_space<vmem>>, vector<8x1x7x128xf32>
    %45 = vector.shape_cast %44 : vector<8x1x7x128xf32> to vector<8x7x128xf32>
    %46 = arith.maximumf %43, %45 : vector<8x7x128xf32>
    %47 = vector.extract_strided_slice %46 {offsets = [0, 0, 0], sizes = [8, 6, 128], strides = [1, 1, 1]} : vector<8x7x128xf32> to vector<8x6x128xf32>
    %48 = vector.extract_strided_slice %46 {offsets = [0, 1, 0], sizes = [8, 6, 128], strides = [1, 1, 1]} : vector<8x7x128xf32> to vector<8x6x128xf32>
    %49 = arith.maximumf %47, %48 : vector<8x6x128xf32>
    %50 = vector.extract_strided_slice %49 {offsets = [0, 0, 0], sizes = [8, 1, 128], strides = [1, 1, 1]} : vector<8x6x128xf32> to vector<8x1x128xf32>
    %51 = vector.shape_cast %50 : vector<8x1x128xf32> to vector<8x128xf32>
    %52 = vector.extract_strided_slice %49 {offsets = [0, 2, 0], sizes = [8, 1, 128], strides = [1, 1, 1]} : vector<8x6x128xf32> to vector<8x1x128xf32>
    %53 = vector.shape_cast %52 : vector<8x1x128xf32> to vector<8x128xf32>
    %54 = arith.addf %51, %53 : vector<8x128xf32>
    %55 = vector.extract_strided_slice %49 {offsets = [0, 4, 0], sizes = [8, 1, 128], strides = [1, 1, 1]} : vector<8x6x128xf32> to vector<8x1x128xf32>
    %56 = vector.shape_cast %55 : vector<8x1x128xf32> to vector<8x128xf32>
    %57 = arith.addf %54, %56 : vector<8x128xf32>
    %58 = arith.addf %41, %57 : vector<8x128xf32>
    %c0_37 = arith.constant 0 : index
    %c0_38 = arith.constant 0 : index
    %c6 = arith.constant 6 : index
    %c0_39 = arith.constant 0 : index
    %59 = vector.load %arg14[%c0_37, %c0_38, %c6, %c0_39] : memref<8x16x16x128xf32, #tpu.memory_space<vmem>>, vector<8x1x7x128xf32>
    %60 = vector.shape_cast %59 : vector<8x1x7x128xf32> to vector<8x7x128xf32>
    %c0_40 = arith.constant 0 : index
    %c1_41 = arith.constant 1 : index
    %c6_42 = arith.constant 6 : index
    %c0_43 = arith.constant 0 : index
    %61 = vector.load %arg14[%c0_40, %c1_41, %c6_42, %c0_43] : memref<8x16x16x128xf32, #tpu.memory_space<vmem>>, vector<8x1x7x128xf32>
    %62 = vector.shape_cast %61 : vector<8x1x7x128xf32> to vector<8x7x128xf32>
    %63 = arith.maximumf %60, %62 : vector<8x7x128xf32>
    %64 = vector.extract_strided_slice %63 {offsets = [0, 0, 0], sizes = [8, 6, 128], strides = [1, 1, 1]} : vector<8x7x128xf32> to vector<8x6x128xf32>
    %65 = vector.extract_strided_slice %63 {offsets = [0, 1, 0], sizes = [8, 6, 128], strides = [1, 1, 1]} : vector<8x7x128xf32> to vector<8x6x128xf32>
    %66 = arith.maximumf %64, %65 : vector<8x6x128xf32>
    %67 = vector.extract_strided_slice %66 {offsets = [0, 0, 0], sizes = [8, 1, 128], strides = [1, 1, 1]} : vector<8x6x128xf32> to vector<8x1x128xf32>
    %68 = vector.shape_cast %67 : vector<8x1x128xf32> to vector<8x128xf32>
    %69 = vector.extract_strided_slice %66 {offsets = [0, 2, 0], sizes = [8, 1, 128], strides = [1, 1, 1]} : vector<8x6x128xf32> to vector<8x1x128xf32>
    %70 = vector.shape_cast %69 : vector<8x1x128xf32> to vector<8x128xf32>
    %71 = arith.addf %68, %70 : vector<8x128xf32>
    %72 = vector.extract_strided_slice %66 {offsets = [0, 4, 0], sizes = [8, 1, 128], strides = [1, 1, 1]} : vector<8x6x128xf32> to vector<8x1x128xf32>
    %73 = vector.shape_cast %72 : vector<8x1x128xf32> to vector<8x128xf32>
    %74 = arith.addf %71, %73 : vector<8x128xf32>
    %c0_44 = arith.constant 0 : index
    %c2_45 = arith.constant 2 : index
    %c6_46 = arith.constant 6 : index
    %c0_47 = arith.constant 0 : index
    %75 = vector.load %arg14[%c0_44, %c2_45, %c6_46, %c0_47] : memref<8x16x16x128xf32, #tpu.memory_space<vmem>>, vector<8x1x7x128xf32>
    %76 = vector.shape_cast %75 : vector<8x1x7x128xf32> to vector<8x7x128xf32>
    %c0_48 = arith.constant 0 : index
    %c3_49 = arith.constant 3 : index
    %c6_50 = arith.constant 6 : index
    %c0_51 = arith.constant 0 : index
    %77 = vector.load %arg14[%c0_48, %c3_49, %c6_50, %c0_51] : memref<8x16x16x128xf32, #tpu.memory_space<vmem>>, vector<8x1x7x128xf32>
    %78 = vector.shape_cast %77 : vector<8x1x7x128xf32> to vector<8x7x128xf32>
    %79 = arith.maximumf %76, %78 : vector<8x7x128xf32>
    %80 = vector.extract_strided_slice %79 {offsets = [0, 0, 0], sizes = [8, 6, 128], strides = [1, 1, 1]} : vector<8x7x128xf32> to vector<8x6x128xf32>
    %81 = vector.extract_strided_slice %79 {offsets = [0, 1, 0], sizes = [8, 6, 128], strides = [1, 1, 1]} : vector<8x7x128xf32> to vector<8x6x128xf32>
    %82 = arith.maximumf %80, %81 : vector<8x6x128xf32>
    %83 = vector.extract_strided_slice %82 {offsets = [0, 0, 0], sizes = [8, 1, 128], strides = [1, 1, 1]} : vector<8x6x128xf32> to vector<8x1x128xf32>
    %84 = vector.shape_cast %83 : vector<8x1x128xf32> to vector<8x128xf32>
    %85 = vector.extract_strided_slice %82 {offsets = [0, 2, 0], sizes = [8, 1, 128], strides = [1, 1, 1]} : vector<8x6x128xf32> to vector<8x1x128xf32>
    %86 = vector.shape_cast %85 : vector<8x1x128xf32> to vector<8x128xf32>
    %87 = arith.addf %84, %86 : vector<8x128xf32>
    %88 = vector.extract_strided_slice %82 {offsets = [0, 4, 0], sizes = [8, 1, 128], strides = [1, 1, 1]} : vector<8x6x128xf32> to vector<8x1x128xf32>
    %89 = vector.shape_cast %88 : vector<8x1x128xf32> to vector<8x128xf32>
    %90 = arith.addf %87, %89 : vector<8x128xf32>
    %91 = arith.addf %74, %90 : vector<8x128xf32>
    %c0_52 = arith.constant 0 : index
    %c4_53 = arith.constant 4 : index
    %c6_54 = arith.constant 6 : index
    %c0_55 = arith.constant 0 : index
    %92 = vector.load %arg14[%c0_52, %c4_53, %c6_54, %c0_55] : memref<8x16x16x128xf32, #tpu.memory_space<vmem>>, vector<8x1x7x128xf32>
    %93 = vector.shape_cast %92 : vector<8x1x7x128xf32> to vector<8x7x128xf32>
    %c0_56 = arith.constant 0 : index
    %c5_57 = arith.constant 5 : index
    %c6_58 = arith.constant 6 : index
    %c0_59 = arith.constant 0 : index
    %94 = vector.load %arg14[%c0_56, %c5_57, %c6_58, %c0_59] : memref<8x16x16x128xf32, #tpu.memory_space<vmem>>, vector<8x1x7x128xf32>
    %95 = vector.shape_cast %94 : vector<8x1x7x128xf32> to vector<8x7x128xf32>
    %96 = arith.maximumf %93, %95 : vector<8x7x128xf32>
    %97 = vector.extract_strided_slice %96 {offsets = [0, 0, 0], sizes = [8, 6, 128], strides = [1, 1, 1]} : vector<8x7x128xf32> to vector<8x6x128xf32>
    %98 = vector.extract_strided_slice %96 {offsets = [0, 1, 0], sizes = [8, 6, 128], strides = [1, 1, 1]} : vector<8x7x128xf32> to vector<8x6x128xf32>
    %99 = arith.maximumf %97, %98 : vector<8x6x128xf32>
    %100 = vector.extract_strided_slice %99 {offsets = [0, 0, 0], sizes = [8, 1, 128], strides = [1, 1, 1]} : vector<8x6x128xf32> to vector<8x1x128xf32>
    %101 = vector.shape_cast %100 : vector<8x1x128xf32> to vector<8x128xf32>
    %102 = vector.extract_strided_slice %99 {offsets = [0, 2, 0], sizes = [8, 1, 128], strides = [1, 1, 1]} : vector<8x6x128xf32> to vector<8x1x128xf32>
    %103 = vector.shape_cast %102 : vector<8x1x128xf32> to vector<8x128xf32>
    %104 = arith.addf %101, %103 : vector<8x128xf32>
    %105 = vector.extract_strided_slice %99 {offsets = [0, 4, 0], sizes = [8, 1, 128], strides = [1, 1, 1]} : vector<8x6x128xf32> to vector<8x1x128xf32>
    %106 = vector.shape_cast %105 : vector<8x1x128xf32> to vector<8x128xf32>
    %107 = arith.addf %104, %106 : vector<8x128xf32>
    %108 = arith.addf %91, %107 : vector<8x128xf32>
    %c0_60 = arith.constant 0 : index
    %c6_61 = arith.constant 6 : index
    %c0_62 = arith.constant 0 : index
    %c0_63 = arith.constant 0 : index
    %109 = vector.load %arg14[%c0_60, %c6_61, %c0_62, %c0_63] : memref<8x16x16x128xf32, #tpu.memory_space<vmem>>, vector<8x1x7x128xf32>
    %110 = vector.shape_cast %109 : vector<8x1x7x128xf32> to vector<8x7x128xf32>
    %c0_64 = arith.constant 0 : index
    %c7 = arith.constant 7 : index
    %c0_65 = arith.constant 0 : index
    %c0_66 = arith.constant 0 : index
    %111 = vector.load %arg14[%c0_64, %c7, %c0_65, %c0_66] : memref<8x16x16x128xf32, #tpu.memory_space<vmem>>, vector<8x1x7x128xf32>
    %112 = vector.shape_cast %111 : vector<8x1x7x128xf32> to vector<8x7x128xf32>
    %113 = arith.maximumf %110, %112 : vector<8x7x128xf32>
    %114 = vector.extract_strided_slice %113 {offsets = [0, 0, 0], sizes = [8, 6, 128], strides = [1, 1, 1]} : vector<8x7x128xf32> to vector<8x6x128xf32>
    %115 = vector.extract_strided_slice %113 {offsets = [0, 1, 0], sizes = [8, 6, 128], strides = [1, 1, 1]} : vector<8x7x128xf32> to vector<8x6x128xf32>
    %116 = arith.maximumf %114, %115 : vector<8x6x128xf32>
    %117 = vector.extract_strided_slice %116 {offsets = [0, 0, 0], sizes = [8, 1, 128], strides = [1, 1, 1]} : vector<8x6x128xf32> to vector<8x1x128xf32>
    %118 = vector.shape_cast %117 : vector<8x1x128xf32> to vector<8x128xf32>
    %119 = vector.extract_strided_slice %116 {offsets = [0, 2, 0], sizes = [8, 1, 128], strides = [1, 1, 1]} : vector<8x6x128xf32> to vector<8x1x128xf32>
    %120 = vector.shape_cast %119 : vector<8x1x128xf32> to vector<8x128xf32>
    %121 = arith.addf %118, %120 : vector<8x128xf32>
    %122 = vector.extract_strided_slice %116 {offsets = [0, 4, 0], sizes = [8, 1, 128], strides = [1, 1, 1]} : vector<8x6x128xf32> to vector<8x1x128xf32>
    %123 = vector.shape_cast %122 : vector<8x1x128xf32> to vector<8x128xf32>
    %124 = arith.addf %121, %123 : vector<8x128xf32>
    %c0_67 = arith.constant 0 : index
    %c8 = arith.constant 8 : index
    %c0_68 = arith.constant 0 : index
    %c0_69 = arith.constant 0 : index
    %125 = vector.load %arg14[%c0_67, %c8, %c0_68, %c0_69] : memref<8x16x16x128xf32, #tpu.memory_space<vmem>>, vector<8x1x7x128xf32>
    %126 = vector.shape_cast %125 : vector<8x1x7x128xf32> to vector<8x7x128xf32>
    %c0_70 = arith.constant 0 : index
    %c9 = arith.constant 9 : index
    %c0_71 = arith.constant 0 : index
    %c0_72 = arith.constant 0 : index
    %127 = vector.load %arg14[%c0_70, %c9, %c0_71, %c0_72] : memref<8x16x16x128xf32, #tpu.memory_space<vmem>>, vector<8x1x7x128xf32>
    %128 = vector.shape_cast %127 : vector<8x1x7x128xf32> to vector<8x7x128xf32>
    %129 = arith.maximumf %126, %128 : vector<8x7x128xf32>
    %130 = vector.extract_strided_slice %129 {offsets = [0, 0, 0], sizes = [8, 6, 128], strides = [1, 1, 1]} : vector<8x7x128xf32> to vector<8x6x128xf32>
    %131 = vector.extract_strided_slice %129 {offsets = [0, 1, 0], sizes = [8, 6, 128], strides = [1, 1, 1]} : vector<8x7x128xf32> to vector<8x6x128xf32>
    %132 = arith.maximumf %130, %131 : vector<8x6x128xf32>
    %133 = vector.extract_strided_slice %132 {offsets = [0, 0, 0], sizes = [8, 1, 128], strides = [1, 1, 1]} : vector<8x6x128xf32> to vector<8x1x128xf32>
    %134 = vector.shape_cast %133 : vector<8x1x128xf32> to vector<8x128xf32>
    %135 = vector.extract_strided_slice %132 {offsets = [0, 2, 0], sizes = [8, 1, 128], strides = [1, 1, 1]} : vector<8x6x128xf32> to vector<8x1x128xf32>
    %136 = vector.shape_cast %135 : vector<8x1x128xf32> to vector<8x128xf32>
    %137 = arith.addf %134, %136 : vector<8x128xf32>
    %138 = vector.extract_strided_slice %132 {offsets = [0, 4, 0], sizes = [8, 1, 128], strides = [1, 1, 1]} : vector<8x6x128xf32> to vector<8x1x128xf32>
    %139 = vector.shape_cast %138 : vector<8x1x128xf32> to vector<8x128xf32>
    %140 = arith.addf %137, %139 : vector<8x128xf32>
    %141 = arith.addf %124, %140 : vector<8x128xf32>
    %c0_73 = arith.constant 0 : index
    %c10 = arith.constant 10 : index
    %c0_74 = arith.constant 0 : index
    %c0_75 = arith.constant 0 : index
    %142 = vector.load %arg14[%c0_73, %c10, %c0_74, %c0_75] : memref<8x16x16x128xf32, #tpu.memory_space<vmem>>, vector<8x1x7x128xf32>
    %143 = vector.shape_cast %142 : vector<8x1x7x128xf32> to vector<8x7x128xf32>
    %c0_76 = arith.constant 0 : index
    %c11 = arith.constant 11 : index
    %c0_77 = arith.constant 0 : index
    %c0_78 = arith.constant 0 : index
    %144 = vector.load %arg14[%c0_76, %c11, %c0_77, %c0_78] : memref<8x16x16x128xf32, #tpu.memory_space<vmem>>, vector<8x1x7x128xf32>
    %145 = vector.shape_cast %144 : vector<8x1x7x128xf32> to vector<8x7x128xf32>
    %146 = arith.maximumf %143, %145 : vector<8x7x128xf32>
    %147 = vector.extract_strided_slice %146 {offsets = [0, 0, 0], sizes = [8, 6, 128], strides = [1, 1, 1]} : vector<8x7x128xf32> to vector<8x6x128xf32>
    %148 = vector.extract_strided_slice %146 {offsets = [0, 1, 0], sizes = [8, 6, 128], strides = [1, 1, 1]} : vector<8x7x128xf32> to vector<8x6x128xf32>
    %149 = arith.maximumf %147, %148 : vector<8x6x128xf32>
    %150 = vector.extract_strided_slice %149 {offsets = [0, 0, 0], sizes = [8, 1, 128], strides = [1, 1, 1]} : vector<8x6x128xf32> to vector<8x1x128xf32>
    %151 = vector.shape_cast %150 : vector<8x1x128xf32> to vector<8x128xf32>
    %152 = vector.extract_strided_slice %149 {offsets = [0, 2, 0], sizes = [8, 1, 128], strides = [1, 1, 1]} : vector<8x6x128xf32> to vector<8x1x128xf32>
    %153 = vector.shape_cast %152 : vector<8x1x128xf32> to vector<8x128xf32>
    %154 = arith.addf %151, %153 : vector<8x128xf32>
    %155 = vector.extract_strided_slice %149 {offsets = [0, 4, 0], sizes = [8, 1, 128], strides = [1, 1, 1]} : vector<8x6x128xf32> to vector<8x1x128xf32>
    %156 = vector.shape_cast %155 : vector<8x1x128xf32> to vector<8x128xf32>
    %157 = arith.addf %154, %156 : vector<8x128xf32>
    %158 = arith.addf %141, %157 : vector<8x128xf32>
    %c0_79 = arith.constant 0 : index
    %c6_80 = arith.constant 6 : index
    %c6_81 = arith.constant 6 : index
    %c0_82 = arith.constant 0 : index
    %159 = vector.load %arg14[%c0_79, %c6_80, %c6_81, %c0_82] : memref<8x16x16x128xf32, #tpu.memory_space<vmem>>, vector<8x1x7x128xf32>
    %160 = vector.shape_cast %159 : vector<8x1x7x128xf32> to vector<8x7x128xf32>
    %c0_83 = arith.constant 0 : index
    %c7_84 = arith.constant 7 : index
    %c6_85 = arith.constant 6 : index
    %c0_86 = arith.constant 0 : index
    %161 = vector.load %arg14[%c0_83, %c7_84, %c6_85, %c0_86] : memref<8x16x16x128xf32, #tpu.memory_space<vmem>>, vector<8x1x7x128xf32>
    %162 = vector.shape_cast %161 : vector<8x1x7x128xf32> to vector<8x7x128xf32>
    %163 = arith.maximumf %160, %162 : vector<8x7x128xf32>
    %164 = vector.extract_strided_slice %163 {offsets = [0, 0, 0], sizes = [8, 6, 128], strides = [1, 1, 1]} : vector<8x7x128xf32> to vector<8x6x128xf32>
    %165 = vector.extract_strided_slice %163 {offsets = [0, 1, 0], sizes = [8, 6, 128], strides = [1, 1, 1]} : vector<8x7x128xf32> to vector<8x6x128xf32>
    %166 = arith.maximumf %164, %165 : vector<8x6x128xf32>
    %167 = vector.extract_strided_slice %166 {offsets = [0, 0, 0], sizes = [8, 1, 128], strides = [1, 1, 1]} : vector<8x6x128xf32> to vector<8x1x128xf32>
    %168 = vector.shape_cast %167 : vector<8x1x128xf32> to vector<8x128xf32>
    %169 = vector.extract_strided_slice %166 {offsets = [0, 2, 0], sizes = [8, 1, 128], strides = [1, 1, 1]} : vector<8x6x128xf32> to vector<8x1x128xf32>
    %170 = vector.shape_cast %169 : vector<8x1x128xf32> to vector<8x128xf32>
    %171 = arith.addf %168, %170 : vector<8x128xf32>
    %172 = vector.extract_strided_slice %166 {offsets = [0, 4, 0], sizes = [8, 1, 128], strides = [1, 1, 1]} : vector<8x6x128xf32> to vector<8x1x128xf32>
    %173 = vector.shape_cast %172 : vector<8x1x128xf32> to vector<8x128xf32>
    %174 = arith.addf %171, %173 : vector<8x128xf32>
    %c0_87 = arith.constant 0 : index
    %c8_88 = arith.constant 8 : index
    %c6_89 = arith.constant 6 : index
    %c0_90 = arith.constant 0 : index
    %175 = vector.load %arg14[%c0_87, %c8_88, %c6_89, %c0_90] : memref<8x16x16x128xf32, #tpu.memory_space<vmem>>, vector<8x1x7x128xf32>
    %176 = vector.shape_cast %175 : vector<8x1x7x128xf32> to vector<8x7x128xf32>
    %c0_91 = arith.constant 0 : index
    %c9_92 = arith.constant 9 : index
    %c6_93 = arith.constant 6 : index
    %c0_94 = arith.constant 0 : index
    %177 = vector.load %arg14[%c0_91, %c9_92, %c6_93, %c0_94] : memref<8x16x16x128xf32, #tpu.memory_space<vmem>>, vector<8x1x7x128xf32>
    %178 = vector.shape_cast %177 : vector<8x1x7x128xf32> to vector<8x7x128xf32>
    %179 = arith.maximumf %176, %178 : vector<8x7x128xf32>
    %180 = vector.extract_strided_slice %179 {offsets = [0, 0, 0], sizes = [8, 6, 128], strides = [1, 1, 1]} : vector<8x7x128xf32> to vector<8x6x128xf32>
    %181 = vector.extract_strided_slice %179 {offsets = [0, 1, 0], sizes = [8, 6, 128], strides = [1, 1, 1]} : vector<8x7x128xf32> to vector<8x6x128xf32>
    %182 = arith.maximumf %180, %181 : vector<8x6x128xf32>
    %183 = vector.extract_strided_slice %182 {offsets = [0, 0, 0], sizes = [8, 1, 128], strides = [1, 1, 1]} : vector<8x6x128xf32> to vector<8x1x128xf32>
    %184 = vector.shape_cast %183 : vector<8x1x128xf32> to vector<8x128xf32>
    %185 = vector.extract_strided_slice %182 {offsets = [0, 2, 0], sizes = [8, 1, 128], strides = [1, 1, 1]} : vector<8x6x128xf32> to vector<8x1x128xf32>
    %186 = vector.shape_cast %185 : vector<8x1x128xf32> to vector<8x128xf32>
    %187 = arith.addf %184, %186 : vector<8x128xf32>
    %188 = vector.extract_strided_slice %182 {offsets = [0, 4, 0], sizes = [8, 1, 128], strides = [1, 1, 1]} : vector<8x6x128xf32> to vector<8x1x128xf32>
    %189 = vector.shape_cast %188 : vector<8x1x128xf32> to vector<8x128xf32>
    %190 = arith.addf %187, %189 : vector<8x128xf32>
    %191 = arith.addf %174, %190 : vector<8x128xf32>
    %c0_95 = arith.constant 0 : index
    %c10_96 = arith.constant 10 : index
    %c6_97 = arith.constant 6 : index
    %c0_98 = arith.constant 0 : index
    %192 = vector.load %arg14[%c0_95, %c10_96, %c6_97, %c0_98] : memref<8x16x16x128xf32, #tpu.memory_space<vmem>>, vector<8x1x7x128xf32>
    %193 = vector.shape_cast %192 : vector<8x1x7x128xf32> to vector<8x7x128xf32>
    %c0_99 = arith.constant 0 : index
    %c11_100 = arith.constant 11 : index
    %c6_101 = arith.constant 6 : index
    %c0_102 = arith.constant 0 : index
    %194 = vector.load %arg14[%c0_99, %c11_100, %c6_101, %c0_102] : memref<8x16x16x128xf32, #tpu.memory_space<vmem>>, vector<8x1x7x128xf32>
    %195 = vector.shape_cast %194 : vector<8x1x7x128xf32> to vector<8x7x128xf32>
    %196 = arith.maximumf %193, %195 : vector<8x7x128xf32>
    %197 = vector.extract_strided_slice %196 {offsets = [0, 0, 0], sizes = [8, 6, 128], strides = [1, 1, 1]} : vector<8x7x128xf32> to vector<8x6x128xf32>
    %198 = vector.extract_strided_slice %196 {offsets = [0, 1, 0], sizes = [8, 6, 128], strides = [1, 1, 1]} : vector<8x7x128xf32> to vector<8x6x128xf32>
    %199 = arith.maximumf %197, %198 : vector<8x6x128xf32>
    %200 = vector.extract_strided_slice %199 {offsets = [0, 0, 0], sizes = [8, 1, 128], strides = [1, 1, 1]} : vector<8x6x128xf32> to vector<8x1x128xf32>
    %201 = vector.shape_cast %200 : vector<8x1x128xf32> to vector<8x128xf32>
    %202 = vector.extract_strided_slice %199 {offsets = [0, 2, 0], sizes = [8, 1, 128], strides = [1, 1, 1]} : vector<8x6x128xf32> to vector<8x1x128xf32>
    %203 = vector.shape_cast %202 : vector<8x1x128xf32> to vector<8x128xf32>
    %204 = arith.addf %201, %203 : vector<8x128xf32>
    %205 = vector.extract_strided_slice %199 {offsets = [0, 4, 0], sizes = [8, 1, 128], strides = [1, 1, 1]} : vector<8x6x128xf32> to vector<8x1x128xf32>
    %206 = vector.shape_cast %205 : vector<8x1x128xf32> to vector<8x128xf32>
    %207 = arith.addf %204, %206 : vector<8x128xf32>
    %208 = arith.addf %191, %207 : vector<8x128xf32>
    %209 = tpu.concatenate %58, %108, %158, %208 in 1 : vector<8x128xf32>, vector<8x128xf32>, vector<8x128xf32>, vector<8x128xf32> -> vector<8x512xf32>
    %c0_103 = arith.constant 0 : index
    %c0_104 = arith.constant 0 : index
    %210 = vector.load %arg7[%c0_103, %c0_104] : memref<1x128xf32, #tpu.memory_space<vmem>>, vector<1x128xf32>
    %211 = arith.truncf %209 : vector<8x512xf32> to vector<8x512xbf16>
    %c0_105 = arith.constant 0 : index
    %c0_106 = arith.constant 0 : index
    %212 = vector.load %arg6[%c0_105, %c0_106] : memref<512x128xbf16, #tpu.memory_space<vmem>>, vector<512x128xbf16>
    %cst_107 = arith.constant dense<0.000000e+00> : vector<8x128xf32>
    %213 = tpu.matmul %211, %212, %cst_107 {dimension_numbers = #tpu.dot_dimension_numbers<[1], [0], [0], [1], [0, 0, 1, 1], [], []>} : vector<8x512xbf16>, vector<512x128xbf16>, vector<8x128xf32> -> vector<8x128xf32>
    %214 = vector.broadcast %210 : vector<1x128xf32> to vector<8x128xf32>
    %215 = arith.addf %214, %213 : vector<8x128xf32>
    %cst_108 = arith.constant 0.000000e+00 : f32
    %216 = vector.broadcast %cst_108 : f32 to vector<8x128xf32>
    %217 = arith.maximumf %215, %216 : vector<8x128xf32>
    %c0_109 = arith.constant 0 : index
    %c0_110 = arith.constant 0 : index
    %218 = vector.load %arg9[%c0_109, %c0_110] : memref<1x128xf32, #tpu.memory_space<vmem>>, vector<1x128xf32>
    %219 = arith.truncf %217 : vector<8x128xf32> to vector<8x128xbf16>
    %c0_111 = arith.constant 0 : index
    %c0_112 = arith.constant 0 : index
    %220 = vector.load %arg8[%c0_111, %c0_112] : memref<128x128xbf16, #tpu.memory_space<vmem>>, vector<128x128xbf16>
    %cst_113 = arith.constant dense<0.000000e+00> : vector<8x128xf32>
    %221 = tpu.matmul %219, %220, %cst_113 {dimension_numbers = #tpu.dot_dimension_numbers<[1], [0], [0], [1], [0, 0, 1, 1], [], []>} : vector<8x128xbf16>, vector<128x128xbf16>, vector<8x128xf32> -> vector<8x128xf32>
    %222 = vector.broadcast %218 : vector<1x128xf32> to vector<8x128xf32>
    %223 = arith.addf %222, %221 : vector<8x128xf32>
    %cst_114 = arith.constant 0.000000e+00 : f32
    %224 = vector.broadcast %cst_114 : f32 to vector<8x128xf32>
    %225 = arith.maximumf %223, %224 : vector<8x128xf32>
    %c0_115 = arith.constant 0 : index
    %c0_116 = arith.constant 0 : index
    %226 = vector.load %arg11[%c0_115, %c0_116] : memref<1x128xf32, #tpu.memory_space<vmem>>, vector<1x128xf32>
    %227 = arith.truncf %225 : vector<8x128xf32> to vector<8x128xbf16>
    %c0_117 = arith.constant 0 : index
    %c0_118 = arith.constant 0 : index
    %228 = vector.load %arg10[%c0_117, %c0_118] : memref<128x128xbf16, #tpu.memory_space<vmem>>, vector<128x128xbf16>
    %cst_119 = arith.constant dense<0.000000e+00> : vector<8x128xf32>
    %229 = tpu.matmul %227, %228, %cst_119 {dimension_numbers = #tpu.dot_dimension_numbers<[1], [0], [0], [1], [0, 0, 1, 1], [], []>} : vector<8x128xbf16>, vector<128x128xbf16>, vector<8x128xf32> -> vector<8x128xf32>
    %230 = vector.broadcast %226 : vector<1x128xf32> to vector<8x128xf32>
    %231 = arith.addf %230, %229 : vector<8x128xf32>
    %c0_120 = arith.constant 0 : index
    %c0_121 = arith.constant 0 : index
    %232 = vector.load %arg12[%c0_120, %c0_121] : memref<8x128xf32, #tpu.memory_space<vmem>>, vector<8x128xf32>
    tpu.vector_store %arg12[%c0_120, %c0_121], %231 {strides = array<i32>} : memref<8x128xf32, #tpu.memory_space<vmem>>, vector<8x128xf32>,
    return
  }
  func.func @transform_0(%arg0: i32) -> (i32, i32, i32, i32) {
    %c0_i32 = arith.constant 0 : i32
    %c0_i32_0 = arith.constant 0 : i32
    %c0_i32_1 = arith.constant 0 : i32
    %c0_i32_2 = arith.constant 0 : i32
    return %arg0, %c0_i32, %c0_i32_0, %c0_i32_1 : i32, i32, i32, i32
  }
  func.func @transform_1(%arg0: i32) -> (i32, i32) {
    %c0_i32 = arith.constant 0 : i32
    %c0_i32_0 = arith.constant 0 : i32
    %c0_i32_1 = arith.constant 0 : i32
    return %c0_i32, %c0_i32_0 : i32, i32
  }
  func.func @transform_2(%arg0: i32) -> (i32, i32) {
    %c0_i32 = arith.constant 0 : i32
    %c0_i32_0 = arith.constant 0 : i32
    %c0_i32_1 = arith.constant 0 : i32
    return %c0_i32, %c0_i32_0 : i32, i32
  }
  func.func @transform_3(%arg0: i32) -> (i32, i32, i32) {
    %c0_i32 = arith.constant 0 : i32
    %c0_i32_0 = arith.constant 0 : i32
    %c0_i32_1 = arith.constant 0 : i32
    %c0_i32_2 = arith.constant 0 : i32
    return %c0_i32, %c0_i32_0, %c0_i32_1 : i32, i32, i32
  }
  func.func @transform_4(%arg0: i32) -> (i32, i32) {
    %c0_i32 = arith.constant 0 : i32
    %c0_i32_0 = arith.constant 0 : i32
    %c0_i32_1 = arith.constant 0 : i32
    return %c0_i32, %c0_i32_0 : i32, i32
  }
  func.func @transform_5(%arg0: i32) -> (i32, i32) {
    %c0_i32 = arith.constant 0 : i32
    %c0_i32_0 = arith.constant 0 : i32
    %c0_i32_1 = arith.constant 0 : i32
    return %c0_i32, %c0_i32_0 : i32, i32
  }
  func.func @transform_6(%arg0: i32) -> (i32, i32) {
    %c0_i32 = arith.constant 0 : i32
    %c0_i32_0 = arith.constant 0 : i32
    %c0_i32_1 = arith.constant 0 : i32
    return %c0_i32, %c0_i32_0 : i32, i32
  }
  func.func @transform_7(%arg0: i32) -> (i32, i32) {
    %c0_i32 = arith.constant 0 : i32
    %c0_i32_0 = arith.constant 0 : i32
    %c0_i32_1 = arith.constant 0 : i32
    return %c0_i32, %c0_i32_0 : i32, i32
  }
  func.func @transform_8(%arg0: i32) -> (i32, i32) {
    %c0_i32 = arith.constant 0 : i32
    %c0_i32_0 = arith.constant 0 : i32
    %c0_i32_1 = arith.constant 0 : i32
    return %c0_i32, %c0_i32_0 : i32, i32
  }
  func.func @transform_9(%arg0: i32) -> (i32, i32) {
    %c0_i32 = arith.constant 0 : i32
    %c0_i32_0 = arith.constant 0 : i32
    %c0_i32_1 = arith.constant 0 : i32
    return %c0_i32, %c0_i32_0 : i32, i32
  }
  func.func @transform_10(%arg0: i32) -> (i32, i32) {
    %c0_i32 = arith.constant 0 : i32
    %c0_i32_0 = arith.constant 0 : i32
    %c0_i32_1 = arith.constant 0 : i32
    return %c0_i32, %c0_i32_0 : i32, i32
  }
  func.func @transform_11(%arg0: i32) -> (i32, i32) {
    %c0_i32 = arith.constant 0 : i32
    %c0_i32_0 = arith.constant 0 : i32
    return %arg0, %c0_i32 : i32, i32
  }
}

</mosaic_0001>

<llo_original>
// kernel: equivalent_net_mnist.1
$region0: #{equivalent_net_mnist.1}
  #allocation0 [shape = 'u32[]', space=smem, size = 0x4, offset = 0x4, fixed_abs, tag = 'smem constant byte address 0x4 - core index']
  #allocation1 [shape = 'u32[144,128]{1,0:T(1,128)}', space=vmem, size = 0x12000, scoped, tag = 'internal scratch']
  #allocation2 [shape = 'f32[8,19,19,128]{3,2,1,0:T(8,128)}', space=vmem, size = 0x1c8000, scoped, tag = 'scratch operand']
  #allocation3 [shape = 'f32[8,16,16,128]{3,2,1,0:T(8,128)}', space=vmem, size = 0x100000, scoped, tag = 'scratch operand']
  %s0 = inlined_call_operand.vmem [shape: f32[16,16,16,1], index: 0, kind: input, shape index: {}]
  %s1 = inlined_call_operand.vmem [shape: f32[9,128], index: 1, kind: input, shape index: {}]
  %s2 = inlined_call_operand.vmem [shape: f32[1,128], index: 2, kind: input, shape index: {}]
  %s3 = inlined_call_operand.vmem [shape: bf16[4,512,128], index: 3, kind: input, shape index: {}]
  %s4 = inlined_call_operand.vmem [shape: f32[1,128], index: 4, kind: input, shape index: {}]
  %s5 = inlined_call_operand.vmem [shape: bf16[512,128], index: 5, kind: input, shape index: {}]
  %s6 = inlined_call_operand.vmem [shape: f32[1,128], index: 6, kind: input, shape index: {}]
  %s7 = inlined_call_operand.vmem [shape: bf16[128,128], index: 7, kind: input, shape index: {}]
  %s8 = inlined_call_operand.vmem [shape: f32[1,128], index: 8, kind: input, shape index: {}]
  %s9 = inlined_call_operand.vmem [shape: bf16[128,128], index: 9, kind: input, shape index: {}]
  %s10 = inlined_call_operand.vmem [shape: f32[1,128], index: 10, kind: input, shape index: {}]
  %s11 = inlined_call_operand.vmem [shape: f32[16,128], index: 11, kind: output, shape index: {}]
  %s12 = sld [smem:[#allocation0]]
  $region84: #{equivalent_net_mnist.1} parent=0
    _
  %s14 = ssub.s32 1, %s12
  %s15 = scalar_select 0, %s14, %s12
  loop: start=0, step=1, limit=4
  $region2: #{equivalent_net_mnist.1} parent=0 // loop_pre_header
    _
  $region3: #{equivalent_net_mnist.1} parent=0 // loop_header
    %s17 = sphi 0, %s21
    %p18 = scmp.ge.s32.totalorder %s17, 4
    %s27 = sphi 0, %s29
    %s30 = sphi 0, %s27
    %s31 = sphi 0, %s30
    %s47 = sphi 0, %s31
    %s51 = sphi 0, %s51
    %s53 = sphi 0, %s51
    %s54 = sphi 0, %s53
    %s68 = sphi 0, %s54
    %s72 = sphi 0, %s72
    %s74 = sphi 0, %s72
    %s75 = sphi 0, %s74
    %s89 = sphi 0, %s75
    %s93 = sphi 0, %s93
    %s95 = sphi 0, %s93
    %s96 = sphi 0, %s95
    %s110 = sphi 0, %s96
    %s114 = sphi 0, %s114
    %s116 = sphi 0, %s114
    %s117 = sphi 0, %s116
    %s131 = sphi 0, %s117
    %s135 = sphi 0, %s135
    %s137 = sphi 0, %s135
    %s138 = sphi 0, %s137
    %s152 = sphi 0, %s138
    %s156 = sphi 0, %s156
    %s158 = sphi 0, %s156
    %s159 = sphi 0, %s158
    %s173 = sphi 0, %s159
    %s177 = sphi 0, %s177
    %s179 = sphi 0, %s177
    %s180 = sphi 0, %s179
    %s194 = sphi 0, %s180
    %s198 = sphi 0, %s198
    %s200 = sphi 0, %s198
    %s201 = sphi 0, %s200
    %s215 = sphi 0, %s201
    %s219 = sphi 0, %s219
    %s221 = sphi 0, %s219
    %s222 = sphi 0, %s221
    %s236 = sphi 0, %s222
    %s240 = sphi 0, %s240
    %s242 = sphi 0, %s240
    %s243 = sphi 0, %s242
    %s257 = sphi 0, %s243
    %s263 = sphi 0, %s265
    %s266 = sphi 0, %s263
    %s267 = sphi 0, %s266
    %s283 = sphi 0, %s267
  $region4: #{equivalent_net_mnist.1} parent=0 // loop_header_branch
    %20 = sbr.rel (%p18) target = $region8
  $region5: #{equivalent_net_mnist.1} parent=0 // loop_body
    %s22 = ssub.s32 %s17, 1
    %s23 = ssub.s32 %s17, 2
    %s24 = sadd.s32 %s17, 1
    %s25 = ssub.s32 %s17, %s24
    %p26 = scmp.eq.s32.totalorder %s25, 0
    %s28 = sadd.s32 %s27, 1
    %s29 = scalar_select %p26, %s27, %s28
    %p32 = pneg %p26
    %p33 = scmp.eq.s32.totalorder %s17, 1
    %p34 = por %p32, %p33
    %p35 = scmp.ne.s32.totalorder %s27, %s30
    %p36 = scmp.eq.s32.totalorder %s17, 0
    %p37 = por %p35, %p36
    %p38 = scmp.ne.s32.totalorder %s27, %s30
    %p39 = scmp.eq.s32.totalorder %s22, 1
    %p40 = por %p38, %p39
    %p41 = scmp.ne.s32.totalorder %s30, %s31
    %p42 = scmp.eq.s32.totalorder %s22, 0
    %p43 = por %p41, %p42
    %p44 = scmp.ne.s32.totalorder %s30, %s31
    %p45 = scmp.eq.s32.totalorder %s23, 1
    %p46 = por %p44, %p45
    %p48 = scmp.ne.s32.totalorder %s31, %s47
    %p49 = scmp.eq.s32.totalorder %s23, 0
    %p50 = por %p48, %p49
    %s52 = sadd.s32 %s51, 1
    %p55 = scmp.eq.s32.totalorder %s17, 1
    %p56 = scmp.ne.s32.totalorder %s51, %s53
    %p57 = scmp.eq.s32.totalorder %s17, 0
    %p58 = por %p56, %p57
    %p59 = scmp.ne.s32.totalorder %s51, %s53
    %p60 = scmp.eq.s32.totalorder %s22, 1
    %p61 = por %p59, %p60
    %p62 = scmp.ne.s32.totalorder %s53, %s54
    %p63 = scmp.eq.s32.totalorder %s22, 0
    %p64 = por %p62, %p63
    %p65 = scmp.ne.s32.totalorder %s53, %s54
    %p66 = scmp.eq.s32.totalorder %s23, 1
    %p67 = por %p65, %p66
    %p69 = scmp.ne.s32.totalorder %s54, %s68
    %p70 = scmp.eq.s32.totalorder %s23, 0
    %p71 = por %p69, %p70
    %s73 = sadd.s32 %s72, 1
    %p76 = scmp.eq.s32.totalorder %s17, 1
    %p77 = scmp.ne.s32.totalorder %s72, %s74
    %p78 = scmp.eq.s32.totalorder %s17, 0
    %p79 = por %p77, %p78
    %p80 = scmp.ne.s32.totalorder %s72, %s74
    %p81 = scmp.eq.s32.totalorder %s22, 1
    %p82 = por %p80, %p81
    %p83 = scmp.ne.s32.totalorder %s74, %s75
    %p84 = scmp.eq.s32.totalorder %s22, 0
    %p85 = por %p83, %p84
    %p86 = scmp.ne.s32.totalorder %s74, %s75
    %p87 = scmp.eq.s32.totalorder %s23, 1
    %p88 = por %p86, %p87
    %p90 = scmp.ne.s32.totalorder %s75, %s89
    %p91 = scmp.eq.s32.totalorder %s23, 0
    %p92 = por %p90, %p91
    %s94 = sadd.s32 %s93, 1
    %p97 = scmp.eq.s32.totalorder %s17, 1
    %p98 = scmp.ne.s32.totalorder %s93, %s95
    %p99 = scmp.eq.s32.totalorder %s17, 0
    %p100 = por %p98, %p99
    %p101 = scmp.ne.s32.totalorder %s93, %s95
    %p102 = scmp.eq.s32.totalorder %s22, 1
    %p103 = por %p101, %p102
    %p104 = scmp.ne.s32.totalorder %s95, %s96
    %p105 = scmp.eq.s32.totalorder %s22, 0
    %p106 = por %p104, %p105
    %p107 = scmp.ne.s32.totalorder %s95, %s96
    %p108 = scmp.eq.s32.totalorder %s23, 1
    %p109 = por %p107, %p108
    %p111 = scmp.ne.s32.totalorder %s96, %s110
    %p112 = scmp.eq.s32.totalorder %s23, 0
    %p113 = por %p111, %p112
    %s115 = sadd.s32 %s114, 1
    %p118 = scmp.eq.s32.totalorder %s17, 1
    %p119 = scmp.ne.s32.totalorder %s114, %s116
    %p120 = scmp.eq.s32.totalorder %s17, 0
    %p121 = por %p119, %p120
    %p122 = scmp.ne.s32.totalorder %s114, %s116
    %p123 = scmp.eq.s32.totalorder %s22, 1
    %p124 = por %p122, %p123
    %p125 = scmp.ne.s32.totalorder %s116, %s117
    %p126 = scmp.eq.s32.totalorder %s22, 0
    %p127 = por %p125, %p126
    %p128 = scmp.ne.s32.totalorder %s116, %s117
    %p129 = scmp.eq.s32.totalorder %s23, 1
    %p130 = por %p128, %p129
    %p132 = scmp.ne.s32.totalorder %s117, %s131
    %p133 = scmp.eq.s32.totalorder %s23, 0
    %p134 = por %p132, %p133
    %s136 = sadd.s32 %s135, 1
    %p139 = scmp.eq.s32.totalorder %s17, 1
    %p140 = scmp.ne.s32.totalorder %s135, %s137
    %p141 = scmp.eq.s32.totalorder %s17, 0
    %p142 = por %p140, %p141
    %p143 = scmp.ne.s32.totalorder %s135, %s137
    %p144 = scmp.eq.s32.totalorder %s22, 1
    %p145 = por %p143, %p144
    %p146 = scmp.ne.s32.totalorder %s137, %s138
    %p147 = scmp.eq.s32.totalorder %s22, 0
    %p148 = por %p146, %p147
    %p149 = scmp.ne.s32.totalorder %s137, %s138
    %p150 = scmp.eq.s32.totalorder %s23, 1
    %p151 = por %p149, %p150
    %p153 = scmp.ne.s32.totalorder %s138, %s152
    %p154 = scmp.eq.s32.totalorder %s23, 0
    %p155 = por %p153, %p154
    %s157 = sadd.s32 %s156, 1
    %p160 = scmp.eq.s32.totalorder %s17, 1
    %p161 = scmp.ne.s32.totalorder %s156, %s158
    %p162 = scmp.eq.s32.totalorder %s17, 0
    %p163 = por %p161, %p162
    %p164 = scmp.ne.s32.totalorder %s156, %s158
    %p165 = scmp.eq.s32.totalorder %s22, 1
    %p166 = por %p164, %p165
    %p167 = scmp.ne.s32.totalorder %s158, %s159
    %p168 = scmp.eq.s32.totalorder %s22, 0
    %p169 = por %p167, %p168
    %p170 = scmp.ne.s32.totalorder %s158, %s159
    %p171 = scmp.eq.s32.totalorder %s23, 1
    %p172 = por %p170, %p171
    %p174 = scmp.ne.s32.totalorder %s159, %s173
    %p175 = scmp.eq.s32.totalorder %s23, 0
    %p176 = por %p174, %p175
    %s178 = sadd.s32 %s177, 1
    %p181 = scmp.eq.s32.totalorder %s17, 1
    %p182 = scmp.ne.s32.totalorder %s177, %s179
    %p183 = scmp.eq.s32.totalorder %s17, 0
    %p184 = por %p182, %p183
    %p185 = scmp.ne.s32.totalorder %s177, %s179
    %p186 = scmp.eq.s32.totalorder %s22, 1
    %p187 = por %p185, %p186
    %p188 = scmp.ne.s32.totalorder %s179, %s180
    %p189 = scmp.eq.s32.totalorder %s22, 0
    %p190 = por %p188, %p189
    %p191 = scmp.ne.s32.totalorder %s179, %s180
    %p192 = scmp.eq.s32.totalorder %s23, 1
    %p193 = por %p191, %p192
    %p195 = scmp.ne.s32.totalorder %s180, %s194
    %p196 = scmp.eq.s32.totalorder %s23, 0
    %p197 = por %p195, %p196
    %s199 = sadd.s32 %s198, 1
    %p202 = scmp.eq.s32.totalorder %s17, 1
    %p203 = scmp.ne.s32.totalorder %s198, %s200
    %p204 = scmp.eq.s32.totalorder %s17, 0
    %p205 = por %p203, %p204
    %p206 = scmp.ne.s32.totalorder %s198, %s200
    %p207 = scmp.eq.s32.totalorder %s22, 1
    %p208 = por %p206, %p207
    %p209 = scmp.ne.s32.totalorder %s200, %s201
    %p210 = scmp.eq.s32.totalorder %s22, 0
    %p211 = por %p209, %p210
    %p212 = scmp.ne.s32.totalorder %s200, %s201
    %p213 = scmp.eq.s32.totalorder %s23, 1
    %p214 = por %p212, %p213
    %p216 = scmp.ne.s32.totalorder %s201, %s215
    %p217 = scmp.eq.s32.totalorder %s23, 0
    %p218 = por %p216, %p217
    %s220 = sadd.s32 %s219, 1
    %p223 = scmp.eq.s32.totalorder %s17, 1
    %p224 = scmp.ne.s32.totalorder %s219, %s221
    %p225 = scmp.eq.s32.totalorder %s17, 0
    %p226 = por %p224, %p225
    %p227 = scmp.ne.s32.totalorder %s219, %s221
    %p228 = scmp.eq.s32.totalorder %s22, 1
    %p229 = por %p227, %p228
    %p230 = scmp.ne.s32.totalorder %s221, %s222
    %p231 = scmp.eq.s32.totalorder %s22, 0
    %p232 = por %p230, %p231
    %p233 = scmp.ne.s32.totalorder %s221, %s222
    %p234 = scmp.eq.s32.totalorder %s23, 1
    %p235 = por %p233, %p234
    %p237 = scmp.ne.s32.totalorder %s222, %s236
    %p238 = scmp.eq.s32.totalorder %s23, 0
    %p239 = por %p237, %p238
    %s241 = sadd.s32 %s240, 1
    %p244 = scmp.eq.s32.totalorder %s17, 1
    %p245 = scmp.ne.s32.totalorder %s240, %s242
    %p246 = scmp.eq.s32.totalorder %s17, 0
    %p247 = por %p245, %p246
    %p248 = scmp.ne.s32.totalorder %s240, %s242
    %p249 = scmp.eq.s32.totalorder %s22, 1
    %p250 = por %p248, %p249
    %p251 = scmp.ne.s32.totalorder %s242, %s243
    %p252 = scmp.eq.s32.totalorder %s22, 0
    %p253 = por %p251, %p252
    %p254 = scmp.ne.s32.totalorder %s242, %s243
    %p255 = scmp.eq.s32.totalorder %s23, 1
    %p256 = por %p254, %p255
    %p258 = scmp.ne.s32.totalorder %s243, %s257
    %p259 = scmp.eq.s32.totalorder %s23, 0
    %p260 = por %p258, %p259
    %s261 = ssub.s32 %s17, %s24
    %p262 = scmp.eq.s32.totalorder %s261, 0
    %s264 = sadd.s32 %s263, 1
    %s265 = scalar_select %p262, %s263, %s264
    %p268 = pneg %p262
    %p269 = scmp.eq.s32.totalorder %s17, 1
    %p270 = por %p268, %p269
    %p271 = scmp.ne.s32.totalorder %s263, %s266
    %p272 = scmp.eq.s32.totalorder %s17, 0
    %p273 = por %p271, %p272
    %p274 = scmp.ne.s32.totalorder %s263, %s266
    %p275 = scmp.eq.s32.totalorder %s22, 1
    %p276 = por %p274, %p275
    %p277 = scmp.ne.s32.totalorder %s266, %s267
    %p278 = scmp.eq.s32.totalorder %s22, 0
    %p279 = por %p277, %p278
    %p280 = scmp.ne.s32.totalorder %s266, %s267
    %p281 = scmp.eq.s32.totalorder %s23, 1
    %p282 = por %p280, %p281
    %p284 = scmp.ne.s32.totalorder %s267, %s283
    %p285 = scmp.eq.s32.totalorder %s23, 0
    %p286 = por %p284, %p285
    %p287 = scmp.le.s32.totalorder 1, %s17
    %p288 = scmp.lt.s32.totalorder %s17, 3
    %p289 = pnand %p287, %p288
    %p290 = pneg %p289
    // Predicated region
    $region9: #{equivalent_net_mnist.1} parent=5 // pred_check
      _
    $region10: #{equivalent_net_mnist.1} parent=5 // pred_check_branch
      %292 = sbr.rel (%p289) target = $region12
    $region11: #{equivalent_net_mnist.1} parent=5 // pred_region
      %s293 = ssub.s32 %s17, 1
      // Predicated region
      $region13: #{equivalent_net_mnist.1} parent=11 // pred_check
        %p294 = pneg %p64
      $region14: #{equivalent_net_mnist.1} parent=11 // pred_check_branch
        %296 = sbr.rel (%p294) target = $region16
      $region15: #{equivalent_net_mnist.1} parent=11 // pred_region
        _
      $region16: #{equivalent_net_mnist.1} parent=11 // pred_fallthru
        _
      // Predicated region
      $region17: #{equivalent_net_mnist.1} parent=11 // pred_check
        %p297 = pneg %p85
      $region18: #{equivalent_net_mnist.1} parent=11 // pred_check_branch
        %299 = sbr.rel (%p297) target = $region20
      $region19: #{equivalent_net_mnist.1} parent=11 // pred_region
        _
      $region20: #{equivalent_net_mnist.1} parent=11 // pred_fallthru
        _
      // Predicated region
      $region21: #{equivalent_net_mnist.1} parent=11 // pred_check
        %p300 = pneg %p106
      $region22: #{equivalent_net_mnist.1} parent=11 // pred_check_branch
        %302 = sbr.rel (%p300) target = $region24
      $region23: #{equivalent_net_mnist.1} parent=11 // pred_region
        _
      $region24: #{equivalent_net_mnist.1} parent=11 // pred_fallthru
        _
      // Predicated region
      $region25: #{equivalent_net_mnist.1} parent=11 // pred_check
        %p303 = pneg %p127
      $region26: #{equivalent_net_mnist.1} parent=11 // pred_check_branch
        %305 = sbr.rel (%p303) target = $region28
      $region27: #{equivalent_net_mnist.1} parent=11 // pred_region
        _
      $region28: #{equivalent_net_mnist.1} parent=11 // pred_fallthru
        _
      // Predicated region
      $region29: #{equivalent_net_mnist.1} parent=11 // pred_check
        %p306 = pneg %p148
      $region30: #{equivalent_net_mnist.1} parent=11 // pred_check_branch
        %308 = sbr.rel (%p306) target = $region32
      $region31: #{equivalent_net_mnist.1} parent=11 // pred_region
        _
      $region32: #{equivalent_net_mnist.1} parent=11 // pred_fallthru
        _
      // Predicated region
      $region33: #{equivalent_net_mnist.1} parent=11 // pred_check
        %p309 = pneg %p169
      $region34: #{equivalent_net_mnist.1} parent=11 // pred_check_branch
        %311 = sbr.rel (%p309) target = $region36
      $region35: #{equivalent_net_mnist.1} parent=11 // pred_region
        _
      $region36: #{equivalent_net_mnist.1} parent=11 // pred_fallthru
        _
      // Predicated region
      $region37: #{equivalent_net_mnist.1} parent=11 // pred_check
        %p312 = pneg %p190
      $region38: #{equivalent_net_mnist.1} parent=11 // pred_check_branch
        %314 = sbr.rel (%p312) target = $region40
      $region39: #{equivalent_net_mnist.1} parent=11 // pred_region
        _
      $region40: #{equivalent_net_mnist.1} parent=11 // pred_fallthru
        _
      // Predicated region
      $region41: #{equivalent_net_mnist.1} parent=11 // pred_check
        %p315 = pneg %p211
      $region42: #{equivalent_net_mnist.1} parent=11 // pred_check_branch
        %317 = sbr.rel (%p315) target = $region44
      $region43: #{equivalent_net_mnist.1} parent=11 // pred_region
        _
      $region44: #{equivalent_net_mnist.1} parent=11 // pred_fallthru
        _
      // Predicated region
      $region45: #{equivalent_net_mnist.1} parent=11 // pred_check
        %p318 = pneg %p232
      $region46: #{equivalent_net_mnist.1} parent=11 // pred_check_branch
        %320 = sbr.rel (%p318) target = $region48
      $region47: #{equivalent_net_mnist.1} parent=11 // pred_region
        _
      $region48: #{equivalent_net_mnist.1} parent=11 // pred_fallthru
        _
      // Predicated region
      $region49: #{equivalent_net_mnist.1} parent=11 // pred_check
        %p321 = pneg %p253
      $region50: #{equivalent_net_mnist.1} parent=11 // pred_check_branch
        %323 = sbr.rel (%p321) target = $region52
      $region51: #{equivalent_net_mnist.1} parent=11 // pred_region
        _
      $region52: #{equivalent_net_mnist.1} parent=11 // pred_fallthru
        _
    $region12: #{equivalent_net_mnist.1} parent=5 // pred_fallthru
      _
    %p324 = scmp.lt.s32.totalorder %s17, 2
    // Predicated region
    $region53: #{equivalent_net_mnist.1} parent=5 // pred_check
      %p325 = pneg %p324
    $region54: #{equivalent_net_mnist.1} parent=5 // pred_check_branch
      %327 = sbr.rel (%p325) target = $region56
    $region55: #{equivalent_net_mnist.1} parent=5 // pred_region
      // Predicated region
      $region57: #{equivalent_net_mnist.1} parent=55 // pred_check
        %p328 = pneg %p37
      $region58: #{equivalent_net_mnist.1} parent=55 // pred_check_branch
        %330 = sbr.rel (%p328) target = $region60
      $region59: #{equivalent_net_mnist.1} parent=55 // pred_region
        %s331 = smul.u32 8, %s17
        %p332 = scmp.lt.s32.totalorder %s331, 15
        %s333 = scalar_select %p332, %s331, 15
        %s334 = smul.addr %s333, 32
        %s335 = smul.addr %s334, 8
        %s336 = scalar_lea.vmem %s0, %s335
        %s337 = smul.u32 8, %s17
      $region60: #{equivalent_net_mnist.1} parent=55 // pred_fallthru
        _
    $region56: #{equivalent_net_mnist.1} parent=5 // pred_fallthru
      _
    %p338 = scmp.le.s32.totalorder 1, %s17
    %p339 = scmp.lt.s32.totalorder %s17, 3
    %p340 = pnand %p338, %p339
    %p341 = pneg %p340
    // Predicated region
    $region61: #{equivalent_net_mnist.1} parent=5 // pred_check
      _
    $region62: #{equivalent_net_mnist.1} parent=5 // pred_check_branch
      %343 = sbr.rel (%p340) target = $region64
    $region63: #{equivalent_net_mnist.1} parent=5 // pred_region
      %s344 = ssub.s32 %s17, 1
      %s345 = smul.u32 8, %s22
      %p346 = scmp.lt.s32.totalorder %s345, 15
      %s347 = scalar_select %p346, %s345, 15
      %s348 = smul.addr %s347, 32
      %s349 = smul.addr %s348, 8
      %s350 = scalar_lea.vmem %s0, %s349
      %p351 = pneg %p43
      %p352 = pneg %p40
      %p353 = pneg %p64
      %p354 = pneg %p61
      %p355 = pneg %p85
      %p356 = pneg %p82
      %p357 = pneg %p106
      %p358 = pneg %p103
      %p359 = pneg %p127
      %p360 = pneg %p124
      %p361 = pneg %p148
      %p362 = pneg %p145
      %p363 = pneg %p169
      %p364 = pneg %p166
      %p365 = pneg %p190
      %p366 = pneg %p187
      %p367 = pneg %p211
      %p368 = pneg %p208
      %p369 = pneg %p232
      %p370 = pneg %p229
      %p371 = pneg %p253
      %p372 = pneg %p250
      %p373 = pneg %p279
      %p374 = pneg %p276
      %p375 = scmp.lt.s32.totalorder %s22, 1
      %s376 = scalar_select %p375, %s22, 1
      %s377 = smul.addr %s376, 8
      %s378 = scalar_lea.vmem %s11, %s377
      %s379 = smul.u32 8, %s22
      %p380 = scmp.lt.s32.totalorder %s379, 15
      %s381 = scalar_select %p380, %s379, 15
      %s382 = smul.addr %s381, 32
      %s383 = smul.addr %s382, 8
      %s384 = scalar_lea.vmem %s0, %s383
      %s385 = smul.u32 8, %s22
      %p386 = scmp.lt.s32.totalorder %s22, 1
      %s387 = scalar_select %p386, %s22, 1
      %s388 = smul.addr %s387, 8
      %s389 = scalar_lea.vmem %s11, %s388
      %391 = vst [vmem:[#allocation2] sm:$0xff] 0.0
      %392 = vst [vmem:[#allocation2 + $0x8] sm:$0xff] 0.0
      %393 = vst [vmem:[#allocation2 + $0x1c8] sm:$0xff] 0.0
      %394 = vst [vmem:[#allocation2 + $0x1d0] sm:$0xff] 0.0
      %395 = vst [vmem:[#allocation2 + $0x390] sm:$0xff] 0.0
      %396 = vst [vmem:[#allocation2 + $0x398] sm:$0xff] 0.0
      %397 = vst [vmem:[#allocation2 + $0x558] sm:$0xff] 0.0
      %398 = vst [vmem:[#allocation2 + $0x560] sm:$0xff] 0.0
      %399 = vst [vmem:[#allocation2 + $0x720] sm:$0xff] 0.0
      %400 = vst [vmem:[#allocation2 + $0x728] sm:$0xff] 0.0
      %401 = vst [vmem:[#allocation2 + $0x8e8] sm:$0xff] 0.0
      %402 = vst [vmem:[#allocation2 + $0x8f0] sm:$0xff] 0.0
      %403 = vst [vmem:[#allocation2 + $0xab0] sm:$0xff] 0.0
      %404 = vst [vmem:[#allocation2 + $0xab8] sm:$0xff] 0.0
      %405 = vst [vmem:[#allocation2 + $0xc78] sm:$0xff] 0.0
      %406 = vst [vmem:[#allocation2 + $0xc80] sm:$0xff] 0.0
      %s407 = scalar_lea.vmem [#allocation2], 360
      %408 = vst [vmem:[%s407] sm:$0xff] 0.0
      %409 = vst [vmem:[%s407 + $0x8] sm:$0xff] 0.0
      %410 = vst [vmem:[%s407 + $0x1c8] sm:$0xff] 0.0
      %411 = vst [vmem:[%s407 + $0x1d0] sm:$0xff] 0.0
      %412 = vst [vmem:[%s407 + $0x390] sm:$0xff] 0.0
      %413 = vst [vmem:[%s407 + $0x398] sm:$0xff] 0.0
      %414 = vst [vmem:[%s407 + $0x558] sm:$0xff] 0.0
      %415 = vst [vmem:[%s407 + $0x560] sm:$0xff] 0.0
      %416 = vst [vmem:[%s407 + $0x720] sm:$0xff] 0.0
      %417 = vst [vmem:[%s407 + $0x728] sm:$0xff] 0.0
      %418 = vst [vmem:[%s407 + $0x8e8] sm:$0xff] 0.0
      %419 = vst [vmem:[%s407 + $0x8f0] sm:$0xff] 0.0
      %420 = vst [vmem:[%s407 + $0xab0] sm:$0xff] 0.0
      %421 = vst [vmem:[%s407 + $0xab8] sm:$0xff] 0.0
      %422 = vst [vmem:[%s407 + $0xc78] sm:$0xff] 0.0
      %423 = vst [vmem:[%s407 + $0xc80] sm:$0xff] 0.0
      %s424 = scalar_lea.vmem [#allocation2], 24
      %425 = vst [vmem:[%s424] sm:$0x1] 0.0
      %426 = vst [vmem:[%s424 + $0x18] sm:$0x1] 0.0
      %427 = vst [vmem:[%s424 + $0x30] sm:$0x1] 0.0
      %428 = vst [vmem:[%s424 + $0x48] sm:$0x1] 0.0
      %429 = vst [vmem:[%s424 + $0x60] sm:$0x1] 0.0
      %430 = vst [vmem:[%s424 + $0x78] sm:$0x1] 0.0
      %431 = vst [vmem:[%s424 + $0x90] sm:$0x1] 0.0
      %432 = vst [vmem:[%s424 + $0xa8] sm:$0x1] 0.0
      %433 = vst [vmem:[%s424 + $0xc0] sm:$0x1] 0.0
      %434 = vst [vmem:[%s424 + $0xd8] sm:$0x1] 0.0
      %435 = vst [vmem:[%s424 + $0xf0] sm:$0x1] 0.0
      %436 = vst [vmem:[%s424 + $0x108] sm:$0x1] 0.0
      %437 = vst [vmem:[%s424 + $0x120] sm:$0x1] 0.0
      %438 = vst [vmem:[%s424 + $0x138] sm:$0x1] 0.0
      %439 = vst [vmem:[%s424 + $0x1c8] sm:$0x1] 0.0
      %440 = vst [vmem:[%s424 + $0x1e0] sm:$0x1] 0.0
      %441 = vst [vmem:[%s424 + $0x1f8] sm:$0x1] 0.0
      %442 = vst [vmem:[%s424 + $0x210] sm:$0x1] 0.0
      %443 = vst [vmem:[%s424 + $0x228] sm:$0x1] 0.0
      %444 = vst [vmem:[%s424 + $0x240] sm:$0x1] 0.0
      %445 = vst [vmem:[%s424 + $0x258] sm:$0x1] 0.0
      %446 = vst [vmem:[%s424 + $0x270] sm:$0x1] 0.0
      %447 = vst [vmem:[%s424 + $0x288] sm:$0x1] 0.0
      %448 = vst [vmem:[%s424 + $0x2a0] sm:$0x1] 0.0
      %449 = vst [vmem:[%s424 + $0x2b8] sm:$0x1] 0.0
      %450 = vst [vmem:[%s424 + $0x2d0] sm:$0x1] 0.0
      %451 = vst [vmem:[%s424 + $0x2e8] sm:$0x1] 0.0
      %452 = vst [vmem:[%s424 + $0x300] sm:$0x1] 0.0
      %453 = vst [vmem:[%s424 + $0x390] sm:$0x1] 0.0
      %454 = vst [vmem:[%s424 + $0x3a8] sm:$0x1] 0.0
      %455 = vst [vmem:[%s424 + $0x3c0] sm:$0x1] 0.0
      %456 = vst [vmem:[%s424 + $0x3d8] sm:$0x1] 0.0
      %457 = vst [vmem:[%s424 + $0x3f0] sm:$0x1] 0.0
      %458 = vst [vmem:[%s424 + $0x408] sm:$0x1] 0.0
      %459 = vst [vmem:[%s424 + $0x420] sm:$0x1] 0.0
      %460 = vst [vmem:[%s424 + $0x438] sm:$0x1] 0.0
      %461 = vst [vmem:[%s424 + $0x450] sm:$0x1] 0.0
      %462 = vst [vmem:[%s424 + $0x468] sm:$0x1] 0.0
      %463 = vst [vmem:[%s424 + $0x480] sm:$0x1] 0.0
      %464 = vst [vmem:[%s424 + $0x498] sm:$0x1] 0.0
      %465 = vst [vmem:[%s424 + $0x4b0] sm:$0x1] 0.0
      %466 = vst [vmem:[%s424 + $0x4c8] sm:$0x1] 0.0
      %467 = vst [vmem:[%s424 + $0x558] sm:$0x1] 0.0
      %468 = vst [vmem:[%s424 + $0x570] sm:$0x1] 0.0
      %469 = vst [vmem:[%s424 + $0x588] sm:$0x1] 0.0
      %470 = vst [vmem:[%s424 + $0x5a0] sm:$0x1] 0.0
      %471 = vst [vmem:[%s424 + $0x5b8] sm:$0x1] 0.0
      %472 = vst [vmem:[%s424 + $0x5d0] sm:$0x1] 0.0
      %473 = vst [vmem:[%s424 + $0x5e8] sm:$0x1] 0.0
      %474 = vst [vmem:[%s424 + $0x600] sm:$0x1] 0.0
      %475 = vst [vmem:[%s424 + $0x618] sm:$0x1] 0.0
      %476 = vst [vmem:[%s424 + $0x630] sm:$0x1] 0.0
      %477 = vst [vmem:[%s424 + $0x648] sm:$0x1] 0.0
      %478 = vst [vmem:[%s424 + $0x660] sm:$0x1] 0.0
      %479 = vst [vmem:[%s424 + $0x678] sm:$0x1] 0.0
      %480 = vst [vmem:[%s424 + $0x690] sm:$0x1] 0.0
      %481 = vst [vmem:[%s424 + $0x720] sm:$0x1] 0.0
      %482 = vst [vmem:[%s424 + $0x738] sm:$0x1] 0.0
      %483 = vst [vmem:[%s424 + $0x750] sm:$0x1] 0.0
      %484 = vst [vmem:[%s424 + $0x768] sm:$0x1] 0.0
      %485 = vst [vmem:[%s424 + $0x780] sm:$0x1] 0.0
      %486 = vst [vmem:[%s424 + $0x798] sm:$0x1] 0.0
      %487 = vst [vmem:[%s424 + $0x7b0] sm:$0x1] 0.0
      %488 = vst [vmem:[%s424 + $0x7c8] sm:$0x1] 0.0
      %489 = vst [vmem:[%s424 + $0x7e0] sm:$0x1] 0.0
      %490 = vst [vmem:[%s424 + $0x7f8] sm:$0x1] 0.0
      %491 = vst [vmem:[%s424 + $0x810] sm:$0x1] 0.0
      %492 = vst [vmem:[%s424 + $0x828] sm:$0x1] 0.0
      %493 = vst [vmem:[%s424 + $0x840] sm:$0x1] 0.0
      %494 = vst [vmem:[%s424 + $0x858] sm:$0x1] 0.0
      %495 = vst [vmem:[%s424 + $0x8e8] sm:$0x1] 0.0
      %496 = vst [vmem:[%s424 + $0x900] sm:$0x1] 0.0
      %497 = vst [vmem:[%s424 + $0x918] sm:$0x1] 0.0
      %498 = vst [vmem:[%s424 + $0x930] sm:$0x1] 0.0
      %499 = vst [vmem:[%s424 + $0x948] sm:$0x1] 0.0
      %500 = vst [vmem:[%s424 + $0x960] sm:$0x1] 0.0
      %501 = vst [vmem:[%s424 + $0x978] sm:$0x1] 0.0
      %502 = vst [vmem:[%s424 + $0x990] sm:$0x1] 0.0
      %503 = vst [vmem:[%s424 + $0x9a8] sm:$0x1] 0.0
      %504 = vst [vmem:[%s424 + $0x9c0] sm:$0x1] 0.0
      %505 = vst [vmem:[%s424 + $0x9d8] sm:$0x1] 0.0
      %506 = vst [vmem:[%s424 + $0x9f0] sm:$0x1] 0.0
      %507 = vst [vmem:[%s424 + $0xa08] sm:$0x1] 0.0
      %508 = vst [vmem:[%s424 + $0xa20] sm:$0x1] 0.0
      %509 = vst [vmem:[%s424 + $0xab0] sm:$0x1] 0.0
      %510 = vst [vmem:[%s424 + $0xac8] sm:$0x1] 0.0
      %511 = vst [vmem:[%s424 + $0xae0] sm:$0x1] 0.0
      %512 = vst [vmem:[%s424 + $0xaf8] sm:$0x1] 0.0
      %513 = vst [vmem:[%s424 + $0xb10] sm:$0x1] 0.0
      %514 = vst [vmem:[%s424 + $0xb28] sm:$0x1] 0.0
      %515 = vst [vmem:[%s424 + $0xb40] sm:$0x1] 0.0
      %516 = vst [vmem:[%s424 + $0xb58] sm:$0x1] 0.0
      %517 = vst [vmem:[%s424 + $0xb70] sm:$0x1] 0.0
      %518 = vst [vmem:[%s424 + $0xb88] sm:$0x1] 0.0
      %519 = vst [vmem:[%s424 + $0xba0] sm:$0x1] 0.0
      %520 = vst [vmem:[%s424 + $0xbb8] sm:$0x1] 0.0
      %521 = vst [vmem:[%s424 + $0xbd0] sm:$0x1] 0.0
      %522 = vst [vmem:[%s424 + $0xbe8] sm:$0x1] 0.0
      %523 = vst [vmem:[%s424 + $0xc78] sm:$0x1] 0.0
      %524 = vst [vmem:[%s424 + $0xc90] sm:$0x1] 0.0
      %525 = vst [vmem:[%s424 + $0xca8] sm:$0x1] 0.0
      %526 = vst [vmem:[%s424 + $0xcc0] sm:$0x1] 0.0
      %527 = vst [vmem:[%s424 + $0xcd8] sm:$0x1] 0.0
      %528 = vst [vmem:[%s424 + $0xcf0] sm:$0x1] 0.0
      %529 = vst [vmem:[%s424 + $0xd08] sm:$0x1] 0.0
      %530 = vst [vmem:[%s424 + $0xd20] sm:$0x1] 0.0
      %531 = vst [vmem:[%s424 + $0xd38] sm:$0x1] 0.0
      %532 = vst [vmem:[%s424 + $0xd50] sm:$0x1] 0.0
      %533 = vst [vmem:[%s424 + $0xd68] sm:$0x1] 0.0
      %534 = vst [vmem:[%s424 + $0xd80] sm:$0x1] 0.0
      %535 = vst [vmem:[%s424 + $0xd98] sm:$0x1] 0.0
      %536 = vst [vmem:[%s424 + $0xdb0] sm:$0x1] 0.0
      %537 = vst [vmem:[%s424 + $0xf] sm:$0x1] 0.0
      %538 = vst [vmem:[%s424 + $0x27] sm:$0x1] 0.0
      %539 = vst [vmem:[%s424 + $0x3f] sm:$0x1] 0.0
      %540 = vst [vmem:[%s424 + $0x57] sm:$0x1] 0.0
      %541 = vst [vmem:[%s424 + $0x6f] sm:$0x1] 0.0
      %542 = vst [vmem:[%s424 + $0x87] sm:$0x1] 0.0
      %543 = vst [vmem:[%s424 + $0x9f] sm:$0x1] 0.0
      %544 = vst [vmem:[%s424 + $0xb7] sm:$0x1] 0.0
      %545 = vst [vmem:[%s424 + $0xcf] sm:$0x1] 0.0
      %546 = vst [vmem:[%s424 + $0xe7] sm:$0x1] 0.0
      %547 = vst [vmem:[%s424 + $0xff] sm:$0x1] 0.0
      %548 = vst [vmem:[%s424 + $0x117] sm:$0x1] 0.0
      %549 = vst [vmem:[%s424 + $0x12f] sm:$0x1] 0.0
      %550 = vst [vmem:[%s424 + $0x147] sm:$0x1] 0.0
      %551 = vst [vmem:[%s424 + $0x1d7] sm:$0x1] 0.0
      %552 = vst [vmem:[%s424 + $0x1ef] sm:$0x1] 0.0
      %553 = vst [vmem:[%s424 + $0x207] sm:$0x1] 0.0
      %554 = vst [vmem:[%s424 + $0x21f] sm:$0x1] 0.0
      %555 = vst [vmem:[%s424 + $0x237] sm:$0x1] 0.0
      %556 = vst [vmem:[%s424 + $0x24f] sm:$0x1] 0.0
      %557 = vst [vmem:[%s424 + $0x267] sm:$0x1] 0.0
      %558 = vst [vmem:[%s424 + $0x27f] sm:$0x1] 0.0
      %559 = vst [vmem:[%s424 + $0x297] sm:$0x1] 0.0
      %560 = vst [vmem:[%s424 + $0x2af] sm:$0x1] 0.0
      %561 = vst [vmem:[%s424 + $0x2c7] sm:$0x1] 0.0
      %562 = vst [vmem:[%s424 + $0x2df] sm:$0x1] 0.0
      %563 = vst [vmem:[%s424 + $0x2f7] sm:$0x1] 0.0
      %564 = vst [vmem:[%s424 + $0x30f] sm:$0x1] 0.0
      %565 = vst [vmem:[%s424 + $0x39f] sm:$0x1] 0.0
      %566 = vst [vmem:[%s424 + $0x3b7] sm:$0x1] 0.0
      %567 = vst [vmem:[%s424 + $0x3cf] sm:$0x1] 0.0
      %568 = vst [vmem:[%s424 + $0x3e7] sm:$0x1] 0.0
      %569 = vst [vmem:[%s424 + $0x3ff] sm:$0x1] 0.0
      %570 = vst [vmem:[%s424 + $0x417] sm:$0x1] 0.0
      %571 = vst [vmem:[%s424 + $0x42f] sm:$0x1] 0.0
      %572 = vst [vmem:[%s424 + $0x447] sm:$0x1] 0.0
      %573 = vst [vmem:[%s424 + $0x45f] sm:$0x1] 0.0
      %574 = vst [vmem:[%s424 + $0x477] sm:$0x1] 0.0
      %575 = vst [vmem:[%s424 + $0x48f] sm:$0x1] 0.0
      %576 = vst [vmem:[%s424 + $0x4a7] sm:$0x1] 0.0
      %577 = vst [vmem:[%s424 + $0x4bf] sm:$0x1] 0.0
      %578 = vst [vmem:[%s424 + $0x4d7] sm:$0x1] 0.0
      %579 = vst [vmem:[%s424 + $0x567] sm:$0x1] 0.0
      %580 = vst [vmem:[%s424 + $0x57f] sm:$0x1] 0.0
      %581 = vst [vmem:[%s424 + $0x597] sm:$0x1] 0.0
      %582 = vst [vmem:[%s424 + $0x5af] sm:$0x1] 0.0
      %583 = vst [vmem:[%s424 + $0x5c7] sm:$0x1] 0.0
      %584 = vst [vmem:[%s424 + $0x5df] sm:$0x1] 0.0
      %585 = vst [vmem:[%s424 + $0x5f7] sm:$0x1] 0.0
      %586 = vst [vmem:[%s424 + $0x60f] sm:$0x1] 0.0
      %587 = vst [vmem:[%s424 + $0x627] sm:$0x1] 0.0
      %588 = vst [vmem:[%s424 + $0x63f] sm:$0x1] 0.0
      %589 = vst [vmem:[%s424 + $0x657] sm:$0x1] 0.0
      %590 = vst [vmem:[%s424 + $0x66f] sm:$0x1] 0.0
      %591 = vst [vmem:[%s424 + $0x687] sm:$0x1] 0.0
      %592 = vst [vmem:[%s424 + $0x69f] sm:$0x1] 0.0
      %593 = vst [vmem:[%s424 + $0x72f] sm:$0x1] 0.0
      %594 = vst [vmem:[%s424 + $0x747] sm:$0x1] 0.0
      %595 = vst [vmem:[%s424 + $0x75f] sm:$0x1] 0.0
      %596 = vst [vmem:[%s424 + $0x777] sm:$0x1] 0.0
      %597 = vst [vmem:[%s424 + $0x78f] sm:$0x1] 0.0
      %598 = vst [vmem:[%s424 + $0x7a7] sm:$0x1] 0.0
      %599 = vst [vmem:[%s424 + $0x7bf] sm:$0x1] 0.0
      %600 = vst [vmem:[%s424 + $0x7d7] sm:$0x1] 0.0
      %601 = vst [vmem:[%s424 + $0x7ef] sm:$0x1] 0.0
      %602 = vst [vmem:[%s424 + $0x807] sm:$0x1] 0.0
      %603 = vst [vmem:[%s424 + $0x81f] sm:$0x1] 0.0
      %604 = vst [vmem:[%s424 + $0x837] sm:$0x1] 0.0
      %605 = vst [vmem:[%s424 + $0x84f] sm:$0x1] 0.0
      %606 = vst [vmem:[%s424 + $0x867] sm:$0x1] 0.0
      %607 = vst [vmem:[%s424 + $0x8f7] sm:$0x1] 0.0
      %608 = vst [vmem:[%s424 + $0x90f] sm:$0x1] 0.0
      %609 = vst [vmem:[%s424 + $0x927] sm:$0x1] 0.0
      %610 = vst [vmem:[%s424 + $0x93f] sm:$0x1] 0.0
      %611 = vst [vmem:[%s424 + $0x957] sm:$0x1] 0.0
      %612 = vst [vmem:[%s424 + $0x96f] sm:$0x1] 0.0
      %613 = vst [vmem:[%s424 + $0x987] sm:$0x1] 0.0
      %614 = vst [vmem:[%s424 + $0x99f] sm:$0x1] 0.0
      %615 = vst [vmem:[%s424 + $0x9b7] sm:$0x1] 0.0
      %616 = vst [vmem:[%s424 + $0x9cf] sm:$0x1] 0.0
      %617 = vst [vmem:[%s424 + $0x9e7] sm:$0x1] 0.0
      %618 = vst [vmem:[%s424 + $0x9ff] sm:$0x1] 0.0
      %619 = vst [vmem:[%s424 + $0xa17] sm:$0x1] 0.0
      %620 = vst [vmem:[%s424 + $0xa2f] sm:$0x1] 0.0
      %621 = vst [vmem:[%s424 + $0xabf] sm:$0x1] 0.0
      %622 = vst [vmem:[%s424 + $0xad7] sm:$0x1] 0.0
      %623 = vst [vmem:[%s424 + $0xaef] sm:$0x1] 0.0
      %624 = vst [vmem:[%s424 + $0xb07] sm:$0x1] 0.0
      %625 = vst [vmem:[%s424 + $0xb1f] sm:$0x1] 0.0
      %626 = vst [vmem:[%s424 + $0xb37] sm:$0x1] 0.0
      %627 = vst [vmem:[%s424 + $0xb4f] sm:$0x1] 0.0
      %628 = vst [vmem:[%s424 + $0xb67] sm:$0x1] 0.0
      %629 = vst [vmem:[%s424 + $0xb7f] sm:$0x1] 0.0
      %630 = vst [vmem:[%s424 + $0xb97] sm:$0x1] 0.0
      %631 = vst [vmem:[%s424 + $0xbaf] sm:$0x1] 0.0
      %632 = vst [vmem:[%s424 + $0xbc7] sm:$0x1] 0.0
      %633 = vst [vmem:[%s424 + $0xbdf] sm:$0x1] 0.0
      %634 = vst [vmem:[%s424 + $0xbf7] sm:$0x1] 0.0
      %635 = vst [vmem:[%s424 + $0xc87] sm:$0x1] 0.0
      %636 = vst [vmem:[%s424 + $0xc9f] sm:$0x1] 0.0
      %637 = vst [vmem:[%s424 + $0xcb7] sm:$0x1] 0.0
      %638 = vst [vmem:[%s424 + $0xccf] sm:$0x1] 0.0
      %639 = vst [vmem:[%s424 + $0xce7] sm:$0x1] 0.0
      %640 = vst [vmem:[%s424 + $0xcff] sm:$0x1] 0.0
      %641 = vst [vmem:[%s424 + $0xd17] sm:$0x1] 0.0
      %642 = vst [vmem:[%s424 + $0xd2f] sm:$0x1] 0.0
      %643 = vst [vmem:[%s424 + $0xd47] sm:$0x1] 0.0
      %644 = vst [vmem:[%s424 + $0xd5f] sm:$0x1] 0.0
      %645 = vst [vmem:[%s424 + $0xd77] sm:$0x1] 0.0
      %646 = vst [vmem:[%s424 + $0xd8f] sm:$0x1] 0.0
      %647 = vst [vmem:[%s424 + $0xda7] sm:$0x1] 0.0
      %648 = vst [vmem:[%s424 + $0xdbf] sm:$0x1] 0.0
      loop: start=0, step=1, limit=8
      $region65: #{equivalent_net_mnist.1} parent=63 // loop_pre_header
        _
      $region66: #{equivalent_net_mnist.1} parent=63 // loop_header
        %s650 = sphi 0, %s654
        %p651 = scmp.ge.s32.totalorder %s650, 8
      $region67: #{equivalent_net_mnist.1} parent=63 // loop_header_branch
        %653 = sbr.rel (%p651) target = $region71
      $region68: #{equivalent_net_mnist.1} parent=63 // loop_body
        %s655 = smul.u32 %s650, 256
        %s656 = scalar_lea.vmem %s384, %s655
        %v657 = vld [vmem:[%s656] sm:$0xff]
        %v658 = vld [vmem:[%s656 + $0x8] sm:$0x3f]
        %v659 = vld [vmem:[%s656 + $0x10] sm:$0xff]
        %v660 = vld [vmem:[%s656 + $0x18] sm:$0x3f]
        %v661 = vld [vmem:[%s656 + $0x20] sm:$0xff]
        %v662 = vld [vmem:[%s656 + $0x28] sm:$0x3f]
        %v663 = vld [vmem:[%s656 + $0x30] sm:$0xff]
        %v664 = vld [vmem:[%s656 + $0x38] sm:$0x3f]
        %v665 = vld [vmem:[%s656 + $0x40] sm:$0xff]
        %v666 = vld [vmem:[%s656 + $0x48] sm:$0x3f]
        %v667 = vld [vmem:[%s656 + $0x50] sm:$0xff]
        %v668 = vld [vmem:[%s656 + $0x58] sm:$0x3f]
        %v669 = vld [vmem:[%s656 + $0x60] sm:$0xff]
        %v670 = vld [vmem:[%s656 + $0x68] sm:$0x3f]
        %v671 = vld [vmem:[%s656 + $0x70] sm:$0xff]
        %v672 = vld [vmem:[%s656 + $0x78] sm:$0x3f]
        %v673 = vld [vmem:[%s656 + $0x80] sm:$0xff]
        %v674 = vld [vmem:[%s656 + $0x88] sm:$0x3f]
        %v675 = vld [vmem:[%s656 + $0x90] sm:$0xff]
        %v676 = vld [vmem:[%s656 + $0x98] sm:$0x3f]
        %v677 = vld [vmem:[%s656 + $0xa0] sm:$0xff]
        %v678 = vld [vmem:[%s656 + $0xa8] sm:$0x3f]
        %v679 = vld [vmem:[%s656 + $0xb0] sm:$0xff]
        %v680 = vld [vmem:[%s656 + $0xb8] sm:$0x3f]
        %v681 = vld [vmem:[%s656 + $0xc0] sm:$0xff]
        %v682 = vld [vmem:[%s656 + $0xc8] sm:$0x3f]
        %v683 = vld [vmem:[%s656 + $0xd0] sm:$0xff]
        %v684 = vld [vmem:[%s656 + $0xd8] sm:$0x3f]
        %v685 = vld [vmem:[%s1] sm:$0x1]
        %687 = vset.pattern.permute.xlu0 0
        %688 = vperm.xlu0 %687, %v657
        %v689 = vpop.permute.xlu0 %688
        %692 = vset.pattern.permute.xlu0 0
        %693 = vperm.xlu0 %692, %v658
        %v694 = vpop.permute.xlu0 %693
        %697 = vset.pattern.permute.xlu0 0
        %698 = vperm.xlu0 %697, %v659
        %v699 = vpop.permute.xlu0 %698
        %702 = vset.pattern.permute.xlu0 0
        %703 = vperm.xlu0 %702, %v660
        %v704 = vpop.permute.xlu0 %703
        %707 = vset.pattern.permute.xlu0 0
        %708 = vperm.xlu0 %707, %v661
        %v709 = vpop.permute.xlu0 %708
        %712 = vset.pattern.permute.xlu0 0
        %713 = vperm.xlu0 %712, %v662
        %v714 = vpop.permute.xlu0 %713
        %717 = vset.pattern.permute.xlu0 0
        %718 = vperm.xlu0 %717, %v663
        %v719 = vpop.permute.xlu0 %718
        %722 = vset.pattern.permute.xlu0 0
        %723 = vperm.xlu0 %722, %v664
        %v724 = vpop.permute.xlu0 %723
        %727 = vset.pattern.permute.xlu0 0
        %728 = vperm.xlu0 %727, %v665
        %v729 = vpop.permute.xlu0 %728
        %732 = vset.pattern.permute.xlu0 0
        %733 = vperm.xlu0 %732, %v666
        %v734 = vpop.permute.xlu0 %733
        %737 = vset.pattern.permute.xlu0 0
        %738 = vperm.xlu0 %737, %v667
        %v739 = vpop.permute.xlu0 %738
        %742 = vset.pattern.permute.xlu0 0
        %743 = vperm.xlu0 %742, %v668
        %v744 = vpop.permute.xlu0 %743
        %747 = vset.pattern.permute.xlu0 0
        %748 = vperm.xlu0 %747, %v669
        %v749 = vpop.permute.xlu0 %748
        %752 = vset.pattern.permute.xlu0 0
        %753 = vperm.xlu0 %752, %v670
        %v754 = vpop.permute.xlu0 %753
        %757 = vset.pattern.permute.xlu0 0
        %758 = vperm.xlu0 %757, %v671
        %v759 = vpop.permute.xlu0 %758
        %762 = vset.pattern.permute.xlu0 0
        %763 = vperm.xlu0 %762, %v672
        %v764 = vpop.permute.xlu0 %763
        %767 = vset.pattern.permute.xlu0 0
        %768 = vperm.xlu0 %767, %v673
        %v769 = vpop.permute.xlu0 %768
        %772 = vset.pattern.permute.xlu0 0
        %773 = vperm.xlu0 %772, %v674
        %v774 = vpop.permute.xlu0 %773
        %777 = vset.pattern.permute.xlu0 0
        %778 = vperm.xlu0 %777, %v675
        %v779 = vpop.permute.xlu0 %778
        %782 = vset.pattern.permute.xlu0 0
        %783 = vperm.xlu0 %782, %v676
        %v784 = vpop.permute.xlu0 %783
        %787 = vset.pattern.permute.xlu0 0
        %788 = vperm.xlu0 %787, %v677
        %v789 = vpop.permute.xlu0 %788
        %792 = vset.pattern.permute.xlu0 0
        %793 = vperm.xlu0 %792, %v678
        %v794 = vpop.permute.xlu0 %793
        %797 = vset.pattern.permute.xlu0 0
        %798 = vperm.xlu0 %797, %v679
        %v799 = vpop.permute.xlu0 %798
        %802 = vset.pattern.permute.xlu0 0
        %803 = vperm.xlu0 %802, %v680
        %v804 = vpop.permute.xlu0 %803
        %807 = vset.pattern.permute.xlu0 0
        %808 = vperm.xlu0 %807, %v681
        %v809 = vpop.permute.xlu0 %808
        %812 = vset.pattern.permute.xlu0 0
        %813 = vperm.xlu0 %812, %v682
        %v814 = vpop.permute.xlu0 %813
        %817 = vset.pattern.permute.xlu0 0
        %818 = vperm.xlu0 %817, %v683
        %v819 = vpop.permute.xlu0 %818
        %822 = vset.pattern.permute.xlu0 0
        %823 = vperm.xlu0 %822, %v684
        %v824 = vpop.permute.xlu0 %823
        %v826 = vlaneseq
        %v827 = vshrl.u32 %v826, 7
        %v828 = vsub.s32 0, %v827
        %v829 = vrot.slane %v685, %v828
        %v830 = vmul.f32 %v689, %v829
        %v831 = vmul.f32 %v694, %v829
        %v832 = vmul.f32 %v699, %v829
        %v833 = vmul.f32 %v704, %v829
        %v834 = vmul.f32 %v709, %v829
        %v835 = vmul.f32 %v714, %v829
        %v836 = vmul.f32 %v719, %v829
        %v837 = vmul.f32 %v724, %v829
        %v838 = vmul.f32 %v729, %v829
        %v839 = vmul.f32 %v734, %v829
        %v840 = vmul.f32 %v739, %v829
        %v841 = vmul.f32 %v744, %v829
        %v842 = vmul.f32 %v749, %v829
        %v843 = vmul.f32 %v754, %v829
        %v844 = vmul.f32 %v759, %v829
        %v845 = vmul.f32 %v764, %v829
        %v846 = vmul.f32 %v769, %v829
        %v847 = vmul.f32 %v774, %v829
        %v848 = vmul.f32 %v779, %v829
        %v849 = vmul.f32 %v784, %v829
        %v850 = vmul.f32 %v789, %v829
        %v851 = vmul.f32 %v794, %v829
        %v852 = vmul.f32 %v799, %v829
        %v853 = vmul.f32 %v804, %v829
        %v854 = vmul.f32 %v809, %v829
        %v855 = vmul.f32 %v814, %v829
        %v856 = vmul.f32 %v819, %v829
        %v857 = vmul.f32 %v824, %v829
        %v858 = vld [vmem:[%s656 + $0x1] sm:$0xff]
        %v859 = vld [vmem:[%s656 + $0x9] sm:$0x3f]
        %v860 = vld [vmem:[%s656 + $0x11] sm:$0xff]
        %v861 = vld [vmem:[%s656 + $0x19] sm:$0x3f]
        %v862 = vld [vmem:[%s656 + $0x21] sm:$0xff]
        %v863 = vld [vmem:[%s656 + $0x29] sm:$0x3f]
        %v864 = vld [vmem:[%s656 + $0x31] sm:$0xff]
        %v865 = vld [vmem:[%s656 + $0x39] sm:$0x3f]
        %v866 = vld [vmem:[%s656 + $0x41] sm:$0xff]
        %v867 = vld [vmem:[%s656 + $0x49] sm:$0x3f]
        %v868 = vld [vmem:[%s656 + $0x51] sm:$0xff]
        %v869 = vld [vmem:[%s656 + $0x59] sm:$0x3f]
        %v870 = vld [vmem:[%s656 + $0x61] sm:$0xff]
        %v871 = vld [vmem:[%s656 + $0x69] sm:$0x3f]
        %v872 = vld [vmem:[%s656 + $0x71] sm:$0xff]
        %v873 = vld [vmem:[%s656 + $0x79] sm:$0x3f]
        %v874 = vld [vmem:[%s656 + $0x81] sm:$0xff]
        %v875 = vld [vmem:[%s656 + $0x89] sm:$0x3f]
        %v876 = vld [vmem:[%s656 + $0x91] sm:$0xff]
        %v877 = vld [vmem:[%s656 + $0x99] sm:$0x3f]
        %v878 = vld [vmem:[%s656 + $0xa1] sm:$0xff]
        %v879 = vld [vmem:[%s656 + $0xa9] sm:$0x3f]
        %v880 = vld [vmem:[%s656 + $0xb1] sm:$0xff]
        %v881 = vld [vmem:[%s656 + $0xb9] sm:$0x3f]
        %v882 = vld [vmem:[%s656 + $0xc1] sm:$0xff]
        %v883 = vld [vmem:[%s656 + $0xc9] sm:$0x3f]
        %v884 = vld [vmem:[%s656 + $0xd1] sm:$0xff]
        %v885 = vld [vmem:[%s656 + $0xd9] sm:$0x3f]
        %v886 = vld [vmem:[%s1 + $0x1] sm:$0x1]
        %888 = vset.pattern.permute.xlu0 0
        %889 = vperm.xlu0 %888, %v858
        %v890 = vpop.permute.xlu0 %889
        %893 = vset.pattern.permute.xlu0 0
        %894 = vperm.xlu0 %893, %v859
        %v895 = vpop.permute.xlu0 %894
        %898 = vset.pattern.permute.xlu0 0
        %899 = vperm.xlu0 %898, %v860
        %v900 = vpop.permute.xlu0 %899
        %903 = vset.pattern.permute.xlu0 0
        %904 = vperm.xlu0 %903, %v861
        %v905 = vpop.permute.xlu0 %904
        %908 = vset.pattern.permute.xlu0 0
        %909 = vperm.xlu0 %908, %v862
        %v910 = vpop.permute.xlu0 %909
        %913 = vset.pattern.permute.xlu0 0
        %914 = vperm.xlu0 %913, %v863
        %v915 = vpop.permute.xlu0 %914
        %918 = vset.pattern.permute.xlu0 0
        %919 = vperm.xlu0 %918, %v864
        %v920 = vpop.permute.xlu0 %919
        %923 = vset.pattern.permute.xlu0 0
        %924 = vperm.xlu0 %923, %v865
        %v925 = vpop.permute.xlu0 %924
        %928 = vset.pattern.permute.xlu0 0
        %929 = vperm.xlu0 %928, %v866
        %v930 = vpop.permute.xlu0 %929
        %933 = vset.pattern.permute.xlu0 0
        %934 = vperm.xlu0 %933, %v867
        %v935 = vpop.permute.xlu0 %934
        %938 = vset.pattern.permute.xlu0 0
        %939 = vperm.xlu0 %938, %v868
        %v940 = vpop.permute.xlu0 %939
        %943 = vset.pattern.permute.xlu0 0
        %944 = vperm.xlu0 %943, %v869
        %v945 = vpop.permute.xlu0 %944
        %948 = vset.pattern.permute.xlu0 0
        %949 = vperm.xlu0 %948, %v870
        %v950 = vpop.permute.xlu0 %949
        %953 = vset.pattern.permute.xlu0 0
        %954 = vperm.xlu0 %953, %v871
        %v955 = vpop.permute.xlu0 %954
        %958 = vset.pattern.permute.xlu0 0
        %959 = vperm.xlu0 %958, %v872
        %v960 = vpop.permute.xlu0 %959
        %963 = vset.pattern.permute.xlu0 0
        %964 = vperm.xlu0 %963, %v873
        %v965 = vpop.permute.xlu0 %964
        %968 = vset.pattern.permute.xlu0 0
        %969 = vperm.xlu0 %968, %v874
        %v970 = vpop.permute.xlu0 %969
        %973 = vset.pattern.permute.xlu0 0
        %974 = vperm.xlu0 %973, %v875
        %v975 = vpop.permute.xlu0 %974
        %978 = vset.pattern.permute.xlu0 0
        %979 = vperm.xlu0 %978, %v876
        %v980 = vpop.permute.xlu0 %979
        %983 = vset.pattern.permute.xlu0 0
        %984 = vperm.xlu0 %983, %v877
        %v985 = vpop.permute.xlu0 %984
        %988 = vset.pattern.permute.xlu0 0
        %989 = vperm.xlu0 %988, %v878
        %v990 = vpop.permute.xlu0 %989
        %993 = vset.pattern.permute.xlu0 0
        %994 = vperm.xlu0 %993, %v879
        %v995 = vpop.permute.xlu0 %994
        %998 = vset.pattern.permute.xlu0 0
        %999 = vperm.xlu0 %998, %v880
        %v1000 = vpop.permute.xlu0 %999
        %1003 = vset.pattern.permute.xlu0 0
        %1004 = vperm.xlu0 %1003, %v881
        %v1005 = vpop.permute.xlu0 %1004
        %1008 = vset.pattern.permute.xlu0 0
        %1009 = vperm.xlu0 %1008, %v882
        %v1010 = vpop.permute.xlu0 %1009
        %1013 = vset.pattern.permute.xlu0 0
        %1014 = vperm.xlu0 %1013, %v883
        %v1015 = vpop.permute.xlu0 %1014
        %1018 = vset.pattern.permute.xlu0 0
        %1019 = vperm.xlu0 %1018, %v884
        %v1020 = vpop.permute.xlu0 %1019
        %1023 = vset.pattern.permute.xlu0 0
        %1024 = vperm.xlu0 %1023, %v885
        %v1025 = vpop.permute.xlu0 %1024
        %v1027 = vlaneseq
        %v1028 = vshrl.u32 %v1027, 7
        %v1029 = vsub.s32 0, %v1028
        %v1030 = vrot.slane %v886, %v1029
        %v1031 = vmul.f32 %v890, %v1030
        %v1032 = vmul.f32 %v895, %v1030
        %v1033 = vmul.f32 %v900, %v1030
        %v1034 = vmul.f32 %v905, %v1030
        %v1035 = vmul.f32 %v910, %v1030
        %v1036 = vmul.f32 %v915, %v1030
        %v1037 = vmul.f32 %v920, %v1030
        %v1038 = vmul.f32 %v925, %v1030
        %v1039 = vmul.f32 %v930, %v1030
        %v1040 = vmul.f32 %v935, %v1030
        %v1041 = vmul.f32 %v940, %v1030
        %v1042 = vmul.f32 %v945, %v1030
        %v1043 = vmul.f32 %v950, %v1030
        %v1044 = vmul.f32 %v955, %v1030
        %v1045 = vmul.f32 %v960, %v1030
        %v1046 = vmul.f32 %v965, %v1030
        %v1047 = vmul.f32 %v970, %v1030
        %v1048 = vmul.f32 %v975, %v1030
        %v1049 = vmul.f32 %v980, %v1030
        %v1050 = vmul.f32 %v985, %v1030
        %v1051 = vmul.f32 %v990, %v1030
        %v1052 = vmul.f32 %v995, %v1030
        %v1053 = vmul.f32 %v1000, %v1030
        %v1054 = vmul.f32 %v1005, %v1030
        %v1055 = vmul.f32 %v1010, %v1030
        %v1056 = vmul.f32 %v1015, %v1030
        %v1057 = vmul.f32 %v1020, %v1030
        %v1058 = vmul.f32 %v1025, %v1030
        %v1059 = vadd.f32 %v830, %v1031
        %v1060 = vadd.f32 %v831, %v1032
        %v1061 = vadd.f32 %v832, %v1033
        %v1062 = vadd.f32 %v833, %v1034
        %v1063 = vadd.f32 %v834, %v1035
        %v1064 = vadd.f32 %v835, %v1036
        %v1065 = vadd.f32 %v836, %v1037
        %v1066 = vadd.f32 %v837, %v1038
        %v1067 = vadd.f32 %v838, %v1039
        %v1068 = vadd.f32 %v839, %v1040
        %v1069 = vadd.f32 %v840, %v1041
        %v1070 = vadd.f32 %v841, %v1042
        %v1071 = vadd.f32 %v842, %v1043
        %v1072 = vadd.f32 %v843, %v1044
        %v1073 = vadd.f32 %v844, %v1045
        %v1074 = vadd.f32 %v845, %v1046
        %v1075 = vadd.f32 %v846, %v1047
        %v1076 = vadd.f32 %v847, %v1048
        %v1077 = vadd.f32 %v848, %v1049
        %v1078 = vadd.f32 %v849, %v1050
        %v1079 = vadd.f32 %v850, %v1051
        %v1080 = vadd.f32 %v851, %v1052
        %v1081 = vadd.f32 %v852, %v1053
        %v1082 = vadd.f32 %v853, %v1054
        %v1083 = vadd.f32 %v854, %v1055
        %v1084 = vadd.f32 %v855, %v1056
        %v1085 = vadd.f32 %v856, %v1057
        %v1086 = vadd.f32 %v857, %v1058
        %v1087 = vld [vmem:[%s656 + $0x2] sm:$0xff]
        %v1088 = vld [vmem:[%s656 + $0xa] sm:$0x3f]
        %v1089 = vld [vmem:[%s656 + $0x12] sm:$0xff]
        %v1090 = vld [vmem:[%s656 + $0x1a] sm:$0x3f]
        %v1091 = vld [vmem:[%s656 + $0x22] sm:$0xff]
        %v1092 = vld [vmem:[%s656 + $0x2a] sm:$0x3f]
        %v1093 = vld [vmem:[%s656 + $0x32] sm:$0xff]
        %v1094 = vld [vmem:[%s656 + $0x3a] sm:$0x3f]
        %v1095 = vld [vmem:[%s656 + $0x42] sm:$0xff]
        %v1096 = vld [vmem:[%s656 + $0x4a] sm:$0x3f]
        %v1097 = vld [vmem:[%s656 + $0x52] sm:$0xff]
        %v1098 = vld [vmem:[%s656 + $0x5a] sm:$0x3f]
        %v1099 = vld [vmem:[%s656 + $0x62] sm:$0xff]
        %v1100 = vld [vmem:[%s656 + $0x6a] sm:$0x3f]
        %v1101 = vld [vmem:[%s656 + $0x72] sm:$0xff]
        %v1102 = vld [vmem:[%s656 + $0x7a] sm:$0x3f]
        %v1103 = vld [vmem:[%s656 + $0x82] sm:$0xff]
        %v1104 = vld [vmem:[%s656 + $0x8a] sm:$0x3f]
        %v1105 = vld [vmem:[%s656 + $0x92] sm:$0xff]
        %v1106 = vld [vmem:[%s656 + $0x9a] sm:$0x3f]
        %v1107 = vld [vmem:[%s656 + $0xa2] sm:$0xff]
        %v1108 = vld [vmem:[%s656 + $0xaa] sm:$0x3f]
        %v1109 = vld [vmem:[%s656 + $0xb2] sm:$0xff]
        %v1110 = vld [vmem:[%s656 + $0xba] sm:$0x3f]
        %v1111 = vld [vmem:[%s656 + $0xc2] sm:$0xff]
        %v1112 = vld [vmem:[%s656 + $0xca] sm:$0x3f]
        %v1113 = vld [vmem:[%s656 + $0xd2] sm:$0xff]
        %v1114 = vld [vmem:[%s656 + $0xda] sm:$0x3f]
        %v1115 = vld [vmem:[%s1 + $0x2] sm:$0x1]
        %1117 = vset.pattern.permute.xlu0 0
        %1118 = vperm.xlu0 %1117, %v1087
        %v1119 = vpop.permute.xlu0 %1118
        %1122 = vset.pattern.permute.xlu0 0
        %1123 = vperm.xlu0 %1122, %v1088
        %v1124 = vpop.permute.xlu0 %1123
        %1127 = vset.pattern.permute.xlu0 0
        %1128 = vperm.xlu0 %1127, %v1089
        %v1129 = vpop.permute.xlu0 %1128
        %1132 = vset.pattern.permute.xlu0 0
        %1133 = vperm.xlu0 %1132, %v1090
        %v1134 = vpop.permute.xlu0 %1133
        %1137 = vset.pattern.permute.xlu0 0
        %1138 = vperm.xlu0 %1137, %v1091
        %v1139 = vpop.permute.xlu0 %1138
        %1142 = vset.pattern.permute.xlu0 0
        %1143 = vperm.xlu0 %1142, %v1092
        %v1144 = vpop.permute.xlu0 %1143
        %1147 = vset.pattern.permute.xlu0 0
        %1148 = vperm.xlu0 %1147, %v1093
        %v1149 = vpop.permute.xlu0 %1148
        %1152 = vset.pattern.permute.xlu0 0
        %1153 = vperm.xlu0 %1152, %v1094
        %v1154 = vpop.permute.xlu0 %1153
        %1157 = vset.pattern.permute.xlu0 0
        %1158 = vperm.xlu0 %1157, %v1095
        %v1159 = vpop.permute.xlu0 %1158
        %1162 = vset.pattern.permute.xlu0 0
        %1163 = vperm.xlu0 %1162, %v1096
        %v1164 = vpop.permute.xlu0 %1163
        %1167 = vset.pattern.permute.xlu0 0
        %1168 = vperm.xlu0 %1167, %v1097
        %v1169 = vpop.permute.xlu0 %1168
        %1172 = vset.pattern.permute.xlu0 0
        %1173 = vperm.xlu0 %1172, %v1098
        %v1174 = vpop.permute.xlu0 %1173
        %1177 = vset.pattern.permute.xlu0 0
        %1178 = vperm.xlu0 %1177, %v1099
        %v1179 = vpop.permute.xlu0 %1178
        %1182 = vset.pattern.permute.xlu0 0
        %1183 = vperm.xlu0 %1182, %v1100
        %v1184 = vpop.permute.xlu0 %1183
        %1187 = vset.pattern.permute.xlu0 0
        %1188 = vperm.xlu0 %1187, %v1101
        %v1189 = vpop.permute.xlu0 %1188
        %1192 = vset.pattern.permute.xlu0 0
        %1193 = vperm.xlu0 %1192, %v1102
        %v1194 = vpop.permute.xlu0 %1193
        %1197 = vset.pattern.permute.xlu0 0
        %1198 = vperm.xlu0 %1197, %v1103
        %v1199 = vpop.permute.xlu0 %1198
        %1202 = vset.pattern.permute.xlu0 0
        %1203 = vperm.xlu0 %1202, %v1104
        %v1204 = vpop.permute.xlu0 %1203
        %1207 = vset.pattern.permute.xlu0 0
        %1208 = vperm.xlu0 %1207, %v1105
        %v1209 = vpop.permute.xlu0 %1208
        %1212 = vset.pattern.permute.xlu0 0
        %1213 = vperm.xlu0 %1212, %v1106
        %v1214 = vpop.permute.xlu0 %1213
        %1217 = vset.pattern.permute.xlu0 0
        %1218 = vperm.xlu0 %1217, %v1107
        %v1219 = vpop.permute.xlu0 %1218
        %1222 = vset.pattern.permute.xlu0 0
        %1223 = vperm.xlu0 %1222, %v1108
        %v1224 = vpop.permute.xlu0 %1223
        %1227 = vset.pattern.permute.xlu0 0
        %1228 = vperm.xlu0 %1227, %v1109
        %v1229 = vpop.permute.xlu0 %1228
        %1232 = vset.pattern.permute.xlu0 0
        %1233 = vperm.xlu0 %1232, %v1110
        %v1234 = vpop.permute.xlu0 %1233
        %1237 = vset.pattern.permute.xlu0 0
        %1238 = vperm.xlu0 %1237, %v1111
        %v1239 = vpop.permute.xlu0 %1238
        %1242 = vset.pattern.permute.xlu0 0
        %1243 = vperm.xlu0 %1242, %v1112
        %v1244 = vpop.permute.xlu0 %1243
        %1247 = vset.pattern.permute.xlu0 0
        %1248 = vperm.xlu0 %1247, %v1113
        %v1249 = vpop.permute.xlu0 %1248
        %1252 = vset.pattern.permute.xlu0 0
        %1253 = vperm.xlu0 %1252, %v1114
        %v1254 = vpop.permute.xlu0 %1253
        %v1256 = vlaneseq
        %v1257 = vshrl.u32 %v1256, 7
        %v1258 = vsub.s32 0, %v1257
        %v1259 = vrot.slane %v1115, %v1258
        %v1260 = vmul.f32 %v1119, %v1259
        %v1261 = vmul.f32 %v1124, %v1259
        %v1262 = vmul.f32 %v1129, %v1259
        %v1263 = vmul.f32 %v1134, %v1259
        %v1264 = vmul.f32 %v1139, %v1259
        %v1265 = vmul.f32 %v1144, %v1259
        %v1266 = vmul.f32 %v1149, %v1259
        %v1267 = vmul.f32 %v1154, %v1259
        %v1268 = vmul.f32 %v1159, %v1259
        %v1269 = vmul.f32 %v1164, %v1259
        %v1270 = vmul.f32 %v1169, %v1259
        %v1271 = vmul.f32 %v1174, %v1259
        %v1272 = vmul.f32 %v1179, %v1259
        %v1273 = vmul.f32 %v1184, %v1259
        %v1274 = vmul.f32 %v1189, %v1259
        %v1275 = vmul.f32 %v1194, %v1259
        %v1276 = vmul.f32 %v1199, %v1259
        %v1277 = vmul.f32 %v1204, %v1259
        %v1278 = vmul.f32 %v1209, %v1259
        %v1279 = vmul.f32 %v1214, %v1259
        %v1280 = vmul.f32 %v1219, %v1259
        %v1281 = vmul.f32 %v1224, %v1259
        %v1282 = vmul.f32 %v1229, %v1259
        %v1283 = vmul.f32 %v1234, %v1259
        %v1284 = vmul.f32 %v1239, %v1259
        %v1285 = vmul.f32 %v1244, %v1259
        %v1286 = vmul.f32 %v1249, %v1259
        %v1287 = vmul.f32 %v1254, %v1259
        %v1288 = vadd.f32 %v1059, %v1260
        %v1289 = vadd.f32 %v1060, %v1261
        %v1290 = vadd.f32 %v1061, %v1262
        %v1291 = vadd.f32 %v1062, %v1263
        %v1292 = vadd.f32 %v1063, %v1264
        %v1293 = vadd.f32 %v1064, %v1265
        %v1294 = vadd.f32 %v1065, %v1266
        %v1295 = vadd.f32 %v1066, %v1267
        %v1296 = vadd.f32 %v1067, %v1268
        %v1297 = vadd.f32 %v1068, %v1269
        %v1298 = vadd.f32 %v1069, %v1270
        %v1299 = vadd.f32 %v1070, %v1271
        %v1300 = vadd.f32 %v1071, %v1272
        %v1301 = vadd.f32 %v1072, %v1273
        %v1302 = vadd.f32 %v1073, %v1274
        %v1303 = vadd.f32 %v1074, %v1275
        %v1304 = vadd.f32 %v1075, %v1276
        %v1305 = vadd.f32 %v1076, %v1277
        %v1306 = vadd.f32 %v1077, %v1278
        %v1307 = vadd.f32 %v1078, %v1279
        %v1308 = vadd.f32 %v1079, %v1280
        %v1309 = vadd.f32 %v1080, %v1281
        %v1310 = vadd.f32 %v1081, %v1282
        %v1311 = vadd.f32 %v1082, %v1283
        %v1312 = vadd.f32 %v1083, %v1284
        %v1313 = vadd.f32 %v1084, %v1285
        %v1314 = vadd.f32 %v1085, %v1286
        %v1315 = vadd.f32 %v1086, %v1287
        %s1316 = sadd.s32 16, %s655
        %s1317 = scalar_lea.vmem %s384, %s1316
        %v1318 = vld [vmem:[%s1317] sm:$0xff]
        %v1319 = vld [vmem:[%s1317 + $0x8] sm:$0x3f]
        %v1320 = vld [vmem:[%s1317 + $0x10] sm:$0xff]
        %v1321 = vld [vmem:[%s1317 + $0x18] sm:$0x3f]
        %v1322 = vld [vmem:[%s1317 + $0x20] sm:$0xff]
        %v1323 = vld [vmem:[%s1317 + $0x28] sm:$0x3f]
        %v1324 = vld [vmem:[%s1317 + $0x30] sm:$0xff]
        %v1325 = vld [vmem:[%s1317 + $0x38] sm:$0x3f]
        %v1326 = vld [vmem:[%s1317 + $0x40] sm:$0xff]
        %v1327 = vld [vmem:[%s1317 + $0x48] sm:$0x3f]
        %v1328 = vld [vmem:[%s1317 + $0x50] sm:$0xff]
        %v1329 = vld [vmem:[%s1317 + $0x58] sm:$0x3f]
        %v1330 = vld [vmem:[%s1317 + $0x60] sm:$0xff]
        %v1331 = vld [vmem:[%s1317 + $0x68] sm:$0x3f]
        %v1332 = vld [vmem:[%s1317 + $0x70] sm:$0xff]
        %v1333 = vld [vmem:[%s1317 + $0x78] sm:$0x3f]
        %v1334 = vld [vmem:[%s1317 + $0x80] sm:$0xff]
        %v1335 = vld [vmem:[%s1317 + $0x88] sm:$0x3f]
        %v1336 = vld [vmem:[%s1317 + $0x90] sm:$0xff]
        %v1337 = vld [vmem:[%s1317 + $0x98] sm:$0x3f]
        %v1338 = vld [vmem:[%s1317 + $0xa0] sm:$0xff]
        %v1339 = vld [vmem:[%s1317 + $0xa8] sm:$0x3f]
        %v1340 = vld [vmem:[%s1317 + $0xb0] sm:$0xff]
        %v1341 = vld [vmem:[%s1317 + $0xb8] sm:$0x3f]
        %v1342 = vld [vmem:[%s1317 + $0xc0] sm:$0xff]
        %v1343 = vld [vmem:[%s1317 + $0xc8] sm:$0x3f]
        %v1344 = vld [vmem:[%s1317 + $0xd0] sm:$0xff]
        %v1345 = vld [vmem:[%s1317 + $0xd8] sm:$0x3f]
        %v1346 = vld [vmem:[%s1 + $0x3] sm:$0x1]
        %1348 = vset.pattern.permute.xlu0 0
        %1349 = vperm.xlu0 %1348, %v1318
        %v1350 = vpop.permute.xlu0 %1349
        %1353 = vset.pattern.permute.xlu0 0
        %1354 = vperm.xlu0 %1353, %v1319
        %v1355 = vpop.permute.xlu0 %1354
        %1358 = vset.pattern.permute.xlu0 0
        %1359 = vperm.xlu0 %1358, %v1320
        %v1360 = vpop.permute.xlu0 %1359
        %1363 = vset.pattern.permute.xlu0 0
        %1364 = vperm.xlu0 %1363, %v1321
        %v1365 = vpop.permute.xlu0 %1364
        %1368 = vset.pattern.permute.xlu0 0
        %1369 = vperm.xlu0 %1368, %v1322
        %v1370 = vpop.permute.xlu0 %1369
        %1373 = vset.pattern.permute.xlu0 0
        %1374 = vperm.xlu0 %1373, %v1323
        %v1375 = vpop.permute.xlu0 %1374
        %1378 = vset.pattern.permute.xlu0 0
        %1379 = vperm.xlu0 %1378, %v1324
        %v1380 = vpop.permute.xlu0 %1379
        %1383 = vset.pattern.permute.xlu0 0
        %1384 = vperm.xlu0 %1383, %v1325
        %v1385 = vpop.permute.xlu0 %1384
        %1388 = vset.pattern.permute.xlu0 0
        %1389 = vperm.xlu0 %1388, %v1326
        %v1390 = vpop.permute.xlu0 %1389
        %1393 = vset.pattern.permute.xlu0 0
        %1394 = vperm.xlu0 %1393, %v1327
        %v1395 = vpop.permute.xlu0 %1394
        %1398 = vset.pattern.permute.xlu0 0
        %1399 = vperm.xlu0 %1398, %v1328
        %v1400 = vpop.permute.xlu0 %1399
        %1403 = vset.pattern.permute.xlu0 0
        %1404 = vperm.xlu0 %1403, %v1329
        %v1405 = vpop.permute.xlu0 %1404
        %1408 = vset.pattern.permute.xlu0 0
        %1409 = vperm.xlu0 %1408, %v1330
        %v1410 = vpop.permute.xlu0 %1409
        %1413 = vset.pattern.permute.xlu0 0
        %1414 = vperm.xlu0 %1413, %v1331
        %v1415 = vpop.permute.xlu0 %1414
        %1418 = vset.pattern.permute.xlu0 0
        %1419 = vperm.xlu0 %1418, %v1332
        %v1420 = vpop.permute.xlu0 %1419
        %1423 = vset.pattern.permute.xlu0 0
        %1424 = vperm.xlu0 %1423, %v1333
        %v1425 = vpop.permute.xlu0 %1424
        %1428 = vset.pattern.permute.xlu0 0
        %1429 = vperm.xlu0 %1428, %v1334
        %v1430 = vpop.permute.xlu0 %1429
        %1433 = vset.pattern.permute.xlu0 0
        %1434 = vperm.xlu0 %1433, %v1335
        %v1435 = vpop.permute.xlu0 %1434
        %1438 = vset.pattern.permute.xlu0 0
        %1439 = vperm.xlu0 %1438, %v1336
        %v1440 = vpop.permute.xlu0 %1439
        %1443 = vset.pattern.permute.xlu0 0
        %1444 = vperm.xlu0 %1443, %v1337
        %v1445 = vpop.permute.xlu0 %1444
        %1448 = vset.pattern.permute.xlu0 0
        %1449 = vperm.xlu0 %1448, %v1338
        %v1450 = vpop.permute.xlu0 %1449
        %1453 = vset.pattern.permute.xlu0 0
        %1454 = vperm.xlu0 %1453, %v1339
        %v1455 = vpop.permute.xlu0 %1454
        %1458 = vset.pattern.permute.xlu0 0
        %1459 = vperm.xlu0 %1458, %v1340
        %v1460 = vpop.permute.xlu0 %1459
        %1463 = vset.pattern.permute.xlu0 0
        %1464 = vperm.xlu0 %1463, %v1341
        %v1465 = vpop.permute.xlu0 %1464
        %1468 = vset.pattern.permute.xlu0 0
        %1469 = vperm.xlu0 %1468, %v1342
        %v1470 = vpop.permute.xlu0 %1469
        %1473 = vset.pattern.permute.xlu0 0
        %1474 = vperm.xlu0 %1473, %v1343
        %v1475 = vpop.permute.xlu0 %1474
        %1478 = vset.pattern.permute.xlu0 0
        %1479 = vperm.xlu0 %1478, %v1344
        %v1480 = vpop.permute.xlu0 %1479
        %1483 = vset.pattern.permute.xlu0 0
        %1484 = vperm.xlu0 %1483, %v1345
        %v1485 = vpop.permute.xlu0 %1484
        %v1487 = vlaneseq
        %v1488 = vshrl.u32 %v1487, 7
        %v1489 = vsub.s32 0, %v1488
        %v1490 = vrot.slane %v1346, %v1489
        %v1491 = vmul.f32 %v1350, %v1490
        %v1492 = vmul.f32 %v1355, %v1490
        %v1493 = vmul.f32 %v1360, %v1490
        %v1494 = vmul.f32 %v1365, %v1490
        %v1495 = vmul.f32 %v1370, %v1490
        %v1496 = vmul.f32 %v1375, %v1490
        %v1497 = vmul.f32 %v1380, %v1490
        %v1498 = vmul.f32 %v1385, %v1490
        %v1499 = vmul.f32 %v1390, %v1490
        %v1500 = vmul.f32 %v1395, %v1490
        %v1501 = vmul.f32 %v1400, %v1490
        %v1502 = vmul.f32 %v1405, %v1490
        %v1503 = vmul.f32 %v1410, %v1490
        %v1504 = vmul.f32 %v1415, %v1490
        %v1505 = vmul.f32 %v1420, %v1490
        %v1506 = vmul.f32 %v1425, %v1490
        %v1507 = vmul.f32 %v1430, %v1490
        %v1508 = vmul.f32 %v1435, %v1490
        %v1509 = vmul.f32 %v1440, %v1490
        %v1510 = vmul.f32 %v1445, %v1490
        %v1511 = vmul.f32 %v1450, %v1490
        %v1512 = vmul.f32 %v1455, %v1490
        %v1513 = vmul.f32 %v1460, %v1490
        %v1514 = vmul.f32 %v1465, %v1490
        %v1515 = vmul.f32 %v1470, %v1490
        %v1516 = vmul.f32 %v1475, %v1490
        %v1517 = vmul.f32 %v1480, %v1490
        %v1518 = vmul.f32 %v1485, %v1490
        %v1519 = vadd.f32 %v1288, %v1491
        %v1520 = vadd.f32 %v1289, %v1492
        %v1521 = vadd.f32 %v1290, %v1493
        %v1522 = vadd.f32 %v1291, %v1494
        %v1523 = vadd.f32 %v1292, %v1495
        %v1524 = vadd.f32 %v1293, %v1496
        %v1525 = vadd.f32 %v1294, %v1497
        %v1526 = vadd.f32 %v1295, %v1498
        %v1527 = vadd.f32 %v1296, %v1499
        %v1528 = vadd.f32 %v1297, %v1500
        %v1529 = vadd.f32 %v1298, %v1501
        %v1530 = vadd.f32 %v1299, %v1502
        %v1531 = vadd.f32 %v1300, %v1503
        %v1532 = vadd.f32 %v1301, %v1504
        %v1533 = vadd.f32 %v1302, %v1505
        %v1534 = vadd.f32 %v1303, %v1506
        %v1535 = vadd.f32 %v1304, %v1507
        %v1536 = vadd.f32 %v1305, %v1508
        %v1537 = vadd.f32 %v1306, %v1509
        %v1538 = vadd.f32 %v1307, %v1510
        %v1539 = vadd.f32 %v1308, %v1511
        %v1540 = vadd.f32 %v1309, %v1512
        %v1541 = vadd.f32 %v1310, %v1513
        %v1542 = vadd.f32 %v1311, %v1514
        %v1543 = vadd.f32 %v1312, %v1515
        %v1544 = vadd.f32 %v1313, %v1516
        %v1545 = vadd.f32 %v1314, %v1517
        %v1546 = vadd.f32 %v1315, %v1518
        %v1547 = vld [vmem:[%s1317 + $0x1] sm:$0xff]
        %v1548 = vld [vmem:[%s1317 + $0x9] sm:$0x3f]
        %v1549 = vld [vmem:[%s1317 + $0x11] sm:$0xff]
        %v1550 = vld [vmem:[%s1317 + $0x19] sm:$0x3f]
        %v1551 = vld [vmem:[%s1317 + $0x21] sm:$0xff]
        %v1552 = vld [vmem:[%s1317 + $0x29] sm:$0x3f]
        %v1553 = vld [vmem:[%s1317 + $0x31] sm:$0xff]
        %v1554 = vld [vmem:[%s1317 + $0x39] sm:$0x3f]
        %v1555 = vld [vmem:[%s1317 + $0x41] sm:$0xff]
        %v1556 = vld [vmem:[%s1317 + $0x49] sm:$0x3f]
        %v1557 = vld [vmem:[%s1317 + $0x51] sm:$0xff]
        %v1558 = vld [vmem:[%s1317 + $0x59] sm:$0x3f]
        %v1559 = vld [vmem:[%s1317 + $0x61] sm:$0xff]
        %v1560 = vld [vmem:[%s1317 + $0x69] sm:$0x3f]
        %v1561 = vld [vmem:[%s1317 + $0x71] sm:$0xff]
        %v1562 = vld [vmem:[%s1317 + $0x79] sm:$0x3f]
        %v1563 = vld [vmem:[%s1317 + $0x81] sm:$0xff]
        %v1564 = vld [vmem:[%s1317 + $0x89] sm:$0x3f]
        %v1565 = vld [vmem:[%s1317 + $0x91] sm:$0xff]
        %v1566 = vld [vmem:[%s1317 + $0x99] sm:$0x3f]
        %v1567 = vld [vmem:[%s1317 + $0xa1] sm:$0xff]
        %v1568 = vld [vmem:[%s1317 + $0xa9] sm:$0x3f]
        %v1569 = vld [vmem:[%s1317 + $0xb1] sm:$0xff]
        %v1570 = vld [vmem:[%s1317 + $0xb9] sm:$0x3f]
        %v1571 = vld [vmem:[%s1317 + $0xc1] sm:$0xff]
        %v1572 = vld [vmem:[%s1317 + $0xc9] sm:$0x3f]
        %v1573 = vld [vmem:[%s1317 + $0xd1] sm:$0xff]
        %v1574 = vld [vmem:[%s1317 + $0xd9] sm:$0x3f]
        %v1575 = vld [vmem:[%s1 + $0x4] sm:$0x1]
        %1577 = vset.pattern.permute.xlu0 0
        %1578 = vperm.xlu0 %1577, %v1547
        %v1579 = vpop.permute.xlu0 %1578
        %1582 = vset.pattern.permute.xlu0 0
        %1583 = vperm.xlu0 %1582, %v1548
        %v1584 = vpop.permute.xlu0 %1583
        %1587 = vset.pattern.permute.xlu0 0
        %1588 = vperm.xlu0 %1587, %v1549
        %v1589 = vpop.permute.xlu0 %1588
        %1592 = vset.pattern.permute.xlu0 0
        %1593 = vperm.xlu0 %1592, %v1550
        %v1594 = vpop.permute.xlu0 %1593
        %1597 = vset.pattern.permute.xlu0 0
        %1598 = vperm.xlu0 %1597, %v1551
        %v1599 = vpop.permute.xlu0 %1598
        %1602 = vset.pattern.permute.xlu0 0
        %1603 = vperm.xlu0 %1602, %v1552
        %v1604 = vpop.permute.xlu0 %1603
        %1607 = vset.pattern.permute.xlu0 0
        %1608 = vperm.xlu0 %1607, %v1553
        %v1609 = vpop.permute.xlu0 %1608
        %1612 = vset.pattern.permute.xlu0 0
        %1613 = vperm.xlu0 %1612, %v1554
        %v1614 = vpop.permute.xlu0 %1613
        %1617 = vset.pattern.permute.xlu0 0
        %1618 = vperm.xlu0 %1617, %v1555
        %v1619 = vpop.permute.xlu0 %1618
        %1622 = vset.pattern.permute.xlu0 0
        %1623 = vperm.xlu0 %1622, %v1556
        %v1624 = vpop.permute.xlu0 %1623
        %1627 = vset.pattern.permute.xlu0 0
        %1628 = vperm.xlu0 %1627, %v1557
        %v1629 = vpop.permute.xlu0 %1628
        %1632 = vset.pattern.permute.xlu0 0
        %1633 = vperm.xlu0 %1632, %v1558
        %v1634 = vpop.permute.xlu0 %1633
        %1637 = vset.pattern.permute.xlu0 0
        %1638 = vperm.xlu0 %1637, %v1559
        %v1639 = vpop.permute.xlu0 %1638
        %1642 = vset.pattern.permute.xlu0 0
        %1643 = vperm.xlu0 %1642, %v1560
        %v1644 = vpop.permute.xlu0 %1643
        %1647 = vset.pattern.permute.xlu0 0
        %1648 = vperm.xlu0 %1647, %v1561
        %v1649 = vpop.permute.xlu0 %1648
        %1652 = vset.pattern.permute.xlu0 0
        %1653 = vperm.xlu0 %1652, %v1562
        %v1654 = vpop.permute.xlu0 %1653
        %1657 = vset.pattern.permute.xlu0 0
        %1658 = vperm.xlu0 %1657, %v1563
        %v1659 = vpop.permute.xlu0 %1658
        %1662 = vset.pattern.permute.xlu0 0
        %1663 = vperm.xlu0 %1662, %v1564
        %v1664 = vpop.permute.xlu0 %1663
        %1667 = vset.pattern.permute.xlu0 0
        %1668 = vperm.xlu0 %1667, %v1565
        %v1669 = vpop.permute.xlu0 %1668
        %1672 = vset.pattern.permute.xlu0 0
        %1673 = vperm.xlu0 %1672, %v1566
        %v1674 = vpop.permute.xlu0 %1673
        %1677 = vset.pattern.permute.xlu0 0
        %1678 = vperm.xlu0 %1677, %v1567
        %v1679 = vpop.permute.xlu0 %1678
        %1682 = vset.pattern.permute.xlu0 0
        %1683 = vperm.xlu0 %1682, %v1568
        %v1684 = vpop.permute.xlu0 %1683
        %1687 = vset.pattern.permute.xlu0 0
        %1688 = vperm.xlu0 %1687, %v1569
        %v1689 = vpop.permute.xlu0 %1688
        %1692 = vset.pattern.permute.xlu0 0
        %1693 = vperm.xlu0 %1692, %v1570
        %v1694 = vpop.permute.xlu0 %1693
        %1697 = vset.pattern.permute.xlu0 0
        %1698 = vperm.xlu0 %1697, %v1571
        %v1699 = vpop.permute.xlu0 %1698
        %1702 = vset.pattern.permute.xlu0 0
        %1703 = vperm.xlu0 %1702, %v1572
        %v1704 = vpop.permute.xlu0 %1703
        %1707 = vset.pattern.permute.xlu0 0
        %1708 = vperm.xlu0 %1707, %v1573
        %v1709 = vpop.permute.xlu0 %1708
        %1712 = vset.pattern.permute.xlu0 0
        %1713 = vperm.xlu0 %1712, %v1574
        %v1714 = vpop.permute.xlu0 %1713
        %v1716 = vlaneseq
        %v1717 = vshrl.u32 %v1716, 7
        %v1718 = vsub.s32 0, %v1717
        %v1719 = vrot.slane %v1575, %v1718
        %v1720 = vmul.f32 %v1579, %v1719
        %v1721 = vmul.f32 %v1584, %v1719
        %v1722 = vmul.f32 %v1589, %v1719
        %v1723 = vmul.f32 %v1594, %v1719
        %v1724 = vmul.f32 %v1599, %v1719
        %v1725 = vmul.f32 %v1604, %v1719
        %v1726 = vmul.f32 %v1609, %v1719
        %v1727 = vmul.f32 %v1614, %v1719
        %v1728 = vmul.f32 %v1619, %v1719
        %v1729 = vmul.f32 %v1624, %v1719
        %v1730 = vmul.f32 %v1629, %v1719
        %v1731 = vmul.f32 %v1634, %v1719
        %v1732 = vmul.f32 %v1639, %v1719
        %v1733 = vmul.f32 %v1644, %v1719
        %v1734 = vmul.f32 %v1649, %v1719
        %v1735 = vmul.f32 %v1654, %v1719
        %v1736 = vmul.f32 %v1659, %v1719
        %v1737 = vmul.f32 %v1664, %v1719
        %v1738 = vmul.f32 %v1669, %v1719
        %v1739 = vmul.f32 %v1674, %v1719
        %v1740 = vmul.f32 %v1679, %v1719
        %v1741 = vmul.f32 %v1684, %v1719
        %v1742 = vmul.f32 %v1689, %v1719
        %v1743 = vmul.f32 %v1694, %v1719
        %v1744 = vmul.f32 %v1699, %v1719
        %v1745 = vmul.f32 %v1704, %v1719
        %v1746 = vmul.f32 %v1709, %v1719
        %v1747 = vmul.f32 %v1714, %v1719
        %v1748 = vadd.f32 %v1519, %v1720
        %v1749 = vadd.f32 %v1520, %v1721
        %v1750 = vadd.f32 %v1521, %v1722
        %v1751 = vadd.f32 %v1522, %v1723
        %v1752 = vadd.f32 %v1523, %v1724
        %v1753 = vadd.f32 %v1524, %v1725
        %v1754 = vadd.f32 %v1525, %v1726
        %v1755 = vadd.f32 %v1526, %v1727
        %v1756 = vadd.f32 %v1527, %v1728
        %v1757 = vadd.f32 %v1528, %v1729
        %v1758 = vadd.f32 %v1529, %v1730
        %v1759 = vadd.f32 %v1530, %v1731
        %v1760 = vadd.f32 %v1531, %v1732
        %v1761 = vadd.f32 %v1532, %v1733
        %v1762 = vadd.f32 %v1533, %v1734
        %v1763 = vadd.f32 %v1534, %v1735
        %v1764 = vadd.f32 %v1535, %v1736
        %v1765 = vadd.f32 %v1536, %v1737
        %v1766 = vadd.f32 %v1537, %v1738
        %v1767 = vadd.f32 %v1538, %v1739
        %v1768 = vadd.f32 %v1539, %v1740
        %v1769 = vadd.f32 %v1540, %v1741
        %v1770 = vadd.f32 %v1541, %v1742
        %v1771 = vadd.f32 %v1542, %v1743
        %v1772 = vadd.f32 %v1543, %v1744
        %v1773 = vadd.f32 %v1544, %v1745
        %v1774 = vadd.f32 %v1545, %v1746
        %v1775 = vadd.f32 %v1546, %v1747
        %v1776 = vld [vmem:[%s1317 + $0x2] sm:$0xff]
        %v1777 = vld [vmem:[%s1317 + $0xa] sm:$0x3f]
        %v1778 = vld [vmem:[%s1317 + $0x12] sm:$0xff]
        %v1779 = vld [vmem:[%s1317 + $0x1a] sm:$0x3f]
        %v1780 = vld [vmem:[%s1317 + $0x22] sm:$0xff]
        %v1781 = vld [vmem:[%s1317 + $0x2a] sm:$0x3f]
        %v1782 = vld [vmem:[%s1317 + $0x32] sm:$0xff]
        %v1783 = vld [vmem:[%s1317 + $0x3a] sm:$0x3f]
        %v1784 = vld [vmem:[%s1317 + $0x42] sm:$0xff]
        %v1785 = vld [vmem:[%s1317 + $0x4a] sm:$0x3f]
        %v1786 = vld [vmem:[%s1317 + $0x52] sm:$0xff]
        %v1787 = vld [vmem:[%s1317 + $0x5a] sm:$0x3f]
        %v1788 = vld [vmem:[%s1317 + $0x62] sm:$0xff]
        %v1789 = vld [vmem:[%s1317 + $0x6a] sm:$0x3f]
        %v1790 = vld [vmem:[%s1317 + $0x72] sm:$0xff]
        %v1791 = vld [vmem:[%s1317 + $0x7a] sm:$0x3f]
        %v1792 = vld [vmem:[%s1317 + $0x82] sm:$0xff]
        %v1793 = vld [vmem:[%s1317 + $0x8a] sm:$0x3f]
        %v1794 = vld [vmem:[%s1317 + $0x92] sm:$0xff]
        %v1795 = vld [vmem:[%s1317 + $0x9a] sm:$0x3f]
        %v1796 = vld [vmem:[%s1317 + $0xa2] sm:$0xff]
        %v1797 = vld [vmem:[%s1317 + $0xaa] sm:$0x3f]
        %v1798 = vld [vmem:[%s1317 + $0xb2] sm:$0xff]
        %v1799 = vld [vmem:[%s1317 + $0xba] sm:$0x3f]
        %v1800 = vld [vmem:[%s1317 + $0xc2] sm:$0xff]
        %v1801 = vld [vmem:[%s1317 + $0xca] sm:$0x3f]
        %v1802 = vld [vmem:[%s1317 + $0xd2] sm:$0xff]
        %v1803 = vld [vmem:[%s1317 + $0xda] sm:$0x3f]
        %v1804 = vld [vmem:[%s1 + $0x5] sm:$0x1]
        %1806 = vset.pattern.permute.xlu0 0
        %1807 = vperm.xlu0 %1806, %v1776
        %v1808 = vpop.permute.xlu0 %1807
        %1811 = vset.pattern.permute.xlu0 0
        %1812 = vperm.xlu0 %1811, %v1777
        %v1813 = vpop.permute.xlu0 %1812
        %1816 = vset.pattern.permute.xlu0 0
        %1817 = vperm.xlu0 %1816, %v1778
        %v1818 = vpop.permute.xlu0 %1817
        %1821 = vset.pattern.permute.xlu0 0
        %1822 = vperm.xlu0 %1821, %v1779
        %v1823 = vpop.permute.xlu0 %1822
        %1826 = vset.pattern.permute.xlu0 0
        %1827 = vperm.xlu0 %1826, %v1780
        %v1828 = vpop.permute.xlu0 %1827
        %1831 = vset.pattern.permute.xlu0 0
        %1832 = vperm.xlu0 %1831, %v1781
        %v1833 = vpop.permute.xlu0 %1832
        %1836 = vset.pattern.permute.xlu0 0
        %1837 = vperm.xlu0 %1836, %v1782
        %v1838 = vpop.permute.xlu0 %1837
        %1841 = vset.pattern.permute.xlu0 0
        %1842 = vperm.xlu0 %1841, %v1783
        %v1843 = vpop.permute.xlu0 %1842
        %1846 = vset.pattern.permute.xlu0 0
        %1847 = vperm.xlu0 %1846, %v1784
        %v1848 = vpop.permute.xlu0 %1847
        %1851 = vset.pattern.permute.xlu0 0
        %1852 = vperm.xlu0 %1851, %v1785
        %v1853 = vpop.permute.xlu0 %1852
        %1856 = vset.pattern.permute.xlu0 0
        %1857 = vperm.xlu0 %1856, %v1786
        %v1858 = vpop.permute.xlu0 %1857
        %1861 = vset.pattern.permute.xlu0 0
        %1862 = vperm.xlu0 %1861, %v1787
        %v1863 = vpop.permute.xlu0 %1862
        %1866 = vset.pattern.permute.xlu0 0
        %1867 = vperm.xlu0 %1866, %v1788
        %v1868 = vpop.permute.xlu0 %1867
        %1871 = vset.pattern.permute.xlu0 0
        %1872 = vperm.xlu0 %1871, %v1789
        %v1873 = vpop.permute.xlu0 %1872
        %1876 = vset.pattern.permute.xlu0 0
        %1877 = vperm.xlu0 %1876, %v1790
        %v1878 = vpop.permute.xlu0 %1877
        %1881 = vset.pattern.permute.xlu0 0
        %1882 = vperm.xlu0 %1881, %v1791
        %v1883 = vpop.permute.xlu0 %1882
        %1886 = vset.pattern.permute.xlu0 0
        %1887 = vperm.xlu0 %1886, %v1792
        %v1888 = vpop.permute.xlu0 %1887
        %1891 = vset.pattern.permute.xlu0 0
        %1892 = vperm.xlu0 %1891, %v1793
        %v1893 = vpop.permute.xlu0 %1892
        %1896 = vset.pattern.permute.xlu0 0
        %1897 = vperm.xlu0 %1896, %v1794
        %v1898 = vpop.permute.xlu0 %1897
        %1901 = vset.pattern.permute.xlu0 0
        %1902 = vperm.xlu0 %1901, %v1795
        %v1903 = vpop.permute.xlu0 %1902
        %1906 = vset.pattern.permute.xlu0 0
        %1907 = vperm.xlu0 %1906, %v1796
        %v1908 = vpop.permute.xlu0 %1907
        %1911 = vset.pattern.permute.xlu0 0
        %1912 = vperm.xlu0 %1911, %v1797
        %v1913 = vpop.permute.xlu0 %1912
        %1916 = vset.pattern.permute.xlu0 0
        %1917 = vperm.xlu0 %1916, %v1798
        %v1918 = vpop.permute.xlu0 %1917
        %1921 = vset.pattern.permute.xlu0 0
        %1922 = vperm.xlu0 %1921, %v1799
        %v1923 = vpop.permute.xlu0 %1922
        %1926 = vset.pattern.permute.xlu0 0
        %1927 = vperm.xlu0 %1926, %v1800
        %v1928 = vpop.permute.xlu0 %1927
        %1931 = vset.pattern.permute.xlu0 0
        %1932 = vperm.xlu0 %1931, %v1801
        %v1933 = vpop.permute.xlu0 %1932
        %1936 = vset.pattern.permute.xlu0 0
        %1937 = vperm.xlu0 %1936, %v1802
        %v1938 = vpop.permute.xlu0 %1937
        %1941 = vset.pattern.permute.xlu0 0
        %1942 = vperm.xlu0 %1941, %v1803
        %v1943 = vpop.permute.xlu0 %1942
        %v1945 = vlaneseq
        %v1946 = vshrl.u32 %v1945, 7
        %v1947 = vsub.s32 0, %v1946
        %v1948 = vrot.slane %v1804, %v1947
        %v1949 = vmul.f32 %v1808, %v1948
        %v1950 = vmul.f32 %v1813, %v1948
        %v1951 = vmul.f32 %v1818, %v1948
        %v1952 = vmul.f32 %v1823, %v1948
        %v1953 = vmul.f32 %v1828, %v1948
        %v1954 = vmul.f32 %v1833, %v1948
        %v1955 = vmul.f32 %v1838, %v1948
        %v1956 = vmul.f32 %v1843, %v1948
        %v1957 = vmul.f32 %v1848, %v1948
        %v1958 = vmul.f32 %v1853, %v1948
        %v1959 = vmul.f32 %v1858, %v1948
        %v1960 = vmul.f32 %v1863, %v1948
        %v1961 = vmul.f32 %v1868, %v1948
        %v1962 = vmul.f32 %v1873, %v1948
        %v1963 = vmul.f32 %v1878, %v1948
        %v1964 = vmul.f32 %v1883, %v1948
        %v1965 = vmul.f32 %v1888, %v1948
        %v1966 = vmul.f32 %v1893, %v1948
        %v1967 = vmul.f32 %v1898, %v1948
        %v1968 = vmul.f32 %v1903, %v1948
        %v1969 = vmul.f32 %v1908, %v1948
        %v1970 = vmul.f32 %v1913, %v1948
        %v1971 = vmul.f32 %v1918, %v1948
        %v1972 = vmul.f32 %v1923, %v1948
        %v1973 = vmul.f32 %v1928, %v1948
        %v1974 = vmul.f32 %v1933, %v1948
        %v1975 = vmul.f32 %v1938, %v1948
        %v1976 = vmul.f32 %v1943, %v1948
        %v1977 = vadd.f32 %v1748, %v1949
        %v1978 = vadd.f32 %v1749, %v1950
        %v1979 = vadd.f32 %v1750, %v1951
        %v1980 = vadd.f32 %v1751, %v1952
        %v1981 = vadd.f32 %v1752, %v1953
        %v1982 = vadd.f32 %v1753, %v1954
        %v1983 = vadd.f32 %v1754, %v1955
        %v1984 = vadd.f32 %v1755, %v1956
        %v1985 = vadd.f32 %v1756, %v1957
        %v1986 = vadd.f32 %v1757, %v1958
        %v1987 = vadd.f32 %v1758, %v1959
        %v1988 = vadd.f32 %v1759, %v1960
        %v1989 = vadd.f32 %v1760, %v1961
        %v1990 = vadd.f32 %v1761, %v1962
        %v1991 = vadd.f32 %v1762, %v1963
        %v1992 = vadd.f32 %v1763, %v1964
        %v1993 = vadd.f32 %v1764, %v1965
        %v1994 = vadd.f32 %v1765, %v1966
        %v1995 = vadd.f32 %v1766, %v1967
        %v1996 = vadd.f32 %v1767, %v1968
        %v1997 = vadd.f32 %v1768, %v1969
        %v1998 = vadd.f32 %v1769, %v1970
        %v1999 = vadd.f32 %v1770, %v1971
        %v2000 = vadd.f32 %v1771, %v1972
        %v2001 = vadd.f32 %v1772, %v1973
        %v2002 = vadd.f32 %v1773, %v1974
        %v2003 = vadd.f32 %v1774, %v1975
        %v2004 = vadd.f32 %v1775, %v1976
        %s2005 = sadd.s32 32, %s655
        %s2006 = scalar_lea.vmem %s384, %s2005
        %v2007 = vld [vmem:[%s2006] sm:$0xff]
        %v2008 = vld [vmem:[%s2006 + $0x8] sm:$0x3f]
        %v2009 = vld [vmem:[%s2006 + $0x10] sm:$0xff]
        %v2010 = vld [vmem:[%s2006 + $0x18] sm:$0x3f]
        %v2011 = vld [vmem:[%s2006 + $0x20] sm:$0xff]
        %v2012 = vld [vmem:[%s2006 + $0x28] sm:$0x3f]
        %v2013 = vld [vmem:[%s2006 + $0x30] sm:$0xff]
        %v2014 = vld [vmem:[%s2006 + $0x38] sm:$0x3f]
        %v2015 = vld [vmem:[%s2006 + $0x40] sm:$0xff]
        %v2016 = vld [vmem:[%s2006 + $0x48] sm:$0x3f]
        %v2017 = vld [vmem:[%s2006 + $0x50] sm:$0xff]
        %v2018 = vld [vmem:[%s2006 + $0x58] sm:$0x3f]
        %v2019 = vld [vmem:[%s2006 + $0x60] sm:$0xff]
        %v2020 = vld [vmem:[%s2006 + $0x68] sm:$0x3f]
        %v2021 = vld [vmem:[%s2006 + $0x70] sm:$0xff]
        %v2022 = vld [vmem:[%s2006 + $0x78] sm:$0x3f]
        %v2023 = vld [vmem:[%s2006 + $0x80] sm:$0xff]
        %v2024 = vld [vmem:[%s2006 + $0x88] sm:$0x3f]
        %v2025 = vld [vmem:[%s2006 + $0x90] sm:$0xff]
        %v2026 = vld [vmem:[%s2006 + $0x98] sm:$0x3f]
        %v2027 = vld [vmem:[%s2006 + $0xa0] sm:$0xff]
        %v2028 = vld [vmem:[%s2006 + $0xa8] sm:$0x3f]
        %v2029 = vld [vmem:[%s2006 + $0xb0] sm:$0xff]
        %v2030 = vld [vmem:[%s2006 + $0xb8] sm:$0x3f]
        %v2031 = vld [vmem:[%s2006 + $0xc0] sm:$0xff]
        %v2032 = vld [vmem:[%s2006 + $0xc8] sm:$0x3f]
        %v2033 = vld [vmem:[%s2006 + $0xd0] sm:$0xff]
        %v2034 = vld [vmem:[%s2006 + $0xd8] sm:$0x3f]
        %v2035 = vld [vmem:[%s1 + $0x6] sm:$0x1]
        %2037 = vset.pattern.permute.xlu0 0
        %2038 = vperm.xlu0 %2037, %v2007
        %v2039 = vpop.permute.xlu0 %2038
        %2042 = vset.pattern.permute.xlu0 0
        %2043 = vperm.xlu0 %2042, %v2008
        %v2044 = vpop.permute.xlu0 %2043
        %2047 = vset.pattern.permute.xlu0 0
        %2048 = vperm.xlu0 %2047, %v2009
        %v2049 = vpop.permute.xlu0 %2048
        %2052 = vset.pattern.permute.xlu0 0
        %2053 = vperm.xlu0 %2052, %v2010
        %v2054 = vpop.permute.xlu0 %2053
        %2057 = vset.pattern.permute.xlu0 0
        %2058 = vperm.xlu0 %2057, %v2011
        %v2059 = vpop.permute.xlu0 %2058
        %2062 = vset.pattern.permute.xlu0 0
        %2063 = vperm.xlu0 %2062, %v2012
        %v2064 = vpop.permute.xlu0 %2063
        %2067 = vset.pattern.permute.xlu0 0
        %2068 = vperm.xlu0 %2067, %v2013
        %v2069 = vpop.permute.xlu0 %2068
        %2072 = vset.pattern.permute.xlu0 0
        %2073 = vperm.xlu0 %2072, %v2014
        %v2074 = vpop.permute.xlu0 %2073
        %2077 = vset.pattern.permute.xlu0 0
        %2078 = vperm.xlu0 %2077, %v2015
        %v2079 = vpop.permute.xlu0 %2078
        %2082 = vset.pattern.permute.xlu0 0
        %2083 = vperm.xlu0 %2082, %v2016
        %v2084 = vpop.permute.xlu0 %2083
        %2087 = vset.pattern.permute.xlu0 0
        %2088 = vperm.xlu0 %2087, %v2017
        %v2089 = vpop.permute.xlu0 %2088
        %2092 = vset.pattern.permute.xlu0 0
        %2093 = vperm.xlu0 %2092, %v2018
        %v2094 = vpop.permute.xlu0 %2093
        %2097 = vset.pattern.permute.xlu0 0
        %2098 = vperm.xlu0 %2097, %v2019
        %v2099 = vpop.permute.xlu0 %2098
        %2102 = vset.pattern.permute.xlu0 0
        %2103 = vperm.xlu0 %2102, %v2020
        %v2104 = vpop.permute.xlu0 %2103
        %2107 = vset.pattern.permute.xlu0 0
        %2108 = vperm.xlu0 %2107, %v2021
        %v2109 = vpop.permute.xlu0 %2108
        %2112 = vset.pattern.permute.xlu0 0
        %2113 = vperm.xlu0 %2112, %v2022
        %v2114 = vpop.permute.xlu0 %2113
        %2117 = vset.pattern.permute.xlu0 0
        %2118 = vperm.xlu0 %2117, %v2023
        %v2119 = vpop.permute.xlu0 %2118
        %2122 = vset.pattern.permute.xlu0 0
        %2123 = vperm.xlu0 %2122, %v2024
        %v2124 = vpop.permute.xlu0 %2123
        %2127 = vset.pattern.permute.xlu0 0
        %2128 = vperm.xlu0 %2127, %v2025
        %v2129 = vpop.permute.xlu0 %2128
        %2132 = vset.pattern.permute.xlu0 0
        %2133 = vperm.xlu0 %2132, %v2026
        %v2134 = vpop.permute.xlu0 %2133
        %2137 = vset.pattern.permute.xlu0 0
        %2138 = vperm.xlu0 %2137, %v2027
        %v2139 = vpop.permute.xlu0 %2138
        %2142 = vset.pattern.permute.xlu0 0
        %2143 = vperm.xlu0 %2142, %v2028
        %v2144 = vpop.permute.xlu0 %2143
        %2147 = vset.pattern.permute.xlu0 0
        %2148 = vperm.xlu0 %2147, %v2029
        %v2149 = vpop.permute.xlu0 %2148
        %2152 = vset.pattern.permute.xlu0 0
        %2153 = vperm.xlu0 %2152, %v2030
        %v2154 = vpop.permute.xlu0 %2153
        %2157 = vset.pattern.permute.xlu0 0
        %2158 = vperm.xlu0 %2157, %v2031
        %v2159 = vpop.permute.xlu0 %2158
        %2162 = vset.pattern.permute.xlu0 0
        %2163 = vperm.xlu0 %2162, %v2032
        %v2164 = vpop.permute.xlu0 %2163
        %2167 = vset.pattern.permute.xlu0 0
        %2168 = vperm.xlu0 %2167, %v2033
        %v2169 = vpop.permute.xlu0 %2168
        %2172 = vset.pattern.permute.xlu0 0
        %2173 = vperm.xlu0 %2172, %v2034
        %v2174 = vpop.permute.xlu0 %2173
        %v2176 = vlaneseq
        %v2177 = vshrl.u32 %v2176, 7
        %v2178 = vsub.s32 0, %v2177
        %v2179 = vrot.slane %v2035, %v2178
        %v2180 = vmul.f32 %v2039, %v2179
        %v2181 = vmul.f32 %v2044, %v2179
        %v2182 = vmul.f32 %v2049, %v2179
        %v2183 = vmul.f32 %v2054, %v2179
        %v2184 = vmul.f32 %v2059, %v2179
        %v2185 = vmul.f32 %v2064, %v2179
        %v2186 = vmul.f32 %v2069, %v2179
        %v2187 = vmul.f32 %v2074, %v2179
        %v2188 = vmul.f32 %v2079, %v2179
        %v2189 = vmul.f32 %v2084, %v2179
        %v2190 = vmul.f32 %v2089, %v2179
        %v2191 = vmul.f32 %v2094, %v2179
        %v2192 = vmul.f32 %v2099, %v2179
        %v2193 = vmul.f32 %v2104, %v2179
        %v2194 = vmul.f32 %v2109, %v2179
        %v2195 = vmul.f32 %v2114, %v2179
        %v2196 = vmul.f32 %v2119, %v2179
        %v2197 = vmul.f32 %v2124, %v2179
        %v2198 = vmul.f32 %v2129, %v2179
        %v2199 = vmul.f32 %v2134, %v2179
        %v2200 = vmul.f32 %v2139, %v2179
        %v2201 = vmul.f32 %v2144, %v2179
        %v2202 = vmul.f32 %v2149, %v2179
        %v2203 = vmul.f32 %v2154, %v2179
        %v2204 = vmul.f32 %v2159, %v2179
        %v2205 = vmul.f32 %v2164, %v2179
        %v2206 = vmul.f32 %v2169, %v2179
        %v2207 = vmul.f32 %v2174, %v2179
        %v2208 = vadd.f32 %v1977, %v2180
        %v2209 = vadd.f32 %v1978, %v2181
        %v2210 = vadd.f32 %v1979, %v2182
        %v2211 = vadd.f32 %v1980, %v2183
        %v2212 = vadd.f32 %v1981, %v2184
        %v2213 = vadd.f32 %v1982, %v2185
        %v2214 = vadd.f32 %v1983, %v2186
        %v2215 = vadd.f32 %v1984, %v2187
        %v2216 = vadd.f32 %v1985, %v2188
        %v2217 = vadd.f32 %v1986, %v2189
        %v2218 = vadd.f32 %v1987, %v2190
        %v2219 = vadd.f32 %v1988, %v2191
        %v2220 = vadd.f32 %v1989, %v2192
        %v2221 = vadd.f32 %v1990, %v2193
        %v2222 = vadd.f32 %v1991, %v2194
        %v2223 = vadd.f32 %v1992, %v2195
        %v2224 = vadd.f32 %v1993, %v2196
        %v2225 = vadd.f32 %v1994, %v2197
        %v2226 = vadd.f32 %v1995, %v2198
        %v2227 = vadd.f32 %v1996, %v2199
        %v2228 = vadd.f32 %v1997, %v2200
        %v2229 = vadd.f32 %v1998, %v2201
        %v2230 = vadd.f32 %v1999, %v2202
        %v2231 = vadd.f32 %v2000, %v2203
        %v2232 = vadd.f32 %v2001, %v2204
        %v2233 = vadd.f32 %v2002, %v2205
        %v2234 = vadd.f32 %v2003, %v2206
        %v2235 = vadd.f32 %v2004, %v2207
        %v2236 = vld [vmem:[%s2006 + $0x1] sm:$0xff]
        %v2237 = vld [vmem:[%s2006 + $0x9] sm:$0x3f]
        %v2238 = vld [vmem:[%s2006 + $0x11] sm:$0xff]
        %v2239 = vld [vmem:[%s2006 + $0x19] sm:$0x3f]
        %v2240 = vld [vmem:[%s2006 + $0x21] sm:$0xff]
        %v2241 = vld [vmem:[%s2006 + $0x29] sm:$0x3f]
        %v2242 = vld [vmem:[%s2006 + $0x31] sm:$0xff]
        %v2243 = vld [vmem:[%s2006 + $0x39] sm:$0x3f]
        %v2244 = vld [vmem:[%s2006 + $0x41] sm:$0xff]
        %v2245 = vld [vmem:[%s2006 + $0x49] sm:$0x3f]
        %v2246 = vld [vmem:[%s2006 + $0x51] sm:$0xff]
        %v2247 = vld [vmem:[%s2006 + $0x59] sm:$0x3f]
        %v2248 = vld [vmem:[%s2006 + $0x61] sm:$0xff]
        %v2249 = vld [vmem:[%s2006 + $0x69] sm:$0x3f]
        %v2250 = vld [vmem:[%s2006 + $0x71] sm:$0xff]
        %v2251 = vld [vmem:[%s2006 + $0x79] sm:$0x3f]
        %v2252 = vld [vmem:[%s2006 + $0x81] sm:$0xff]
        %v2253 = vld [vmem:[%s2006 + $0x89] sm:$0x3f]
        %v2254 = vld [vmem:[%s2006 + $0x91] sm:$0xff]
        %v2255 = vld [vmem:[%s2006 + $0x99] sm:$0x3f]
        %v2256 = vld [vmem:[%s2006 + $0xa1] sm:$0xff]
        %v2257 = vld [vmem:[%s2006 + $0xa9] sm:$0x3f]
        %v2258 = vld [vmem:[%s2006 + $0xb1] sm:$0xff]
        %v2259 = vld [vmem:[%s2006 + $0xb9] sm:$0x3f]
        %v2260 = vld [vmem:[%s2006 + $0xc1] sm:$0xff]
        %v2261 = vld [vmem:[%s2006 + $0xc9] sm:$0x3f]
        %v2262 = vld [vmem:[%s2006 + $0xd1] sm:$0xff]
        %v2263 = vld [vmem:[%s2006 + $0xd9] sm:$0x3f]
        %v2264 = vld [vmem:[%s1 + $0x7] sm:$0x1]
        %2266 = vset.pattern.permute.xlu0 0
        %2267 = vperm.xlu0 %2266, %v2236
        %v2268 = vpop.permute.xlu0 %2267
        %2271 = vset.pattern.permute.xlu0 0
        %2272 = vperm.xlu0 %2271, %v2237
        %v2273 = vpop.permute.xlu0 %2272
        %2276 = vset.pattern.permute.xlu0 0
        %2277 = vperm.xlu0 %2276, %v2238
        %v2278 = vpop.permute.xlu0 %2277
        %2281 = vset.pattern.permute.xlu0 0
        %2282 = vperm.xlu0 %2281, %v2239
        %v2283 = vpop.permute.xlu0 %2282
        %2286 = vset.pattern.permute.xlu0 0
        %2287 = vperm.xlu0 %2286, %v2240
        %v2288 = vpop.permute.xlu0 %2287
        %2291 = vset.pattern.permute.xlu0 0
        %2292 = vperm.xlu0 %2291, %v2241
        %v2293 = vpop.permute.xlu0 %2292
        %2296 = vset.pattern.permute.xlu0 0
        %2297 = vperm.xlu0 %2296, %v2242
        %v2298 = vpop.permute.xlu0 %2297
        %2301 = vset.pattern.permute.xlu0 0
        %2302 = vperm.xlu0 %2301, %v2243
        %v2303 = vpop.permute.xlu0 %2302
        %2306 = vset.pattern.permute.xlu0 0
        %2307 = vperm.xlu0 %2306, %v2244
        %v2308 = vpop.permute.xlu0 %2307
        %2311 = vset.pattern.permute.xlu0 0
        %2312 = vperm.xlu0 %2311, %v2245
        %v2313 = vpop.permute.xlu0 %2312
        %2316 = vset.pattern.permute.xlu0 0
        %2317 = vperm.xlu0 %2316, %v2246
        %v2318 = vpop.permute.xlu0 %2317
        %2321 = vset.pattern.permute.xlu0 0
        %2322 = vperm.xlu0 %2321, %v2247
        %v2323 = vpop.permute.xlu0 %2322
        %2326 = vset.pattern.permute.xlu0 0
        %2327 = vperm.xlu0 %2326, %v2248
        %v2328 = vpop.permute.xlu0 %2327
        %2331 = vset.pattern.permute.xlu0 0
        %2332 = vperm.xlu0 %2331, %v2249
        %v2333 = vpop.permute.xlu0 %2332
        %2336 = vset.pattern.permute.xlu0 0
        %2337 = vperm.xlu0 %2336, %v2250
        %v2338 = vpop.permute.xlu0 %2337
        %2341 = vset.pattern.permute.xlu0 0
        %2342 = vperm.xlu0 %2341, %v2251
        %v2343 = vpop.permute.xlu0 %2342
        %2346 = vset.pattern.permute.xlu0 0
        %2347 = vperm.xlu0 %2346, %v2252
        %v2348 = vpop.permute.xlu0 %2347
        %2351 = vset.pattern.permute.xlu0 0
        %2352 = vperm.xlu0 %2351, %v2253
        %v2353 = vpop.permute.xlu0 %2352
        %2356 = vset.pattern.permute.xlu0 0
        %2357 = vperm.xlu0 %2356, %v2254
        %v2358 = vpop.permute.xlu0 %2357
        %2361 = vset.pattern.permute.xlu0 0
        %2362 = vperm.xlu0 %2361, %v2255
        %v2363 = vpop.permute.xlu0 %2362
        %2366 = vset.pattern.permute.xlu0 0
        %2367 = vperm.xlu0 %2366, %v2256
        %v2368 = vpop.permute.xlu0 %2367
        %2371 = vset.pattern.permute.xlu0 0
        %2372 = vperm.xlu0 %2371, %v2257
        %v2373 = vpop.permute.xlu0 %2372
        %2376 = vset.pattern.permute.xlu0 0
        %2377 = vperm.xlu0 %2376, %v2258
        %v2378 = vpop.permute.xlu0 %2377
        %2381 = vset.pattern.permute.xlu0 0
        %2382 = vperm.xlu0 %2381, %v2259
        %v2383 = vpop.permute.xlu0 %2382
        %2386 = vset.pattern.permute.xlu0 0
        %2387 = vperm.xlu0 %2386, %v2260
        %v2388 = vpop.permute.xlu0 %2387
        %2391 = vset.pattern.permute.xlu0 0
        %2392 = vperm.xlu0 %2391, %v2261
        %v2393 = vpop.permute.xlu0 %2392
        %2396 = vset.pattern.permute.xlu0 0
        %2397 = vperm.xlu0 %2396, %v2262
        %v2398 = vpop.permute.xlu0 %2397
        %2401 = vset.pattern.permute.xlu0 0
        %2402 = vperm.xlu0 %2401, %v2263
        %v2403 = vpop.permute.xlu0 %2402
        %v2405 = vlaneseq
        %v2406 = vshrl.u32 %v2405, 7
        %v2407 = vsub.s32 0, %v2406
        %v2408 = vrot.slane %v2264, %v2407
        %v2409 = vmul.f32 %v2268, %v2408
        %v2410 = vmul.f32 %v2273, %v2408
        %v2411 = vmul.f32 %v2278, %v2408
        %v2412 = vmul.f32 %v2283, %v2408
        %v2413 = vmul.f32 %v2288, %v2408
        %v2414 = vmul.f32 %v2293, %v2408
        %v2415 = vmul.f32 %v2298, %v2408
        %v2416 = vmul.f32 %v2303, %v2408
        %v2417 = vmul.f32 %v2308, %v2408
        %v2418 = vmul.f32 %v2313, %v2408
        %v2419 = vmul.f32 %v2318, %v2408
        %v2420 = vmul.f32 %v2323, %v2408
        %v2421 = vmul.f32 %v2328, %v2408
        %v2422 = vmul.f32 %v2333, %v2408
        %v2423 = vmul.f32 %v2338, %v2408
        %v2424 = vmul.f32 %v2343, %v2408
        %v2425 = vmul.f32 %v2348, %v2408
        %v2426 = vmul.f32 %v2353, %v2408
        %v2427 = vmul.f32 %v2358, %v2408
        %v2428 = vmul.f32 %v2363, %v2408
        %v2429 = vmul.f32 %v2368, %v2408
        %v2430 = vmul.f32 %v2373, %v2408
        %v2431 = vmul.f32 %v2378, %v2408
        %v2432 = vmul.f32 %v2383, %v2408
        %v2433 = vmul.f32 %v2388, %v2408
        %v2434 = vmul.f32 %v2393, %v2408
        %v2435 = vmul.f32 %v2398, %v2408
        %v2436 = vmul.f32 %v2403, %v2408
        %v2437 = vadd.f32 %v2208, %v2409
        %v2438 = vadd.f32 %v2209, %v2410
        %v2439 = vadd.f32 %v2210, %v2411
        %v2440 = vadd.f32 %v2211, %v2412
        %v2441 = vadd.f32 %v2212, %v2413
        %v2442 = vadd.f32 %v2213, %v2414
        %v2443 = vadd.f32 %v2214, %v2415
        %v2444 = vadd.f32 %v2215, %v2416
        %v2445 = vadd.f32 %v2216, %v2417
        %v2446 = vadd.f32 %v2217, %v2418
        %v2447 = vadd.f32 %v2218, %v2419
        %v2448 = vadd.f32 %v2219, %v2420
        %v2449 = vadd.f32 %v2220, %v2421
        %v2450 = vadd.f32 %v2221, %v2422
        %v2451 = vadd.f32 %v2222, %v2423
        %v2452 = vadd.f32 %v2223, %v2424
        %v2453 = vadd.f32 %v2224, %v2425
        %v2454 = vadd.f32 %v2225, %v2426
        %v2455 = vadd.f32 %v2226, %v2427
        %v2456 = vadd.f32 %v2227, %v2428
        %v2457 = vadd.f32 %v2228, %v2429
        %v2458 = vadd.f32 %v2229, %v2430
        %v2459 = vadd.f32 %v2230, %v2431
        %v2460 = vadd.f32 %v2231, %v2432
        %v2461 = vadd.f32 %v2232, %v2433
        %v2462 = vadd.f32 %v2233, %v2434
        %v2463 = vadd.f32 %v2234, %v2435
        %v2464 = vadd.f32 %v2235, %v2436
        %v2465 = vld [vmem:[%s2006 + $0x2] sm:$0xff]
        %v2466 = vld [vmem:[%s2006 + $0xa] sm:$0x3f]
        %v2467 = vld [vmem:[%s2006 + $0x12] sm:$0xff]
        %v2468 = vld [vmem:[%s2006 + $0x1a] sm:$0x3f]
        %v2469 = vld [vmem:[%s2006 + $0x22] sm:$0xff]
        %v2470 = vld [vmem:[%s2006 + $0x2a] sm:$0x3f]
        %v2471 = vld [vmem:[%s2006 + $0x32] sm:$0xff]
        %v2472 = vld [vmem:[%s2006 + $0x3a] sm:$0x3f]
        %v2473 = vld [vmem:[%s2006 + $0x42] sm:$0xff]
        %v2474 = vld [vmem:[%s2006 + $0x4a] sm:$0x3f]
        %v2475 = vld [vmem:[%s2006 + $0x52] sm:$0xff]
        %v2476 = vld [vmem:[%s2006 + $0x5a] sm:$0x3f]
        %v2477 = vld [vmem:[%s2006 + $0x62] sm:$0xff]
        %v2478 = vld [vmem:[%s2006 + $0x6a] sm:$0x3f]
        %v2479 = vld [vmem:[%s2006 + $0x72] sm:$0xff]
        %v2480 = vld [vmem:[%s2006 + $0x7a] sm:$0x3f]
        %v2481 = vld [vmem:[%s2006 + $0x82] sm:$0xff]
        %v2482 = vld [vmem:[%s2006 + $0x8a] sm:$0x3f]
        %v2483 = vld [vmem:[%s2006 + $0x92] sm:$0xff]
        %v2484 = vld [vmem:[%s2006 + $0x9a] sm:$0x3f]
        %v2485 = vld [vmem:[%s2006 + $0xa2] sm:$0xff]
        %v2486 = vld [vmem:[%s2006 + $0xaa] sm:$0x3f]
        %v2487 = vld [vmem:[%s2006 + $0xb2] sm:$0xff]
        %v2488 = vld [vmem:[%s2006 + $0xba] sm:$0x3f]
        %v2489 = vld [vmem:[%s2006 + $0xc2] sm:$0xff]
        %v2490 = vld [vmem:[%s2006 + $0xca] sm:$0x3f]
        %v2491 = vld [vmem:[%s2006 + $0xd2] sm:$0xff]
        %v2492 = vld [vmem:[%s2006 + $0xda] sm:$0x3f]
        %v2493 = vld [vmem:[%s1 + $0x8] sm:$0x1]
        %2495 = vset.pattern.permute.xlu0 0
        %2496 = vperm.xlu0 %2495, %v2465
        %v2497 = vpop.permute.xlu0 %2496
        %2500 = vset.pattern.permute.xlu0 0
        %2501 = vperm.xlu0 %2500, %v2466
        %v2502 = vpop.permute.xlu0 %2501
        %2505 = vset.pattern.permute.xlu0 0
        %2506 = vperm.xlu0 %2505, %v2467
        %v2507 = vpop.permute.xlu0 %2506
        %2510 = vset.pattern.permute.xlu0 0
        %2511 = vperm.xlu0 %2510, %v2468
        %v2512 = vpop.permute.xlu0 %2511
        %2515 = vset.pattern.permute.xlu0 0
        %2516 = vperm.xlu0 %2515, %v2469
        %v2517 = vpop.permute.xlu0 %2516
        %2520 = vset.pattern.permute.xlu0 0
        %2521 = vperm.xlu0 %2520, %v2470
        %v2522 = vpop.permute.xlu0 %2521
        %2525 = vset.pattern.permute.xlu0 0
        %2526 = vperm.xlu0 %2525, %v2471
        %v2527 = vpop.permute.xlu0 %2526
        %2530 = vset.pattern.permute.xlu0 0
        %2531 = vperm.xlu0 %2530, %v2472
        %v2532 = vpop.permute.xlu0 %2531
        %2535 = vset.pattern.permute.xlu0 0
        %2536 = vperm.xlu0 %2535, %v2473
        %v2537 = vpop.permute.xlu0 %2536
        %2540 = vset.pattern.permute.xlu0 0
        %2541 = vperm.xlu0 %2540, %v2474
        %v2542 = vpop.permute.xlu0 %2541
        %2545 = vset.pattern.permute.xlu0 0
        %2546 = vperm.xlu0 %2545, %v2475
        %v2547 = vpop.permute.xlu0 %2546
        %2550 = vset.pattern.permute.xlu0 0
        %2551 = vperm.xlu0 %2550, %v2476
        %v2552 = vpop.permute.xlu0 %2551
        %2555 = vset.pattern.permute.xlu0 0
        %2556 = vperm.xlu0 %2555, %v2477
        %v2557 = vpop.permute.xlu0 %2556
        %2560 = vset.pattern.permute.xlu0 0
        %2561 = vperm.xlu0 %2560, %v2478
        %v2562 = vpop.permute.xlu0 %2561
        %2565 = vset.pattern.permute.xlu0 0
        %2566 = vperm.xlu0 %2565, %v2479
        %v2567 = vpop.permute.xlu0 %2566
        %2570 = vset.pattern.permute.xlu0 0
        %2571 = vperm.xlu0 %2570, %v2480
        %v2572 = vpop.permute.xlu0 %2571
        %2575 = vset.pattern.permute.xlu0 0
        %2576 = vperm.xlu0 %2575, %v2481
        %v2577 = vpop.permute.xlu0 %2576
        %2580 = vset.pattern.permute.xlu0 0
        %2581 = vperm.xlu0 %2580, %v2482
        %v2582 = vpop.permute.xlu0 %2581
        %2585 = vset.pattern.permute.xlu0 0
        %2586 = vperm.xlu0 %2585, %v2483
        %v2587 = vpop.permute.xlu0 %2586
        %2590 = vset.pattern.permute.xlu0 0
        %2591 = vperm.xlu0 %2590, %v2484
        %v2592 = vpop.permute.xlu0 %2591
        %2595 = vset.pattern.permute.xlu0 0
        %2596 = vperm.xlu0 %2595, %v2485
        %v2597 = vpop.permute.xlu0 %2596
        %2600 = vset.pattern.permute.xlu0 0
        %2601 = vperm.xlu0 %2600, %v2486
        %v2602 = vpop.permute.xlu0 %2601
        %2605 = vset.pattern.permute.xlu0 0
        %2606 = vperm.xlu0 %2605, %v2487
        %v2607 = vpop.permute.xlu0 %2606
        %2610 = vset.pattern.permute.xlu0 0
        %2611 = vperm.xlu0 %2610, %v2488
        %v2612 = vpop.permute.xlu0 %2611
        %2615 = vset.pattern.permute.xlu0 0
        %2616 = vperm.xlu0 %2615, %v2489
        %v2617 = vpop.permute.xlu0 %2616
        %2620 = vset.pattern.permute.xlu0 0
        %2621 = vperm.xlu0 %2620, %v2490
        %v2622 = vpop.permute.xlu0 %2621
        %2625 = vset.pattern.permute.xlu0 0
        %2626 = vperm.xlu0 %2625, %v2491
        %v2627 = vpop.permute.xlu0 %2626
        %2630 = vset.pattern.permute.xlu0 0
        %2631 = vperm.xlu0 %2630, %v2492
        %v2632 = vpop.permute.xlu0 %2631
        %v2634 = vlaneseq
        %v2635 = vshrl.u32 %v2634, 7
        %v2636 = vsub.s32 0, %v2635
        %v2637 = vrot.slane %v2493, %v2636
        %v2638 = vmul.f32 %v2497, %v2637
        %v2639 = vmul.f32 %v2502, %v2637
        %v2640 = vmul.f32 %v2507, %v2637
        %v2641 = vmul.f32 %v2512, %v2637
        %v2642 = vmul.f32 %v2517, %v2637
        %v2643 = vmul.f32 %v2522, %v2637
        %v2644 = vmul.f32 %v2527, %v2637
        %v2645 = vmul.f32 %v2532, %v2637
        %v2646 = vmul.f32 %v2537, %v2637
        %v2647 = vmul.f32 %v2542, %v2637
        %v2648 = vmul.f32 %v2547, %v2637
        %v2649 = vmul.f32 %v2552, %v2637
        %v2650 = vmul.f32 %v2557, %v2637
        %v2651 = vmul.f32 %v2562, %v2637
        %v2652 = vmul.f32 %v2567, %v2637
        %v2653 = vmul.f32 %v2572, %v2637
        %v2654 = vmul.f32 %v2577, %v2637
        %v2655 = vmul.f32 %v2582, %v2637
        %v2656 = vmul.f32 %v2587, %v2637
        %v2657 = vmul.f32 %v2592, %v2637
        %v2658 = vmul.f32 %v2597, %v2637
        %v2659 = vmul.f32 %v2602, %v2637
        %v2660 = vmul.f32 %v2607, %v2637
        %v2661 = vmul.f32 %v2612, %v2637
        %v2662 = vmul.f32 %v2617, %v2637
        %v2663 = vmul.f32 %v2622, %v2637
        %v2664 = vmul.f32 %v2627, %v2637
        %v2665 = vmul.f32 %v2632, %v2637
        %v2666 = vadd.f32 %v2437, %v2638
        %v2667 = vadd.f32 %v2438, %v2639
        %v2668 = vadd.f32 %v2439, %v2640
        %v2669 = vadd.f32 %v2440, %v2641
        %v2670 = vadd.f32 %v2441, %v2642
        %v2671 = vadd.f32 %v2442, %v2643
        %v2672 = vadd.f32 %v2443, %v2644
        %v2673 = vadd.f32 %v2444, %v2645
        %v2674 = vadd.f32 %v2445, %v2646
        %v2675 = vadd.f32 %v2446, %v2647
        %v2676 = vadd.f32 %v2447, %v2648
        %v2677 = vadd.f32 %v2448, %v2649
        %v2678 = vadd.f32 %v2449, %v2650
        %v2679 = vadd.f32 %v2450, %v2651
        %v2680 = vadd.f32 %v2451, %v2652
        %v2681 = vadd.f32 %v2452, %v2653
        %v2682 = vadd.f32 %v2453, %v2654
        %v2683 = vadd.f32 %v2454, %v2655
        %v2684 = vadd.f32 %v2455, %v2656
        %v2685 = vadd.f32 %v2456, %v2657
        %v2686 = vadd.f32 %v2457, %v2658
        %v2687 = vadd.f32 %v2458, %v2659
        %v2688 = vadd.f32 %v2459, %v2660
        %v2689 = vadd.f32 %v2460, %v2661
        %v2690 = vadd.f32 %v2461, %v2662
        %v2691 = vadd.f32 %v2462, %v2663
        %v2692 = vadd.f32 %v2463, %v2664
        %v2693 = vadd.f32 %v2464, %v2665
        %v2694 = vld [vmem:[%s2] sm:$0x1]
        %v2696 = vlaneseq
        %v2697 = vshrl.u32 %v2696, 7
        %v2698 = vsub.s32 0, %v2697
        %v2699 = vrot.slane %v2694, %v2698
        %v2701 = vadd.f32 %v2666, %v2699
        %v2702 = vadd.f32 %v2667, %v2699
        %v2703 = vadd.f32 %v2668, %v2699
        %v2704 = vadd.f32 %v2669, %v2699
        %v2705 = vadd.f32 %v2670, %v2699
        %v2706 = vadd.f32 %v2671, %v2699
        %v2707 = vadd.f32 %v2672, %v2699
        %v2708 = vadd.f32 %v2673, %v2699
        %v2709 = vadd.f32 %v2674, %v2699
        %v2710 = vadd.f32 %v2675, %v2699
        %v2711 = vadd.f32 %v2676, %v2699
        %v2712 = vadd.f32 %v2677, %v2699
        %v2713 = vadd.f32 %v2678, %v2699
        %v2714 = vadd.f32 %v2679, %v2699
        %v2715 = vadd.f32 %v2680, %v2699
        %v2716 = vadd.f32 %v2681, %v2699
        %v2717 = vadd.f32 %v2682, %v2699
        %v2718 = vadd.f32 %v2683, %v2699
        %v2719 = vadd.f32 %v2684, %v2699
        %v2720 = vadd.f32 %v2685, %v2699
        %v2721 = vadd.f32 %v2686, %v2699
        %v2722 = vadd.f32 %v2687, %v2699
        %v2723 = vadd.f32 %v2688, %v2699
        %v2724 = vadd.f32 %v2689, %v2699
        %v2725 = vadd.f32 %v2690, %v2699
        %v2726 = vadd.f32 %v2691, %v2699
        %v2727 = vadd.f32 %v2692, %v2699
        %v2728 = vadd.f32 %v2693, %v2699
        %v2729 = vmax.f32 %v2701, 0.0
        %v2730 = vmax.f32 %v2702, 0.0
        %v2731 = vmax.f32 %v2703, 0.0
        %v2732 = vmax.f32 %v2704, 0.0
        %v2733 = vmax.f32 %v2705, 0.0
        %v2734 = vmax.f32 %v2706, 0.0
        %v2735 = vmax.f32 %v2707, 0.0
        %v2736 = vmax.f32 %v2708, 0.0
        %v2737 = vmax.f32 %v2709, 0.0
        %v2738 = vmax.f32 %v2710, 0.0
        %v2739 = vmax.f32 %v2711, 0.0
        %v2740 = vmax.f32 %v2712, 0.0
        %v2741 = vmax.f32 %v2713, 0.0
        %v2742 = vmax.f32 %v2714, 0.0
        %v2743 = vmax.f32 %v2715, 0.0
        %v2744 = vmax.f32 %v2716, 0.0
        %v2745 = vmax.f32 %v2717, 0.0
        %v2746 = vmax.f32 %v2718, 0.0
        %v2747 = vmax.f32 %v2719, 0.0
        %v2748 = vmax.f32 %v2720, 0.0
        %v2749 = vmax.f32 %v2721, 0.0
        %v2750 = vmax.f32 %v2722, 0.0
        %v2751 = vmax.f32 %v2723, 0.0
        %v2752 = vmax.f32 %v2724, 0.0
        %v2753 = vmax.f32 %v2725, 0.0
        %v2754 = vmax.f32 %v2726, 0.0
        %v2755 = vmax.f32 %v2727, 0.0
        %v2756 = vmax.f32 %v2728, 0.0
        %s2757 = smul.u32 %s650, 456
        %s2758 = sadd.s32 24, %s2757
        %s2759 = scalar_lea.vmem [#allocation2], %s2758
        %2760 = vst [vmem:[%s2759 + $0x1] sm:$0xff] %v2729
        %2761 = vst [vmem:[%s2759 + $0x9] sm:$0x3f] %v2730
        %2762 = vst [vmem:[%s2759 + $0x19] sm:$0xff] %v2731
        %2763 = vst [vmem:[%s2759 + $0x21] sm:$0x3f] %v2732
        %2764 = vst [vmem:[%s2759 + $0x31] sm:$0xff] %v2733
        %2765 = vst [vmem:[%s2759 + $0x39] sm:$0x3f] %v2734
        %2766 = vst [vmem:[%s2759 + $0x49] sm:$0xff] %v2735
        %2767 = vst [vmem:[%s2759 + $0x51] sm:$0x3f] %v2736
        %2768 = vst [vmem:[%s2759 + $0x61] sm:$0xff] %v2737
        %2769 = vst [vmem:[%s2759 + $0x69] sm:$0x3f] %v2738
        %2770 = vst [vmem:[%s2759 + $0x79] sm:$0xff] %v2739
        %2771 = vst [vmem:[%s2759 + $0x81] sm:$0x3f] %v2740
        %2772 = vst [vmem:[%s2759 + $0x91] sm:$0xff] %v2741
        %2773 = vst [vmem:[%s2759 + $0x99] sm:$0x3f] %v2742
        %2774 = vst [vmem:[%s2759 + $0xa9] sm:$0xff] %v2743
        %2775 = vst [vmem:[%s2759 + $0xb1] sm:$0x3f] %v2744
        %2776 = vst [vmem:[%s2759 + $0xc1] sm:$0xff] %v2745
        %2777 = vst [vmem:[%s2759 + $0xc9] sm:$0x3f] %v2746
        %2778 = vst [vmem:[%s2759 + $0xd9] sm:$0xff] %v2747
        %2779 = vst [vmem:[%s2759 + $0xe1] sm:$0x3f] %v2748
        %2780 = vst [vmem:[%s2759 + $0xf1] sm:$0xff] %v2749
        %2781 = vst [vmem:[%s2759 + $0xf9] sm:$0x3f] %v2750
        %2782 = vst [vmem:[%s2759 + $0x109] sm:$0xff] %v2751
        %2783 = vst [vmem:[%s2759 + $0x111] sm:$0x3f] %v2752
        %2784 = vst [vmem:[%s2759 + $0x121] sm:$0xff] %v2753
        %2785 = vst [vmem:[%s2759 + $0x129] sm:$0x3f] %v2754
        %2786 = vst [vmem:[%s2759 + $0x139] sm:$0xff] %v2755
        %2787 = vst [vmem:[%s2759 + $0x141] sm:$0x3f] %v2756
        %s2788 = scalar_lea.vmem [#allocation2], %s2757
        %v2789 = vld [vmem:[%s2788] sm:$0xff]
        %v2790 = vld [vmem:[%s2788 + $0x8] sm:$0xff]
        %v2791 = vld [vmem:[%s2788 + $0x18] sm:$0xff]
        %v2792 = vld [vmem:[%s2788 + $0x20] sm:$0xff]
        %v2793 = vld [vmem:[%s2788 + $0x30] sm:$0xff]
        %v2794 = vld [vmem:[%s2788 + $0x38] sm:$0xff]
        %v2795 = vld [vmem:[%s2788 + $0x48] sm:$0xff]
        %v2796 = vld [vmem:[%s2788 + $0x50] sm:$0xff]
        %v2797 = vld [vmem:[%s2788 + $0x60] sm:$0xff]
        %v2798 = vld [vmem:[%s2788 + $0x68] sm:$0xff]
        %v2799 = vld [vmem:[%s2788 + $0x78] sm:$0xff]
        %v2800 = vld [vmem:[%s2788 + $0x80] sm:$0xff]
        %v2801 = vld [vmem:[%s2788 + $0x90] sm:$0xff]
        %v2802 = vld [vmem:[%s2788 + $0x98] sm:$0xff]
        %v2803 = vld [vmem:[%s2788 + $0xa8] sm:$0xff]
        %v2804 = vld [vmem:[%s2788 + $0xb0] sm:$0xff]
        %v2805 = vpack.c.bf16 %v2790, %v2789
        %v2806 = vpack.c.bf16 %v2792, %v2791
        %v2807 = vpack.c.bf16 %v2794, %v2793
        %v2808 = vpack.c.bf16 %v2796, %v2795
        %v2809 = vpack.c.bf16 %v2798, %v2797
        %v2810 = vpack.c.bf16 %v2800, %v2799
        %v2811 = vpack.c.bf16 %v2802, %v2801
        %v2812 = vpack.c.bf16 %v2804, %v2803
        %v2813 = vld [vmem:[%s2788 + $0x1] sm:$0xff]
        %v2814 = vld [vmem:[%s2788 + $0x9] sm:$0xff]
        %v2815 = vld [vmem:[%s2788 + $0x19] sm:$0xff]
        %v2816 = vld [vmem:[%s2788 + $0x21] sm:$0xff]
        %v2817 = vld [vmem:[%s2788 + $0x31] sm:$0xff]
        %v2818 = vld [vmem:[%s2788 + $0x39] sm:$0xff]
        %v2819 = vld [vmem:[%s2788 + $0x49] sm:$0xff]
        %v2820 = vld [vmem:[%s2788 + $0x51] sm:$0xff]
        %v2821 = vld [vmem:[%s2788 + $0x61] sm:$0xff]
        %v2822 = vld [vmem:[%s2788 + $0x69] sm:$0xff]
        %v2823 = vld [vmem:[%s2788 + $0x79] sm:$0xff]
        %v2824 = vld [vmem:[%s2788 + $0x81] sm:$0xff]
        %v2825 = vld [vmem:[%s2788 + $0x91] sm:$0xff]
        %v2826 = vld [vmem:[%s2788 + $0x99] sm:$0xff]
        %v2827 = vld [vmem:[%s2788 + $0xa9] sm:$0xff]
        %v2828 = vld [vmem:[%s2788 + $0xb1] sm:$0xff]
        %v2829 = vpack.c.bf16 %v2814, %v2813
        %v2830 = vpack.c.bf16 %v2816, %v2815
        %v2831 = vpack.c.bf16 %v2818, %v2817
        %v2832 = vpack.c.bf16 %v2820, %v2819
        %v2833 = vpack.c.bf16 %v2822, %v2821
        %v2834 = vpack.c.bf16 %v2824, %v2823
        %v2835 = vpack.c.bf16 %v2826, %v2825
        %v2836 = vpack.c.bf16 %v2828, %v2827
        %v2837 = vld [vmem:[%s2788 + $0x2] sm:$0xff]
        %v2838 = vld [vmem:[%s2788 + $0xa] sm:$0xff]
        %v2839 = vld [vmem:[%s2788 + $0x1a] sm:$0xff]
        %v2840 = vld [vmem:[%s2788 + $0x22] sm:$0xff]
        %v2841 = vld [vmem:[%s2788 + $0x32] sm:$0xff]
        %v2842 = vld [vmem:[%s2788 + $0x3a] sm:$0xff]
        %v2843 = vld [vmem:[%s2788 + $0x4a] sm:$0xff]
        %v2844 = vld [vmem:[%s2788 + $0x52] sm:$0xff]
        %v2845 = vld [vmem:[%s2788 + $0x62] sm:$0xff]
        %v2846 = vld [vmem:[%s2788 + $0x6a] sm:$0xff]
        %v2847 = vld [vmem:[%s2788 + $0x7a] sm:$0xff]
        %v2848 = vld [vmem:[%s2788 + $0x82] sm:$0xff]
        %v2849 = vld [vmem:[%s2788 + $0x92] sm:$0xff]
        %v2850 = vld [vmem:[%s2788 + $0x9a] sm:$0xff]
        %v2851 = vld [vmem:[%s2788 + $0xaa] sm:$0xff]
        %v2852 = vld [vmem:[%s2788 + $0xb2] sm:$0xff]
        %v2853 = vpack.c.bf16 %v2838, %v2837
        %v2854 = vpack.c.bf16 %v2840, %v2839
        %v2855 = vpack.c.bf16 %v2842, %v2841
        %v2856 = vpack.c.bf16 %v2844, %v2843
        %v2857 = vpack.c.bf16 %v2846, %v2845
        %v2858 = vpack.c.bf16 %v2848, %v2847
        %v2859 = vpack.c.bf16 %v2850, %v2849
        %v2860 = vpack.c.bf16 %v2852, %v2851
        %v2861 = vld [vmem:[%s2788 + $0x3] sm:$0xff]
        %v2862 = vld [vmem:[%s2788 + $0xb] sm:$0xff]
        %v2863 = vld [vmem:[%s2788 + $0x1b] sm:$0xff]
        %v2864 = vld [vmem:[%s2788 + $0x23] sm:$0xff]
        %v2865 = vld [vmem:[%s2788 + $0x33] sm:$0xff]
        %v2866 = vld [vmem:[%s2788 + $0x3b] sm:$0xff]
        %v2867 = vld [vmem:[%s2788 + $0x4b] sm:$0xff]
        %v2868 = vld [vmem:[%s2788 + $0x53] sm:$0xff]
        %v2869 = vld [vmem:[%s2788 + $0x63] sm:$0xff]
        %v2870 = vld [vmem:[%s2788 + $0x6b] sm:$0xff]
        %v2871 = vld [vmem:[%s2788 + $0x7b] sm:$0xff]
        %v2872 = vld [vmem:[%s2788 + $0x83] sm:$0xff]
        %v2873 = vld [vmem:[%s2788 + $0x93] sm:$0xff]
        %v2874 = vld [vmem:[%s2788 + $0x9b] sm:$0xff]
        %v2875 = vld [vmem:[%s2788 + $0xab] sm:$0xff]
        %v2876 = vld [vmem:[%s2788 + $0xb3] sm:$0xff]
        %v2877 = vpack.c.bf16 %v2862, %v2861
        %v2878 = vpack.c.bf16 %v2864, %v2863
        %v2879 = vpack.c.bf16 %v2866, %v2865
        %v2880 = vpack.c.bf16 %v2868, %v2867
        %v2881 = vpack.c.bf16 %v2870, %v2869
        %v2882 = vpack.c.bf16 %v2872, %v2871
        %v2883 = vpack.c.bf16 %v2874, %v2873
        %v2884 = vpack.c.bf16 %v2876, %v2875
        %v2885 = vld [vmem:[%s3] sm:$0xf]
        %v2886 = vld [vmem:[%s3 + $0x4] sm:$0xf]
        %v2887 = vld [vmem:[%s3 + $0x8] sm:$0xf]
        %v2888 = vld [vmem:[%s3 + $0xc] sm:$0xf]
        %v2889 = vld [vmem:[%s3 + $0x10] sm:$0xf]
        %v2890 = vld [vmem:[%s3 + $0x14] sm:$0xf]
        %v2891 = vld [vmem:[%s3 + $0x18] sm:$0xf]
        %v2892 = vld [vmem:[%s3 + $0x1c] sm:$0xf]
        %v2893 = vld [vmem:[%s3 + $0x20] sm:$0xf]
        %v2894 = vld [vmem:[%s3 + $0x24] sm:$0xf]
        %v2895 = vld [vmem:[%s3 + $0x28] sm:$0xf]
        %v2896 = vld [vmem:[%s3 + $0x2c] sm:$0xf]
        %v2897 = vld [vmem:[%s3 + $0x30] sm:$0xf]
        %v2898 = vld [vmem:[%s3 + $0x34] sm:$0xf]
        %v2899 = vld [vmem:[%s3 + $0x38] sm:$0xf]
        %v2900 = vld [vmem:[%s3 + $0x3c] sm:$0xf]
        %v2901 = vld [vmem:[%s3 + $0x40] sm:$0xf]
        %v2902 = vld [vmem:[%s3 + $0x44] sm:$0xf]
        %v2903 = vld [vmem:[%s3 + $0x48] sm:$0xf]
        %v2904 = vld [vmem:[%s3 + $0x4c] sm:$0xf]
        %v2905 = vld [vmem:[%s3 + $0x50] sm:$0xf]
        %v2906 = vld [vmem:[%s3 + $0x54] sm:$0xf]
        %v2907 = vld [vmem:[%s3 + $0x58] sm:$0xf]
        %v2908 = vld [vmem:[%s3 + $0x5c] sm:$0xf]
        %v2909 = vld [vmem:[%s3 + $0x60] sm:$0xf]
        %v2910 = vld [vmem:[%s3 + $0x64] sm:$0xf]
        %v2911 = vld [vmem:[%s3 + $0x68] sm:$0xf]
        %v2912 = vld [vmem:[%s3 + $0x6c] sm:$0xf]
        %v2913 = vld [vmem:[%s3 + $0x70] sm:$0xf]
        %v2914 = vld [vmem:[%s3 + $0x74] sm:$0xf]
        %v2915 = vld [vmem:[%s3 + $0x78] sm:$0xf]
        %v2916 = vld [vmem:[%s3 + $0x7c] sm:$0xf]
        %v2917 = vld [vmem:[%s3 + $0x80] sm:$0xf]
        %v2918 = vld [vmem:[%s3 + $0x84] sm:$0xf]
        %v2919 = vld [vmem:[%s3 + $0x88] sm:$0xf]
        %v2920 = vld [vmem:[%s3 + $0x8c] sm:$0xf]
        %v2921 = vld [vmem:[%s3 + $0x90] sm:$0xf]
        %v2922 = vld [vmem:[%s3 + $0x94] sm:$0xf]
        %v2923 = vld [vmem:[%s3 + $0x98] sm:$0xf]
        %v2924 = vld [vmem:[%s3 + $0x9c] sm:$0xf]
        %v2925 = vld [vmem:[%s3 + $0xa0] sm:$0xf]
        %v2926 = vld [vmem:[%s3 + $0xa4] sm:$0xf]
        %v2927 = vld [vmem:[%s3 + $0xa8] sm:$0xf]
        %v2928 = vld [vmem:[%s3 + $0xac] sm:$0xf]
        %v2929 = vld [vmem:[%s3 + $0xb0] sm:$0xf]
        %v2930 = vld [vmem:[%s3 + $0xb4] sm:$0xf]
        %v2931 = vld [vmem:[%s3 + $0xb8] sm:$0xf]
        %v2932 = vld [vmem:[%s3 + $0xbc] sm:$0xf]
        %v2933 = vld [vmem:[%s3 + $0xc0] sm:$0xf]
        %v2934 = vld [vmem:[%s3 + $0xc4] sm:$0xf]
        %v2935 = vld [vmem:[%s3 + $0xc8] sm:$0xf]
        %v2936 = vld [vmem:[%s3 + $0xcc] sm:$0xf]
        %v2937 = vld [vmem:[%s3 + $0xd0] sm:$0xf]
        %v2938 = vld [vmem:[%s3 + $0xd4] sm:$0xf]
        %v2939 = vld [vmem:[%s3 + $0xd8] sm:$0xf]
        %v2940 = vld [vmem:[%s3 + $0xdc] sm:$0xf]
        %v2941 = vld [vmem:[%s3 + $0xe0] sm:$0xf]
        %v2942 = vld [vmem:[%s3 + $0xe4] sm:$0xf]
        %v2943 = vld [vmem:[%s3 + $0xe8] sm:$0xf]
        %v2944 = vld [vmem:[%s3 + $0xec] sm:$0xf]
        %v2945 = vld [vmem:[%s3 + $0xf0] sm:$0xf]
        %v2946 = vld [vmem:[%s3 + $0xf4] sm:$0xf]
        %v2947 = vld [vmem:[%s3 + $0xf8] sm:$0xf]
        %v2948 = vld [vmem:[%s3 + $0xfc] sm:$0xf]
        %v2949 = vld [vmem:[%s2759] sm:$0xff]
        %v2950 = vld [vmem:[%s2759 + $0x8] sm:$0xff]
        %v2951 = vld [vmem:[%s2759 + $0x18] sm:$0xff]
        %v2952 = vld [vmem:[%s2759 + $0x20] sm:$0xff]
        %v2953 = vld [vmem:[%s2759 + $0x30] sm:$0xff]
        %v2954 = vld [vmem:[%s2759 + $0x38] sm:$0xff]
        %v2955 = vld [vmem:[%s2759 + $0x48] sm:$0xff]
        %v2956 = vld [vmem:[%s2759 + $0x50] sm:$0xff]
        %v2957 = vld [vmem:[%s2759 + $0x60] sm:$0xff]
        %v2958 = vld [vmem:[%s2759 + $0x68] sm:$0xff]
        %v2959 = vld [vmem:[%s2759 + $0x78] sm:$0xff]
        %v2960 = vld [vmem:[%s2759 + $0x80] sm:$0xff]
        %v2961 = vld [vmem:[%s2759 + $0x90] sm:$0xff]
        %v2962 = vld [vmem:[%s2759 + $0x98] sm:$0xff]
        %v2963 = vld [vmem:[%s2759 + $0xa8] sm:$0xff]
        %v2964 = vld [vmem:[%s2759 + $0xb0] sm:$0xff]
        %v2965 = vpack.c.bf16 %v2950, %v2949
        %v2966 = vpack.c.bf16 %v2952, %v2951
        %v2967 = vpack.c.bf16 %v2954, %v2953
        %v2968 = vpack.c.bf16 %v2956, %v2955
        %v2969 = vpack.c.bf16 %v2958, %v2957
        %v2970 = vpack.c.bf16 %v2960, %v2959
        %v2971 = vpack.c.bf16 %v2962, %v2961
        %v2972 = vpack.c.bf16 %v2964, %v2963
        %v2973 = vld [vmem:[%s2759 + $0x1] sm:$0xff]
        %v2974 = vld [vmem:[%s2759 + $0x9] sm:$0xff]
        %v2975 = vld [vmem:[%s2759 + $0x19] sm:$0xff]
        %v2976 = vld [vmem:[%s2759 + $0x21] sm:$0xff]
        %v2977 = vld [vmem:[%s2759 + $0x31] sm:$0xff]
        %v2978 = vld [vmem:[%s2759 + $0x39] sm:$0xff]
        %v2979 = vld [vmem:[%s2759 + $0x49] sm:$0xff]
        %v2980 = vld [vmem:[%s2759 + $0x51] sm:$0xff]
        %v2981 = vld [vmem:[%s2759 + $0x61] sm:$0xff]
        %v2982 = vld [vmem:[%s2759 + $0x69] sm:$0xff]
        %v2983 = vld [vmem:[%s2759 + $0x79] sm:$0xff]
        %v2984 = vld [vmem:[%s2759 + $0x81] sm:$0xff]
        %v2985 = vld [vmem:[%s2759 + $0x91] sm:$0xff]
        %v2986 = vld [vmem:[%s2759 + $0x99] sm:$0xff]
        %v2987 = vld [vmem:[%s2759 + $0xa9] sm:$0xff]
        %v2988 = vld [vmem:[%s2759 + $0xb1] sm:$0xff]
        %v2989 = vpack.c.bf16 %v2974, %v2973
        %v2990 = vpack.c.bf16 %v2976, %v2975
        %v2991 = vpack.c.bf16 %v2978, %v2977
        %v2992 = vpack.c.bf16 %v2980, %v2979
        %v2993 = vpack.c.bf16 %v2982, %v2981
        %v2994 = vpack.c.bf16 %v2984, %v2983
        %v2995 = vpack.c.bf16 %v2986, %v2985
        %v2996 = vpack.c.bf16 %v2988, %v2987
        %v2997 = vld [vmem:[%s2759 + $0x2] sm:$0xff]
        %v2998 = vld [vmem:[%s2759 + $0xa] sm:$0xff]
        %v2999 = vld [vmem:[%s2759 + $0x1a] sm:$0xff]
        %v3000 = vld [vmem:[%s2759 + $0x22] sm:$0xff]
        %v3001 = vld [vmem:[%s2759 + $0x32] sm:$0xff]
        %v3002 = vld [vmem:[%s2759 + $0x3a] sm:$0xff]
        %v3003 = vld [vmem:[%s2759 + $0x4a] sm:$0xff]
        %v3004 = vld [vmem:[%s2759 + $0x52] sm:$0xff]
        %v3005 = vld [vmem:[%s2759 + $0x62] sm:$0xff]
        %v3006 = vld [vmem:[%s2759 + $0x6a] sm:$0xff]
        %v3007 = vld [vmem:[%s2759 + $0x7a] sm:$0xff]
        %v3008 = vld [vmem:[%s2759 + $0x82] sm:$0xff]
        %v3009 = vld [vmem:[%s2759 + $0x92] sm:$0xff]
        %v3010 = vld [vmem:[%s2759 + $0x9a] sm:$0xff]
        %v3011 = vld [vmem:[%s2759 + $0xaa] sm:$0xff]
        %v3012 = vld [vmem:[%s2759 + $0xb2] sm:$0xff]
        %v3013 = vpack.c.bf16 %v2998, %v2997
        %v3014 = vpack.c.bf16 %v3000, %v2999
        %v3015 = vpack.c.bf16 %v3002, %v3001
        %v3016 = vpack.c.bf16 %v3004, %v3003
        %v3017 = vpack.c.bf16 %v3006, %v3005
        %v3018 = vpack.c.bf16 %v3008, %v3007
        %v3019 = vpack.c.bf16 %v3010, %v3009
        %v3020 = vpack.c.bf16 %v3012, %v3011
        %v3021 = vld [vmem:[%s2759 + $0x3] sm:$0xff]
        %v3022 = vld [vmem:[%s2759 + $0xb] sm:$0xff]
        %v3023 = vld [vmem:[%s2759 + $0x1b] sm:$0xff]
        %v3024 = vld [vmem:[%s2759 + $0x23] sm:$0xff]
        %v3025 = vld [vmem:[%s2759 + $0x33] sm:$0xff]
        %v3026 = vld [vmem:[%s2759 + $0x3b] sm:$0xff]
        %v3027 = vld [vmem:[%s2759 + $0x4b] sm:$0xff]
        %v3028 = vld [vmem:[%s2759 + $0x53] sm:$0xff]
        %v3029 = vld [vmem:[%s2759 + $0x63] sm:$0xff]
        %v3030 = vld [vmem:[%s2759 + $0x6b] sm:$0xff]
        %v3031 = vld [vmem:[%s2759 + $0x7b] sm:$0xff]
        %v3032 = vld [vmem:[%s2759 + $0x83] sm:$0xff]
        %v3033 = vld [vmem:[%s2759 + $0x93] sm:$0xff]
        %v3034 = vld [vmem:[%s2759 + $0x9b] sm:$0xff]
        %v3035 = vld [vmem:[%s2759 + $0xab] sm:$0xff]
        %v3036 = vld [vmem:[%s2759 + $0xb3] sm:$0xff]
        %v3037 = vpack.c.bf16 %v3022, %v3021
        %v3038 = vpack.c.bf16 %v3024, %v3023
        %v3039 = vpack.c.bf16 %v3026, %v3025
        %v3040 = vpack.c.bf16 %v3028, %v3027
        %v3041 = vpack.c.bf16 %v3030, %v3029
        %v3042 = vpack.c.bf16 %v3032, %v3031
        %v3043 = vpack.c.bf16 %v3034, %v3033
        %v3044 = vpack.c.bf16 %v3036, %v3035
        %s3045 = scalar_lea.vmem %s3, 256
        %v3046 = vld [vmem:[%s3045] sm:$0xf]
        %v3047 = vld [vmem:[%s3045 + $0x4] sm:$0xf]
        %v3048 = vld [vmem:[%s3045 + $0x8] sm:$0xf]
        %v3049 = vld [vmem:[%s3045 + $0xc] sm:$0xf]
        %v3050 = vld [vmem:[%s3045 + $0x10] sm:$0xf]
        %v3051 = vld [vmem:[%s3045 + $0x14] sm:$0xf]
        %v3052 = vld [vmem:[%s3045 + $0x18] sm:$0xf]
        %v3053 = vld [vmem:[%s3045 + $0x1c] sm:$0xf]
        %v3054 = vld [vmem:[%s3045 + $0x20] sm:$0xf]
        %v3055 = vld [vmem:[%s3045 + $0x24] sm:$0xf]
        %v3056 = vld [vmem:[%s3045 + $0x28] sm:$0xf]
        %v3057 = vld [vmem:[%s3045 + $0x2c] sm:$0xf]
        %v3058 = vld [vmem:[%s3045 + $0x30] sm:$0xf]
        %v3059 = vld [vmem:[%s3045 + $0x34] sm:$0xf]
        %v3060 = vld [vmem:[%s3045 + $0x38] sm:$0xf]
        %v3061 = vld [vmem:[%s3045 + $0x3c] sm:$0xf]
        %v3062 = vld [vmem:[%s3045 + $0x40] sm:$0xf]
        %v3063 = vld [vmem:[%s3045 + $0x44] sm:$0xf]
        %v3064 = vld [vmem:[%s3045 + $0x48] sm:$0xf]
        %v3065 = vld [vmem:[%s3045 + $0x4c] sm:$0xf]
        %v3066 = vld [vmem:[%s3045 + $0x50] sm:$0xf]
        %v3067 = vld [vmem:[%s3045 + $0x54] sm:$0xf]
        %v3068 = vld [vmem:[%s3045 + $0x58] sm:$0xf]
        %v3069 = vld [vmem:[%s3045 + $0x5c] sm:$0xf]
        %v3070 = vld [vmem:[%s3045 + $0x60] sm:$0xf]
        %v3071 = vld [vmem:[%s3045 + $0x64] sm:$0xf]
        %v3072 = vld [vmem:[%s3045 + $0x68] sm:$0xf]
        %v3073 = vld [vmem:[%s3045 + $0x6c] sm:$0xf]
        %v3074 = vld [vmem:[%s3045 + $0x70] sm:$0xf]
        %v3075 = vld [vmem:[%s3045 + $0x74] sm:$0xf]
        %v3076 = vld [vmem:[%s3045 + $0x78] sm:$0xf]
        %v3077 = vld [vmem:[%s3045 + $0x7c] sm:$0xf]
        %v3078 = vld [vmem:[%s3045 + $0x80] sm:$0xf]
        %v3079 = vld [vmem:[%s3045 + $0x84] sm:$0xf]
        %v3080 = vld [vmem:[%s3045 + $0x88] sm:$0xf]
        %v3081 = vld [vmem:[%s3045 + $0x8c] sm:$0xf]
        %v3082 = vld [vmem:[%s3045 + $0x90] sm:$0xf]
        %v3083 = vld [vmem:[%s3045 + $0x94] sm:$0xf]
        %v3084 = vld [vmem:[%s3045 + $0x98] sm:$0xf]
        %v3085 = vld [vmem:[%s3045 + $0x9c] sm:$0xf]
        %v3086 = vld [vmem:[%s3045 + $0xa0] sm:$0xf]
        %v3087 = vld [vmem:[%s3045 + $0xa4] sm:$0xf]
        %v3088 = vld [vmem:[%s3045 + $0xa8] sm:$0xf]
        %v3089 = vld [vmem:[%s3045 + $0xac] sm:$0xf]
        %v3090 = vld [vmem:[%s3045 + $0xb0] sm:$0xf]
        %v3091 = vld [vmem:[%s3045 + $0xb4] sm:$0xf]
        %v3092 = vld [vmem:[%s3045 + $0xb8] sm:$0xf]
        %v3093 = vld [vmem:[%s3045 + $0xbc] sm:$0xf]
        %v3094 = vld [vmem:[%s3045 + $0xc0] sm:$0xf]
        %v3095 = vld [vmem:[%s3045 + $0xc4] sm:$0xf]
        %v3096 = vld [vmem:[%s3045 + $0xc8] sm:$0xf]
        %v3097 = vld [vmem:[%s3045 + $0xcc] sm:$0xf]
        %v3098 = vld [vmem:[%s3045 + $0xd0] sm:$0xf]
        %v3099 = vld [vmem:[%s3045 + $0xd4] sm:$0xf]
        %v3100 = vld [vmem:[%s3045 + $0xd8] sm:$0xf]
        %v3101 = vld [vmem:[%s3045 + $0xdc] sm:$0xf]
        %v3102 = vld [vmem:[%s3045 + $0xe0] sm:$0xf]
        %v3103 = vld [vmem:[%s3045 + $0xe4] sm:$0xf]
        %v3104 = vld [vmem:[%s3045 + $0xe8] sm:$0xf]
        %v3105 = vld [vmem:[%s3045 + $0xec] sm:$0xf]
        %v3106 = vld [vmem:[%s3045 + $0xf0] sm:$0xf]
        %v3107 = vld [vmem:[%s3045 + $0xf4] sm:$0xf]
        %v3108 = vld [vmem:[%s3045 + $0xf8] sm:$0xf]
        %v3109 = vld [vmem:[%s3045 + $0xfc] sm:$0xf]
        %v3174 = vunpack.c.l.b16 %v3046
        %v3175 = vunpack.c.l.b16 %v3047
        %v3176 = vunpack.c.l.b16 %v3048
        %v3177 = vunpack.c.l.b16 %v3049
        %v3178 = vunpack.c.l.b16 %v3050
        %v3179 = vunpack.c.l.b16 %v3051
        %v3180 = vunpack.c.l.b16 %v3052
        %v3181 = vunpack.c.l.b16 %v3053
        %v3182 = vunpack.c.l.b16 %v3054
        %v3183 = vunpack.c.l.b16 %v3055
        %v3184 = vunpack.c.l.b16 %v3056
        %v3185 = vunpack.c.l.b16 %v3057
        %v3186 = vunpack.c.l.b16 %v3058
        %v3187 = vunpack.c.l.b16 %v3059
        %v3188 = vunpack.c.l.b16 %v3060
        %v3189 = vunpack.c.l.b16 %v3061
        %v3190 = vunpack.c.l.b16 %v3062
        %v3191 = vunpack.c.l.b16 %v3063
        %v3192 = vunpack.c.l.b16 %v3064
        %v3193 = vunpack.c.l.b16 %v3065
        %v3194 = vunpack.c.l.b16 %v3066
        %v3195 = vunpack.c.l.b16 %v3067
        %v3196 = vunpack.c.l.b16 %v3068
        %v3197 = vunpack.c.l.b16 %v3069
        %v3198 = vunpack.c.l.b16 %v3070
        %v3199 = vunpack.c.l.b16 %v3071
        %v3200 = vunpack.c.l.b16 %v3072
        %v3201 = vunpack.c.l.b16 %v3073
        %v3202 = vunpack.c.l.b16 %v3074
        %v3203 = vunpack.c.l.b16 %v3075
        %v3204 = vunpack.c.l.b16 %v3076
        %v3205 = vunpack.c.l.b16 %v3077
        %v3206 = vunpack.c.l.b16 %v3078
        %v3207 = vunpack.c.l.b16 %v3079
        %v3208 = vunpack.c.l.b16 %v3080
        %v3209 = vunpack.c.l.b16 %v3081
        %v3210 = vunpack.c.l.b16 %v3082
        %v3211 = vunpack.c.l.b16 %v3083
        %v3212 = vunpack.c.l.b16 %v3084
        %v3213 = vunpack.c.l.b16 %v3085
        %v3214 = vunpack.c.l.b16 %v3086
        %v3215 = vunpack.c.l.b16 %v3087
        %v3216 = vunpack.c.l.b16 %v3088
        %v3217 = vunpack.c.l.b16 %v3089
        %v3218 = vunpack.c.l.b16 %v3090
        %v3219 = vunpack.c.l.b16 %v3091
        %v3220 = vunpack.c.l.b16 %v3092
        %v3221 = vunpack.c.l.b16 %v3093
        %v3222 = vunpack.c.l.b16 %v3094
        %v3223 = vunpack.c.l.b16 %v3095
        %v3224 = vunpack.c.l.b16 %v3096
        %v3225 = vunpack.c.l.b16 %v3097
        %v3226 = vunpack.c.l.b16 %v3098
        %v3227 = vunpack.c.l.b16 %v3099
        %v3228 = vunpack.c.l.b16 %v3100
        %v3229 = vunpack.c.l.b16 %v3101
        %v3230 = vunpack.c.l.b16 %v3102
        %v3231 = vunpack.c.l.b16 %v3103
        %v3232 = vunpack.c.l.b16 %v3104
        %v3233 = vunpack.c.l.b16 %v3105
        %v3234 = vunpack.c.l.b16 %v3106
        %v3235 = vunpack.c.l.b16 %v3107
        %v3236 = vunpack.c.l.b16 %v3108
        %v3237 = vunpack.c.l.b16 %v3109
        %v3238 = vpack.c.b16 %v3175, %v3174
        %v3239 = vpack.c.b16 %v3177, %v3176
        %v3240 = vpack.c.b16 %v3179, %v3178
        %v3241 = vpack.c.b16 %v3181, %v3180
        %v3242 = vpack.c.b16 %v3183, %v3182
        %v3243 = vpack.c.b16 %v3185, %v3184
        %v3244 = vpack.c.b16 %v3187, %v3186
        %v3245 = vpack.c.b16 %v3189, %v3188
        %v3246 = vpack.c.b16 %v3191, %v3190
        %v3247 = vpack.c.b16 %v3193, %v3192
        %v3248 = vpack.c.b16 %v3195, %v3194
        %v3249 = vpack.c.b16 %v3197, %v3196
        %v3250 = vpack.c.b16 %v3199, %v3198
        %v3251 = vpack.c.b16 %v3201, %v3200
        %v3252 = vpack.c.b16 %v3203, %v3202
        %v3253 = vpack.c.b16 %v3205, %v3204
        %v3254 = vpack.c.b16 %v3207, %v3206
        %v3255 = vpack.c.b16 %v3209, %v3208
        %v3256 = vpack.c.b16 %v3211, %v3210
        %v3257 = vpack.c.b16 %v3213, %v3212
        %v3258 = vpack.c.b16 %v3215, %v3214
        %v3259 = vpack.c.b16 %v3217, %v3216
        %v3260 = vpack.c.b16 %v3219, %v3218
        %v3261 = vpack.c.b16 %v3221, %v3220
        %v3262 = vpack.c.b16 %v3223, %v3222
        %v3263 = vpack.c.b16 %v3225, %v3224
        %v3264 = vpack.c.b16 %v3227, %v3226
        %v3265 = vpack.c.b16 %v3229, %v3228
        %v3266 = vpack.c.b16 %v3231, %v3230
        %v3267 = vpack.c.b16 %v3233, %v3232
        %v3268 = vpack.c.b16 %v3235, %v3234
        %v3269 = vpack.c.b16 %v3237, %v3236
        %3302 = vmatprep.subr.bf16.mxu0 0
        %3303 = vmatpush1.bf16.msra.mxu0 %v3238
        %3304 = vmatprep.subr.bf16.mxu0 0
        %3305 = vmatpush1.bf16.msra.mxu0 %v3239
        %3306 = vmatprep.subr.bf16.mxu0 0
        %3307 = vmatpush1.bf16.msra.mxu0 %v3240
        %3308 = vmatprep.subr.bf16.mxu0 0
        %3309 = vmatpush1.bf16.msra.mxu0 %v3241
        %3310 = vmatprep.subr.bf16.mxu0 0
        %3311 = vmatpush1.bf16.msra.mxu0 %v3242
        %3312 = vmatprep.subr.bf16.mxu0 0
        %3313 = vmatpush1.bf16.msra.mxu0 %v3243
        %3314 = vmatprep.subr.bf16.mxu0 0
        %3315 = vmatpush1.bf16.msra.mxu0 %v3244
        %3316 = vmatprep.subr.bf16.mxu0 0
        %3317 = vmatpush1.bf16.msra.mxu0 %v3245
        %3318 = vmatprep.subr.bf16.mxu0 0
        %3319 = vmatpush1.bf16.msra.mxu0 %v3246
        %3320 = vmatprep.subr.bf16.mxu0 0
        %3321 = vmatpush1.bf16.msra.mxu0 %v3247
        %3322 = vmatprep.subr.bf16.mxu0 0
        %3323 = vmatpush1.bf16.msra.mxu0 %v3248
        %3324 = vmatprep.subr.bf16.mxu0 0
        %3325 = vmatpush1.bf16.msra.mxu0 %v3249
        %3326 = vmatprep.subr.bf16.mxu0 0
        %3327 = vmatpush1.bf16.msra.mxu0 %v3250
        %3328 = vmatprep.subr.bf16.mxu0 0
        %3329 = vmatpush1.bf16.msra.mxu0 %v3251
        %3330 = vmatprep.subr.bf16.mxu0 0
        %3331 = vmatpush1.bf16.msra.mxu0 %v3252
        %3332 = vmatprep.subr.bf16.mxu0 0
        %3333 = vmatpush1.bf16.msra.mxu0 %v3253
        %3334 = vmatprep.mubr.bf16.mxu0 %v2989
        %3335 = vmatmul.mubr.bf16.gmra.mrb[0].mxu0 %v2965
        %v3336 = vpop.f32.mrb[0].mxu0
        %v3337 = vadd.f32 0.0, %v3336
        %v3338 = vpop.f32.mrb[0].mxu0
        %v3339 = vpop.f32.mrb[0].mxu0
        %v3340 = vadd.f32 0.0, %v3339
        %v3341 = vpop.f32.mrb[0].mxu0
        %3342 = vmatprep.mubr.bf16.mxu0 %v2990
        %3343 = vmatmul.mubr.bf16.gmra.mrb[0].mxu0 %v2966
        %v3344 = vpop.f32.mrb[0].mxu0
        %v3345 = vadd.f32 0.0, %v3344
        %v3346 = vpop.f32.mrb[0].mxu0
        %v3347 = vpop.f32.mrb[0].mxu0
        %v3348 = vadd.f32 0.0, %v3347
        %v3349 = vpop.f32.mrb[0].mxu0
        %3350 = vmatprep.mubr.bf16.mxu0 %v2991
        %3351 = vmatmul.mubr.bf16.gmra.mrb[0].mxu0 %v2967
        %v3352 = vpop.f32.mrb[0].mxu0
        %v3353 = vadd.f32 0.0, %v3352
        %v3354 = vpop.f32.mrb[0].mxu0
        %v3355 = vpop.f32.mrb[0].mxu0
        %v3356 = vadd.f32 0.0, %v3355
        %v3357 = vpop.f32.mrb[0].mxu0
        %3358 = vmatprep.mubr.bf16.mxu0 %v2992
        %3359 = vmatmul.mubr.bf16.gmra.mrb[0].mxu0 %v2968
        %v3360 = vpop.f32.mrb[0].mxu0
        %v3361 = vadd.f32 0.0, %v3360
        %v3362 = vpop.f32.mrb[0].mxu0
        %v3363 = vpop.f32.mrb[0].mxu0
        %v3364 = vadd.f32 0.0, %v3363
        %v3365 = vpop.f32.mrb[0].mxu0
        %3366 = vmatprep.mubr.bf16.mxu0 %v2993
        %3367 = vmatmul.mubr.bf16.gmra.mrb[0].mxu0 %v2969
        %v3368 = vpop.f32.mrb[0].mxu0
        %v3369 = vadd.f32 0.0, %v3368
        %v3370 = vpop.f32.mrb[0].mxu0
        %v3371 = vpop.f32.mrb[0].mxu0
        %v3372 = vadd.f32 0.0, %v3371
        %v3373 = vpop.f32.mrb[0].mxu0
        %3374 = vmatprep.mubr.bf16.mxu0 %v2994
        %3375 = vmatmul.mubr.bf16.gmra.mrb[0].mxu0 %v2970
        %v3376 = vpop.f32.mrb[0].mxu0
        %v3377 = vadd.f32 0.0, %v3376
        %v3378 = vpop.f32.mrb[0].mxu0
        %v3379 = vpop.f32.mrb[0].mxu0
        %v3380 = vadd.f32 0.0, %v3379
        %v3381 = vpop.f32.mrb[0].mxu0
        %3382 = vmatprep.mubr.bf16.mxu0 %v2995
        %3383 = vmatmul.mubr.bf16.gmra.mrb[0].mxu0 %v2971
        %v3384 = vpop.f32.mrb[0].mxu0
        %v3385 = vadd.f32 0.0, %v3384
        %v3386 = vpop.f32.mrb[0].mxu0
        %v3387 = vpop.f32.mrb[0].mxu0
        %v3388 = vadd.f32 0.0, %v3387
        %v3389 = vpop.f32.mrb[0].mxu0
        %3390 = vmatprep.mubr.bf16.mxu0 %v2996
        %3391 = vmatmul.mubr.bf16.gmra.mrb[0].mxu0 %v2972
        %v3392 = vpop.f32.mrb[0].mxu0
        %v3393 = vadd.f32 0.0, %v3392
        %v3394 = vpop.f32.mrb[0].mxu0
        %v3395 = vpop.f32.mrb[0].mxu0
        %v3396 = vadd.f32 0.0, %v3395
        %v3397 = vpop.f32.mrb[0].mxu0
        %3398 = vdwg.mxu0
        %3399 = vmatprep.subr.bf16.mxu0 0
        %3400 = vmatpush1.bf16.msra.mxu0 %v3254
        %3401 = vmatprep.subr.bf16.mxu0 0
        %3402 = vmatpush1.bf16.msra.mxu0 %v3255
        %3403 = vmatprep.subr.bf16.mxu0 0
        %3404 = vmatpush1.bf16.msra.mxu0 %v3256
        %3405 = vmatprep.subr.bf16.mxu0 0
        %3406 = vmatpush1.bf16.msra.mxu0 %v3257
        %3407 = vmatprep.subr.bf16.mxu0 0
        %3408 = vmatpush1.bf16.msra.mxu0 %v3258
        %3409 = vmatprep.subr.bf16.mxu0 0
        %3410 = vmatpush1.bf16.msra.mxu0 %v3259
        %3411 = vmatprep.subr.bf16.mxu0 0
        %3412 = vmatpush1.bf16.msra.mxu0 %v3260
        %3413 = vmatprep.subr.bf16.mxu0 0
        %3414 = vmatpush1.bf16.msra.mxu0 %v3261
        %3415 = vmatprep.subr.bf16.mxu0 0
        %3416 = vmatpush1.bf16.msra.mxu0 %v3262
        %3417 = vmatprep.subr.bf16.mxu0 0
        %3418 = vmatpush1.bf16.msra.mxu0 %v3263
        %3419 = vmatprep.subr.bf16.mxu0 0
        %3420 = vmatpush1.bf16.msra.mxu0 %v3264
        %3421 = vmatprep.subr.bf16.mxu0 0
        %3422 = vmatpush1.bf16.msra.mxu0 %v3265
        %3423 = vmatprep.subr.bf16.mxu0 0
        %3424 = vmatpush1.bf16.msra.mxu0 %v3266
        %3425 = vmatprep.subr.bf16.mxu0 0
        %3426 = vmatpush1.bf16.msra.mxu0 %v3267
        %3427 = vmatprep.subr.bf16.mxu0 0
        %3428 = vmatpush1.bf16.msra.mxu0 %v3268
        %3429 = vmatprep.subr.bf16.mxu0 0
        %3430 = vmatpush1.bf16.msra.mxu0 %v3269
        %3431 = vmatprep.mubr.bf16.mxu0 %v3037
        %3432 = vmatmul.mubr.bf16.gmra.mrb[0].mxu0 %v3013
        %v3433 = vpop.f32.mrb[0].mxu0
        %v3434 = vadd.f32 %v3337, %v3433
        %v3435 = vpop.f32.mrb[0].mxu0
        %v3436 = vpop.f32.mrb[0].mxu0
        %v3437 = vadd.f32 %v3340, %v3436
        %v3438 = vpop.f32.mrb[0].mxu0
        %3439 = vmatprep.mubr.bf16.mxu0 %v3038
        %3440 = vmatmul.mubr.bf16.gmra.mrb[0].mxu0 %v3014
        %v3441 = vpop.f32.mrb[0].mxu0
        %v3442 = vadd.f32 %v3345, %v3441
        %v3443 = vpop.f32.mrb[0].mxu0
        %v3444 = vpop.f32.mrb[0].mxu0
        %v3445 = vadd.f32 %v3348, %v3444
        %v3446 = vpop.f32.mrb[0].mxu0
        %3447 = vmatprep.mubr.bf16.mxu0 %v3039
        %3448 = vmatmul.mubr.bf16.gmra.mrb[0].mxu0 %v3015
        %v3449 = vpop.f32.mrb[0].mxu0
        %v3450 = vadd.f32 %v3353, %v3449
        %v3451 = vpop.f32.mrb[0].mxu0
        %v3452 = vpop.f32.mrb[0].mxu0
        %v3453 = vadd.f32 %v3356, %v3452
        %v3454 = vpop.f32.mrb[0].mxu0
        %3455 = vmatprep.mubr.bf16.mxu0 %v3040
        %3456 = vmatmul.mubr.bf16.gmra.mrb[0].mxu0 %v3016
        %v3457 = vpop.f32.mrb[0].mxu0
        %v3458 = vadd.f32 %v3361, %v3457
        %v3459 = vpop.f32.mrb[0].mxu0
        %v3460 = vpop.f32.mrb[0].mxu0
        %v3461 = vadd.f32 %v3364, %v3460
        %v3462 = vpop.f32.mrb[0].mxu0
        %3463 = vmatprep.mubr.bf16.mxu0 %v3041
        %3464 = vmatmul.mubr.bf16.gmra.mrb[0].mxu0 %v3017
        %v3465 = vpop.f32.mrb[0].mxu0
        %v3466 = vadd.f32 %v3369, %v3465
        %v3467 = vpop.f32.mrb[0].mxu0
        %v3468 = vpop.f32.mrb[0].mxu0
        %v3469 = vadd.f32 %v3372, %v3468
        %v3470 = vpop.f32.mrb[0].mxu0
        %3471 = vmatprep.mubr.bf16.mxu0 %v3042
        %3472 = vmatmul.mubr.bf16.gmra.mrb[0].mxu0 %v3018
        %v3473 = vpop.f32.mrb[0].mxu0
        %v3474 = vadd.f32 %v3377, %v3473
        %v3475 = vpop.f32.mrb[0].mxu0
        %v3476 = vpop.f32.mrb[0].mxu0
        %v3477 = vadd.f32 %v3380, %v3476
        %v3478 = vpop.f32.mrb[0].mxu0
        %3479 = vmatprep.mubr.bf16.mxu0 %v3043
        %3480 = vmatmul.mubr.bf16.gmra.mrb[0].mxu0 %v3019
        %v3481 = vpop.f32.mrb[0].mxu0
        %v3482 = vadd.f32 %v3385, %v3481
        %v3483 = vpop.f32.mrb[0].mxu0
        %v3484 = vpop.f32.mrb[0].mxu0
        %v3485 = vadd.f32 %v3388, %v3484
        %v3486 = vpop.f32.mrb[0].mxu0
        %3487 = vmatprep.mubr.bf16.mxu0 %v3044
        %3488 = vmatmul.mubr.bf16.gmra.mrb[0].mxu0 %v3020
        %v3489 = vpop.f32.mrb[0].mxu0
        %v3490 = vadd.f32 %v3393, %v3489
        %v3491 = vpop.f32.mrb[0].mxu0
        %v3492 = vpop.f32.mrb[0].mxu0
        %v3493 = vadd.f32 %v3396, %v3492
        %v3494 = vpop.f32.mrb[0].mxu0
        %3495 = vdwg.mxu0
        %v3560 = vunpack.c.l.b16 %v2885
        %v3561 = vunpack.c.l.b16 %v2886
        %v3562 = vunpack.c.l.b16 %v2887
        %v3563 = vunpack.c.l.b16 %v2888
        %v3564 = vunpack.c.l.b16 %v2889
        %v3565 = vunpack.c.l.b16 %v2890
        %v3566 = vunpack.c.l.b16 %v2891
        %v3567 = vunpack.c.l.b16 %v2892
        %v3568 = vunpack.c.l.b16 %v2893
        %v3569 = vunpack.c.l.b16 %v2894
        %v3570 = vunpack.c.l.b16 %v2895
        %v3571 = vunpack.c.l.b16 %v2896
        %v3572 = vunpack.c.l.b16 %v2897
        %v3573 = vunpack.c.l.b16 %v2898
        %v3574 = vunpack.c.l.b16 %v2899
        %v3575 = vunpack.c.l.b16 %v2900
        %v3576 = vunpack.c.l.b16 %v2901
        %v3577 = vunpack.c.l.b16 %v2902
        %v3578 = vunpack.c.l.b16 %v2903
        %v3579 = vunpack.c.l.b16 %v2904
        %v3580 = vunpack.c.l.b16 %v2905
        %v3581 = vunpack.c.l.b16 %v2906
        %v3582 = vunpack.c.l.b16 %v2907
        %v3583 = vunpack.c.l.b16 %v2908
        %v3584 = vunpack.c.l.b16 %v2909
        %v3585 = vunpack.c.l.b16 %v2910
        %v3586 = vunpack.c.l.b16 %v2911
        %v3587 = vunpack.c.l.b16 %v2912
        %v3588 = vunpack.c.l.b16 %v2913
        %v3589 = vunpack.c.l.b16 %v2914
        %v3590 = vunpack.c.l.b16 %v2915
        %v3591 = vunpack.c.l.b16 %v2916
        %v3592 = vunpack.c.l.b16 %v2917
        %v3593 = vunpack.c.l.b16 %v2918
        %v3594 = vunpack.c.l.b16 %v2919
        %v3595 = vunpack.c.l.b16 %v2920
        %v3596 = vunpack.c.l.b16 %v2921
        %v3597 = vunpack.c.l.b16 %v2922
        %v3598 = vunpack.c.l.b16 %v2923
        %v3599 = vunpack.c.l.b16 %v2924
        %v3600 = vunpack.c.l.b16 %v2925
        %v3601 = vunpack.c.l.b16 %v2926
        %v3602 = vunpack.c.l.b16 %v2927
        %v3603 = vunpack.c.l.b16 %v2928
        %v3604 = vunpack.c.l.b16 %v2929
        %v3605 = vunpack.c.l.b16 %v2930
        %v3606 = vunpack.c.l.b16 %v2931
        %v3607 = vunpack.c.l.b16 %v2932
        %v3608 = vunpack.c.l.b16 %v2933
        %v3609 = vunpack.c.l.b16 %v2934
        %v3610 = vunpack.c.l.b16 %v2935
        %v3611 = vunpack.c.l.b16 %v2936
        %v3612 = vunpack.c.l.b16 %v2937
        %v3613 = vunpack.c.l.b16 %v2938
        %v3614 = vunpack.c.l.b16 %v2939
        %v3615 = vunpack.c.l.b16 %v2940
        %v3616 = vunpack.c.l.b16 %v2941
        %v3617 = vunpack.c.l.b16 %v2942
        %v3618 = vunpack.c.l.b16 %v2943
        %v3619 = vunpack.c.l.b16 %v2944
        %v3620 = vunpack.c.l.b16 %v2945
        %v3621 = vunpack.c.l.b16 %v2946
        %v3622 = vunpack.c.l.b16 %v2947
        %v3623 = vunpack.c.l.b16 %v2948
        %v3624 = vpack.c.b16 %v3561, %v3560
        %v3625 = vpack.c.b16 %v3563, %v3562
        %v3626 = vpack.c.b16 %v3565, %v3564
        %v3627 = vpack.c.b16 %v3567, %v3566
        %v3628 = vpack.c.b16 %v3569, %v3568
        %v3629 = vpack.c.b16 %v3571, %v3570
        %v3630 = vpack.c.b16 %v3573, %v3572
        %v3631 = vpack.c.b16 %v3575, %v3574
        %v3632 = vpack.c.b16 %v3577, %v3576
        %v3633 = vpack.c.b16 %v3579, %v3578
        %v3634 = vpack.c.b16 %v3581, %v3580
        %v3635 = vpack.c.b16 %v3583, %v3582
        %v3636 = vpack.c.b16 %v3585, %v3584
        %v3637 = vpack.c.b16 %v3587, %v3586
        %v3638 = vpack.c.b16 %v3589, %v3588
        %v3639 = vpack.c.b16 %v3591, %v3590
        %v3640 = vpack.c.b16 %v3593, %v3592
        %v3641 = vpack.c.b16 %v3595, %v3594
        %v3642 = vpack.c.b16 %v3597, %v3596
        %v3643 = vpack.c.b16 %v3599, %v3598
        %v3644 = vpack.c.b16 %v3601, %v3600
        %v3645 = vpack.c.b16 %v3603, %v3602
        %v3646 = vpack.c.b16 %v3605, %v3604
        %v3647 = vpack.c.b16 %v3607, %v3606
        %v3648 = vpack.c.b16 %v3609, %v3608
        %v3649 = vpack.c.b16 %v3611, %v3610
        %v3650 = vpack.c.b16 %v3613, %v3612
        %v3651 = vpack.c.b16 %v3615, %v3614
        %v3652 = vpack.c.b16 %v3617, %v3616
        %v3653 = vpack.c.b16 %v3619, %v3618
        %v3654 = vpack.c.b16 %v3621, %v3620
        %v3655 = vpack.c.b16 %v3623, %v3622
        %3688 = vmatprep.subr.bf16.mxu0 0
        %3689 = vmatpush1.bf16.msra.mxu0 %v3624
        %3690 = vmatprep.subr.bf16.mxu0 0
        %3691 = vmatpush1.bf16.msra.mxu0 %v3625
        %3692 = vmatprep.subr.bf16.mxu0 0
        %3693 = vmatpush1.bf16.msra.mxu0 %v3626
        %3694 = vmatprep.subr.bf16.mxu0 0
        %3695 = vmatpush1.bf16.msra.mxu0 %v3627
        %3696 = vmatprep.subr.bf16.mxu0 0
        %3697 = vmatpush1.bf16.msra.mxu0 %v3628
        %3698 = vmatprep.subr.bf16.mxu0 0
        %3699 = vmatpush1.bf16.msra.mxu0 %v3629
        %3700 = vmatprep.subr.bf16.mxu0 0
        %3701 = vmatpush1.bf16.msra.mxu0 %v3630
        %3702 = vmatprep.subr.bf16.mxu0 0
        %3703 = vmatpush1.bf16.msra.mxu0 %v3631
        %3704 = vmatprep.subr.bf16.mxu0 0
        %3705 = vmatpush1.bf16.msra.mxu0 %v3632
        %3706 = vmatprep.subr.bf16.mxu0 0
        %3707 = vmatpush1.bf16.msra.mxu0 %v3633
        %3708 = vmatprep.subr.bf16.mxu0 0
        %3709 = vmatpush1.bf16.msra.mxu0 %v3634
        %3710 = vmatprep.subr.bf16.mxu0 0
        %3711 = vmatpush1.bf16.msra.mxu0 %v3635
        %3712 = vmatprep.subr.bf16.mxu0 0
        %3713 = vmatpush1.bf16.msra.mxu0 %v3636
        %3714 = vmatprep.subr.bf16.mxu0 0
        %3715 = vmatpush1.bf16.msra.mxu0 %v3637
        %3716 = vmatprep.subr.bf16.mxu0 0
        %3717 = vmatpush1.bf16.msra.mxu0 %v3638
        %3718 = vmatprep.subr.bf16.mxu0 0
        %3719 = vmatpush1.bf16.msra.mxu0 %v3639
        %3720 = vmatprep.mubr.bf16.mxu0 %v2829
        %3721 = vmatmul.mubr.bf16.gmra.mrb[0].mxu0 %v2805
        %v3722 = vpop.f32.mrb[0].mxu0
        %v3723 = vadd.f32 %v3434, %v3722
        %v3724 = vpop.f32.mrb[0].mxu0
        %v3725 = vpop.f32.mrb[0].mxu0
        %v3726 = vadd.f32 %v3437, %v3725
        %v3727 = vpop.f32.mrb[0].mxu0
        %3728 = vmatprep.mubr.bf16.mxu0 %v2830
        %3729 = vmatmul.mubr.bf16.gmra.mrb[0].mxu0 %v2806
        %v3730 = vpop.f32.mrb[0].mxu0
        %v3731 = vadd.f32 %v3442, %v3730
        %v3732 = vpop.f32.mrb[0].mxu0
        %v3733 = vpop.f32.mrb[0].mxu0
        %v3734 = vadd.f32 %v3445, %v3733
        %v3735 = vpop.f32.mrb[0].mxu0
        %3736 = vmatprep.mubr.bf16.mxu0 %v2831
        %3737 = vmatmul.mubr.bf16.gmra.mrb[0].mxu0 %v2807
        %v3738 = vpop.f32.mrb[0].mxu0
        %v3739 = vadd.f32 %v3450, %v3738
        %v3740 = vpop.f32.mrb[0].mxu0
        %v3741 = vpop.f32.mrb[0].mxu0
        %v3742 = vadd.f32 %v3453, %v3741
        %v3743 = vpop.f32.mrb[0].mxu0
        %3744 = vmatprep.mubr.bf16.mxu0 %v2832
        %3745 = vmatmul.mubr.bf16.gmra.mrb[0].mxu0 %v2808
        %v3746 = vpop.f32.mrb[0].mxu0
        %v3747 = vadd.f32 %v3458, %v3746
        %v3748 = vpop.f32.mrb[0].mxu0
        %v3749 = vpop.f32.mrb[0].mxu0
        %v3750 = vadd.f32 %v3461, %v3749
        %v3751 = vpop.f32.mrb[0].mxu0
        %3752 = vmatprep.mubr.bf16.mxu0 %v2833
        %3753 = vmatmul.mubr.bf16.gmra.mrb[0].mxu0 %v2809
        %v3754 = vpop.f32.mrb[0].mxu0
        %v3755 = vadd.f32 %v3466, %v3754
        %v3756 = vpop.f32.mrb[0].mxu0
        %v3757 = vpop.f32.mrb[0].mxu0
        %v3758 = vadd.f32 %v3469, %v3757
        %v3759 = vpop.f32.mrb[0].mxu0
        %3760 = vmatprep.mubr.bf16.mxu0 %v2834
        %3761 = vmatmul.mubr.bf16.gmra.mrb[0].mxu0 %v2810
        %v3762 = vpop.f32.mrb[0].mxu0
        %v3763 = vadd.f32 %v3474, %v3762
        %v3764 = vpop.f32.mrb[0].mxu0
        %v3765 = vpop.f32.mrb[0].mxu0
        %v3766 = vadd.f32 %v3477, %v3765
        %v3767 = vpop.f32.mrb[0].mxu0
        %3768 = vmatprep.mubr.bf16.mxu0 %v2835
        %3769 = vmatmul.mubr.bf16.gmra.mrb[0].mxu0 %v2811
        %v3770 = vpop.f32.mrb[0].mxu0
        %v3771 = vadd.f32 %v3482, %v3770
        %v3772 = vpop.f32.mrb[0].mxu0
        %v3773 = vpop.f32.mrb[0].mxu0
        %v3774 = vadd.f32 %v3485, %v3773
        %v3775 = vpop.f32.mrb[0].mxu0
        %3776 = vmatprep.mubr.bf16.mxu0 %v2836
        %3777 = vmatmul.mubr.bf16.gmra.mrb[0].mxu0 %v2812
        %v3778 = vpop.f32.mrb[0].mxu0
        %v3779 = vadd.f32 %v3490, %v3778
        %v3780 = vpop.f32.mrb[0].mxu0
        %v3781 = vpop.f32.mrb[0].mxu0
        %v3782 = vadd.f32 %v3493, %v3781
        %v3783 = vpop.f32.mrb[0].mxu0
        %3784 = vdwg.mxu0
        %3785 = vmatprep.subr.bf16.mxu0 0
        %3786 = vmatpush1.bf16.msra.mxu0 %v3640
        %3787 = vmatprep.subr.bf16.mxu0 0
        %3788 = vmatpush1.bf16.msra.mxu0 %v3641
        %3789 = vmatprep.subr.bf16.mxu0 0
        %3790 = vmatpush1.bf16.msra.mxu0 %v3642
        %3791 = vmatprep.subr.bf16.mxu0 0
        %3792 = vmatpush1.bf16.msra.mxu0 %v3643
        %3793 = vmatprep.subr.bf16.mxu0 0
        %3794 = vmatpush1.bf16.msra.mxu0 %v3644
        %3795 = vmatprep.subr.bf16.mxu0 0
        %3796 = vmatpush1.bf16.msra.mxu0 %v3645
        %3797 = vmatprep.subr.bf16.mxu0 0
        %3798 = vmatpush1.bf16.msra.mxu0 %v3646
        %3799 = vmatprep.subr.bf16.mxu0 0
        %3800 = vmatpush1.bf16.msra.mxu0 %v3647
        %3801 = vmatprep.subr.bf16.mxu0 0
        %3802 = vmatpush1.bf16.msra.mxu0 %v3648
        %3803 = vmatprep.subr.bf16.mxu0 0
        %3804 = vmatpush1.bf16.msra.mxu0 %v3649
        %3805 = vmatprep.subr.bf16.mxu0 0
        %3806 = vmatpush1.bf16.msra.mxu0 %v3650
        %3807 = vmatprep.subr.bf16.mxu0 0
        %3808 = vmatpush1.bf16.msra.mxu0 %v3651
        %3809 = vmatprep.subr.bf16.mxu0 0
        %3810 = vmatpush1.bf16.msra.mxu0 %v3652
        %3811 = vmatprep.subr.bf16.mxu0 0
        %3812 = vmatpush1.bf16.msra.mxu0 %v3653
        %3813 = vmatprep.subr.bf16.mxu0 0
        %3814 = vmatpush1.bf16.msra.mxu0 %v3654
        %3815 = vmatprep.subr.bf16.mxu0 0
        %3816 = vmatpush1.bf16.msra.mxu0 %v3655
        %3817 = vmatprep.mubr.bf16.mxu0 %v2877
        %3818 = vmatmul.mubr.bf16.gmra.mrb[0].mxu0 %v2853
        %v3819 = vpop.f32.mrb[0].mxu0
        %v3820 = vadd.f32 %v3723, %v3819
        %v3821 = vpop.f32.mrb[0].mxu0
        %v3822 = vpop.f32.mrb[0].mxu0
        %v3823 = vadd.f32 %v3726, %v3822
        %v3824 = vpop.f32.mrb[0].mxu0
        %3825 = vmatprep.mubr.bf16.mxu0 %v2878
        %3826 = vmatmul.mubr.bf16.gmra.mrb[0].mxu0 %v2854
        %v3827 = vpop.f32.mrb[0].mxu0
        %v3828 = vadd.f32 %v3731, %v3827
        %v3829 = vpop.f32.mrb[0].mxu0
        %v3830 = vpop.f32.mrb[0].mxu0
        %v3831 = vadd.f32 %v3734, %v3830
        %v3832 = vpop.f32.mrb[0].mxu0
        %3833 = vmatprep.mubr.bf16.mxu0 %v2879
        %3834 = vmatmul.mubr.bf16.gmra.mrb[0].mxu0 %v2855
        %v3835 = vpop.f32.mrb[0].mxu0
        %v3836 = vadd.f32 %v3739, %v3835
        %v3837 = vpop.f32.mrb[0].mxu0
        %v3838 = vpop.f32.mrb[0].mxu0
        %v3839 = vadd.f32 %v3742, %v3838
        %v3840 = vpop.f32.mrb[0].mxu0
        %3841 = vmatprep.mubr.bf16.mxu0 %v2880
        %3842 = vmatmul.mubr.bf16.gmra.mrb[0].mxu0 %v2856
        %v3843 = vpop.f32.mrb[0].mxu0
        %v3844 = vadd.f32 %v3747, %v3843
        %v3845 = vpop.f32.mrb[0].mxu0
        %v3846 = vpop.f32.mrb[0].mxu0
        %v3847 = vadd.f32 %v3750, %v3846
        %v3848 = vpop.f32.mrb[0].mxu0
        %3849 = vmatprep.mubr.bf16.mxu0 %v2881
        %3850 = vmatmul.mubr.bf16.gmra.mrb[0].mxu0 %v2857
        %v3851 = vpop.f32.mrb[0].mxu0
        %v3852 = vadd.f32 %v3755, %v3851
        %v3853 = vpop.f32.mrb[0].mxu0
        %v3854 = vpop.f32.mrb[0].mxu0
        %v3855 = vadd.f32 %v3758, %v3854
        %v3856 = vpop.f32.mrb[0].mxu0
        %3857 = vmatprep.mubr.bf16.mxu0 %v2882
        %3858 = vmatmul.mubr.bf16.gmra.mrb[0].mxu0 %v2858
        %v3859 = vpop.f32.mrb[0].mxu0
        %v3860 = vadd.f32 %v3763, %v3859
        %v3861 = vpop.f32.mrb[0].mxu0
        %v3862 = vpop.f32.mrb[0].mxu0
        %v3863 = vadd.f32 %v3766, %v3862
        %v3864 = vpop.f32.mrb[0].mxu0
        %3865 = vmatprep.mubr.bf16.mxu0 %v2883
        %3866 = vmatmul.mubr.bf16.gmra.mrb[0].mxu0 %v2859
        %v3867 = vpop.f32.mrb[0].mxu0
        %v3868 = vadd.f32 %v3771, %v3867
        %v3869 = vpop.f32.mrb[0].mxu0
        %v3870 = vpop.f32.mrb[0].mxu0
        %v3871 = vadd.f32 %v3774, %v3870
        %v3872 = vpop.f32.mrb[0].mxu0
        %3873 = vmatprep.mubr.bf16.mxu0 %v2884
        %3874 = vmatmul.mubr.bf16.gmra.mrb[0].mxu0 %v2860
        %v3875 = vpop.f32.mrb[0].mxu0
        %v3876 = vadd.f32 %v3779, %v3875
        %v3877 = vpop.f32.mrb[0].mxu0
        %v3878 = vpop.f32.mrb[0].mxu0
        %v3879 = vadd.f32 %v3782, %v3878
        %v3880 = vpop.f32.mrb[0].mxu0
        %3881 = vdwg.mxu0
        %s3882 = sadd.s32 48, %s2757
        %s3883 = scalar_lea.vmem [#allocation2], %s3882
        %v3884 = vld [vmem:[%s3883] sm:$0xff]
        %v3885 = vld [vmem:[%s3883 + $0x8] sm:$0xff]
        %v3886 = vld [vmem:[%s3883 + $0x18] sm:$0xff]
        %v3887 = vld [vmem:[%s3883 + $0x20] sm:$0xff]
        %v3888 = vld [vmem:[%s3883 + $0x30] sm:$0xff]
        %v3889 = vld [vmem:[%s3883 + $0x38] sm:$0xff]
        %v3890 = vld [vmem:[%s3883 + $0x48] sm:$0xff]
        %v3891 = vld [vmem:[%s3883 + $0x50] sm:$0xff]
        %v3892 = vld [vmem:[%s3883 + $0x60] sm:$0xff]
        %v3893 = vld [vmem:[%s3883 + $0x68] sm:$0xff]
        %v3894 = vld [vmem:[%s3883 + $0x78] sm:$0xff]
        %v3895 = vld [vmem:[%s3883 + $0x80] sm:$0xff]
        %v3896 = vld [vmem:[%s3883 + $0x90] sm:$0xff]
        %v3897 = vld [vmem:[%s3883 + $0x98] sm:$0xff]
        %v3898 = vld [vmem:[%s3883 + $0xa8] sm:$0xff]
        %v3899 = vld [vmem:[%s3883 + $0xb0] sm:$0xff]
        %v3900 = vpack.c.bf16 %v3885, %v3884
        %v3901 = vpack.c.bf16 %v3887, %v3886
        %v3902 = vpack.c.bf16 %v3889, %v3888
        %v3903 = vpack.c.bf16 %v3891, %v3890
        %v3904 = vpack.c.bf16 %v3893, %v3892
        %v3905 = vpack.c.bf16 %v3895, %v3894
        %v3906 = vpack.c.bf16 %v3897, %v3896
        %v3907 = vpack.c.bf16 %v3899, %v3898
        %v3908 = vld [vmem:[%s3883 + $0x1] sm:$0xff]
        %v3909 = vld [vmem:[%s3883 + $0x9] sm:$0xff]
        %v3910 = vld [vmem:[%s3883 + $0x19] sm:$0xff]
        %v3911 = vld [vmem:[%s3883 + $0x21] sm:$0xff]
        %v3912 = vld [vmem:[%s3883 + $0x31] sm:$0xff]
        %v3913 = vld [vmem:[%s3883 + $0x39] sm:$0xff]
        %v3914 = vld [vmem:[%s3883 + $0x49] sm:$0xff]
        %v3915 = vld [vmem:[%s3883 + $0x51] sm:$0xff]
        %v3916 = vld [vmem:[%s3883 + $0x61] sm:$0xff]
        %v3917 = vld [vmem:[%s3883 + $0x69] sm:$0xff]
        %v3918 = vld [vmem:[%s3883 + $0x79] sm:$0xff]
        %v3919 = vld [vmem:[%s3883 + $0x81] sm:$0xff]
        %v3920 = vld [vmem:[%s3883 + $0x91] sm:$0xff]
        %v3921 = vld [vmem:[%s3883 + $0x99] sm:$0xff]
        %v3922 = vld [vmem:[%s3883 + $0xa9] sm:$0xff]
        %v3923 = vld [vmem:[%s3883 + $0xb1] sm:$0xff]
        %v3924 = vpack.c.bf16 %v3909, %v3908
        %v3925 = vpack.c.bf16 %v3911, %v3910
        %v3926 = vpack.c.bf16 %v3913, %v3912
        %v3927 = vpack.c.bf16 %v3915, %v3914
        %v3928 = vpack.c.bf16 %v3917, %v3916
        %v3929 = vpack.c.bf16 %v3919, %v3918
        %v3930 = vpack.c.bf16 %v3921, %v3920
        %v3931 = vpack.c.bf16 %v3923, %v3922
        %v3932 = vld [vmem:[%s3883 + $0x2] sm:$0xff]
        %v3933 = vld [vmem:[%s3883 + $0xa] sm:$0xff]
        %v3934 = vld [vmem:[%s3883 + $0x1a] sm:$0xff]
        %v3935 = vld [vmem:[%s3883 + $0x22] sm:$0xff]
        %v3936 = vld [vmem:[%s3883 + $0x32] sm:$0xff]
        %v3937 = vld [vmem:[%s3883 + $0x3a] sm:$0xff]
        %v3938 = vld [vmem:[%s3883 + $0x4a] sm:$0xff]
        %v3939 = vld [vmem:[%s3883 + $0x52] sm:$0xff]
        %v3940 = vld [vmem:[%s3883 + $0x62] sm:$0xff]
        %v3941 = vld [vmem:[%s3883 + $0x6a] sm:$0xff]
        %v3942 = vld [vmem:[%s3883 + $0x7a] sm:$0xff]
        %v3943 = vld [vmem:[%s3883 + $0x82] sm:$0xff]
        %v3944 = vld [vmem:[%s3883 + $0x92] sm:$0xff]
        %v3945 = vld [vmem:[%s3883 + $0x9a] sm:$0xff]
        %v3946 = vld [vmem:[%s3883 + $0xaa] sm:$0xff]
        %v3947 = vld [vmem:[%s3883 + $0xb2] sm:$0xff]
        %v3948 = vpack.c.bf16 %v3933, %v3932
        %v3949 = vpack.c.bf16 %v3935, %v3934
        %v3950 = vpack.c.bf16 %v3937, %v3936
        %v3951 = vpack.c.bf16 %v3939, %v3938
        %v3952 = vpack.c.bf16 %v3941, %v3940
        %v3953 = vpack.c.bf16 %v3943, %v3942
        %v3954 = vpack.c.bf16 %v3945, %v3944
        %v3955 = vpack.c.bf16 %v3947, %v3946
        %v3956 = vld [vmem:[%s3883 + $0x3] sm:$0xff]
        %v3957 = vld [vmem:[%s3883 + $0xb] sm:$0xff]
        %v3958 = vld [vmem:[%s3883 + $0x1b] sm:$0xff]
        %v3959 = vld [vmem:[%s3883 + $0x23] sm:$0xff]
        %v3960 = vld [vmem:[%s3883 + $0x33] sm:$0xff]
        %v3961 = vld [vmem:[%s3883 + $0x3b] sm:$0xff]
        %v3962 = vld [vmem:[%s3883 + $0x4b] sm:$0xff]
        %v3963 = vld [vmem:[%s3883 + $0x53] sm:$0xff]
        %v3964 = vld [vmem:[%s3883 + $0x63] sm:$0xff]
        %v3965 = vld [vmem:[%s3883 + $0x6b] sm:$0xff]
        %v3966 = vld [vmem:[%s3883 + $0x7b] sm:$0xff]
        %v3967 = vld [vmem:[%s3883 + $0x83] sm:$0xff]
        %v3968 = vld [vmem:[%s3883 + $0x93] sm:$0xff]
        %v3969 = vld [vmem:[%s3883 + $0x9b] sm:$0xff]
        %v3970 = vld [vmem:[%s3883 + $0xab] sm:$0xff]
        %v3971 = vld [vmem:[%s3883 + $0xb3] sm:$0xff]
        %v3972 = vpack.c.bf16 %v3957, %v3956
        %v3973 = vpack.c.bf16 %v3959, %v3958
        %v3974 = vpack.c.bf16 %v3961, %v3960
        %v3975 = vpack.c.bf16 %v3963, %v3962
        %v3976 = vpack.c.bf16 %v3965, %v3964
        %v3977 = vpack.c.bf16 %v3967, %v3966
        %v3978 = vpack.c.bf16 %v3969, %v3968
        %v3979 = vpack.c.bf16 %v3971, %v3970
        %s3980 = scalar_lea.vmem %s3, 512
        %v3981 = vld [vmem:[%s3980] sm:$0xf]
        %v3982 = vld [vmem:[%s3980 + $0x4] sm:$0xf]
        %v3983 = vld [vmem:[%s3980 + $0x8] sm:$0xf]
        %v3984 = vld [vmem:[%s3980 + $0xc] sm:$0xf]
        %v3985 = vld [vmem:[%s3980 + $0x10] sm:$0xf]
        %v3986 = vld [vmem:[%s3980 + $0x14] sm:$0xf]
        %v3987 = vld [vmem:[%s3980 + $0x18] sm:$0xf]
        %v3988 = vld [vmem:[%s3980 + $0x1c] sm:$0xf]
        %v3989 = vld [vmem:[%s3980 + $0x20] sm:$0xf]
        %v3990 = vld [vmem:[%s3980 + $0x24] sm:$0xf]
        %v3991 = vld [vmem:[%s3980 + $0x28] sm:$0xf]
        %v3992 = vld [vmem:[%s3980 + $0x2c] sm:$0xf]
        %v3993 = vld [vmem:[%s3980 + $0x30] sm:$0xf]
        %v3994 = vld [vmem:[%s3980 + $0x34] sm:$0xf]
        %v3995 = vld [vmem:[%s3980 + $0x38] sm:$0xf]
        %v3996 = vld [vmem:[%s3980 + $0x3c] sm:$0xf]
        %v3997 = vld [vmem:[%s3980 + $0x40] sm:$0xf]
        %v3998 = vld [vmem:[%s3980 + $0x44] sm:$0xf]
        %v3999 = vld [vmem:[%s3980 + $0x48] sm:$0xf]
        %v4000 = vld [vmem:[%s3980 + $0x4c] sm:$0xf]
        %v4001 = vld [vmem:[%s3980 + $0x50] sm:$0xf]
        %v4002 = vld [vmem:[%s3980 + $0x54] sm:$0xf]
        %v4003 = vld [vmem:[%s3980 + $0x58] sm:$0xf]
        %v4004 = vld [vmem:[%s3980 + $0x5c] sm:$0xf]
        %v4005 = vld [vmem:[%s3980 + $0x60] sm:$0xf]
        %v4006 = vld [vmem:[%s3980 + $0x64] sm:$0xf]
        %v4007 = vld [vmem:[%s3980 + $0x68] sm:$0xf]
        %v4008 = vld [vmem:[%s3980 + $0x6c] sm:$0xf]
        %v4009 = vld [vmem:[%s3980 + $0x70] sm:$0xf]
        %v4010 = vld [vmem:[%s3980 + $0x74] sm:$0xf]
        %v4011 = vld [vmem:[%s3980 + $0x78] sm:$0xf]
        %v4012 = vld [vmem:[%s3980 + $0x7c] sm:$0xf]
        %v4013 = vld [vmem:[%s3980 + $0x80] sm:$0xf]
        %v4014 = vld [vmem:[%s3980 + $0x84] sm:$0xf]
        %v4015 = vld [vmem:[%s3980 + $0x88] sm:$0xf]
        %v4016 = vld [vmem:[%s3980 + $0x8c] sm:$0xf]
        %v4017 = vld [vmem:[%s3980 + $0x90] sm:$0xf]
        %v4018 = vld [vmem:[%s3980 + $0x94] sm:$0xf]
        %v4019 = vld [vmem:[%s3980 + $0x98] sm:$0xf]
        %v4020 = vld [vmem:[%s3980 + $0x9c] sm:$0xf]
        %v4021 = vld [vmem:[%s3980 + $0xa0] sm:$0xf]
        %v4022 = vld [vmem:[%s3980 + $0xa4] sm:$0xf]
        %v4023 = vld [vmem:[%s3980 + $0xa8] sm:$0xf]
        %v4024 = vld [vmem:[%s3980 + $0xac] sm:$0xf]
        %v4025 = vld [vmem:[%s3980 + $0xb0] sm:$0xf]
        %v4026 = vld [vmem:[%s3980 + $0xb4] sm:$0xf]
        %v4027 = vld [vmem:[%s3980 + $0xb8] sm:$0xf]
        %v4028 = vld [vmem:[%s3980 + $0xbc] sm:$0xf]
        %v4029 = vld [vmem:[%s3980 + $0xc0] sm:$0xf]
        %v4030 = vld [vmem:[%s3980 + $0xc4] sm:$0xf]
        %v4031 = vld [vmem:[%s3980 + $0xc8] sm:$0xf]
        %v4032 = vld [vmem:[%s3980 + $0xcc] sm:$0xf]
        %v4033 = vld [vmem:[%s3980 + $0xd0] sm:$0xf]
        %v4034 = vld [vmem:[%s3980 + $0xd4] sm:$0xf]
        %v4035 = vld [vmem:[%s3980 + $0xd8] sm:$0xf]
        %v4036 = vld [vmem:[%s3980 + $0xdc] sm:$0xf]
        %v4037 = vld [vmem:[%s3980 + $0xe0] sm:$0xf]
        %v4038 = vld [vmem:[%s3980 + $0xe4] sm:$0xf]
        %v4039 = vld [vmem:[%s3980 + $0xe8] sm:$0xf]
        %v4040 = vld [vmem:[%s3980 + $0xec] sm:$0xf]
        %v4041 = vld [vmem:[%s3980 + $0xf0] sm:$0xf]
        %v4042 = vld [vmem:[%s3980 + $0xf4] sm:$0xf]
        %v4043 = vld [vmem:[%s3980 + $0xf8] sm:$0xf]
        %v4044 = vld [vmem:[%s3980 + $0xfc] sm:$0xf]
        %v4109 = vunpack.c.l.b16 %v3981
        %v4110 = vunpack.c.l.b16 %v3982
        %v4111 = vunpack.c.l.b16 %v3983
        %v4112 = vunpack.c.l.b16 %v3984
        %v4113 = vunpack.c.l.b16 %v3985
        %v4114 = vunpack.c.l.b16 %v3986
        %v4115 = vunpack.c.l.b16 %v3987
        %v4116 = vunpack.c.l.b16 %v3988
        %v4117 = vunpack.c.l.b16 %v3989
        %v4118 = vunpack.c.l.b16 %v3990
        %v4119 = vunpack.c.l.b16 %v3991
        %v4120 = vunpack.c.l.b16 %v3992
        %v4121 = vunpack.c.l.b16 %v3993
        %v4122 = vunpack.c.l.b16 %v3994
        %v4123 = vunpack.c.l.b16 %v3995
        %v4124 = vunpack.c.l.b16 %v3996
        %v4125 = vunpack.c.l.b16 %v3997
        %v4126 = vunpack.c.l.b16 %v3998
        %v4127 = vunpack.c.l.b16 %v3999
        %v4128 = vunpack.c.l.b16 %v4000
        %v4129 = vunpack.c.l.b16 %v4001
        %v4130 = vunpack.c.l.b16 %v4002
        %v4131 = vunpack.c.l.b16 %v4003
        %v4132 = vunpack.c.l.b16 %v4004
        %v4133 = vunpack.c.l.b16 %v4005
        %v4134 = vunpack.c.l.b16 %v4006
        %v4135 = vunpack.c.l.b16 %v4007
        %v4136 = vunpack.c.l.b16 %v4008
        %v4137 = vunpack.c.l.b16 %v4009
        %v4138 = vunpack.c.l.b16 %v4010
        %v4139 = vunpack.c.l.b16 %v4011
        %v4140 = vunpack.c.l.b16 %v4012
        %v4141 = vunpack.c.l.b16 %v4013
        %v4142 = vunpack.c.l.b16 %v4014
        %v4143 = vunpack.c.l.b16 %v4015
        %v4144 = vunpack.c.l.b16 %v4016
        %v4145 = vunpack.c.l.b16 %v4017
        %v4146 = vunpack.c.l.b16 %v4018
        %v4147 = vunpack.c.l.b16 %v4019
        %v4148 = vunpack.c.l.b16 %v4020
        %v4149 = vunpack.c.l.b16 %v4021
        %v4150 = vunpack.c.l.b16 %v4022
        %v4151 = vunpack.c.l.b16 %v4023
        %v4152 = vunpack.c.l.b16 %v4024
        %v4153 = vunpack.c.l.b16 %v4025
        %v4154 = vunpack.c.l.b16 %v4026
        %v4155 = vunpack.c.l.b16 %v4027
        %v4156 = vunpack.c.l.b16 %v4028
        %v4157 = vunpack.c.l.b16 %v4029
        %v4158 = vunpack.c.l.b16 %v4030
        %v4159 = vunpack.c.l.b16 %v4031
        %v4160 = vunpack.c.l.b16 %v4032
        %v4161 = vunpack.c.l.b16 %v4033
        %v4162 = vunpack.c.l.b16 %v4034
        %v4163 = vunpack.c.l.b16 %v4035
        %v4164 = vunpack.c.l.b16 %v4036
        %v4165 = vunpack.c.l.b16 %v4037
        %v4166 = vunpack.c.l.b16 %v4038
        %v4167 = vunpack.c.l.b16 %v4039
        %v4168 = vunpack.c.l.b16 %v4040
        %v4169 = vunpack.c.l.b16 %v4041
        %v4170 = vunpack.c.l.b16 %v4042
        %v4171 = vunpack.c.l.b16 %v4043
        %v4172 = vunpack.c.l.b16 %v4044
        %v4173 = vpack.c.b16 %v4110, %v4109
        %v4174 = vpack.c.b16 %v4112, %v4111
        %v4175 = vpack.c.b16 %v4114, %v4113
        %v4176 = vpack.c.b16 %v4116, %v4115
        %v4177 = vpack.c.b16 %v4118, %v4117
        %v4178 = vpack.c.b16 %v4120, %v4119
        %v4179 = vpack.c.b16 %v4122, %v4121
        %v4180 = vpack.c.b16 %v4124, %v4123
        %v4181 = vpack.c.b16 %v4126, %v4125
        %v4182 = vpack.c.b16 %v4128, %v4127
        %v4183 = vpack.c.b16 %v4130, %v4129
        %v4184 = vpack.c.b16 %v4132, %v4131
        %v4185 = vpack.c.b16 %v4134, %v4133
        %v4186 = vpack.c.b16 %v4136, %v4135
        %v4187 = vpack.c.b16 %v4138, %v4137
        %v4188 = vpack.c.b16 %v4140, %v4139
        %v4189 = vpack.c.b16 %v4142, %v4141
        %v4190 = vpack.c.b16 %v4144, %v4143
        %v4191 = vpack.c.b16 %v4146, %v4145
        %v4192 = vpack.c.b16 %v4148, %v4147
        %v4193 = vpack.c.b16 %v4150, %v4149
        %v4194 = vpack.c.b16 %v4152, %v4151
        %v4195 = vpack.c.b16 %v4154, %v4153
        %v4196 = vpack.c.b16 %v4156, %v4155
        %v4197 = vpack.c.b16 %v4158, %v4157
        %v4198 = vpack.c.b16 %v4160, %v4159
        %v4199 = vpack.c.b16 %v4162, %v4161
        %v4200 = vpack.c.b16 %v4164, %v4163
        %v4201 = vpack.c.b16 %v4166, %v4165
        %v4202 = vpack.c.b16 %v4168, %v4167
        %v4203 = vpack.c.b16 %v4170, %v4169
        %v4204 = vpack.c.b16 %v4172, %v4171
        %4237 = vmatprep.subr.bf16.mxu0 0
        %4238 = vmatpush1.bf16.msra.mxu0 %v4173
        %4239 = vmatprep.subr.bf16.mxu0 0
        %4240 = vmatpush1.bf16.msra.mxu0 %v4174
        %4241 = vmatprep.subr.bf16.mxu0 0
        %4242 = vmatpush1.bf16.msra.mxu0 %v4175
        %4243 = vmatprep.subr.bf16.mxu0 0
        %4244 = vmatpush1.bf16.msra.mxu0 %v4176
        %4245 = vmatprep.subr.bf16.mxu0 0
        %4246 = vmatpush1.bf16.msra.mxu0 %v4177
        %4247 = vmatprep.subr.bf16.mxu0 0
        %4248 = vmatpush1.bf16.msra.mxu0 %v4178
        %4249 = vmatprep.subr.bf16.mxu0 0
        %4250 = vmatpush1.bf16.msra.mxu0 %v4179
        %4251 = vmatprep.subr.bf16.mxu0 0
        %4252 = vmatpush1.bf16.msra.mxu0 %v4180
        %4253 = vmatprep.subr.bf16.mxu0 0
        %4254 = vmatpush1.bf16.msra.mxu0 %v4181
        %4255 = vmatprep.subr.bf16.mxu0 0
        %4256 = vmatpush1.bf16.msra.mxu0 %v4182
        %4257 = vmatprep.subr.bf16.mxu0 0
        %4258 = vmatpush1.bf16.msra.mxu0 %v4183
        %4259 = vmatprep.subr.bf16.mxu0 0
        %4260 = vmatpush1.bf16.msra.mxu0 %v4184
        %4261 = vmatprep.subr.bf16.mxu0 0
        %4262 = vmatpush1.bf16.msra.mxu0 %v4185
        %4263 = vmatprep.subr.bf16.mxu0 0
        %4264 = vmatpush1.bf16.msra.mxu0 %v4186
        %4265 = vmatprep.subr.bf16.mxu0 0
        %4266 = vmatpush1.bf16.msra.mxu0 %v4187
        %4267 = vmatprep.subr.bf16.mxu0 0
        %4268 = vmatpush1.bf16.msra.mxu0 %v4188
        %4269 = vmatprep.mubr.bf16.mxu0 %v3924
        %4270 = vmatmul.mubr.bf16.gmra.mrb[0].mxu0 %v3900
        %v4271 = vpop.f32.mrb[0].mxu0
        %v4272 = vadd.f32 0.0, %v4271
        %v4273 = vpop.f32.mrb[0].mxu0
        %v4274 = vpop.f32.mrb[0].mxu0
        %v4275 = vadd.f32 0.0, %v4274
        %v4276 = vpop.f32.mrb[0].mxu0
        %4277 = vmatprep.mubr.bf16.mxu0 %v3925
        %4278 = vmatmul.mubr.bf16.gmra.mrb[0].mxu0 %v3901
        %v4279 = vpop.f32.mrb[0].mxu0
        %v4280 = vadd.f32 0.0, %v4279
        %v4281 = vpop.f32.mrb[0].mxu0
        %v4282 = vpop.f32.mrb[0].mxu0
        %v4283 = vadd.f32 0.0, %v4282
        %v4284 = vpop.f32.mrb[0].mxu0
        %4285 = vmatprep.mubr.bf16.mxu0 %v3926
        %4286 = vmatmul.mubr.bf16.gmra.mrb[0].mxu0 %v3902
        %v4287 = vpop.f32.mrb[0].mxu0
        %v4288 = vadd.f32 0.0, %v4287
        %v4289 = vpop.f32.mrb[0].mxu0
        %v4290 = vpop.f32.mrb[0].mxu0
        %v4291 = vadd.f32 0.0, %v4290
        %v4292 = vpop.f32.mrb[0].mxu0
        %4293 = vmatprep.mubr.bf16.mxu0 %v3927
        %4294 = vmatmul.mubr.bf16.gmra.mrb[0].mxu0 %v3903
        %v4295 = vpop.f32.mrb[0].mxu0
        %v4296 = vadd.f32 0.0, %v4295
        %v4297 = vpop.f32.mrb[0].mxu0
        %v4298 = vpop.f32.mrb[0].mxu0
        %v4299 = vadd.f32 0.0, %v4298
        %v4300 = vpop.f32.mrb[0].mxu0
        %4301 = vmatprep.mubr.bf16.mxu0 %v3928
        %4302 = vmatmul.mubr.bf16.gmra.mrb[0].mxu0 %v3904
        %v4303 = vpop.f32.mrb[0].mxu0
        %v4304 = vadd.f32 0.0, %v4303
        %v4305 = vpop.f32.mrb[0].mxu0
        %v4306 = vpop.f32.mrb[0].mxu0
        %v4307 = vadd.f32 0.0, %v4306
        %v4308 = vpop.f32.mrb[0].mxu0
        %4309 = vmatprep.mubr.bf16.mxu0 %v3929
        %4310 = vmatmul.mubr.bf16.gmra.mrb[0].mxu0 %v3905
        %v4311 = vpop.f32.mrb[0].mxu0
        %v4312 = vadd.f32 0.0, %v4311
        %v4313 = vpop.f32.mrb[0].mxu0
        %v4314 = vpop.f32.mrb[0].mxu0
        %v4315 = vadd.f32 0.0, %v4314
        %v4316 = vpop.f32.mrb[0].mxu0
        %4317 = vmatprep.mubr.bf16.mxu0 %v3930
        %4318 = vmatmul.mubr.bf16.gmra.mrb[0].mxu0 %v3906
        %v4319 = vpop.f32.mrb[0].mxu0
        %v4320 = vadd.f32 0.0, %v4319
        %v4321 = vpop.f32.mrb[0].mxu0
        %v4322 = vpop.f32.mrb[0].mxu0
        %v4323 = vadd.f32 0.0, %v4322
        %v4324 = vpop.f32.mrb[0].mxu0
        %4325 = vmatprep.mubr.bf16.mxu0 %v3931
        %4326 = vmatmul.mubr.bf16.gmra.mrb[0].mxu0 %v3907
        %v4327 = vpop.f32.mrb[0].mxu0
        %v4328 = vadd.f32 0.0, %v4327
        %v4329 = vpop.f32.mrb[0].mxu0
        %v4330 = vpop.f32.mrb[0].mxu0
        %v4331 = vadd.f32 0.0, %v4330
        %v4332 = vpop.f32.mrb[0].mxu0
        %4333 = vdwg.mxu0
        %4334 = vmatprep.subr.bf16.mxu0 0
        %4335 = vmatpush1.bf16.msra.mxu0 %v4189
        %4336 = vmatprep.subr.bf16.mxu0 0
        %4337 = vmatpush1.bf16.msra.mxu0 %v4190
        %4338 = vmatprep.subr.bf16.mxu0 0
        %4339 = vmatpush1.bf16.msra.mxu0 %v4191
        %4340 = vmatprep.subr.bf16.mxu0 0
        %4341 = vmatpush1.bf16.msra.mxu0 %v4192
        %4342 = vmatprep.subr.bf16.mxu0 0
        %4343 = vmatpush1.bf16.msra.mxu0 %v4193
        %4344 = vmatprep.subr.bf16.mxu0 0
        %4345 = vmatpush1.bf16.msra.mxu0 %v4194
        %4346 = vmatprep.subr.bf16.mxu0 0
        %4347 = vmatpush1.bf16.msra.mxu0 %v4195
        %4348 = vmatprep.subr.bf16.mxu0 0
        %4349 = vmatpush1.bf16.msra.mxu0 %v4196
        %4350 = vmatprep.subr.bf16.mxu0 0
        %4351 = vmatpush1.bf16.msra.mxu0 %v4197
        %4352 = vmatprep.subr.bf16.mxu0 0
        %4353 = vmatpush1.bf16.msra.mxu0 %v4198
        %4354 = vmatprep.subr.bf16.mxu0 0
        %4355 = vmatpush1.bf16.msra.mxu0 %v4199
        %4356 = vmatprep.subr.bf16.mxu0 0
        %4357 = vmatpush1.bf16.msra.mxu0 %v4200
        %4358 = vmatprep.subr.bf16.mxu0 0
        %4359 = vmatpush1.bf16.msra.mxu0 %v4201
        %4360 = vmatprep.subr.bf16.mxu0 0
        %4361 = vmatpush1.bf16.msra.mxu0 %v4202
        %4362 = vmatprep.subr.bf16.mxu0 0
        %4363 = vmatpush1.bf16.msra.mxu0 %v4203
        %4364 = vmatprep.subr.bf16.mxu0 0
        %4365 = vmatpush1.bf16.msra.mxu0 %v4204
        %4366 = vmatprep.mubr.bf16.mxu0 %v3972
        %4367 = vmatmul.mubr.bf16.gmra.mrb[0].mxu0 %v3948
        %v4368 = vpop.f32.mrb[0].mxu0
        %v4369 = vadd.f32 %v4272, %v4368
        %v4370 = vpop.f32.mrb[0].mxu0
        %v4371 = vpop.f32.mrb[0].mxu0
        %v4372 = vadd.f32 %v4275, %v4371
        %v4373 = vpop.f32.mrb[0].mxu0
        %4374 = vmatprep.mubr.bf16.mxu0 %v3973
        %4375 = vmatmul.mubr.bf16.gmra.mrb[0].mxu0 %v3949
        %v4376 = vpop.f32.mrb[0].mxu0
        %v4377 = vadd.f32 %v4280, %v4376
        %v4378 = vpop.f32.mrb[0].mxu0
        %v4379 = vpop.f32.mrb[0].mxu0
        %v4380 = vadd.f32 %v4283, %v4379
        %v4381 = vpop.f32.mrb[0].mxu0
        %4382 = vmatprep.mubr.bf16.mxu0 %v3974
        %4383 = vmatmul.mubr.bf16.gmra.mrb[0].mxu0 %v3950
        %v4384 = vpop.f32.mrb[0].mxu0
        %v4385 = vadd.f32 %v4288, %v4384
        %v4386 = vpop.f32.mrb[0].mxu0
        %v4387 = vpop.f32.mrb[0].mxu0
        %v4388 = vadd.f32 %v4291, %v4387
        %v4389 = vpop.f32.mrb[0].mxu0
        %4390 = vmatprep.mubr.bf16.mxu0 %v3975
        %4391 = vmatmul.mubr.bf16.gmra.mrb[0].mxu0 %v3951
        %v4392 = vpop.f32.mrb[0].mxu0
        %v4393 = vadd.f32 %v4296, %v4392
        %v4394 = vpop.f32.mrb[0].mxu0
        %v4395 = vpop.f32.mrb[0].mxu0
        %v4396 = vadd.f32 %v4299, %v4395
        %v4397 = vpop.f32.mrb[0].mxu0
        %4398 = vmatprep.mubr.bf16.mxu0 %v3976
        %4399 = vmatmul.mubr.bf16.gmra.mrb[0].mxu0 %v3952
        %v4400 = vpop.f32.mrb[0].mxu0
        %v4401 = vadd.f32 %v4304, %v4400
        %v4402 = vpop.f32.mrb[0].mxu0
        %v4403 = vpop.f32.mrb[0].mxu0
        %v4404 = vadd.f32 %v4307, %v4403
        %v4405 = vpop.f32.mrb[0].mxu0
        %4406 = vmatprep.mubr.bf16.mxu0 %v3977
        %4407 = vmatmul.mubr.bf16.gmra.mrb[0].mxu0 %v3953
        %v4408 = vpop.f32.mrb[0].mxu0
        %v4409 = vadd.f32 %v4312, %v4408
        %v4410 = vpop.f32.mrb[0].mxu0
        %v4411 = vpop.f32.mrb[0].mxu0
        %v4412 = vadd.f32 %v4315, %v4411
        %v4413 = vpop.f32.mrb[0].mxu0
        %4414 = vmatprep.mubr.bf16.mxu0 %v3978
        %4415 = vmatmul.mubr.bf16.gmra.mrb[0].mxu0 %v3954
        %v4416 = vpop.f32.mrb[0].mxu0
        %v4417 = vadd.f32 %v4320, %v4416
        %v4418 = vpop.f32.mrb[0].mxu0
        %v4419 = vpop.f32.mrb[0].mxu0
        %v4420 = vadd.f32 %v4323, %v4419
        %v4421 = vpop.f32.mrb[0].mxu0
        %4422 = vmatprep.mubr.bf16.mxu0 %v3979
        %4423 = vmatmul.mubr.bf16.gmra.mrb[0].mxu0 %v3955
        %v4424 = vpop.f32.mrb[0].mxu0
        %v4425 = vadd.f32 %v4328, %v4424
        %v4426 = vpop.f32.mrb[0].mxu0
        %v4427 = vpop.f32.mrb[0].mxu0
        %v4428 = vadd.f32 %v4331, %v4427
        %v4429 = vpop.f32.mrb[0].mxu0
        %4430 = vdwg.mxu0
        %v4431 = vadd.f32 %v3820, %v4369
        %v4432 = vadd.f32 %v3823, %v4372
        %v4433 = vadd.f32 %v3828, %v4377
        %v4434 = vadd.f32 %v3831, %v4380
        %v4435 = vadd.f32 %v3836, %v4385
        %v4436 = vadd.f32 %v3839, %v4388
        %v4437 = vadd.f32 %v3844, %v4393
        %v4438 = vadd.f32 %v3847, %v4396
        %v4439 = vadd.f32 %v3852, %v4401
        %v4440 = vadd.f32 %v3855, %v4404
        %v4441 = vadd.f32 %v3860, %v4409
        %v4442 = vadd.f32 %v3863, %v4412
        %v4443 = vadd.f32 %v3868, %v4417
        %v4444 = vadd.f32 %v3871, %v4420
        %v4445 = vadd.f32 %v3876, %v4425
        %v4446 = vadd.f32 %v3879, %v4428
        %s4447 = sadd.s32 72, %s2757
        %s4448 = scalar_lea.vmem [#allocation2], %s4447
        %v4449 = vld [vmem:[%s4448] sm:$0xff]
        %v4450 = vld [vmem:[%s4448 + $0x8] sm:$0xff]
        %v4451 = vld [vmem:[%s4448 + $0x18] sm:$0xff]
        %v4452 = vld [vmem:[%s4448 + $0x20] sm:$0xff]
        %v4453 = vld [vmem:[%s4448 + $0x30] sm:$0xff]
        %v4454 = vld [vmem:[%s4448 + $0x38] sm:$0xff]
        %v4455 = vld [vmem:[%s4448 + $0x48] sm:$0xff]
        %v4456 = vld [vmem:[%s4448 + $0x50] sm:$0xff]
        %v4457 = vld [vmem:[%s4448 + $0x60] sm:$0xff]
        %v4458 = vld [vmem:[%s4448 + $0x68] sm:$0xff]
        %v4459 = vld [vmem:[%s4448 + $0x78] sm:$0xff]
        %v4460 = vld [vmem:[%s4448 + $0x80] sm:$0xff]
        %v4461 = vld [vmem:[%s4448 + $0x90] sm:$0xff]
        %v4462 = vld [vmem:[%s4448 + $0x98] sm:$0xff]
        %v4463 = vld [vmem:[%s4448 + $0xa8] sm:$0xff]
        %v4464 = vld [vmem:[%s4448 + $0xb0] sm:$0xff]
        %v4465 = vpack.c.bf16 %v4450, %v4449
        %v4466 = vpack.c.bf16 %v4452, %v4451
        %v4467 = vpack.c.bf16 %v4454, %v4453
        %v4468 = vpack.c.bf16 %v4456, %v4455
        %v4469 = vpack.c.bf16 %v4458, %v4457
        %v4470 = vpack.c.bf16 %v4460, %v4459
        %v4471 = vpack.c.bf16 %v4462, %v4461
        %v4472 = vpack.c.bf16 %v4464, %v4463
        %v4473 = vld [vmem:[%s4448 + $0x1] sm:$0xff]
        %v4474 = vld [vmem:[%s4448 + $0x9] sm:$0xff]
        %v4475 = vld [vmem:[%s4448 + $0x19] sm:$0xff]
        %v4476 = vld [vmem:[%s4448 + $0x21] sm:$0xff]
        %v4477 = vld [vmem:[%s4448 + $0x31] sm:$0xff]
        %v4478 = vld [vmem:[%s4448 + $0x39] sm:$0xff]
        %v4479 = vld [vmem:[%s4448 + $0x49] sm:$0xff]
        %v4480 = vld [vmem:[%s4448 + $0x51] sm:$0xff]
        %v4481 = vld [vmem:[%s4448 + $0x61] sm:$0xff]
        %v4482 = vld [vmem:[%s4448 + $0x69] sm:$0xff]
        %v4483 = vld [vmem:[%s4448 + $0x79] sm:$0xff]
        %v4484 = vld [vmem:[%s4448 + $0x81] sm:$0xff]
        %v4485 = vld [vmem:[%s4448 + $0x91] sm:$0xff]
        %v4486 = vld [vmem:[%s4448 + $0x99] sm:$0xff]
        %v4487 = vld [vmem:[%s4448 + $0xa9] sm:$0xff]
        %v4488 = vld [vmem:[%s4448 + $0xb1] sm:$0xff]
        %v4489 = vpack.c.bf16 %v4474, %v4473
        %v4490 = vpack.c.bf16 %v4476, %v4475
        %v4491 = vpack.c.bf16 %v4478, %v4477
        %v4492 = vpack.c.bf16 %v4480, %v4479
        %v4493 = vpack.c.bf16 %v4482, %v4481
        %v4494 = vpack.c.bf16 %v4484, %v4483
        %v4495 = vpack.c.bf16 %v4486, %v4485
        %v4496 = vpack.c.bf16 %v4488, %v4487
        %v4497 = vld [vmem:[%s4448 + $0x2] sm:$0xff]
        %v4498 = vld [vmem:[%s4448 + $0xa] sm:$0xff]
        %v4499 = vld [vmem:[%s4448 + $0x1a] sm:$0xff]
        %v4500 = vld [vmem:[%s4448 + $0x22] sm:$0xff]
        %v4501 = vld [vmem:[%s4448 + $0x32] sm:$0xff]
        %v4502 = vld [vmem:[%s4448 + $0x3a] sm:$0xff]
        %v4503 = vld [vmem:[%s4448 + $0x4a] sm:$0xff]
        %v4504 = vld [vmem:[%s4448 + $0x52] sm:$0xff]
        %v4505 = vld [vmem:[%s4448 + $0x62] sm:$0xff]
        %v4506 = vld [vmem:[%s4448 + $0x6a] sm:$0xff]
        %v4507 = vld [vmem:[%s4448 + $0x7a] sm:$0xff]
        %v4508 = vld [vmem:[%s4448 + $0x82] sm:$0xff]
        %v4509 = vld [vmem:[%s4448 + $0x92] sm:$0xff]
        %v4510 = vld [vmem:[%s4448 + $0x9a] sm:$0xff]
        %v4511 = vld [vmem:[%s4448 + $0xaa] sm:$0xff]
        %v4512 = vld [vmem:[%s4448 + $0xb2] sm:$0xff]
        %v4513 = vpack.c.bf16 %v4498, %v4497
        %v4514 = vpack.c.bf16 %v4500, %v4499
        %v4515 = vpack.c.bf16 %v4502, %v4501
        %v4516 = vpack.c.bf16 %v4504, %v4503
        %v4517 = vpack.c.bf16 %v4506, %v4505
        %v4518 = vpack.c.bf16 %v4508, %v4507
        %v4519 = vpack.c.bf16 %v4510, %v4509
        %v4520 = vpack.c.bf16 %v4512, %v4511
        %v4521 = vld [vmem:[%s4448 + $0x3] sm:$0xff]
        %v4522 = vld [vmem:[%s4448 + $0xb] sm:$0xff]
        %v4523 = vld [vmem:[%s4448 + $0x1b] sm:$0xff]
        %v4524 = vld [vmem:[%s4448 + $0x23] sm:$0xff]
        %v4525 = vld [vmem:[%s4448 + $0x33] sm:$0xff]
        %v4526 = vld [vmem:[%s4448 + $0x3b] sm:$0xff]
        %v4527 = vld [vmem:[%s4448 + $0x4b] sm:$0xff]
        %v4528 = vld [vmem:[%s4448 + $0x53] sm:$0xff]
        %v4529 = vld [vmem:[%s4448 + $0x63] sm:$0xff]
        %v4530 = vld [vmem:[%s4448 + $0x6b] sm:$0xff]
        %v4531 = vld [vmem:[%s4448 + $0x7b] sm:$0xff]
        %v4532 = vld [vmem:[%s4448 + $0x83] sm:$0xff]
        %v4533 = vld [vmem:[%s4448 + $0x93] sm:$0xff]
        %v4534 = vld [vmem:[%s4448 + $0x9b] sm:$0xff]
        %v4535 = vld [vmem:[%s4448 + $0xab] sm:$0xff]
        %v4536 = vld [vmem:[%s4448 + $0xb3] sm:$0xff]
        %v4537 = vpack.c.bf16 %v4522, %v4521
        %v4538 = vpack.c.bf16 %v4524, %v4523
        %v4539 = vpack.c.bf16 %v4526, %v4525
        %v4540 = vpack.c.bf16 %v4528, %v4527
        %v4541 = vpack.c.bf16 %v4530, %v4529
        %v4542 = vpack.c.bf16 %v4532, %v4531
        %v4543 = vpack.c.bf16 %v4534, %v4533
        %v4544 = vpack.c.bf16 %v4536, %v4535
        %s4545 = scalar_lea.vmem %s3, 768
        %v4546 = vld [vmem:[%s4545] sm:$0xf]
        %v4547 = vld [vmem:[%s4545 + $0x4] sm:$0xf]
        %v4548 = vld [vmem:[%s4545 + $0x8] sm:$0xf]
        %v4549 = vld [vmem:[%s4545 + $0xc] sm:$0xf]
        %v4550 = vld [vmem:[%s4545 + $0x10] sm:$0xf]
        %v4551 = vld [vmem:[%s4545 + $0x14] sm:$0xf]
        %v4552 = vld [vmem:[%s4545 + $0x18] sm:$0xf]
        %v4553 = vld [vmem:[%s4545 + $0x1c] sm:$0xf]
        %v4554 = vld [vmem:[%s4545 + $0x20] sm:$0xf]
        %v4555 = vld [vmem:[%s4545 + $0x24] sm:$0xf]
        %v4556 = vld [vmem:[%s4545 + $0x28] sm:$0xf]
        %v4557 = vld [vmem:[%s4545 + $0x2c] sm:$0xf]
        %v4558 = vld [vmem:[%s4545 + $0x30] sm:$0xf]
        %v4559 = vld [vmem:[%s4545 + $0x34] sm:$0xf]
        %v4560 = vld [vmem:[%s4545 + $0x38] sm:$0xf]
        %v4561 = vld [vmem:[%s4545 + $0x3c] sm:$0xf]
        %v4562 = vld [vmem:[%s4545 + $0x40] sm:$0xf]
        %v4563 = vld [vmem:[%s4545 + $0x44] sm:$0xf]
        %v4564 = vld [vmem:[%s4545 + $0x48] sm:$0xf]
        %v4565 = vld [vmem:[%s4545 + $0x4c] sm:$0xf]
        %v4566 = vld [vmem:[%s4545 + $0x50] sm:$0xf]
        %v4567 = vld [vmem:[%s4545 + $0x54] sm:$0xf]
        %v4568 = vld [vmem:[%s4545 + $0x58] sm:$0xf]
        %v4569 = vld [vmem:[%s4545 + $0x5c] sm:$0xf]
        %v4570 = vld [vmem:[%s4545 + $0x60] sm:$0xf]
        %v4571 = vld [vmem:[%s4545 + $0x64] sm:$0xf]
        %v4572 = vld [vmem:[%s4545 + $0x68] sm:$0xf]
        %v4573 = vld [vmem:[%s4545 + $0x6c] sm:$0xf]
        %v4574 = vld [vmem:[%s4545 + $0x70] sm:$0xf]
        %v4575 = vld [vmem:[%s4545 + $0x74] sm:$0xf]
        %v4576 = vld [vmem:[%s4545 + $0x78] sm:$0xf]
        %v4577 = vld [vmem:[%s4545 + $0x7c] sm:$0xf]
        %v4578 = vld [vmem:[%s4545 + $0x80] sm:$0xf]
        %v4579 = vld [vmem:[%s4545 + $0x84] sm:$0xf]
        %v4580 = vld [vmem:[%s4545 + $0x88] sm:$0xf]
        %v4581 = vld [vmem:[%s4545 + $0x8c] sm:$0xf]
        %v4582 = vld [vmem:[%s4545 + $0x90] sm:$0xf]
        %v4583 = vld [vmem:[%s4545 + $0x94] sm:$0xf]
        %v4584 = vld [vmem:[%s4545 + $0x98] sm:$0xf]
        %v4585 = vld [vmem:[%s4545 + $0x9c] sm:$0xf]
        %v4586 = vld [vmem:[%s4545 + $0xa0] sm:$0xf]
        %v4587 = vld [vmem:[%s4545 + $0xa4] sm:$0xf]
        %v4588 = vld [vmem:[%s4545 + $0xa8] sm:$0xf]
        %v4589 = vld [vmem:[%s4545 + $0xac] sm:$0xf]
        %v4590 = vld [vmem:[%s4545 + $0xb0] sm:$0xf]
        %v4591 = vld [vmem:[%s4545 + $0xb4] sm:$0xf]
        %v4592 = vld [vmem:[%s4545 + $0xb8] sm:$0xf]
        %v4593 = vld [vmem:[%s4545 + $0xbc] sm:$0xf]
        %v4594 = vld [vmem:[%s4545 + $0xc0] sm:$0xf]
        %v4595 = vld [vmem:[%s4545 + $0xc4] sm:$0xf]
        %v4596 = vld [vmem:[%s4545 + $0xc8] sm:$0xf]
        %v4597 = vld [vmem:[%s4545 + $0xcc] sm:$0xf]
        %v4598 = vld [vmem:[%s4545 + $0xd0] sm:$0xf]
        %v4599 = vld [vmem:[%s4545 + $0xd4] sm:$0xf]
        %v4600 = vld [vmem:[%s4545 + $0xd8] sm:$0xf]
        %v4601 = vld [vmem:[%s4545 + $0xdc] sm:$0xf]
        %v4602 = vld [vmem:[%s4545 + $0xe0] sm:$0xf]
        %v4603 = vld [vmem:[%s4545 + $0xe4] sm:$0xf]
        %v4604 = vld [vmem:[%s4545 + $0xe8] sm:$0xf]
        %v4605 = vld [vmem:[%s4545 + $0xec] sm:$0xf]
        %v4606 = vld [vmem:[%s4545 + $0xf0] sm:$0xf]
        %v4607 = vld [vmem:[%s4545 + $0xf4] sm:$0xf]
        %v4608 = vld [vmem:[%s4545 + $0xf8] sm:$0xf]
        %v4609 = vld [vmem:[%s4545 + $0xfc] sm:$0xf]
        %v4674 = vunpack.c.l.b16 %v4546
        %v4675 = vunpack.c.l.b16 %v4547
        %v4676 = vunpack.c.l.b16 %v4548
        %v4677 = vunpack.c.l.b16 %v4549
        %v4678 = vunpack.c.l.b16 %v4550
        %v4679 = vunpack.c.l.b16 %v4551
        %v4680 = vunpack.c.l.b16 %v4552
        %v4681 = vunpack.c.l.b16 %v4553
        %v4682 = vunpack.c.l.b16 %v4554
        %v4683 = vunpack.c.l.b16 %v4555
        %v4684 = vunpack.c.l.b16 %v4556
        %v4685 = vunpack.c.l.b16 %v4557
        %v4686 = vunpack.c.l.b16 %v4558
        %v4687 = vunpack.c.l.b16 %v4559
        %v4688 = vunpack.c.l.b16 %v4560
        %v4689 = vunpack.c.l.b16 %v4561
        %v4690 = vunpack.c.l.b16 %v4562
        %v4691 = vunpack.c.l.b16 %v4563
        %v4692 = vunpack.c.l.b16 %v4564
        %v4693 = vunpack.c.l.b16 %v4565
        %v4694 = vunpack.c.l.b16 %v4566
        %v4695 = vunpack.c.l.b16 %v4567
        %v4696 = vunpack.c.l.b16 %v4568
        %v4697 = vunpack.c.l.b16 %v4569
        %v4698 = vunpack.c.l.b16 %v4570
        %v4699 = vunpack.c.l.b16 %v4571
        %v4700 = vunpack.c.l.b16 %v4572
        %v4701 = vunpack.c.l.b16 %v4573
        %v4702 = vunpack.c.l.b16 %v4574
        %v4703 = vunpack.c.l.b16 %v4575
        %v4704 = vunpack.c.l.b16 %v4576
        %v4705 = vunpack.c.l.b16 %v4577
        %v4706 = vunpack.c.l.b16 %v4578
        %v4707 = vunpack.c.l.b16 %v4579
        %v4708 = vunpack.c.l.b16 %v4580
        %v4709 = vunpack.c.l.b16 %v4581
        %v4710 = vunpack.c.l.b16 %v4582
        %v4711 = vunpack.c.l.b16 %v4583
        %v4712 = vunpack.c.l.b16 %v4584
        %v4713 = vunpack.c.l.b16 %v4585
        %v4714 = vunpack.c.l.b16 %v4586
        %v4715 = vunpack.c.l.b16 %v4587
        %v4716 = vunpack.c.l.b16 %v4588
        %v4717 = vunpack.c.l.b16 %v4589
        %v4718 = vunpack.c.l.b16 %v4590
        %v4719 = vunpack.c.l.b16 %v4591
        %v4720 = vunpack.c.l.b16 %v4592
        %v4721 = vunpack.c.l.b16 %v4593
        %v4722 = vunpack.c.l.b16 %v4594
        %v4723 = vunpack.c.l.b16 %v4595
        %v4724 = vunpack.c.l.b16 %v4596
        %v4725 = vunpack.c.l.b16 %v4597
        %v4726 = vunpack.c.l.b16 %v4598
        %v4727 = vunpack.c.l.b16 %v4599
        %v4728 = vunpack.c.l.b16 %v4600
        %v4729 = vunpack.c.l.b16 %v4601
        %v4730 = vunpack.c.l.b16 %v4602
        %v4731 = vunpack.c.l.b16 %v4603
        %v4732 = vunpack.c.l.b16 %v4604
        %v4733 = vunpack.c.l.b16 %v4605
        %v4734 = vunpack.c.l.b16 %v4606
        %v4735 = vunpack.c.l.b16 %v4607
        %v4736 = vunpack.c.l.b16 %v4608
        %v4737 = vunpack.c.l.b16 %v4609
        %v4738 = vpack.c.b16 %v4675, %v4674
        %v4739 = vpack.c.b16 %v4677, %v4676
        %v4740 = vpack.c.b16 %v4679, %v4678
        %v4741 = vpack.c.b16 %v4681, %v4680
        %v4742 = vpack.c.b16 %v4683, %v4682
        %v4743 = vpack.c.b16 %v4685, %v4684
        %v4744 = vpack.c.b16 %v4687, %v4686
        %v4745 = vpack.c.b16 %v4689, %v4688
        %v4746 = vpack.c.b16 %v4691, %v4690
        %v4747 = vpack.c.b16 %v4693, %v4692
        %v4748 = vpack.c.b16 %v4695, %v4694
        %v4749 = vpack.c.b16 %v4697, %v4696
        %v4750 = vpack.c.b16 %v4699, %v4698
        %v4751 = vpack.c.b16 %v4701, %v4700
        %v4752 = vpack.c.b16 %v4703, %v4702
        %v4753 = vpack.c.b16 %v4705, %v4704
        %v4754 = vpack.c.b16 %v4707, %v4706
        %v4755 = vpack.c.b16 %v4709, %v4708
        %v4756 = vpack.c.b16 %v4711, %v4710
        %v4757 = vpack.c.b16 %v4713, %v4712
        %v4758 = vpack.c.b16 %v4715, %v4714
        %v4759 = vpack.c.b16 %v4717, %v4716
        %v4760 = vpack.c.b16 %v4719, %v4718
        %v4761 = vpack.c.b16 %v4721, %v4720
        %v4762 = vpack.c.b16 %v4723, %v4722
        %v4763 = vpack.c.b16 %v4725, %v4724
        %v4764 = vpack.c.b16 %v4727, %v4726
        %v4765 = vpack.c.b16 %v4729, %v4728
        %v4766 = vpack.c.b16 %v4731, %v4730
        %v4767 = vpack.c.b16 %v4733, %v4732
        %v4768 = vpack.c.b16 %v4735, %v4734
        %v4769 = vpack.c.b16 %v4737, %v4736
        %4802 = vmatprep.subr.bf16.mxu0 0
        %4803 = vmatpush1.bf16.msra.mxu0 %v4738
        %4804 = vmatprep.subr.bf16.mxu0 0
        %4805 = vmatpush1.bf16.msra.mxu0 %v4739
        %4806 = vmatprep.subr.bf16.mxu0 0
        %4807 = vmatpush1.bf16.msra.mxu0 %v4740
        %4808 = vmatprep.subr.bf16.mxu0 0
        %4809 = vmatpush1.bf16.msra.mxu0 %v4741
        %4810 = vmatprep.subr.bf16.mxu0 0
        %4811 = vmatpush1.bf16.msra.mxu0 %v4742
        %4812 = vmatprep.subr.bf16.mxu0 0
        %4813 = vmatpush1.bf16.msra.mxu0 %v4743
        %4814 = vmatprep.subr.bf16.mxu0 0
        %4815 = vmatpush1.bf16.msra.mxu0 %v4744
        %4816 = vmatprep.subr.bf16.mxu0 0
        %4817 = vmatpush1.bf16.msra.mxu0 %v4745
        %4818 = vmatprep.subr.bf16.mxu0 0
        %4819 = vmatpush1.bf16.msra.mxu0 %v4746
        %4820 = vmatprep.subr.bf16.mxu0 0
        %4821 = vmatpush1.bf16.msra.mxu0 %v4747
        %4822 = vmatprep.subr.bf16.mxu0 0
        %4823 = vmatpush1.bf16.msra.mxu0 %v4748
        %4824 = vmatprep.subr.bf16.mxu0 0
        %4825 = vmatpush1.bf16.msra.mxu0 %v4749
        %4826 = vmatprep.subr.bf16.mxu0 0
        %4827 = vmatpush1.bf16.msra.mxu0 %v4750
        %4828 = vmatprep.subr.bf16.mxu0 0
        %4829 = vmatpush1.bf16.msra.mxu0 %v4751
        %4830 = vmatprep.subr.bf16.mxu0 0
        %4831 = vmatpush1.bf16.msra.mxu0 %v4752
        %4832 = vmatprep.subr.bf16.mxu0 0
        %4833 = vmatpush1.bf16.msra.mxu0 %v4753
        %4834 = vmatprep.mubr.bf16.mxu0 %v4489
        %4835 = vmatmul.mubr.bf16.gmra.mrb[0].mxu0 %v4465
        %v4836 = vpop.f32.mrb[0].mxu0
        %v4837 = vadd.f32 0.0, %v4836
        %v4838 = vpop.f32.mrb[0].mxu0
        %v4839 = vpop.f32.mrb[0].mxu0
        %v4840 = vadd.f32 0.0, %v4839
        %v4841 = vpop.f32.mrb[0].mxu0
        %4842 = vmatprep.mubr.bf16.mxu0 %v4490
        %4843 = vmatmul.mubr.bf16.gmra.mrb[0].mxu0 %v4466
        %v4844 = vpop.f32.mrb[0].mxu0
        %v4845 = vadd.f32 0.0, %v4844
        %v4846 = vpop.f32.mrb[0].mxu0
        %v4847 = vpop.f32.mrb[0].mxu0
        %v4848 = vadd.f32 0.0, %v4847
        %v4849 = vpop.f32.mrb[0].mxu0
        %4850 = vmatprep.mubr.bf16.mxu0 %v4491
        %4851 = vmatmul.mubr.bf16.gmra.mrb[0].mxu0 %v4467
        %v4852 = vpop.f32.mrb[0].mxu0
        %v4853 = vadd.f32 0.0, %v4852
        %v4854 = vpop.f32.mrb[0].mxu0
        %v4855 = vpop.f32.mrb[0].mxu0
        %v4856 = vadd.f32 0.0, %v4855
        %v4857 = vpop.f32.mrb[0].mxu0
        %4858 = vmatprep.mubr.bf16.mxu0 %v4492
        %4859 = vmatmul.mubr.bf16.gmra.mrb[0].mxu0 %v4468
        %v4860 = vpop.f32.mrb[0].mxu0
        %v4861 = vadd.f32 0.0, %v4860
        %v4862 = vpop.f32.mrb[0].mxu0
        %v4863 = vpop.f32.mrb[0].mxu0
        %v4864 = vadd.f32 0.0, %v4863
        %v4865 = vpop.f32.mrb[0].mxu0
        %4866 = vmatprep.mubr.bf16.mxu0 %v4493
        %4867 = vmatmul.mubr.bf16.gmra.mrb[0].mxu0 %v4469
        %v4868 = vpop.f32.mrb[0].mxu0
        %v4869 = vadd.f32 0.0, %v4868
        %v4870 = vpop.f32.mrb[0].mxu0
        %v4871 = vpop.f32.mrb[0].mxu0
        %v4872 = vadd.f32 0.0, %v4871
        %v4873 = vpop.f32.mrb[0].mxu0
        %4874 = vmatprep.mubr.bf16.mxu0 %v4494
        %4875 = vmatmul.mubr.bf16.gmra.mrb[0].mxu0 %v4470
        %v4876 = vpop.f32.mrb[0].mxu0
        %v4877 = vadd.f32 0.0, %v4876
        %v4878 = vpop.f32.mrb[0].mxu0
        %v4879 = vpop.f32.mrb[0].mxu0
        %v4880 = vadd.f32 0.0, %v4879
        %v4881 = vpop.f32.mrb[0].mxu0
        %4882 = vmatprep.mubr.bf16.mxu0 %v4495
        %4883 = vmatmul.mubr.bf16.gmra.mrb[0].mxu0 %v4471
        %v4884 = vpop.f32.mrb[0].mxu0
        %v4885 = vadd.f32 0.0, %v4884
        %v4886 = vpop.f32.mrb[0].mxu0
        %v4887 = vpop.f32.mrb[0].mxu0
        %v4888 = vadd.f32 0.0, %v4887
        %v4889 = vpop.f32.mrb[0].mxu0
        %4890 = vmatprep.mubr.bf16.mxu0 %v4496
        %4891 = vmatmul.mubr.bf16.gmra.mrb[0].mxu0 %v4472
        %v4892 = vpop.f32.mrb[0].mxu0
        %v4893 = vadd.f32 0.0, %v4892
        %v4894 = vpop.f32.mrb[0].mxu0
        %v4895 = vpop.f32.mrb[0].mxu0
        %v4896 = vadd.f32 0.0, %v4895
        %v4897 = vpop.f32.mrb[0].mxu0
        %4898 = vdwg.mxu0
        %4899 = vmatprep.subr.bf16.mxu0 0
        %4900 = vmatpush1.bf16.msra.mxu0 %v4754
        %4901 = vmatprep.subr.bf16.mxu0 0
        %4902 = vmatpush1.bf16.msra.mxu0 %v4755
        %4903 = vmatprep.subr.bf16.mxu0 0
        %4904 = vmatpush1.bf16.msra.mxu0 %v4756
        %4905 = vmatprep.subr.bf16.mxu0 0
        %4906 = vmatpush1.bf16.msra.mxu0 %v4757
        %4907 = vmatprep.subr.bf16.mxu0 0
        %4908 = vmatpush1.bf16.msra.mxu0 %v4758
        %4909 = vmatprep.subr.bf16.mxu0 0
        %4910 = vmatpush1.bf16.msra.mxu0 %v4759
        %4911 = vmatprep.subr.bf16.mxu0 0
        %4912 = vmatpush1.bf16.msra.mxu0 %v4760
        %4913 = vmatprep.subr.bf16.mxu0 0
        %4914 = vmatpush1.bf16.msra.mxu0 %v4761
        %4915 = vmatprep.subr.bf16.mxu0 0
        %4916 = vmatpush1.bf16.msra.mxu0 %v4762
        %4917 = vmatprep.subr.bf16.mxu0 0
        %4918 = vmatpush1.bf16.msra.mxu0 %v4763
        %4919 = vmatprep.subr.bf16.mxu0 0
        %4920 = vmatpush1.bf16.msra.mxu0 %v4764
        %4921 = vmatprep.subr.bf16.mxu0 0
        %4922 = vmatpush1.bf16.msra.mxu0 %v4765
        %4923 = vmatprep.subr.bf16.mxu0 0
        %4924 = vmatpush1.bf16.msra.mxu0 %v4766
        %4925 = vmatprep.subr.bf16.mxu0 0
        %4926 = vmatpush1.bf16.msra.mxu0 %v4767
        %4927 = vmatprep.subr.bf16.mxu0 0
        %4928 = vmatpush1.bf16.msra.mxu0 %v4768
        %4929 = vmatprep.subr.bf16.mxu0 0
        %4930 = vmatpush1.bf16.msra.mxu0 %v4769
        %4931 = vmatprep.mubr.bf16.mxu0 %v4537
        %4932 = vmatmul.mubr.bf16.gmra.mrb[0].mxu0 %v4513
        %v4933 = vpop.f32.mrb[0].mxu0
        %v4934 = vadd.f32 %v4837, %v4933
        %v4935 = vpop.f32.mrb[0].mxu0
        %v4936 = vpop.f32.mrb[0].mxu0
        %v4937 = vadd.f32 %v4840, %v4936
        %v4938 = vpop.f32.mrb[0].mxu0
        %4939 = vmatprep.mubr.bf16.mxu0 %v4538
        %4940 = vmatmul.mubr.bf16.gmra.mrb[0].mxu0 %v4514
        %v4941 = vpop.f32.mrb[0].mxu0
        %v4942 = vadd.f32 %v4845, %v4941
        %v4943 = vpop.f32.mrb[0].mxu0
        %v4944 = vpop.f32.mrb[0].mxu0
        %v4945 = vadd.f32 %v4848, %v4944
        %v4946 = vpop.f32.mrb[0].mxu0
        %4947 = vmatprep.mubr.bf16.mxu0 %v4539
        %4948 = vmatmul.mubr.bf16.gmra.mrb[0].mxu0 %v4515
        %v4949 = vpop.f32.mrb[0].mxu0
        %v4950 = vadd.f32 %v4853, %v4949
        %v4951 = vpop.f32.mrb[0].mxu0
        %v4952 = vpop.f32.mrb[0].mxu0
        %v4953 = vadd.f32 %v4856, %v4952
        %v4954 = vpop.f32.mrb[0].mxu0
        %4955 = vmatprep.mubr.bf16.mxu0 %v4540
        %4956 = vmatmul.mubr.bf16.gmra.mrb[0].mxu0 %v4516
        %v4957 = vpop.f32.mrb[0].mxu0
        %v4958 = vadd.f32 %v4861, %v4957
        %v4959 = vpop.f32.mrb[0].mxu0
        %v4960 = vpop.f32.mrb[0].mxu0
        %v4961 = vadd.f32 %v4864, %v4960
        %v4962 = vpop.f32.mrb[0].mxu0
        %4963 = vmatprep.mubr.bf16.mxu0 %v4541
        %4964 = vmatmul.mubr.bf16.gmra.mrb[0].mxu0 %v4517
        %v4965 = vpop.f32.mrb[0].mxu0
        %v4966 = vadd.f32 %v4869, %v4965
        %v4967 = vpop.f32.mrb[0].mxu0
        %v4968 = vpop.f32.mrb[0].mxu0
        %v4969 = vadd.f32 %v4872, %v4968
        %v4970 = vpop.f32.mrb[0].mxu0
        %4971 = vmatprep.mubr.bf16.mxu0 %v4542
        %4972 = vmatmul.mubr.bf16.gmra.mrb[0].mxu0 %v4518
        %v4973 = vpop.f32.mrb[0].mxu0
        %v4974 = vadd.f32 %v4877, %v4973
        %v4975 = vpop.f32.mrb[0].mxu0
        %v4976 = vpop.f32.mrb[0].mxu0
        %v4977 = vadd.f32 %v4880, %v4976
        %v4978 = vpop.f32.mrb[0].mxu0
        %4979 = vmatprep.mubr.bf16.mxu0 %v4543
        %4980 = vmatmul.mubr.bf16.gmra.mrb[0].mxu0 %v4519
        %v4981 = vpop.f32.mrb[0].mxu0
        %v4982 = vadd.f32 %v4885, %v4981
        %v4983 = vpop.f32.mrb[0].mxu0
        %v4984 = vpop.f32.mrb[0].mxu0
        %v4985 = vadd.f32 %v4888, %v4984
        %v4986 = vpop.f32.mrb[0].mxu0
        %4987 = vmatprep.mubr.bf16.mxu0 %v4544
        %4988 = vmatmul.mubr.bf16.gmra.mrb[0].mxu0 %v4520
        %v4989 = vpop.f32.mrb[0].mxu0
        %v4990 = vadd.f32 %v4893, %v4989
        %v4991 = vpop.f32.mrb[0].mxu0
        %v4992 = vpop.f32.mrb[0].mxu0
        %v4993 = vadd.f32 %v4896, %v4992
        %v4994 = vpop.f32.mrb[0].mxu0
        %4995 = vdwg.mxu0
        %v4996 = vadd.f32 %v4431, %v4934
        %v4997 = vadd.f32 %v4432, %v4937
        %v4998 = vadd.f32 %v4433, %v4942
        %v4999 = vadd.f32 %v4434, %v4945
        %v5000 = vadd.f32 %v4435, %v4950
        %v5001 = vadd.f32 %v4436, %v4953
        %v5002 = vadd.f32 %v4437, %v4958
        %v5003 = vadd.f32 %v4438, %v4961
        %v5004 = vadd.f32 %v4439, %v4966
        %v5005 = vadd.f32 %v4440, %v4969
        %v5006 = vadd.f32 %v4441, %v4974
        %v5007 = vadd.f32 %v4442, %v4977
        %v5008 = vadd.f32 %v4443, %v4982
        %v5009 = vadd.f32 %v4444, %v4985
        %v5010 = vadd.f32 %v4445, %v4990
        %v5011 = vadd.f32 %v4446, %v4993
        %v5012 = vld [vmem:[%s4] sm:$0x1]
        %v5014 = vlaneseq
        %v5015 = vshrl.u32 %v5014, 7
        %v5016 = vsub.s32 0, %v5015
        %v5017 = vrot.slane %v5012, %v5016
        %v5019 = vadd.f32 %v4996, %v5017
        %v5020 = vadd.f32 %v4997, %v5017
        %v5021 = vadd.f32 %v4998, %v5017
        %v5022 = vadd.f32 %v4999, %v5017
        %v5023 = vadd.f32 %v5000, %v5017
        %v5024 = vadd.f32 %v5001, %v5017
        %v5025 = vadd.f32 %v5002, %v5017
        %v5026 = vadd.f32 %v5003, %v5017
        %v5027 = vadd.f32 %v5004, %v5017
        %v5028 = vadd.f32 %v5005, %v5017
        %v5029 = vadd.f32 %v5006, %v5017
        %v5030 = vadd.f32 %v5007, %v5017
        %v5031 = vadd.f32 %v5008, %v5017
        %v5032 = vadd.f32 %v5009, %v5017
        %v5033 = vadd.f32 %v5010, %v5017
        %v5034 = vadd.f32 %v5011, %v5017
        %v5035 = vmax.f32 %v5019, 0.0
        %v5036 = vmax.f32 %v5020, 0.0
        %v5037 = vmax.f32 %v5021, 0.0
        %v5038 = vmax.f32 %v5022, 0.0
        %v5039 = vmax.f32 %v5023, 0.0
        %v5040 = vmax.f32 %v5024, 0.0
        %v5041 = vmax.f32 %v5025, 0.0
        %v5042 = vmax.f32 %v5026, 0.0
        %v5043 = vmax.f32 %v5027, 0.0
        %v5044 = vmax.f32 %v5028, 0.0
        %v5045 = vmax.f32 %v5029, 0.0
        %v5046 = vmax.f32 %v5030, 0.0
        %v5047 = vmax.f32 %v5031, 0.0
        %v5048 = vmax.f32 %v5032, 0.0
        %v5049 = vmax.f32 %v5033, 0.0
        %v5050 = vmax.f32 %v5034, 0.0
        %s5051 = scalar_lea.vmem [#allocation3], %s655
        %5052 = vst [vmem:[%s5051] sm:$0xff] %v5035
        %5053 = vst [vmem:[%s5051 + $0x8] sm:$0xff] %v5036
        %5054 = vst [vmem:[%s5051 + $0x10] sm:$0xff] %v5037
        %5055 = vst [vmem:[%s5051 + $0x18] sm:$0xff] %v5038
        %5056 = vst [vmem:[%s5051 + $0x20] sm:$0xff] %v5039
        %5057 = vst [vmem:[%s5051 + $0x28] sm:$0xff] %v5040
        %5058 = vst [vmem:[%s5051 + $0x30] sm:$0xff] %v5041
        %5059 = vst [vmem:[%s5051 + $0x38] sm:$0xff] %v5042
        %5060 = vst [vmem:[%s5051 + $0x40] sm:$0xff] %v5043
        %5061 = vst [vmem:[%s5051 + $0x48] sm:$0xff] %v5044
        %5062 = vst [vmem:[%s5051 + $0x50] sm:$0xff] %v5045
        %5063 = vst [vmem:[%s5051 + $0x58] sm:$0xff] %v5046
        %5064 = vst [vmem:[%s5051 + $0x60] sm:$0xff] %v5047
        %5065 = vst [vmem:[%s5051 + $0x68] sm:$0xff] %v5048
        %5066 = vst [vmem:[%s5051 + $0x70] sm:$0xff] %v5049
        %5067 = vst [vmem:[%s5051 + $0x78] sm:$0xff] %v5050
        %s5068 = sadd.s32 192, %s2757
        %s5069 = scalar_lea.vmem [#allocation2], %s5068
        %v5070 = vld [vmem:[%s5069] sm:$0xff]
        %v5071 = vld [vmem:[%s5069 + $0x8] sm:$0xff]
        %v5072 = vld [vmem:[%s5069 + $0x18] sm:$0xff]
        %v5073 = vld [vmem:[%s5069 + $0x20] sm:$0xff]
        %v5074 = vld [vmem:[%s5069 + $0x30] sm:$0xff]
        %v5075 = vld [vmem:[%s5069 + $0x38] sm:$0xff]
        %v5076 = vld [vmem:[%s5069 + $0x48] sm:$0xff]
        %v5077 = vld [vmem:[%s5069 + $0x50] sm:$0xff]
        %v5078 = vld [vmem:[%s5069 + $0x60] sm:$0xff]
        %v5079 = vld [vmem:[%s5069 + $0x68] sm:$0xff]
        %v5080 = vld [vmem:[%s5069 + $0x78] sm:$0xff]
        %v5081 = vld [vmem:[%s5069 + $0x80] sm:$0xff]
        %v5082 = vld [vmem:[%s5069 + $0x90] sm:$0xff]
        %v5083 = vld [vmem:[%s5069 + $0x98] sm:$0xff]
        %v5084 = vld [vmem:[%s5069 + $0xa8] sm:$0xff]
        %v5085 = vld [vmem:[%s5069 + $0xb0] sm:$0xff]
        %v5086 = vpack.c.bf16 %v5071, %v5070
        %v5087 = vpack.c.bf16 %v5073, %v5072
        %v5088 = vpack.c.bf16 %v5075, %v5074
        %v5089 = vpack.c.bf16 %v5077, %v5076
        %v5090 = vpack.c.bf16 %v5079, %v5078
        %v5091 = vpack.c.bf16 %v5081, %v5080
        %v5092 = vpack.c.bf16 %v5083, %v5082
        %v5093 = vpack.c.bf16 %v5085, %v5084
        %v5094 = vld [vmem:[%s5069 + $0x1] sm:$0xff]
        %v5095 = vld [vmem:[%s5069 + $0x9] sm:$0xff]
        %v5096 = vld [vmem:[%s5069 + $0x19] sm:$0xff]
        %v5097 = vld [vmem:[%s5069 + $0x21] sm:$0xff]
        %v5098 = vld [vmem:[%s5069 + $0x31] sm:$0xff]
        %v5099 = vld [vmem:[%s5069 + $0x39] sm:$0xff]
        %v5100 = vld [vmem:[%s5069 + $0x49] sm:$0xff]
        %v5101 = vld [vmem:[%s5069 + $0x51] sm:$0xff]
        %v5102 = vld [vmem:[%s5069 + $0x61] sm:$0xff]
        %v5103 = vld [vmem:[%s5069 + $0x69] sm:$0xff]
        %v5104 = vld [vmem:[%s5069 + $0x79] sm:$0xff]
        %v5105 = vld [vmem:[%s5069 + $0x81] sm:$0xff]
        %v5106 = vld [vmem:[%s5069 + $0x91] sm:$0xff]
        %v5107 = vld [vmem:[%s5069 + $0x99] sm:$0xff]
        %v5108 = vld [vmem:[%s5069 + $0xa9] sm:$0xff]
        %v5109 = vld [vmem:[%s5069 + $0xb1] sm:$0xff]
        %v5110 = vpack.c.bf16 %v5095, %v5094
        %v5111 = vpack.c.bf16 %v5097, %v5096
        %v5112 = vpack.c.bf16 %v5099, %v5098
        %v5113 = vpack.c.bf16 %v5101, %v5100
        %v5114 = vpack.c.bf16 %v5103, %v5102
        %v5115 = vpack.c.bf16 %v5105, %v5104
        %v5116 = vpack.c.bf16 %v5107, %v5106
        %v5117 = vpack.c.bf16 %v5109, %v5108
        %v5118 = vld [vmem:[%s5069 + $0x2] sm:$0xff]
        %v5119 = vld [vmem:[%s5069 + $0xa] sm:$0xff]
        %v5120 = vld [vmem:[%s5069 + $0x1a] sm:$0xff]
        %v5121 = vld [vmem:[%s5069 + $0x22] sm:$0xff]
        %v5122 = vld [vmem:[%s5069 + $0x32] sm:$0xff]
        %v5123 = vld [vmem:[%s5069 + $0x3a] sm:$0xff]
        %v5124 = vld [vmem:[%s5069 + $0x4a] sm:$0xff]
        %v5125 = vld [vmem:[%s5069 + $0x52] sm:$0xff]
        %v5126 = vld [vmem:[%s5069 + $0x62] sm:$0xff]
        %v5127 = vld [vmem:[%s5069 + $0x6a] sm:$0xff]
        %v5128 = vld [vmem:[%s5069 + $0x7a] sm:$0xff]
        %v5129 = vld [vmem:[%s5069 + $0x82] sm:$0xff]
        %v5130 = vld [vmem:[%s5069 + $0x92] sm:$0xff]
        %v5131 = vld [vmem:[%s5069 + $0x9a] sm:$0xff]
        %v5132 = vld [vmem:[%s5069 + $0xaa] sm:$0xff]
        %v5133 = vld [vmem:[%s5069 + $0xb2] sm:$0xff]
        %v5134 = vpack.c.bf16 %v5119, %v5118
        %v5135 = vpack.c.bf16 %v5121, %v5120
        %v5136 = vpack.c.bf16 %v5123, %v5122
        %v5137 = vpack.c.bf16 %v5125, %v5124
        %v5138 = vpack.c.bf16 %v5127, %v5126
        %v5139 = vpack.c.bf16 %v5129, %v5128
        %v5140 = vpack.c.bf16 %v5131, %v5130
        %v5141 = vpack.c.bf16 %v5133, %v5132
        %v5142 = vld [vmem:[%s5069 + $0x3] sm:$0xff]
        %v5143 = vld [vmem:[%s5069 + $0xb] sm:$0xff]
        %v5144 = vld [vmem:[%s5069 + $0x1b] sm:$0xff]
        %v5145 = vld [vmem:[%s5069 + $0x23] sm:$0xff]
        %v5146 = vld [vmem:[%s5069 + $0x33] sm:$0xff]
        %v5147 = vld [vmem:[%s5069 + $0x3b] sm:$0xff]
        %v5148 = vld [vmem:[%s5069 + $0x4b] sm:$0xff]
        %v5149 = vld [vmem:[%s5069 + $0x53] sm:$0xff]
        %v5150 = vld [vmem:[%s5069 + $0x63] sm:$0xff]
        %v5151 = vld [vmem:[%s5069 + $0x6b] sm:$0xff]
        %v5152 = vld [vmem:[%s5069 + $0x7b] sm:$0xff]
        %v5153 = vld [vmem:[%s5069 + $0x83] sm:$0xff]
        %v5154 = vld [vmem:[%s5069 + $0x93] sm:$0xff]
        %v5155 = vld [vmem:[%s5069 + $0x9b] sm:$0xff]
        %v5156 = vld [vmem:[%s5069 + $0xab] sm:$0xff]
        %v5157 = vld [vmem:[%s5069 + $0xb3] sm:$0xff]
        %v5158 = vpack.c.bf16 %v5143, %v5142
        %v5159 = vpack.c.bf16 %v5145, %v5144
        %v5160 = vpack.c.bf16 %v5147, %v5146
        %v5161 = vpack.c.bf16 %v5149, %v5148
        %v5162 = vpack.c.bf16 %v5151, %v5150
        %v5163 = vpack.c.bf16 %v5153, %v5152
        %v5164 = vpack.c.bf16 %v5155, %v5154
        %v5165 = vpack.c.bf16 %v5157, %v5156
        %v5166 = vld [vmem:[%s3] sm:$0xf]
        %v5167 = vld [vmem:[%s3 + $0x4] sm:$0xf]
        %v5168 = vld [vmem:[%s3 + $0x8] sm:$0xf]
        %v5169 = vld [vmem:[%s3 + $0xc] sm:$0xf]
        %v5170 = vld [vmem:[%s3 + $0x10] sm:$0xf]
        %v5171 = vld [vmem:[%s3 + $0x14] sm:$0xf]
        %v5172 = vld [vmem:[%s3 + $0x18] sm:$0xf]
        %v5173 = vld [vmem:[%s3 + $0x1c] sm:$0xf]
        %v5174 = vld [vmem:[%s3 + $0x20] sm:$0xf]
        %v5175 = vld [vmem:[%s3 + $0x24] sm:$0xf]
        %v5176 = vld [vmem:[%s3 + $0x28] sm:$0xf]
        %v5177 = vld [vmem:[%s3 + $0x2c] sm:$0xf]
        %v5178 = vld [vmem:[%s3 + $0x30] sm:$0xf]
        %v5179 = vld [vmem:[%s3 + $0x34] sm:$0xf]
        %v5180 = vld [vmem:[%s3 + $0x38] sm:$0xf]
        %v5181 = vld [vmem:[%s3 + $0x3c] sm:$0xf]
        %v5182 = vld [vmem:[%s3 + $0x40] sm:$0xf]
        %v5183 = vld [vmem:[%s3 + $0x44] sm:$0xf]
        %v5184 = vld [vmem:[%s3 + $0x48] sm:$0xf]
        %v5185 = vld [vmem:[%s3 + $0x4c] sm:$0xf]
        %v5186 = vld [vmem:[%s3 + $0x50] sm:$0xf]
        %v5187 = vld [vmem:[%s3 + $0x54] sm:$0xf]
        %v5188 = vld [vmem:[%s3 + $0x58] sm:$0xf]
        %v5189 = vld [vmem:[%s3 + $0x5c] sm:$0xf]
        %v5190 = vld [vmem:[%s3 + $0x60] sm:$0xf]
        %v5191 = vld [vmem:[%s3 + $0x64] sm:$0xf]
        %v5192 = vld [vmem:[%s3 + $0x68] sm:$0xf]
        %v5193 = vld [vmem:[%s3 + $0x6c] sm:$0xf]
        %v5194 = vld [vmem:[%s3 + $0x70] sm:$0xf]
        %v5195 = vld [vmem:[%s3 + $0x74] sm:$0xf]
        %v5196 = vld [vmem:[%s3 + $0x78] sm:$0xf]
        %v5197 = vld [vmem:[%s3 + $0x7c] sm:$0xf]
        %v5198 = vld [vmem:[%s3 + $0x80] sm:$0xf]
        %v5199 = vld [vmem:[%s3 + $0x84] sm:$0xf]
        %v5200 = vld [vmem:[%s3 + $0x88] sm:$0xf]
        %v5201 = vld [vmem:[%s3 + $0x8c] sm:$0xf]
        %v5202 = vld [vmem:[%s3 + $0x90] sm:$0xf]
        %v5203 = vld [vmem:[%s3 + $0x94] sm:$0xf]
        %v5204 = vld [vmem:[%s3 + $0x98] sm:$0xf]
        %v5205 = vld [vmem:[%s3 + $0x9c] sm:$0xf]
        %v5206 = vld [vmem:[%s3 + $0xa0] sm:$0xf]
        %v5207 = vld [vmem:[%s3 + $0xa4] sm:$0xf]
        %v5208 = vld [vmem:[%s3 + $0xa8] sm:$0xf]
        %v5209 = vld [vmem:[%s3 + $0xac] sm:$0xf]
        %v5210 = vld [vmem:[%s3 + $0xb0] sm:$0xf]
        %v5211 = vld [vmem:[%s3 + $0xb4] sm:$0xf]
        %v5212 = vld [vmem:[%s3 + $0xb8] sm:$0xf]
        %v5213 = vld [vmem:[%s3 + $0xbc] sm:$0xf]
        %v5214 = vld [vmem:[%s3 + $0xc0] sm:$0xf]
        %v5215 = vld [vmem:[%s3 + $0xc4] sm:$0xf]
        %v5216 = vld [vmem:[%s3 + $0xc8] sm:$0xf]
        %v5217 = vld [vmem:[%s3 + $0xcc] sm:$0xf]
        %v5218 = vld [vmem:[%s3 + $0xd0] sm:$0xf]
        %v5219 = vld [vmem:[%s3 + $0xd4] sm:$0xf]
        %v5220 = vld [vmem:[%s3 + $0xd8] sm:$0xf]
        %v5221 = vld [vmem:[%s3 + $0xdc] sm:$0xf]
        %v5222 = vld [vmem:[%s3 + $0xe0] sm:$0xf]
        %v5223 = vld [vmem:[%s3 + $0xe4] sm:$0xf]
        %v5224 = vld [vmem:[%s3 + $0xe8] sm:$0xf]
        %v5225 = vld [vmem:[%s3 + $0xec] sm:$0xf]
        %v5226 = vld [vmem:[%s3 + $0xf0] sm:$0xf]
        %v5227 = vld [vmem:[%s3 + $0xf4] sm:$0xf]
        %v5228 = vld [vmem:[%s3 + $0xf8] sm:$0xf]
        %v5229 = vld [vmem:[%s3 + $0xfc] sm:$0xf]
        %s5230 = sadd.s32 216, %s2757
        %s5231 = scalar_lea.vmem [#allocation2], %s5230
        %v5232 = vld [vmem:[%s5231] sm:$0xff]
        %v5233 = vld [vmem:[%s5231 + $0x8] sm:$0xff]
        %v5234 = vld [vmem:[%s5231 + $0x18] sm:$0xff]
        %v5235 = vld [vmem:[%s5231 + $0x20] sm:$0xff]
        %v5236 = vld [vmem:[%s5231 + $0x30] sm:$0xff]
        %v5237 = vld [vmem:[%s5231 + $0x38] sm:$0xff]
        %v5238 = vld [vmem:[%s5231 + $0x48] sm:$0xff]
        %v5239 = vld [vmem:[%s5231 + $0x50] sm:$0xff]
        %v5240 = vld [vmem:[%s5231 + $0x60] sm:$0xff]
        %v5241 = vld [vmem:[%s5231 + $0x68] sm:$0xff]
        %v5242 = vld [vmem:[%s5231 + $0x78] sm:$0xff]
        %v5243 = vld [vmem:[%s5231 + $0x80] sm:$0xff]
        %v5244 = vld [vmem:[%s5231 + $0x90] sm:$0xff]
        %v5245 = vld [vmem:[%s5231 + $0x98] sm:$0xff]
        %v5246 = vld [vmem:[%s5231 + $0xa8] sm:$0xff]
        %v5247 = vld [vmem:[%s5231 + $0xb0] sm:$0xff]
        %v5248 = vpack.c.bf16 %v5233, %v5232
        %v5249 = vpack.c.bf16 %v5235, %v5234
        %v5250 = vpack.c.bf16 %v5237, %v5236
        %v5251 = vpack.c.bf16 %v5239, %v5238
        %v5252 = vpack.c.bf16 %v5241, %v5240
        %v5253 = vpack.c.bf16 %v5243, %v5242
        %v5254 = vpack.c.bf16 %v5245, %v5244
        %v5255 = vpack.c.bf16 %v5247, %v5246
        %v5256 = vld [vmem:[%s5231 + $0x1] sm:$0xff]
        %v5257 = vld [vmem:[%s5231 + $0x9] sm:$0xff]
        %v5258 = vld [vmem:[%s5231 + $0x19] sm:$0xff]
        %v5259 = vld [vmem:[%s5231 + $0x21] sm:$0xff]
        %v5260 = vld [vmem:[%s5231 + $0x31] sm:$0xff]
        %v5261 = vld [vmem:[%s5231 + $0x39] sm:$0xff]
        %v5262 = vld [vmem:[%s5231 + $0x49] sm:$0xff]
        %v5263 = vld [vmem:[%s5231 + $0x51] sm:$0xff]
        %v5264 = vld [vmem:[%s5231 + $0x61] sm:$0xff]
        %v5265 = vld [vmem:[%s5231 + $0x69] sm:$0xff]
        %v5266 = vld [vmem:[%s5231 + $0x79] sm:$0xff]
        %v5267 = vld [vmem:[%s5231 + $0x81] sm:$0xff]
        %v5268 = vld [vmem:[%s5231 + $0x91] sm:$0xff]
        %v5269 = vld [vmem:[%s5231 + $0x99] sm:$0xff]
        %v5270 = vld [vmem:[%s5231 + $0xa9] sm:$0xff]
        %v5271 = vld [vmem:[%s5231 + $0xb1] sm:$0xff]
        %v5272 = vpack.c.bf16 %v5257, %v5256
        %v5273 = vpack.c.bf16 %v5259, %v5258
        %v5274 = vpack.c.bf16 %v5261, %v5260
        %v5275 = vpack.c.bf16 %v5263, %v5262
        %v5276 = vpack.c.bf16 %v5265, %v5264
        %v5277 = vpack.c.bf16 %v5267, %v5266
        %v5278 = vpack.c.bf16 %v5269, %v5268
        %v5279 = vpack.c.bf16 %v5271, %v5270
        %v5280 = vld [vmem:[%s5231 + $0x2] sm:$0xff]
        %v5281 = vld [vmem:[%s5231 + $0xa] sm:$0xff]
        %v5282 = vld [vmem:[%s5231 + $0x1a] sm:$0xff]
        %v5283 = vld [vmem:[%s5231 + $0x22] sm:$0xff]
        %v5284 = vld [vmem:[%s5231 + $0x32] sm:$0xff]
        %v5285 = vld [vmem:[%s5231 + $0x3a] sm:$0xff]
        %v5286 = vld [vmem:[%s5231 + $0x4a] sm:$0xff]
        %v5287 = vld [vmem:[%s5231 + $0x52] sm:$0xff]
        %v5288 = vld [vmem:[%s5231 + $0x62] sm:$0xff]
        %v5289 = vld [vmem:[%s5231 + $0x6a] sm:$0xff]
        %v5290 = vld [vmem:[%s5231 + $0x7a] sm:$0xff]
        %v5291 = vld [vmem:[%s5231 + $0x82] sm:$0xff]
        %v5292 = vld [vmem:[%s5231 + $0x92] sm:$0xff]
        %v5293 = vld [vmem:[%s5231 + $0x9a] sm:$0xff]
        %v5294 = vld [vmem:[%s5231 + $0xaa] sm:$0xff]
        %v5295 = vld [vmem:[%s5231 + $0xb2] sm:$0xff]
        %v5296 = vpack.c.bf16 %v5281, %v5280
        %v5297 = vpack.c.bf16 %v5283, %v5282
        %v5298 = vpack.c.bf16 %v5285, %v5284
        %v5299 = vpack.c.bf16 %v5287, %v5286
        %v5300 = vpack.c.bf16 %v5289, %v5288
        %v5301 = vpack.c.bf16 %v5291, %v5290
        %v5302 = vpack.c.bf16 %v5293, %v5292
        %v5303 = vpack.c.bf16 %v5295, %v5294
        %v5304 = vld [vmem:[%s5231 + $0x3] sm:$0xff]
        %v5305 = vld [vmem:[%s5231 + $0xb] sm:$0xff]
        %v5306 = vld [vmem:[%s5231 + $0x1b] sm:$0xff]
        %v5307 = vld [vmem:[%s5231 + $0x23] sm:$0xff]
        %v5308 = vld [vmem:[%s5231 + $0x33] sm:$0xff]
        %v5309 = vld [vmem:[%s5231 + $0x3b] sm:$0xff]
        %v5310 = vld [vmem:[%s5231 + $0x4b] sm:$0xff]
        %v5311 = vld [vmem:[%s5231 + $0x53] sm:$0xff]
        %v5312 = vld [vmem:[%s5231 + $0x63] sm:$0xff]
        %v5313 = vld [vmem:[%s5231 + $0x6b] sm:$0xff]
        %v5314 = vld [vmem:[%s5231 + $0x7b] sm:$0xff]
        %v5315 = vld [vmem:[%s5231 + $0x83] sm:$0xff]
        %v5316 = vld [vmem:[%s5231 + $0x93] sm:$0xff]
        %v5317 = vld [vmem:[%s5231 + $0x9b] sm:$0xff]
        %v5318 = vld [vmem:[%s5231 + $0xab] sm:$0xff]
        %v5319 = vld [vmem:[%s5231 + $0xb3] sm:$0xff]
        %v5320 = vpack.c.bf16 %v5305, %v5304
        %v5321 = vpack.c.bf16 %v5307, %v5306
        %v5322 = vpack.c.bf16 %v5309, %v5308
        %v5323 = vpack.c.bf16 %v5311, %v5310
        %v5324 = vpack.c.bf16 %v5313, %v5312
        %v5325 = vpack.c.bf16 %v5315, %v5314
        %v5326 = vpack.c.bf16 %v5317, %v5316
        %v5327 = vpack.c.bf16 %v5319, %v5318
        %v5328 = vld [vmem:[%s3045] sm:$0xf]
        %v5329 = vld [vmem:[%s3045 + $0x4] sm:$0xf]
        %v5330 = vld [vmem:[%s3045 + $0x8] sm:$0xf]
        %v5331 = vld [vmem:[%s3045 + $0xc] sm:$0xf]
        %v5332 = vld [vmem:[%s3045 + $0x10] sm:$0xf]
        %v5333 = vld [vmem:[%s3045 + $0x14] sm:$0xf]
        %v5334 = vld [vmem:[%s3045 + $0x18] sm:$0xf]
        %v5335 = vld [vmem:[%s3045 + $0x1c] sm:$0xf]
        %v5336 = vld [vmem:[%s3045 + $0x20] sm:$0xf]
        %v5337 = vld [vmem:[%s3045 + $0x24] sm:$0xf]
        %v5338 = vld [vmem:[%s3045 + $0x28] sm:$0xf]
        %v5339 = vld [vmem:[%s3045 + $0x2c] sm:$0xf]
        %v5340 = vld [vmem:[%s3045 + $0x30] sm:$0xf]
        %v5341 = vld [vmem:[%s3045 + $0x34] sm:$0xf]
        %v5342 = vld [vmem:[%s3045 + $0x38] sm:$0xf]
        %v5343 = vld [vmem:[%s3045 + $0x3c] sm:$0xf]
        %v5344 = vld [vmem:[%s3045 + $0x40] sm:$0xf]
        %v5345 = vld [vmem:[%s3045 + $0x44] sm:$0xf]
        %v5346 = vld [vmem:[%s3045 + $0x48] sm:$0xf]
        %v5347 = vld [vmem:[%s3045 + $0x4c] sm:$0xf]
        %v5348 = vld [vmem:[%s3045 + $0x50] sm:$0xf]
        %v5349 = vld [vmem:[%s3045 + $0x54] sm:$0xf]
        %v5350 = vld [vmem:[%s3045 + $0x58] sm:$0xf]
        %v5351 = vld [vmem:[%s3045 + $0x5c] sm:$0xf]
        %v5352 = vld [vmem:[%s3045 + $0x60] sm:$0xf]
        %v5353 = vld [vmem:[%s3045 + $0x64] sm:$0xf]
        %v5354 = vld [vmem:[%s3045 + $0x68] sm:$0xf]
        %v5355 = vld [vmem:[%s3045 + $0x6c] sm:$0xf]
        %v5356 = vld [vmem:[%s3045 + $0x70] sm:$0xf]
        %v5357 = vld [vmem:[%s3045 + $0x74] sm:$0xf]
        %v5358 = vld [vmem:[%s3045 + $0x78] sm:$0xf]
        %v5359 = vld [vmem:[%s3045 + $0x7c] sm:$0xf]
        %v5360 = vld [vmem:[%s3045 + $0x80] sm:$0xf]
        %v5361 = vld [vmem:[%s3045 + $0x84] sm:$0xf]
        %v5362 = vld [vmem:[%s3045 + $0x88] sm:$0xf]
        %v5363 = vld [vmem:[%s3045 + $0x8c] sm:$0xf]
        %v5364 = vld [vmem:[%s3045 + $0x90] sm:$0xf]
        %v5365 = vld [vmem:[%s3045 + $0x94] sm:$0xf]
        %v5366 = vld [vmem:[%s3045 + $0x98] sm:$0xf]
        %v5367 = vld [vmem:[%s3045 + $0x9c] sm:$0xf]
        %v5368 = vld [vmem:[%s3045 + $0xa0] sm:$0xf]
        %v5369 = vld [vmem:[%s3045 + $0xa4] sm:$0xf]
        %v5370 = vld [vmem:[%s3045 + $0xa8] sm:$0xf]
        %v5371 = vld [vmem:[%s3045 + $0xac] sm:$0xf]
        %v5372 = vld [vmem:[%s3045 + $0xb0] sm:$0xf]
        %v5373 = vld [vmem:[%s3045 + $0xb4] sm:$0xf]
        %v5374 = vld [vmem:[%s3045 + $0xb8] sm:$0xf]
        %v5375 = vld [vmem:[%s3045 + $0xbc] sm:$0xf]
        %v5376 = vld [vmem:[%s3045 + $0xc0] sm:$0xf]
        %v5377 = vld [vmem:[%s3045 + $0xc4] sm:$0xf]
        %v5378 = vld [vmem:[%s3045 + $0xc8] sm:$0xf]
        %v5379 = vld [vmem:[%s3045 + $0xcc] sm:$0xf]
        %v5380 = vld [vmem:[%s3045 + $0xd0] sm:$0xf]
        %v5381 = vld [vmem:[%s3045 + $0xd4] sm:$0xf]
        %v5382 = vld [vmem:[%s3045 + $0xd8] sm:$0xf]
        %v5383 = vld [vmem:[%s3045 + $0xdc] sm:$0xf]
        %v5384 = vld [vmem:[%s3045 + $0xe0] sm:$0xf]
        %v5385 = vld [vmem:[%s3045 + $0xe4] sm:$0xf]
        %v5386 = vld [vmem:[%s3045 + $0xe8] sm:$0xf]
        %v5387 = vld [vmem:[%s3045 + $0xec] sm:$0xf]
        %v5388 = vld [vmem:[%s3045 + $0xf0] sm:$0xf]
        %v5389 = vld [vmem:[%s3045 + $0xf4] sm:$0xf]
        %v5390 = vld [vmem:[%s3045 + $0xf8] sm:$0xf]
        %v5391 = vld [vmem:[%s3045 + $0xfc] sm:$0xf]
        %v5456 = vunpack.c.l.b16 %v5328
        %v5457 = vunpack.c.l.b16 %v5329
        %v5458 = vunpack.c.l.b16 %v5330
        %v5459 = vunpack.c.l.b16 %v5331
        %v5460 = vunpack.c.l.b16 %v5332
        %v5461 = vunpack.c.l.b16 %v5333
        %v5462 = vunpack.c.l.b16 %v5334
        %v5463 = vunpack.c.l.b16 %v5335
        %v5464 = vunpack.c.l.b16 %v5336
        %v5465 = vunpack.c.l.b16 %v5337
        %v5466 = vunpack.c.l.b16 %v5338
        %v5467 = vunpack.c.l.b16 %v5339
        %v5468 = vunpack.c.l.b16 %v5340
        %v5469 = vunpack.c.l.b16 %v5341
        %v5470 = vunpack.c.l.b16 %v5342
        %v5471 = vunpack.c.l.b16 %v5343
        %v5472 = vunpack.c.l.b16 %v5344
        %v5473 = vunpack.c.l.b16 %v5345
        %v5474 = vunpack.c.l.b16 %v5346
        %v5475 = vunpack.c.l.b16 %v5347
        %v5476 = vunpack.c.l.b16 %v5348
        %v5477 = vunpack.c.l.b16 %v5349
        %v5478 = vunpack.c.l.b16 %v5350
        %v5479 = vunpack.c.l.b16 %v5351
        %v5480 = vunpack.c.l.b16 %v5352
        %v5481 = vunpack.c.l.b16 %v5353
        %v5482 = vunpack.c.l.b16 %v5354
        %v5483 = vunpack.c.l.b16 %v5355
        %v5484 = vunpack.c.l.b16 %v5356
        %v5485 = vunpack.c.l.b16 %v5357
        %v5486 = vunpack.c.l.b16 %v5358
        %v5487 = vunpack.c.l.b16 %v5359
        %v5488 = vunpack.c.l.b16 %v5360
        %v5489 = vunpack.c.l.b16 %v5361
        %v5490 = vunpack.c.l.b16 %v5362
        %v5491 = vunpack.c.l.b16 %v5363
        %v5492 = vunpack.c.l.b16 %v5364
        %v5493 = vunpack.c.l.b16 %v5365
        %v5494 = vunpack.c.l.b16 %v5366
        %v5495 = vunpack.c.l.b16 %v5367
        %v5496 = vunpack.c.l.b16 %v5368
        %v5497 = vunpack.c.l.b16 %v5369
        %v5498 = vunpack.c.l.b16 %v5370
        %v5499 = vunpack.c.l.b16 %v5371
        %v5500 = vunpack.c.l.b16 %v5372
        %v5501 = vunpack.c.l.b16 %v5373
        %v5502 = vunpack.c.l.b16 %v5374
        %v5503 = vunpack.c.l.b16 %v5375
        %v5504 = vunpack.c.l.b16 %v5376
        %v5505 = vunpack.c.l.b16 %v5377
        %v5506 = vunpack.c.l.b16 %v5378
        %v5507 = vunpack.c.l.b16 %v5379
        %v5508 = vunpack.c.l.b16 %v5380
        %v5509 = vunpack.c.l.b16 %v5381
        %v5510 = vunpack.c.l.b16 %v5382
        %v5511 = vunpack.c.l.b16 %v5383
        %v5512 = vunpack.c.l.b16 %v5384
        %v5513 = vunpack.c.l.b16 %v5385
        %v5514 = vunpack.c.l.b16 %v5386
        %v5515 = vunpack.c.l.b16 %v5387
        %v5516 = vunpack.c.l.b16 %v5388
        %v5517 = vunpack.c.l.b16 %v5389
        %v5518 = vunpack.c.l.b16 %v5390
        %v5519 = vunpack.c.l.b16 %v5391
        %v5520 = vpack.c.b16 %v5457, %v5456
        %v5521 = vpack.c.b16 %v5459, %v5458
        %v5522 = vpack.c.b16 %v5461, %v5460
        %v5523 = vpack.c.b16 %v5463, %v5462
        %v5524 = vpack.c.b16 %v5465, %v5464
        %v5525 = vpack.c.b16 %v5467, %v5466
        %v5526 = vpack.c.b16 %v5469, %v5468
        %v5527 = vpack.c.b16 %v5471, %v5470
        %v5528 = vpack.c.b16 %v5473, %v5472
        %v5529 = vpack.c.b16 %v5475, %v5474
        %v5530 = vpack.c.b16 %v5477, %v5476
        %v5531 = vpack.c.b16 %v5479, %v5478
        %v5532 = vpack.c.b16 %v5481, %v5480
        %v5533 = vpack.c.b16 %v5483, %v5482
        %v5534 = vpack.c.b16 %v5485, %v5484
        %v5535 = vpack.c.b16 %v5487, %v5486
        %v5536 = vpack.c.b16 %v5489, %v5488
        %v5537 = vpack.c.b16 %v5491, %v5490
        %v5538 = vpack.c.b16 %v5493, %v5492
        %v5539 = vpack.c.b16 %v5495, %v5494
        %v5540 = vpack.c.b16 %v5497, %v5496
        %v5541 = vpack.c.b16 %v5499, %v5498
        %v5542 = vpack.c.b16 %v5501, %v5500
        %v5543 = vpack.c.b16 %v5503, %v5502
        %v5544 = vpack.c.b16 %v5505, %v5504
        %v5545 = vpack.c.b16 %v5507, %v5506
        %v5546 = vpack.c.b16 %v5509, %v5508
        %v5547 = vpack.c.b16 %v5511, %v5510
        %v5548 = vpack.c.b16 %v5513, %v5512
        %v5549 = vpack.c.b16 %v5515, %v5514
        %v5550 = vpack.c.b16 %v5517, %v5516
        %v5551 = vpack.c.b16 %v5519, %v5518
        %5584 = vmatprep.subr.bf16.mxu0 0
        %5585 = vmatpush1.bf16.msra.mxu0 %v5520
        %5586 = vmatprep.subr.bf16.mxu0 0
        %5587 = vmatpush1.bf16.msra.mxu0 %v5521
        %5588 = vmatprep.subr.bf16.mxu0 0
        %5589 = vmatpush1.bf16.msra.mxu0 %v5522
        %5590 = vmatprep.subr.bf16.mxu0 0
        %5591 = vmatpush1.bf16.msra.mxu0 %v5523
        %5592 = vmatprep.subr.bf16.mxu0 0
        %5593 = vmatpush1.bf16.msra.mxu0 %v5524
        %5594 = vmatprep.subr.bf16.mxu0 0
        %5595 = vmatpush1.bf16.msra.mxu0 %v5525
        %5596 = vmatprep.subr.bf16.mxu0 0
        %5597 = vmatpush1.bf16.msra.mxu0 %v5526
        %5598 = vmatprep.subr.bf16.mxu0 0
        %5599 = vmatpush1.bf16.msra.mxu0 %v5527
        %5600 = vmatprep.subr.bf16.mxu0 0
        %5601 = vmatpush1.bf16.msra.mxu0 %v5528
        %5602 = vmatprep.subr.bf16.mxu0 0
        %5603 = vmatpush1.bf16.msra.mxu0 %v5529
        %5604 = vmatprep.subr.bf16.mxu0 0
        %5605 = vmatpush1.bf16.msra.mxu0 %v5530
        %5606 = vmatprep.subr.bf16.mxu0 0
        %5607 = vmatpush1.bf16.msra.mxu0 %v5531
        %5608 = vmatprep.subr.bf16.mxu0 0
        %5609 = vmatpush1.bf16.msra.mxu0 %v5532
        %5610 = vmatprep.subr.bf16.mxu0 0
        %5611 = vmatpush1.bf16.msra.mxu0 %v5533
        %5612 = vmatprep.subr.bf16.mxu0 0
        %5613 = vmatpush1.bf16.msra.mxu0 %v5534
        %5614 = vmatprep.subr.bf16.mxu0 0
        %5615 = vmatpush1.bf16.msra.mxu0 %v5535
        %5616 = vmatprep.mubr.bf16.mxu0 %v5272
        %5617 = vmatmul.mubr.bf16.gmra.mrb[0].mxu0 %v5248
        %v5618 = vpop.f32.mrb[0].mxu0
        %v5619 = vadd.f32 0.0, %v5618
        %v5620 = vpop.f32.mrb[0].mxu0
        %v5621 = vpop.f32.mrb[0].mxu0
        %v5622 = vadd.f32 0.0, %v5621
        %v5623 = vpop.f32.mrb[0].mxu0
        %5624 = vmatprep.mubr.bf16.mxu0 %v5273
        %5625 = vmatmul.mubr.bf16.gmra.mrb[0].mxu0 %v5249
        %v5626 = vpop.f32.mrb[0].mxu0
        %v5627 = vadd.f32 0.0, %v5626
        %v5628 = vpop.f32.mrb[0].mxu0
        %v5629 = vpop.f32.mrb[0].mxu0
        %v5630 = vadd.f32 0.0, %v5629
        %v5631 = vpop.f32.mrb[0].mxu0
        %5632 = vmatprep.mubr.bf16.mxu0 %v5274
        %5633 = vmatmul.mubr.bf16.gmra.mrb[0].mxu0 %v5250
        %v5634 = vpop.f32.mrb[0].mxu0
        %v5635 = vadd.f32 0.0, %v5634
        %v5636 = vpop.f32.mrb[0].mxu0
        %v5637 = vpop.f32.mrb[0].mxu0
        %v5638 = vadd.f32 0.0, %v5637
        %v5639 = vpop.f32.mrb[0].mxu0
        %5640 = vmatprep.mubr.bf16.mxu0 %v5275
        %5641 = vmatmul.mubr.bf16.gmra.mrb[0].mxu0 %v5251
        %v5642 = vpop.f32.mrb[0].mxu0
        %v5643 = vadd.f32 0.0, %v5642
        %v5644 = vpop.f32.mrb[0].mxu0
        %v5645 = vpop.f32.mrb[0].mxu0
        %v5646 = vadd.f32 0.0, %v5645
        %v5647 = vpop.f32.mrb[0].mxu0
        %5648 = vmatprep.mubr.bf16.mxu0 %v5276
        %5649 = vmatmul.mubr.bf16.gmra.mrb[0].mxu0 %v5252
        %v5650 = vpop.f32.mrb[0].mxu0
        %v5651 = vadd.f32 0.0, %v5650
        %v5652 = vpop.f32.mrb[0].mxu0
        %v5653 = vpop.f32.mrb[0].mxu0
        %v5654 = vadd.f32 0.0, %v5653
        %v5655 = vpop.f32.mrb[0].mxu0
        %5656 = vmatprep.mubr.bf16.mxu0 %v5277
        %5657 = vmatmul.mubr.bf16.gmra.mrb[0].mxu0 %v5253
        %v5658 = vpop.f32.mrb[0].mxu0
        %v5659 = vadd.f32 0.0, %v5658
        %v5660 = vpop.f32.mrb[0].mxu0
        %v5661 = vpop.f32.mrb[0].mxu0
        %v5662 = vadd.f32 0.0, %v5661
        %v5663 = vpop.f32.mrb[0].mxu0
        %5664 = vmatprep.mubr.bf16.mxu0 %v5278
        %5665 = vmatmul.mubr.bf16.gmra.mrb[0].mxu0 %v5254
        %v5666 = vpop.f32.mrb[0].mxu0
        %v5667 = vadd.f32 0.0, %v5666
        %v5668 = vpop.f32.mrb[0].mxu0
        %v5669 = vpop.f32.mrb[0].mxu0
        %v5670 = vadd.f32 0.0, %v5669
        %v5671 = vpop.f32.mrb[0].mxu0
        %5672 = vmatprep.mubr.bf16.mxu0 %v5279
        %5673 = vmatmul.mubr.bf16.gmra.mrb[0].mxu0 %v5255
        %v5674 = vpop.f32.mrb[0].mxu0
        %v5675 = vadd.f32 0.0, %v5674
        %v5676 = vpop.f32.mrb[0].mxu0
        %v5677 = vpop.f32.mrb[0].mxu0
        %v5678 = vadd.f32 0.0, %v5677
        %v5679 = vpop.f32.mrb[0].mxu0
        %5680 = vdwg.mxu0
        %5681 = vmatprep.subr.bf16.mxu0 0
        %5682 = vmatpush1.bf16.msra.mxu0 %v5536
        %5683 = vmatprep.subr.bf16.mxu0 0
        %5684 = vmatpush1.bf16.msra.mxu0 %v5537
        %5685 = vmatprep.subr.bf16.mxu0 0
        %5686 = vmatpush1.bf16.msra.mxu0 %v5538
        %5687 = vmatprep.subr.bf16.mxu0 0
        %5688 = vmatpush1.bf16.msra.mxu0 %v5539
        %5689 = vmatprep.subr.bf16.mxu0 0
        %5690 = vmatpush1.bf16.msra.mxu0 %v5540
        %5691 = vmatprep.subr.bf16.mxu0 0
        %5692 = vmatpush1.bf16.msra.mxu0 %v5541
        %5693 = vmatprep.subr.bf16.mxu0 0
        %5694 = vmatpush1.bf16.msra.mxu0 %v5542
        %5695 = vmatprep.subr.bf16.mxu0 0
        %5696 = vmatpush1.bf16.msra.mxu0 %v5543
        %5697 = vmatprep.subr.bf16.mxu0 0
        %5698 = vmatpush1.bf16.msra.mxu0 %v5544
        %5699 = vmatprep.subr.bf16.mxu0 0
        %5700 = vmatpush1.bf16.msra.mxu0 %v5545
        %5701 = vmatprep.subr.bf16.mxu0 0
        %5702 = vmatpush1.bf16.msra.mxu0 %v5546
        %5703 = vmatprep.subr.bf16.mxu0 0
        %5704 = vmatpush1.bf16.msra.mxu0 %v5547
        %5705 = vmatprep.subr.bf16.mxu0 0
        %5706 = vmatpush1.bf16.msra.mxu0 %v5548
        %5707 = vmatprep.subr.bf16.mxu0 0
        %5708 = vmatpush1.bf16.msra.mxu0 %v5549
        %5709 = vmatprep.subr.bf16.mxu0 0
        %5710 = vmatpush1.bf16.msra.mxu0 %v5550
        %5711 = vmatprep.subr.bf16.mxu0 0
        %5712 = vmatpush1.bf16.msra.mxu0 %v5551
        %5713 = vmatprep.mubr.bf16.mxu0 %v5320
        %5714 = vmatmul.mubr.bf16.gmra.mrb[0].mxu0 %v5296
        %v5715 = vpop.f32.mrb[0].mxu0
        %v5716 = vadd.f32 %v5619, %v5715
        %v5717 = vpop.f32.mrb[0].mxu0
        %v5718 = vpop.f32.mrb[0].mxu0
        %v5719 = vadd.f32 %v5622, %v5718
        %v5720 = vpop.f32.mrb[0].mxu0
        %5721 = vmatprep.mubr.bf16.mxu0 %v5321
        %5722 = vmatmul.mubr.bf16.gmra.mrb[0].mxu0 %v5297
        %v5723 = vpop.f32.mrb[0].mxu0
        %v5724 = vadd.f32 %v5627, %v5723
        %v5725 = vpop.f32.mrb[0].mxu0
        %v5726 = vpop.f32.mrb[0].mxu0
        %v5727 = vadd.f32 %v5630, %v5726
        %v5728 = vpop.f32.mrb[0].mxu0
        %5729 = vmatprep.mubr.bf16.mxu0 %v5322
        %5730 = vmatmul.mubr.bf16.gmra.mrb[0].mxu0 %v5298
        %v5731 = vpop.f32.mrb[0].mxu0
        %v5732 = vadd.f32 %v5635, %v5731
        %v5733 = vpop.f32.mrb[0].mxu0
        %v5734 = vpop.f32.mrb[0].mxu0
        %v5735 = vadd.f32 %v5638, %v5734
        %v5736 = vpop.f32.mrb[0].mxu0
        %5737 = vmatprep.mubr.bf16.mxu0 %v5323
        %5738 = vmatmul.mubr.bf16.gmra.mrb[0].mxu0 %v5299
        %v5739 = vpop.f32.mrb[0].mxu0
        %v5740 = vadd.f32 %v5643, %v5739
        %v5741 = vpop.f32.mrb[0].mxu0
        %v5742 = vpop.f32.mrb[0].mxu0
        %v5743 = vadd.f32 %v5646, %v5742
        %v5744 = vpop.f32.mrb[0].mxu0
        %5745 = vmatprep.mubr.bf16.mxu0 %v5324
        %5746 = vmatmul.mubr.bf16.gmra.mrb[0].mxu0 %v5300
        %v5747 = vpop.f32.mrb[0].mxu0
        %v5748 = vadd.f32 %v5651, %v5747
        %v5749 = vpop.f32.mrb[0].mxu0
        %v5750 = vpop.f32.mrb[0].mxu0
        %v5751 = vadd.f32 %v5654, %v5750
        %v5752 = vpop.f32.mrb[0].mxu0
        %5753 = vmatprep.mubr.bf16.mxu0 %v5325
        %5754 = vmatmul.mubr.bf16.gmra.mrb[0].mxu0 %v5301
        %v5755 = vpop.f32.mrb[0].mxu0
        %v5756 = vadd.f32 %v5659, %v5755
        %v5757 = vpop.f32.mrb[0].mxu0
        %v5758 = vpop.f32.mrb[0].mxu0
        %v5759 = vadd.f32 %v5662, %v5758
        %v5760 = vpop.f32.mrb[0].mxu0
        %5761 = vmatprep.mubr.bf16.mxu0 %v5326
        %5762 = vmatmul.mubr.bf16.gmra.mrb[0].mxu0 %v5302
        %v5763 = vpop.f32.mrb[0].mxu0
        %v5764 = vadd.f32 %v5667, %v5763
        %v5765 = vpop.f32.mrb[0].mxu0
        %v5766 = vpop.f32.mrb[0].mxu0
        %v5767 = vadd.f32 %v5670, %v5766
        %v5768 = vpop.f32.mrb[0].mxu0
        %5769 = vmatprep.mubr.bf16.mxu0 %v5327
        %5770 = vmatmul.mubr.bf16.gmra.mrb[0].mxu0 %v5303
        %v5771 = vpop.f32.mrb[0].mxu0
        %v5772 = vadd.f32 %v5675, %v5771
        %v5773 = vpop.f32.mrb[0].mxu0
        %v5774 = vpop.f32.mrb[0].mxu0
        %v5775 = vadd.f32 %v5678, %v5774
        %v5776 = vpop.f32.mrb[0].mxu0
        %5777 = vdwg.mxu0
        %v5842 = vunpack.c.l.b16 %v5166
        %v5843 = vunpack.c.l.b16 %v5167
        %v5844 = vunpack.c.l.b16 %v5168
        %v5845 = vunpack.c.l.b16 %v5169
        %v5846 = vunpack.c.l.b16 %v5170
        %v5847 = vunpack.c.l.b16 %v5171
        %v5848 = vunpack.c.l.b16 %v5172
        %v5849 = vunpack.c.l.b16 %v5173
        %v5850 = vunpack.c.l.b16 %v5174
        %v5851 = vunpack.c.l.b16 %v5175
        %v5852 = vunpack.c.l.b16 %v5176
        %v5853 = vunpack.c.l.b16 %v5177
        %v5854 = vunpack.c.l.b16 %v5178
        %v5855 = vunpack.c.l.b16 %v5179
        %v5856 = vunpack.c.l.b16 %v5180
        %v5857 = vunpack.c.l.b16 %v5181
        %v5858 = vunpack.c.l.b16 %v5182
        %v5859 = vunpack.c.l.b16 %v5183
        %v5860 = vunpack.c.l.b16 %v5184
        %v5861 = vunpack.c.l.b16 %v5185
        %v5862 = vunpack.c.l.b16 %v5186
        %v5863 = vunpack.c.l.b16 %v5187
        %v5864 = vunpack.c.l.b16 %v5188
        %v5865 = vunpack.c.l.b16 %v5189
        %v5866 = vunpack.c.l.b16 %v5190
        %v5867 = vunpack.c.l.b16 %v5191
        %v5868 = vunpack.c.l.b16 %v5192
        %v5869 = vunpack.c.l.b16 %v5193
        %v5870 = vunpack.c.l.b16 %v5194
        %v5871 = vunpack.c.l.b16 %v5195
        %v5872 = vunpack.c.l.b16 %v5196
        %v5873 = vunpack.c.l.b16 %v5197
        %v5874 = vunpack.c.l.b16 %v5198
        %v5875 = vunpack.c.l.b16 %v5199
        %v5876 = vunpack.c.l.b16 %v5200
        %v5877 = vunpack.c.l.b16 %v5201
        %v5878 = vunpack.c.l.b16 %v5202
        %v5879 = vunpack.c.l.b16 %v5203
        %v5880 = vunpack.c.l.b16 %v5204
        %v5881 = vunpack.c.l.b16 %v5205
        %v5882 = vunpack.c.l.b16 %v5206
        %v5883 = vunpack.c.l.b16 %v5207
        %v5884 = vunpack.c.l.b16 %v5208
        %v5885 = vunpack.c.l.b16 %v5209
        %v5886 = vunpack.c.l.b16 %v5210
        %v5887 = vunpack.c.l.b16 %v5211
        %v5888 = vunpack.c.l.b16 %v5212
        %v5889 = vunpack.c.l.b16 %v5213
        %v5890 = vunpack.c.l.b16 %v5214
        %v5891 = vunpack.c.l.b16 %v5215
        %v5892 = vunpack.c.l.b16 %v5216
        %v5893 = vunpack.c.l.b16 %v5217
        %v5894 = vunpack.c.l.b16 %v5218
        %v5895 = vunpack.c.l.b16 %v5219
        %v5896 = vunpack.c.l.b16 %v5220
        %v5897 = vunpack.c.l.b16 %v5221
        %v5898 = vunpack.c.l.b16 %v5222
        %v5899 = vunpack.c.l.b16 %v5223
        %v5900 = vunpack.c.l.b16 %v5224
        %v5901 = vunpack.c.l.b16 %v5225
        %v5902 = vunpack.c.l.b16 %v5226
        %v5903 = vunpack.c.l.b16 %v5227
        %v5904 = vunpack.c.l.b16 %v5228
        %v5905 = vunpack.c.l.b16 %v5229
        %v5906 = vpack.c.b16 %v5843, %v5842
        %v5907 = vpack.c.b16 %v5845, %v5844
        %v5908 = vpack.c.b16 %v5847, %v5846
        %v5909 = vpack.c.b16 %v5849, %v5848
        %v5910 = vpack.c.b16 %v5851, %v5850
        %v5911 = vpack.c.b16 %v5853, %v5852
        %v5912 = vpack.c.b16 %v5855, %v5854
        %v5913 = vpack.c.b16 %v5857, %v5856
        %v5914 = vpack.c.b16 %v5859, %v5858
        %v5915 = vpack.c.b16 %v5861, %v5860
        %v5916 = vpack.c.b16 %v5863, %v5862
        %v5917 = vpack.c.b16 %v5865, %v5864
        %v5918 = vpack.c.b16 %v5867, %v5866
        %v5919 = vpack.c.b16 %v5869, %v5868
        %v5920 = vpack.c.b16 %v5871, %v5870
        %v5921 = vpack.c.b16 %v5873, %v5872
        %v5922 = vpack.c.b16 %v5875, %v5874
        %v5923 = vpack.c.b16 %v5877, %v5876
        %v5924 = vpack.c.b16 %v5879, %v5878
        %v5925 = vpack.c.b16 %v5881, %v5880
        %v5926 = vpack.c.b16 %v5883, %v5882
        %v5927 = vpack.c.b16 %v5885, %v5884
        %v5928 = vpack.c.b16 %v5887, %v5886
        %v5929 = vpack.c.b16 %v5889, %v5888
        %v5930 = vpack.c.b16 %v5891, %v5890
        %v5931 = vpack.c.b16 %v5893, %v5892
        %v5932 = vpack.c.b16 %v5895, %v5894
        %v5933 = vpack.c.b16 %v5897, %v5896
        %v5934 = vpack.c.b16 %v5899, %v5898
        %v5935 = vpack.c.b16 %v5901, %v5900
        %v5936 = vpack.c.b16 %v5903, %v5902
        %v5937 = vpack.c.b16 %v5905, %v5904
        %5970 = vmatprep.subr.bf16.mxu0 0
        %5971 = vmatpush1.bf16.msra.mxu0 %v5906
        %5972 = vmatprep.subr.bf16.mxu0 0
        %5973 = vmatpush1.bf16.msra.mxu0 %v5907
        %5974 = vmatprep.subr.bf16.mxu0 0
        %5975 = vmatpush1.bf16.msra.mxu0 %v5908
        %5976 = vmatprep.subr.bf16.mxu0 0
        %5977 = vmatpush1.bf16.msra.mxu0 %v5909
        %5978 = vmatprep.subr.bf16.mxu0 0
        %5979 = vmatpush1.bf16.msra.mxu0 %v5910
        %5980 = vmatprep.subr.bf16.mxu0 0
        %5981 = vmatpush1.bf16.msra.mxu0 %v5911
        %5982 = vmatprep.subr.bf16.mxu0 0
        %5983 = vmatpush1.bf16.msra.mxu0 %v5912
        %5984 = vmatprep.subr.bf16.mxu0 0
        %5985 = vmatpush1.bf16.msra.mxu0 %v5913
        %5986 = vmatprep.subr.bf16.mxu0 0
        %5987 = vmatpush1.bf16.msra.mxu0 %v5914
        %5988 = vmatprep.subr.bf16.mxu0 0
        %5989 = vmatpush1.bf16.msra.mxu0 %v5915
        %5990 = vmatprep.subr.bf16.mxu0 0
        %5991 = vmatpush1.bf16.msra.mxu0 %v5916
        %5992 = vmatprep.subr.bf16.mxu0 0
        %5993 = vmatpush1.bf16.msra.mxu0 %v5917
        %5994 = vmatprep.subr.bf16.mxu0 0
        %5995 = vmatpush1.bf16.msra.mxu0 %v5918
        %5996 = vmatprep.subr.bf16.mxu0 0
        %5997 = vmatpush1.bf16.msra.mxu0 %v5919
        %5998 = vmatprep.subr.bf16.mxu0 0
        %5999 = vmatpush1.bf16.msra.mxu0 %v5920
        %6000 = vmatprep.subr.bf16.mxu0 0
        %6001 = vmatpush1.bf16.msra.mxu0 %v5921
        %6002 = vmatprep.mubr.bf16.mxu0 %v5110
        %6003 = vmatmul.mubr.bf16.gmra.mrb[0].mxu0 %v5086
        %v6004 = vpop.f32.mrb[0].mxu0
        %v6005 = vadd.f32 %v5716, %v6004
        %v6006 = vpop.f32.mrb[0].mxu0
        %v6007 = vpop.f32.mrb[0].mxu0
        %v6008 = vadd.f32 %v5719, %v6007
        %v6009 = vpop.f32.mrb[0].mxu0
        %6010 = vmatprep.mubr.bf16.mxu0 %v5111
        %6011 = vmatmul.mubr.bf16.gmra.mrb[0].mxu0 %v5087
        %v6012 = vpop.f32.mrb[0].mxu0
        %v6013 = vadd.f32 %v5724, %v6012
        %v6014 = vpop.f32.mrb[0].mxu0
        %v6015 = vpop.f32.mrb[0].mxu0
        %v6016 = vadd.f32 %v5727, %v6015
        %v6017 = vpop.f32.mrb[0].mxu0
        %6018 = vmatprep.mubr.bf16.mxu0 %v5112
        %6019 = vmatmul.mubr.bf16.gmra.mrb[0].mxu0 %v5088
        %v6020 = vpop.f32.mrb[0].mxu0
        %v6021 = vadd.f32 %v5732, %v6020
        %v6022 = vpop.f32.mrb[0].mxu0
        %v6023 = vpop.f32.mrb[0].mxu0
        %v6024 = vadd.f32 %v5735, %v6023
        %v6025 = vpop.f32.mrb[0].mxu0
        %6026 = vmatprep.mubr.bf16.mxu0 %v5113
        %6027 = vmatmul.mubr.bf16.gmra.mrb[0].mxu0 %v5089
        %v6028 = vpop.f32.mrb[0].mxu0
        %v6029 = vadd.f32 %v5740, %v6028
        %v6030 = vpop.f32.mrb[0].mxu0
        %v6031 = vpop.f32.mrb[0].mxu0
        %v6032 = vadd.f32 %v5743, %v6031
        %v6033 = vpop.f32.mrb[0].mxu0
        %6034 = vmatprep.mubr.bf16.mxu0 %v5114
        %6035 = vmatmul.mubr.bf16.gmra.mrb[0].mxu0 %v5090
        %v6036 = vpop.f32.mrb[0].mxu0
        %v6037 = vadd.f32 %v5748, %v6036
        %v6038 = vpop.f32.mrb[0].mxu0
        %v6039 = vpop.f32.mrb[0].mxu0
        %v6040 = vadd.f32 %v5751, %v6039
        %v6041 = vpop.f32.mrb[0].mxu0
        %6042 = vmatprep.mubr.bf16.mxu0 %v5115
        %6043 = vmatmul.mubr.bf16.gmra.mrb[0].mxu0 %v5091
        %v6044 = vpop.f32.mrb[0].mxu0
        %v6045 = vadd.f32 %v5756, %v6044
        %v6046 = vpop.f32.mrb[0].mxu0
        %v6047 = vpop.f32.mrb[0].mxu0
        %v6048 = vadd.f32 %v5759, %v6047
        %v6049 = vpop.f32.mrb[0].mxu0
        %6050 = vmatprep.mubr.bf16.mxu0 %v5116
        %6051 = vmatmul.mubr.bf16.gmra.mrb[0].mxu0 %v5092
        %v6052 = vpop.f32.mrb[0].mxu0
        %v6053 = vadd.f32 %v5764, %v6052
        %v6054 = vpop.f32.mrb[0].mxu0
        %v6055 = vpop.f32.mrb[0].mxu0
        %v6056 = vadd.f32 %v5767, %v6055
        %v6057 = vpop.f32.mrb[0].mxu0
        %6058 = vmatprep.mubr.bf16.mxu0 %v5117
        %6059 = vmatmul.mubr.bf16.gmra.mrb[0].mxu0 %v5093
        %v6060 = vpop.f32.mrb[0].mxu0
        %v6061 = vadd.f32 %v5772, %v6060
        %v6062 = vpop.f32.mrb[0].mxu0
        %v6063 = vpop.f32.mrb[0].mxu0
        %v6064 = vadd.f32 %v5775, %v6063
        %v6065 = vpop.f32.mrb[0].mxu0
        %6066 = vdwg.mxu0
        %6067 = vmatprep.subr.bf16.mxu0 0
        %6068 = vmatpush1.bf16.msra.mxu0 %v5922
        %6069 = vmatprep.subr.bf16.mxu0 0
        %6070 = vmatpush1.bf16.msra.mxu0 %v5923
        %6071 = vmatprep.subr.bf16.mxu0 0
        %6072 = vmatpush1.bf16.msra.mxu0 %v5924
        %6073 = vmatprep.subr.bf16.mxu0 0
        %6074 = vmatpush1.bf16.msra.mxu0 %v5925
        %6075 = vmatprep.subr.bf16.mxu0 0
        %6076 = vmatpush1.bf16.msra.mxu0 %v5926
        %6077 = vmatprep.subr.bf16.mxu0 0
        %6078 = vmatpush1.bf16.msra.mxu0 %v5927
        %6079 = vmatprep.subr.bf16.mxu0 0
        %6080 = vmatpush1.bf16.msra.mxu0 %v5928
        %6081 = vmatprep.subr.bf16.mxu0 0
        %6082 = vmatpush1.bf16.msra.mxu0 %v5929
        %6083 = vmatprep.subr.bf16.mxu0 0
        %6084 = vmatpush1.bf16.msra.mxu0 %v5930
        %6085 = vmatprep.subr.bf16.mxu0 0
        %6086 = vmatpush1.bf16.msra.mxu0 %v5931
        %6087 = vmatprep.subr.bf16.mxu0 0
        %6088 = vmatpush1.bf16.msra.mxu0 %v5932
        %6089 = vmatprep.subr.bf16.mxu0 0
        %6090 = vmatpush1.bf16.msra.mxu0 %v5933
        %6091 = vmatprep.subr.bf16.mxu0 0
        %6092 = vmatpush1.bf16.msra.mxu0 %v5934
        %6093 = vmatprep.subr.bf16.mxu0 0
        %6094 = vmatpush1.bf16.msra.mxu0 %v5935
        %6095 = vmatprep.subr.bf16.mxu0 0
        %6096 = vmatpush1.bf16.msra.mxu0 %v5936
        %6097 = vmatprep.subr.bf16.mxu0 0
        %6098 = vmatpush1.bf16.msra.mxu0 %v5937
        %6099 = vmatprep.mubr.bf16.mxu0 %v5158
        %6100 = vmatmul.mubr.bf16.gmra.mrb[0].mxu0 %v5134
        %v6101 = vpop.f32.mrb[0].mxu0
        %v6102 = vadd.f32 %v6005, %v6101
        %v6103 = vpop.f32.mrb[0].mxu0
        %v6104 = vpop.f32.mrb[0].mxu0
        %v6105 = vadd.f32 %v6008, %v6104
        %v6106 = vpop.f32.mrb[0].mxu0
        %6107 = vmatprep.mubr.bf16.mxu0 %v5159
        %6108 = vmatmul.mubr.bf16.gmra.mrb[0].mxu0 %v5135
        %v6109 = vpop.f32.mrb[0].mxu0
        %v6110 = vadd.f32 %v6013, %v6109
        %v6111 = vpop.f32.mrb[0].mxu0
        %v6112 = vpop.f32.mrb[0].mxu0
        %v6113 = vadd.f32 %v6016, %v6112
        %v6114 = vpop.f32.mrb[0].mxu0
        %6115 = vmatprep.mubr.bf16.mxu0 %v5160
        %6116 = vmatmul.mubr.bf16.gmra.mrb[0].mxu0 %v5136
        %v6117 = vpop.f32.mrb[0].mxu0
        %v6118 = vadd.f32 %v6021, %v6117
        %v6119 = vpop.f32.mrb[0].mxu0
        %v6120 = vpop.f32.mrb[0].mxu0
        %v6121 = vadd.f32 %v6024, %v6120
        %v6122 = vpop.f32.mrb[0].mxu0
        %6123 = vmatprep.mubr.bf16.mxu0 %v5161
        %6124 = vmatmul.mubr.bf16.gmra.mrb[0].mxu0 %v5137
        %v6125 = vpop.f32.mrb[0].mxu0
        %v6126 = vadd.f32 %v6029, %v6125
        %v6127 = vpop.f32.mrb[0].mxu0
        %v6128 = vpop.f32.mrb[0].mxu0
        %v6129 = vadd.f32 %v6032, %v6128
        %v6130 = vpop.f32.mrb[0].mxu0
        %6131 = vmatprep.mubr.bf16.mxu0 %v5162
        %6132 = vmatmul.mubr.bf16.gmra.mrb[0].mxu0 %v5138
        %v6133 = vpop.f32.mrb[0].mxu0
        %v6134 = vadd.f32 %v6037, %v6133
        %v6135 = vpop.f32.mrb[0].mxu0
        %v6136 = vpop.f32.mrb[0].mxu0
        %v6137 = vadd.f32 %v6040, %v6136
        %v6138 = vpop.f32.mrb[0].mxu0
        %6139 = vmatprep.mubr.bf16.mxu0 %v5163
        %6140 = vmatmul.mubr.bf16.gmra.mrb[0].mxu0 %v5139
        %v6141 = vpop.f32.mrb[0].mxu0
        %v6142 = vadd.f32 %v6045, %v6141
        %v6143 = vpop.f32.mrb[0].mxu0
        %v6144 = vpop.f32.mrb[0].mxu0
        %v6145 = vadd.f32 %v6048, %v6144
        %v6146 = vpop.f32.mrb[0].mxu0
        %6147 = vmatprep.mubr.bf16.mxu0 %v5164
        %6148 = vmatmul.mubr.bf16.gmra.mrb[0].mxu0 %v5140
        %v6149 = vpop.f32.mrb[0].mxu0
        %v6150 = vadd.f32 %v6053, %v6149
        %v6151 = vpop.f32.mrb[0].mxu0
        %v6152 = vpop.f32.mrb[0].mxu0
        %v6153 = vadd.f32 %v6056, %v6152
        %v6154 = vpop.f32.mrb[0].mxu0
        %6155 = vmatprep.mubr.bf16.mxu0 %v5165
        %6156 = vmatmul.mubr.bf16.gmra.mrb[0].mxu0 %v5141
        %v6157 = vpop.f32.mrb[0].mxu0
        %v6158 = vadd.f32 %v6061, %v6157
        %v6159 = vpop.f32.mrb[0].mxu0
        %v6160 = vpop.f32.mrb[0].mxu0
        %v6161 = vadd.f32 %v6064, %v6160
        %v6162 = vpop.f32.mrb[0].mxu0
        %6163 = vdwg.mxu0
        %s6164 = sadd.s32 240, %s2757
        %s6165 = scalar_lea.vmem [#allocation2], %s6164
        %v6166 = vld [vmem:[%s6165] sm:$0xff]
        %v6167 = vld [vmem:[%s6165 + $0x8] sm:$0xff]
        %v6168 = vld [vmem:[%s6165 + $0x18] sm:$0xff]
        %v6169 = vld [vmem:[%s6165 + $0x20] sm:$0xff]
        %v6170 = vld [vmem:[%s6165 + $0x30] sm:$0xff]
        %v6171 = vld [vmem:[%s6165 + $0x38] sm:$0xff]
        %v6172 = vld [vmem:[%s6165 + $0x48] sm:$0xff]
        %v6173 = vld [vmem:[%s6165 + $0x50] sm:$0xff]
        %v6174 = vld [vmem:[%s6165 + $0x60] sm:$0xff]
        %v6175 = vld [vmem:[%s6165 + $0x68] sm:$0xff]
        %v6176 = vld [vmem:[%s6165 + $0x78] sm:$0xff]
        %v6177 = vld [vmem:[%s6165 + $0x80] sm:$0xff]
        %v6178 = vld [vmem:[%s6165 + $0x90] sm:$0xff]
        %v6179 = vld [vmem:[%s6165 + $0x98] sm:$0xff]
        %v6180 = vld [vmem:[%s6165 + $0xa8] sm:$0xff]
        %v6181 = vld [vmem:[%s6165 + $0xb0] sm:$0xff]
        %v6182 = vpack.c.bf16 %v6167, %v6166
        %v6183 = vpack.c.bf16 %v6169, %v6168
        %v6184 = vpack.c.bf16 %v6171, %v6170
        %v6185 = vpack.c.bf16 %v6173, %v6172
        %v6186 = vpack.c.bf16 %v6175, %v6174
        %v6187 = vpack.c.bf16 %v6177, %v6176
        %v6188 = vpack.c.bf16 %v6179, %v6178
        %v6189 = vpack.c.bf16 %v6181, %v6180
        %v6190 = vld [vmem:[%s6165 + $0x1] sm:$0xff]
        %v6191 = vld [vmem:[%s6165 + $0x9] sm:$0xff]
        %v6192 = vld [vmem:[%s6165 + $0x19] sm:$0xff]
        %v6193 = vld [vmem:[%s6165 + $0x21] sm:$0xff]
        %v6194 = vld [vmem:[%s6165 + $0x31] sm:$0xff]
        %v6195 = vld [vmem:[%s6165 + $0x39] sm:$0xff]
        %v6196 = vld [vmem:[%s6165 + $0x49] sm:$0xff]
        %v6197 = vld [vmem:[%s6165 + $0x51] sm:$0xff]
        %v6198 = vld [vmem:[%s6165 + $0x61] sm:$0xff]
        %v6199 = vld [vmem:[%s6165 + $0x69] sm:$0xff]
        %v6200 = vld [vmem:[%s6165 + $0x79] sm:$0xff]
        %v6201 = vld [vmem:[%s6165 + $0x81] sm:$0xff]
        %v6202 = vld [vmem:[%s6165 + $0x91] sm:$0xff]
        %v6203 = vld [vmem:[%s6165 + $0x99] sm:$0xff]
        %v6204 = vld [vmem:[%s6165 + $0xa9] sm:$0xff]
        %v6205 = vld [vmem:[%s6165 + $0xb1] sm:$0xff]
        %v6206 = vpack.c.bf16 %v6191, %v6190
        %v6207 = vpack.c.bf16 %v6193, %v6192
        %v6208 = vpack.c.bf16 %v6195, %v6194
        %v6209 = vpack.c.bf16 %v6197, %v6196
        %v6210 = vpack.c.bf16 %v6199, %v6198
        %v6211 = vpack.c.bf16 %v6201, %v6200
        %v6212 = vpack.c.bf16 %v6203, %v6202
        %v6213 = vpack.c.bf16 %v6205, %v6204
        %v6214 = vld [vmem:[%s6165 + $0x2] sm:$0xff]
        %v6215 = vld [vmem:[%s6165 + $0xa] sm:$0xff]
        %v6216 = vld [vmem:[%s6165 + $0x1a] sm:$0xff]
        %v6217 = vld [vmem:[%s6165 + $0x22] sm:$0xff]
        %v6218 = vld [vmem:[%s6165 + $0x32] sm:$0xff]
        %v6219 = vld [vmem:[%s6165 + $0x3a] sm:$0xff]
        %v6220 = vld [vmem:[%s6165 + $0x4a] sm:$0xff]
        %v6221 = vld [vmem:[%s6165 + $0x52] sm:$0xff]
        %v6222 = vld [vmem:[%s6165 + $0x62] sm:$0xff]
        %v6223 = vld [vmem:[%s6165 + $0x6a] sm:$0xff]
        %v6224 = vld [vmem:[%s6165 + $0x7a] sm:$0xff]
        %v6225 = vld [vmem:[%s6165 + $0x82] sm:$0xff]
        %v6226 = vld [vmem:[%s6165 + $0x92] sm:$0xff]
        %v6227 = vld [vmem:[%s6165 + $0x9a] sm:$0xff]
        %v6228 = vld [vmem:[%s6165 + $0xaa] sm:$0xff]
        %v6229 = vld [vmem:[%s6165 + $0xb2] sm:$0xff]
        %v6230 = vpack.c.bf16 %v6215, %v6214
        %v6231 = vpack.c.bf16 %v6217, %v6216
        %v6232 = vpack.c.bf16 %v6219, %v6218
        %v6233 = vpack.c.bf16 %v6221, %v6220
        %v6234 = vpack.c.bf16 %v6223, %v6222
        %v6235 = vpack.c.bf16 %v6225, %v6224
        %v6236 = vpack.c.bf16 %v6227, %v6226
        %v6237 = vpack.c.bf16 %v6229, %v6228
        %v6238 = vld [vmem:[%s6165 + $0x3] sm:$0xff]
        %v6239 = vld [vmem:[%s6165 + $0xb] sm:$0xff]
        %v6240 = vld [vmem:[%s6165 + $0x1b] sm:$0xff]
        %v6241 = vld [vmem:[%s6165 + $0x23] sm:$0xff]
        %v6242 = vld [vmem:[%s6165 + $0x33] sm:$0xff]
        %v6243 = vld [vmem:[%s6165 + $0x3b] sm:$0xff]
        %v6244 = vld [vmem:[%s6165 + $0x4b] sm:$0xff]
        %v6245 = vld [vmem:[%s6165 + $0x53] sm:$0xff]
        %v6246 = vld [vmem:[%s6165 + $0x63] sm:$0xff]
        %v6247 = vld [vmem:[%s6165 + $0x6b] sm:$0xff]
        %v6248 = vld [vmem:[%s6165 + $0x7b] sm:$0xff]
        %v6249 = vld [vmem:[%s6165 + $0x83] sm:$0xff]
        %v6250 = vld [vmem:[%s6165 + $0x93] sm:$0xff]
        %v6251 = vld [vmem:[%s6165 + $0x9b] sm:$0xff]
        %v6252 = vld [vmem:[%s6165 + $0xab] sm:$0xff]
        %v6253 = vld [vmem:[%s6165 + $0xb3] sm:$0xff]
        %v6254 = vpack.c.bf16 %v6239, %v6238
        %v6255 = vpack.c.bf16 %v6241, %v6240
        %v6256 = vpack.c.bf16 %v6243, %v6242
        %v6257 = vpack.c.bf16 %v6245, %v6244
        %v6258 = vpack.c.bf16 %v6247, %v6246
        %v6259 = vpack.c.bf16 %v6249, %v6248
        %v6260 = vpack.c.bf16 %v6251, %v6250
        %v6261 = vpack.c.bf16 %v6253, %v6252
        %v6262 = vld [vmem:[%s3980] sm:$0xf]
        %v6263 = vld [vmem:[%s3980 + $0x4] sm:$0xf]
        %v6264 = vld [vmem:[%s3980 + $0x8] sm:$0xf]
        %v6265 = vld [vmem:[%s3980 + $0xc] sm:$0xf]
        %v6266 = vld [vmem:[%s3980 + $0x10] sm:$0xf]
        %v6267 = vld [vmem:[%s3980 + $0x14] sm:$0xf]
        %v6268 = vld [vmem:[%s3980 + $0x18] sm:$0xf]
        %v6269 = vld [vmem:[%s3980 + $0x1c] sm:$0xf]
        %v6270 = vld [vmem:[%s3980 + $0x20] sm:$0xf]
        %v6271 = vld [vmem:[%s3980 + $0x24] sm:$0xf]
        %v6272 = vld [vmem:[%s3980 + $0x28] sm:$0xf]
        %v6273 = vld [vmem:[%s3980 + $0x2c] sm:$0xf]
        %v6274 = vld [vmem:[%s3980 + $0x30] sm:$0xf]
        %v6275 = vld [vmem:[%s3980 + $0x34] sm:$0xf]
        %v6276 = vld [vmem:[%s3980 + $0x38] sm:$0xf]
        %v6277 = vld [vmem:[%s3980 + $0x3c] sm:$0xf]
        %v6278 = vld [vmem:[%s3980 + $0x40] sm:$0xf]
        %v6279 = vld [vmem:[%s3980 + $0x44] sm:$0xf]
        %v6280 = vld [vmem:[%s3980 + $0x48] sm:$0xf]
        %v6281 = vld [vmem:[%s3980 + $0x4c] sm:$0xf]
        %v6282 = vld [vmem:[%s3980 + $0x50] sm:$0xf]
        %v6283 = vld [vmem:[%s3980 + $0x54] sm:$0xf]
        %v6284 = vld [vmem:[%s3980 + $0x58] sm:$0xf]
        %v6285 = vld [vmem:[%s3980 + $0x5c] sm:$0xf]
        %v6286 = vld [vmem:[%s3980 + $0x60] sm:$0xf]
        %v6287 = vld [vmem:[%s3980 + $0x64] sm:$0xf]
        %v6288 = vld [vmem:[%s3980 + $0x68] sm:$0xf]
        %v6289 = vld [vmem:[%s3980 + $0x6c] sm:$0xf]
        %v6290 = vld [vmem:[%s3980 + $0x70] sm:$0xf]
        %v6291 = vld [vmem:[%s3980 + $0x74] sm:$0xf]
        %v6292 = vld [vmem:[%s3980 + $0x78] sm:$0xf]
        %v6293 = vld [vmem:[%s3980 + $0x7c] sm:$0xf]
        %v6294 = vld [vmem:[%s3980 + $0x80] sm:$0xf]
        %v6295 = vld [vmem:[%s3980 + $0x84] sm:$0xf]
        %v6296 = vld [vmem:[%s3980 + $0x88] sm:$0xf]
        %v6297 = vld [vmem:[%s3980 + $0x8c] sm:$0xf]
        %v6298 = vld [vmem:[%s3980 + $0x90] sm:$0xf]
        %v6299 = vld [vmem:[%s3980 + $0x94] sm:$0xf]
        %v6300 = vld [vmem:[%s3980 + $0x98] sm:$0xf]
        %v6301 = vld [vmem:[%s3980 + $0x9c] sm:$0xf]
        %v6302 = vld [vmem:[%s3980 + $0xa0] sm:$0xf]
        %v6303 = vld [vmem:[%s3980 + $0xa4] sm:$0xf]
        %v6304 = vld [vmem:[%s3980 + $0xa8] sm:$0xf]
        %v6305 = vld [vmem:[%s3980 + $0xac] sm:$0xf]
        %v6306 = vld [vmem:[%s3980 + $0xb0] sm:$0xf]
        %v6307 = vld [vmem:[%s3980 + $0xb4] sm:$0xf]
        %v6308 = vld [vmem:[%s3980 + $0xb8] sm:$0xf]
        %v6309 = vld [vmem:[%s3980 + $0xbc] sm:$0xf]
        %v6310 = vld [vmem:[%s3980 + $0xc0] sm:$0xf]
        %v6311 = vld [vmem:[%s3980 + $0xc4] sm:$0xf]
        %v6312 = vld [vmem:[%s3980 + $0xc8] sm:$0xf]
        %v6313 = vld [vmem:[%s3980 + $0xcc] sm:$0xf]
        %v6314 = vld [vmem:[%s3980 + $0xd0] sm:$0xf]
        %v6315 = vld [vmem:[%s3980 + $0xd4] sm:$0xf]
        %v6316 = vld [vmem:[%s3980 + $0xd8] sm:$0xf]
        %v6317 = vld [vmem:[%s3980 + $0xdc] sm:$0xf]
        %v6318 = vld [vmem:[%s3980 + $0xe0] sm:$0xf]
        %v6319 = vld [vmem:[%s3980 + $0xe4] sm:$0xf]
        %v6320 = vld [vmem:[%s3980 + $0xe8] sm:$0xf]
        %v6321 = vld [vmem:[%s3980 + $0xec] sm:$0xf]
        %v6322 = vld [vmem:[%s3980 + $0xf0] sm:$0xf]
        %v6323 = vld [vmem:[%s3980 + $0xf4] sm:$0xf]
        %v6324 = vld [vmem:[%s3980 + $0xf8] sm:$0xf]
        %v6325 = vld [vmem:[%s3980 + $0xfc] sm:$0xf]
        %v6390 = vunpack.c.l.b16 %v6262
        %v6391 = vunpack.c.l.b16 %v6263
        %v6392 = vunpack.c.l.b16 %v6264
        %v6393 = vunpack.c.l.b16 %v6265
        %v6394 = vunpack.c.l.b16 %v6266
        %v6395 = vunpack.c.l.b16 %v6267
        %v6396 = vunpack.c.l.b16 %v6268
        %v6397 = vunpack.c.l.b16 %v6269
        %v6398 = vunpack.c.l.b16 %v6270
        %v6399 = vunpack.c.l.b16 %v6271
        %v6400 = vunpack.c.l.b16 %v6272
        %v6401 = vunpack.c.l.b16 %v6273
        %v6402 = vunpack.c.l.b16 %v6274
        %v6403 = vunpack.c.l.b16 %v6275
        %v6404 = vunpack.c.l.b16 %v6276
        %v6405 = vunpack.c.l.b16 %v6277
        %v6406 = vunpack.c.l.b16 %v6278
        %v6407 = vunpack.c.l.b16 %v6279
        %v6408 = vunpack.c.l.b16 %v6280
        %v6409 = vunpack.c.l.b16 %v6281
        %v6410 = vunpack.c.l.b16 %v6282
        %v6411 = vunpack.c.l.b16 %v6283
        %v6412 = vunpack.c.l.b16 %v6284
        %v6413 = vunpack.c.l.b16 %v6285
        %v6414 = vunpack.c.l.b16 %v6286
        %v6415 = vunpack.c.l.b16 %v6287
        %v6416 = vunpack.c.l.b16 %v6288
        %v6417 = vunpack.c.l.b16 %v6289
        %v6418 = vunpack.c.l.b16 %v6290
        %v6419 = vunpack.c.l.b16 %v6291
        %v6420 = vunpack.c.l.b16 %v6292
        %v6421 = vunpack.c.l.b16 %v6293
        %v6422 = vunpack.c.l.b16 %v6294
        %v6423 = vunpack.c.l.b16 %v6295
        %v6424 = vunpack.c.l.b16 %v6296
        %v6425 = vunpack.c.l.b16 %v6297
        %v6426 = vunpack.c.l.b16 %v6298
        %v6427 = vunpack.c.l.b16 %v6299
        %v6428 = vunpack.c.l.b16 %v6300
        %v6429 = vunpack.c.l.b16 %v6301
        %v6430 = vunpack.c.l.b16 %v6302
        %v6431 = vunpack.c.l.b16 %v6303
        %v6432 = vunpack.c.l.b16 %v6304
        %v6433 = vunpack.c.l.b16 %v6305
        %v6434 = vunpack.c.l.b16 %v6306
        %v6435 = vunpack.c.l.b16 %v6307
        %v6436 = vunpack.c.l.b16 %v6308
        %v6437 = vunpack.c.l.b16 %v6309
        %v6438 = vunpack.c.l.b16 %v6310
        %v6439 = vunpack.c.l.b16 %v6311
        %v6440 = vunpack.c.l.b16 %v6312
        %v6441 = vunpack.c.l.b16 %v6313
        %v6442 = vunpack.c.l.b16 %v6314
        %v6443 = vunpack.c.l.b16 %v6315
        %v6444 = vunpack.c.l.b16 %v6316
        %v6445 = vunpack.c.l.b16 %v6317
        %v6446 = vunpack.c.l.b16 %v6318
        %v6447 = vunpack.c.l.b16 %v6319
        %v6448 = vunpack.c.l.b16 %v6320
        %v6449 = vunpack.c.l.b16 %v6321
        %v6450 = vunpack.c.l.b16 %v6322
        %v6451 = vunpack.c.l.b16 %v6323
        %v6452 = vunpack.c.l.b16 %v6324
        %v6453 = vunpack.c.l.b16 %v6325
        %v6454 = vpack.c.b16 %v6391, %v6390
        %v6455 = vpack.c.b16 %v6393, %v6392
        %v6456 = vpack.c.b16 %v6395, %v6394
        %v6457 = vpack.c.b16 %v6397, %v6396
        %v6458 = vpack.c.b16 %v6399, %v6398
        %v6459 = vpack.c.b16 %v6401, %v6400
        %v6460 = vpack.c.b16 %v6403, %v6402
        %v6461 = vpack.c.b16 %v6405, %v6404
        %v6462 = vpack.c.b16 %v6407, %v6406
        %v6463 = vpack.c.b16 %v6409, %v6408
        %v6464 = vpack.c.b16 %v6411, %v6410
        %v6465 = vpack.c.b16 %v6413, %v6412
        %v6466 = vpack.c.b16 %v6415, %v6414
        %v6467 = vpack.c.b16 %v6417, %v6416
        %v6468 = vpack.c.b16 %v6419, %v6418
        %v6469 = vpack.c.b16 %v6421, %v6420
        %v6470 = vpack.c.b16 %v6423, %v6422
        %v6471 = vpack.c.b16 %v6425, %v6424
        %v6472 = vpack.c.b16 %v6427, %v6426
        %v6473 = vpack.c.b16 %v6429, %v6428
        %v6474 = vpack.c.b16 %v6431, %v6430
        %v6475 = vpack.c.b16 %v6433, %v6432
        %v6476 = vpack.c.b16 %v6435, %v6434
        %v6477 = vpack.c.b16 %v6437, %v6436
        %v6478 = vpack.c.b16 %v6439, %v6438
        %v6479 = vpack.c.b16 %v6441, %v6440
        %v6480 = vpack.c.b16 %v6443, %v6442
        %v6481 = vpack.c.b16 %v6445, %v6444
        %v6482 = vpack.c.b16 %v6447, %v6446
        %v6483 = vpack.c.b16 %v6449, %v6448
        %v6484 = vpack.c.b16 %v6451, %v6450
        %v6485 = vpack.c.b16 %v6453, %v6452
        %6518 = vmatprep.subr.bf16.mxu0 0
        %6519 = vmatpush1.bf16.msra.mxu0 %v6454
        %6520 = vmatprep.subr.bf16.mxu0 0
        %6521 = vmatpush1.bf16.msra.mxu0 %v6455
        %6522 = vmatprep.subr.bf16.mxu0 0
        %6523 = vmatpush1.bf16.msra.mxu0 %v6456
        %6524 = vmatprep.subr.bf16.mxu0 0
        %6525 = vmatpush1.bf16.msra.mxu0 %v6457
        %6526 = vmatprep.subr.bf16.mxu0 0
        %6527 = vmatpush1.bf16.msra.mxu0 %v6458
        %6528 = vmatprep.subr.bf16.mxu0 0
        %6529 = vmatpush1.bf16.msra.mxu0 %v6459
        %6530 = vmatprep.subr.bf16.mxu0 0
        %6531 = vmatpush1.bf16.msra.mxu0 %v6460
        %6532 = vmatprep.subr.bf16.mxu0 0
        %6533 = vmatpush1.bf16.msra.mxu0 %v6461
        %6534 = vmatprep.subr.bf16.mxu0 0
        %6535 = vmatpush1.bf16.msra.mxu0 %v6462
        %6536 = vmatprep.subr.bf16.mxu0 0
        %6537 = vmatpush1.bf16.msra.mxu0 %v6463
        %6538 = vmatprep.subr.bf16.mxu0 0
        %6539 = vmatpush1.bf16.msra.mxu0 %v6464
        %6540 = vmatprep.subr.bf16.mxu0 0
        %6541 = vmatpush1.bf16.msra.mxu0 %v6465
        %6542 = vmatprep.subr.bf16.mxu0 0
        %6543 = vmatpush1.bf16.msra.mxu0 %v6466
        %6544 = vmatprep.subr.bf16.mxu0 0
        %6545 = vmatpush1.bf16.msra.mxu0 %v6467
        %6546 = vmatprep.subr.bf16.mxu0 0
        %6547 = vmatpush1.bf16.msra.mxu0 %v6468
        %6548 = vmatprep.subr.bf16.mxu0 0
        %6549 = vmatpush1.bf16.msra.mxu0 %v6469
        %6550 = vmatprep.mubr.bf16.mxu0 %v6206
        %6551 = vmatmul.mubr.bf16.gmra.mrb[0].mxu0 %v6182
        %v6552 = vpop.f32.mrb[0].mxu0
        %v6553 = vadd.f32 0.0, %v6552
        %v6554 = vpop.f32.mrb[0].mxu0
        %v6555 = vpop.f32.mrb[0].mxu0
        %v6556 = vadd.f32 0.0, %v6555
        %v6557 = vpop.f32.mrb[0].mxu0
        %6558 = vmatprep.mubr.bf16.mxu0 %v6207
        %6559 = vmatmul.mubr.bf16.gmra.mrb[0].mxu0 %v6183
        %v6560 = vpop.f32.mrb[0].mxu0
        %v6561 = vadd.f32 0.0, %v6560
        %v6562 = vpop.f32.mrb[0].mxu0
        %v6563 = vpop.f32.mrb[0].mxu0
        %v6564 = vadd.f32 0.0, %v6563
        %v6565 = vpop.f32.mrb[0].mxu0
        %6566 = vmatprep.mubr.bf16.mxu0 %v6208
        %6567 = vmatmul.mubr.bf16.gmra.mrb[0].mxu0 %v6184
        %v6568 = vpop.f32.mrb[0].mxu0
        %v6569 = vadd.f32 0.0, %v6568
        %v6570 = vpop.f32.mrb[0].mxu0
        %v6571 = vpop.f32.mrb[0].mxu0
        %v6572 = vadd.f32 0.0, %v6571
        %v6573 = vpop.f32.mrb[0].mxu0
        %6574 = vmatprep.mubr.bf16.mxu0 %v6209
        %6575 = vmatmul.mubr.bf16.gmra.mrb[0].mxu0 %v6185
        %v6576 = vpop.f32.mrb[0].mxu0
        %v6577 = vadd.f32 0.0, %v6576
        %v6578 = vpop.f32.mrb[0].mxu0
        %v6579 = vpop.f32.mrb[0].mxu0
        %v6580 = vadd.f32 0.0, %v6579
        %v6581 = vpop.f32.mrb[0].mxu0
        %6582 = vmatprep.mubr.bf16.mxu0 %v6210
        %6583 = vmatmul.mubr.bf16.gmra.mrb[0].mxu0 %v6186
        %v6584 = vpop.f32.mrb[0].mxu0
        %v6585 = vadd.f32 0.0, %v6584
        %v6586 = vpop.f32.mrb[0].mxu0
        %v6587 = vpop.f32.mrb[0].mxu0
        %v6588 = vadd.f32 0.0, %v6587
        %v6589 = vpop.f32.mrb[0].mxu0
        %6590 = vmatprep.mubr.bf16.mxu0 %v6211
        %6591 = vmatmul.mubr.bf16.gmra.mrb[0].mxu0 %v6187
        %v6592 = vpop.f32.mrb[0].mxu0
        %v6593 = vadd.f32 0.0, %v6592
        %v6594 = vpop.f32.mrb[0].mxu0
        %v6595 = vpop.f32.mrb[0].mxu0
        %v6596 = vadd.f32 0.0, %v6595
        %v6597 = vpop.f32.mrb[0].mxu0
        %6598 = vmatprep.mubr.bf16.mxu0 %v6212
        %6599 = vmatmul.mubr.bf16.gmra.mrb[0].mxu0 %v6188
        %v6600 = vpop.f32.mrb[0].mxu0
        %v6601 = vadd.f32 0.0, %v6600
        %v6602 = vpop.f32.mrb[0].mxu0
        %v6603 = vpop.f32.mrb[0].mxu0
        %v6604 = vadd.f32 0.0, %v6603
        %v6605 = vpop.f32.mrb[0].mxu0
        %6606 = vmatprep.mubr.bf16.mxu0 %v6213
        %6607 = vmatmul.mubr.bf16.gmra.mrb[0].mxu0 %v6189
        %v6608 = vpop.f32.mrb[0].mxu0
        %v6609 = vadd.f32 0.0, %v6608
        %v6610 = vpop.f32.mrb[0].mxu0
        %v6611 = vpop.f32.mrb[0].mxu0
        %v6612 = vadd.f32 0.0, %v6611
        %v6613 = vpop.f32.mrb[0].mxu0
        %6614 = vdwg.mxu0
        %6615 = vmatprep.subr.bf16.mxu0 0
        %6616 = vmatpush1.bf16.msra.mxu0 %v6470
        %6617 = vmatprep.subr.bf16.mxu0 0
        %6618 = vmatpush1.bf16.msra.mxu0 %v6471
        %6619 = vmatprep.subr.bf16.mxu0 0
        %6620 = vmatpush1.bf16.msra.mxu0 %v6472
        %6621 = vmatprep.subr.bf16.mxu0 0
        %6622 = vmatpush1.bf16.msra.mxu0 %v6473
        %6623 = vmatprep.subr.bf16.mxu0 0
        %6624 = vmatpush1.bf16.msra.mxu0 %v6474
        %6625 = vmatprep.subr.bf16.mxu0 0
        %6626 = vmatpush1.bf16.msra.mxu0 %v6475
        %6627 = vmatprep.subr.bf16.mxu0 0
        %6628 = vmatpush1.bf16.msra.mxu0 %v6476
        %6629 = vmatprep.subr.bf16.mxu0 0
        %6630 = vmatpush1.bf16.msra.mxu0 %v6477
        %6631 = vmatprep.subr.bf16.mxu0 0
        %6632 = vmatpush1.bf16.msra.mxu0 %v6478
        %6633 = vmatprep.subr.bf16.mxu0 0
        %6634 = vmatpush1.bf16.msra.mxu0 %v6479
        %6635 = vmatprep.subr.bf16.mxu0 0
        %6636 = vmatpush1.bf16.msra.mxu0 %v6480
        %6637 = vmatprep.subr.bf16.mxu0 0
        %6638 = vmatpush1.bf16.msra.mxu0 %v6481
        %6639 = vmatprep.subr.bf16.mxu0 0
        %6640 = vmatpush1.bf16.msra.mxu0 %v6482
        %6641 = vmatprep.subr.bf16.mxu0 0
        %6642 = vmatpush1.bf16.msra.mxu0 %v6483
        %6643 = vmatprep.subr.bf16.mxu0 0
        %6644 = vmatpush1.bf16.msra.mxu0 %v6484
        %6645 = vmatprep.subr.bf16.mxu0 0
        %6646 = vmatpush1.bf16.msra.mxu0 %v6485
        %6647 = vmatprep.mubr.bf16.mxu0 %v6254
        %6648 = vmatmul.mubr.bf16.gmra.mrb[0].mxu0 %v6230
        %v6649 = vpop.f32.mrb[0].mxu0
        %v6650 = vadd.f32 %v6553, %v6649
        %v6651 = vpop.f32.mrb[0].mxu0
        %v6652 = vpop.f32.mrb[0].mxu0
        %v6653 = vadd.f32 %v6556, %v6652
        %v6654 = vpop.f32.mrb[0].mxu0
        %6655 = vmatprep.mubr.bf16.mxu0 %v6255
        %6656 = vmatmul.mubr.bf16.gmra.mrb[0].mxu0 %v6231
        %v6657 = vpop.f32.mrb[0].mxu0
        %v6658 = vadd.f32 %v6561, %v6657
        %v6659 = vpop.f32.mrb[0].mxu0
        %v6660 = vpop.f32.mrb[0].mxu0
        %v6661 = vadd.f32 %v6564, %v6660
        %v6662 = vpop.f32.mrb[0].mxu0
        %6663 = vmatprep.mubr.bf16.mxu0 %v6256
        %6664 = vmatmul.mubr.bf16.gmra.mrb[0].mxu0 %v6232
        %v6665 = vpop.f32.mrb[0].mxu0
        %v6666 = vadd.f32 %v6569, %v6665
        %v6667 = vpop.f32.mrb[0].mxu0
        %v6668 = vpop.f32.mrb[0].mxu0
        %v6669 = vadd.f32 %v6572, %v6668
        %v6670 = vpop.f32.mrb[0].mxu0
        %6671 = vmatprep.mubr.bf16.mxu0 %v6257
        %6672 = vmatmul.mubr.bf16.gmra.mrb[0].mxu0 %v6233
        %v6673 = vpop.f32.mrb[0].mxu0
        %v6674 = vadd.f32 %v6577, %v6673
        %v6675 = vpop.f32.mrb[0].mxu0
        %v6676 = vpop.f32.mrb[0].mxu0
        %v6677 = vadd.f32 %v6580, %v6676
        %v6678 = vpop.f32.mrb[0].mxu0
        %6679 = vmatprep.mubr.bf16.mxu0 %v6258
        %6680 = vmatmul.mubr.bf16.gmra.mrb[0].mxu0 %v6234
        %v6681 = vpop.f32.mrb[0].mxu0
        %v6682 = vadd.f32 %v6585, %v6681
        %v6683 = vpop.f32.mrb[0].mxu0
        %v6684 = vpop.f32.mrb[0].mxu0
        %v6685 = vadd.f32 %v6588, %v6684
        %v6686 = vpop.f32.mrb[0].mxu0
        %6687 = vmatprep.mubr.bf16.mxu0 %v6259
        %6688 = vmatmul.mubr.bf16.gmra.mrb[0].mxu0 %v6235
        %v6689 = vpop.f32.mrb[0].mxu0
        %v6690 = vadd.f32 %v6593, %v6689
        %v6691 = vpop.f32.mrb[0].mxu0
        %v6692 = vpop.f32.mrb[0].mxu0
        %v6693 = vadd.f32 %v6596, %v6692
        %v6694 = vpop.f32.mrb[0].mxu0
        %6695 = vmatprep.mubr.bf16.mxu0 %v6260
        %6696 = vmatmul.mubr.bf16.gmra.mrb[0].mxu0 %v6236
        %v6697 = vpop.f32.mrb[0].mxu0
        %v6698 = vadd.f32 %v6601, %v6697
        %v6699 = vpop.f32.mrb[0].mxu0
        %v6700 = vpop.f32.mrb[0].mxu0
        %v6701 = vadd.f32 %v6604, %v6700
        %v6702 = vpop.f32.mrb[0].mxu0
        %6703 = vmatprep.mubr.bf16.mxu0 %v6261
        %6704 = vmatmul.mubr.bf16.gmra.mrb[0].mxu0 %v6237
        %v6705 = vpop.f32.mrb[0].mxu0
        %v6706 = vadd.f32 %v6609, %v6705
        %v6707 = vpop.f32.mrb[0].mxu0
        %v6708 = vpop.f32.mrb[0].mxu0
        %v6709 = vadd.f32 %v6612, %v6708
        %v6710 = vpop.f32.mrb[0].mxu0
        %6711 = vdwg.mxu0
        %v6712 = vadd.f32 %v6102, %v6650
        %v6713 = vadd.f32 %v6105, %v6653
        %v6714 = vadd.f32 %v6110, %v6658
        %v6715 = vadd.f32 %v6113, %v6661
        %v6716 = vadd.f32 %v6118, %v6666
        %v6717 = vadd.f32 %v6121, %v6669
        %v6718 = vadd.f32 %v6126, %v6674
        %v6719 = vadd.f32 %v6129, %v6677
        %v6720 = vadd.f32 %v6134, %v6682
        %v6721 = vadd.f32 %v6137, %v6685
        %v6722 = vadd.f32 %v6142, %v6690
        %v6723 = vadd.f32 %v6145, %v6693
        %v6724 = vadd.f32 %v6150, %v6698
        %v6725 = vadd.f32 %v6153, %v6701
        %v6726 = vadd.f32 %v6158, %v6706
        %v6727 = vadd.f32 %v6161, %v6709
        %s6728 = sadd.s32 264, %s2757
        %s6729 = scalar_lea.vmem [#allocation2], %s6728
        %v6730 = vld [vmem:[%s6729] sm:$0xff]
        %v6731 = vld [vmem:[%s6729 + $0x8] sm:$0xff]
        %v6732 = vld [vmem:[%s6729 + $0x18] sm:$0xff]
        %v6733 = vld [vmem:[%s6729 + $0x20] sm:$0xff]
        %v6734 = vld [vmem:[%s6729 + $0x30] sm:$0xff]
        %v6735 = vld [vmem:[%s6729 + $0x38] sm:$0xff]
        %v6736 = vld [vmem:[%s6729 + $0x48] sm:$0xff]
        %v6737 = vld [vmem:[%s6729 + $0x50] sm:$0xff]
        %v6738 = vld [vmem:[%s6729 + $0x60] sm:$0xff]
        %v6739 = vld [vmem:[%s6729 + $0x68] sm:$0xff]
        %v6740 = vld [vmem:[%s6729 + $0x78] sm:$0xff]
        %v6741 = vld [vmem:[%s6729 + $0x80] sm:$0xff]
        %v6742 = vld [vmem:[%s6729 + $0x90] sm:$0xff]
        %v6743 = vld [vmem:[%s6729 + $0x98] sm:$0xff]
        %v6744 = vld [vmem:[%s6729 + $0xa8] sm:$0xff]
        %v6745 = vld [vmem:[%s6729 + $0xb0] sm:$0xff]
        %v6746 = vpack.c.bf16 %v6731, %v6730
        %v6747 = vpack.c.bf16 %v6733, %v6732
        %v6748 = vpack.c.bf16 %v6735, %v6734
        %v6749 = vpack.c.bf16 %v6737, %v6736
        %v6750 = vpack.c.bf16 %v6739, %v6738
        %v6751 = vpack.c.bf16 %v6741, %v6740
        %v6752 = vpack.c.bf16 %v6743, %v6742
        %v6753 = vpack.c.bf16 %v6745, %v6744
        %v6754 = vld [vmem:[%s6729 + $0x1] sm:$0xff]
        %v6755 = vld [vmem:[%s6729 + $0x9] sm:$0xff]
        %v6756 = vld [vmem:[%s6729 + $0x19] sm:$0xff]
        %v6757 = vld [vmem:[%s6729 + $0x21] sm:$0xff]
        %v6758 = vld [vmem:[%s6729 + $0x31] sm:$0xff]
        %v6759 = vld [vmem:[%s6729 + $0x39] sm:$0xff]
        %v6760 = vld [vmem:[%s6729 + $0x49] sm:$0xff]
        %v6761 = vld [vmem:[%s6729 + $0x51] sm:$0xff]
        %v6762 = vld [vmem:[%s6729 + $0x61] sm:$0xff]
        %v6763 = vld [vmem:[%s6729 + $0x69] sm:$0xff]
        %v6764 = vld [vmem:[%s6729 + $0x79] sm:$0xff]
        %v6765 = vld [vmem:[%s6729 + $0x81] sm:$0xff]
        %v6766 = vld [vmem:[%s6729 + $0x91] sm:$0xff]
        %v6767 = vld [vmem:[%s6729 + $0x99] sm:$0xff]
        %v6768 = vld [vmem:[%s6729 + $0xa9] sm:$0xff]
        %v6769 = vld [vmem:[%s6729 + $0xb1] sm:$0xff]
        %v6770 = vpack.c.bf16 %v6755, %v6754
        %v6771 = vpack.c.bf16 %v6757, %v6756
        %v6772 = vpack.c.bf16 %v6759, %v6758
        %v6773 = vpack.c.bf16 %v6761, %v6760
        %v6774 = vpack.c.bf16 %v6763, %v6762
        %v6775 = vpack.c.bf16 %v6765, %v6764
        %v6776 = vpack.c.bf16 %v6767, %v6766
        %v6777 = vpack.c.bf16 %v6769, %v6768
        %v6778 = vld [vmem:[%s6729 + $0x2] sm:$0xff]
        %v6779 = vld [vmem:[%s6729 + $0xa] sm:$0xff]
        %v6780 = vld [vmem:[%s6729 + $0x1a] sm:$0xff]
        %v6781 = vld [vmem:[%s6729 + $0x22] sm:$0xff]
        %v6782 = vld [vmem:[%s6729 + $0x32] sm:$0xff]
        %v6783 = vld [vmem:[%s6729 + $0x3a] sm:$0xff]
        %v6784 = vld [vmem:[%s6729 + $0x4a] sm:$0xff]
        %v6785 = vld [vmem:[%s6729 + $0x52] sm:$0xff]
        %v6786 = vld [vmem:[%s6729 + $0x62] sm:$0xff]
        %v6787 = vld [vmem:[%s6729 + $0x6a] sm:$0xff]
        %v6788 = vld [vmem:[%s6729 + $0x7a] sm:$0xff]
        %v6789 = vld [vmem:[%s6729 + $0x82] sm:$0xff]
        %v6790 = vld [vmem:[%s6729 + $0x92] sm:$0xff]
        %v6791 = vld [vmem:[%s6729 + $0x9a] sm:$0xff]
        %v6792 = vld [vmem:[%s6729 + $0xaa] sm:$0xff]
        %v6793 = vld [vmem:[%s6729 + $0xb2] sm:$0xff]
        %v6794 = vpack.c.bf16 %v6779, %v6778
        %v6795 = vpack.c.bf16 %v6781, %v6780
        %v6796 = vpack.c.bf16 %v6783, %v6782
        %v6797 = vpack.c.bf16 %v6785, %v6784
        %v6798 = vpack.c.bf16 %v6787, %v6786
        %v6799 = vpack.c.bf16 %v6789, %v6788
        %v6800 = vpack.c.bf16 %v6791, %v6790
        %v6801 = vpack.c.bf16 %v6793, %v6792
        %v6802 = vld [vmem:[%s6729 + $0x3] sm:$0xff]
        %v6803 = vld [vmem:[%s6729 + $0xb] sm:$0xff]
        %v6804 = vld [vmem:[%s6729 + $0x1b] sm:$0xff]
        %v6805 = vld [vmem:[%s6729 + $0x23] sm:$0xff]
        %v6806 = vld [vmem:[%s6729 + $0x33] sm:$0xff]
        %v6807 = vld [vmem:[%s6729 + $0x3b] sm:$0xff]
        %v6808 = vld [vmem:[%s6729 + $0x4b] sm:$0xff]
        %v6809 = vld [vmem:[%s6729 + $0x53] sm:$0xff]
        %v6810 = vld [vmem:[%s6729 + $0x63] sm:$0xff]
        %v6811 = vld [vmem:[%s6729 + $0x6b] sm:$0xff]
        %v6812 = vld [vmem:[%s6729 + $0x7b] sm:$0xff]
        %v6813 = vld [vmem:[%s6729 + $0x83] sm:$0xff]
        %v6814 = vld [vmem:[%s6729 + $0x93] sm:$0xff]
        %v6815 = vld [vmem:[%s6729 + $0x9b] sm:$0xff]
        %v6816 = vld [vmem:[%s6729 + $0xab] sm:$0xff]
        %v6817 = vld [vmem:[%s6729 + $0xb3] sm:$0xff]
        %v6818 = vpack.c.bf16 %v6803, %v6802
        %v6819 = vpack.c.bf16 %v6805, %v6804
        %v6820 = vpack.c.bf16 %v6807, %v6806
        %v6821 = vpack.c.bf16 %v6809, %v6808
        %v6822 = vpack.c.bf16 %v6811, %v6810
        %v6823 = vpack.c.bf16 %v6813, %v6812
        %v6824 = vpack.c.bf16 %v6815, %v6814
        %v6825 = vpack.c.bf16 %v6817, %v6816
        %v6826 = vld [vmem:[%s4545] sm:$0xf]
        %v6827 = vld [vmem:[%s4545 + $0x4] sm:$0xf]
        %v6828 = vld [vmem:[%s4545 + $0x8] sm:$0xf]
        %v6829 = vld [vmem:[%s4545 + $0xc] sm:$0xf]
        %v6830 = vld [vmem:[%s4545 + $0x10] sm:$0xf]
        %v6831 = vld [vmem:[%s4545 + $0x14] sm:$0xf]
        %v6832 = vld [vmem:[%s4545 + $0x18] sm:$0xf]
        %v6833 = vld [vmem:[%s4545 + $0x1c] sm:$0xf]
        %v6834 = vld [vmem:[%s4545 + $0x20] sm:$0xf]
        %v6835 = vld [vmem:[%s4545 + $0x24] sm:$0xf]
        %v6836 = vld [vmem:[%s4545 + $0x28] sm:$0xf]
        %v6837 = vld [vmem:[%s4545 + $0x2c] sm:$0xf]
        %v6838 = vld [vmem:[%s4545 + $0x30] sm:$0xf]
        %v6839 = vld [vmem:[%s4545 + $0x34] sm:$0xf]
        %v6840 = vld [vmem:[%s4545 + $0x38] sm:$0xf]
        %v6841 = vld [vmem:[%s4545 + $0x3c] sm:$0xf]
        %v6842 = vld [vmem:[%s4545 + $0x40] sm:$0xf]
        %v6843 = vld [vmem:[%s4545 + $0x44] sm:$0xf]
        %v6844 = vld [vmem:[%s4545 + $0x48] sm:$0xf]
        %v6845 = vld [vmem:[%s4545 + $0x4c] sm:$0xf]
        %v6846 = vld [vmem:[%s4545 + $0x50] sm:$0xf]
        %v6847 = vld [vmem:[%s4545 + $0x54] sm:$0xf]
        %v6848 = vld [vmem:[%s4545 + $0x58] sm:$0xf]
        %v6849 = vld [vmem:[%s4545 + $0x5c] sm:$0xf]
        %v6850 = vld [vmem:[%s4545 + $0x60] sm:$0xf]
        %v6851 = vld [vmem:[%s4545 + $0x64] sm:$0xf]
        %v6852 = vld [vmem:[%s4545 + $0x68] sm:$0xf]
        %v6853 = vld [vmem:[%s4545 + $0x6c] sm:$0xf]
        %v6854 = vld [vmem:[%s4545 + $0x70] sm:$0xf]
        %v6855 = vld [vmem:[%s4545 + $0x74] sm:$0xf]
        %v6856 = vld [vmem:[%s4545 + $0x78] sm:$0xf]
        %v6857 = vld [vmem:[%s4545 + $0x7c] sm:$0xf]
        %v6858 = vld [vmem:[%s4545 + $0x80] sm:$0xf]
        %v6859 = vld [vmem:[%s4545 + $0x84] sm:$0xf]
        %v6860 = vld [vmem:[%s4545 + $0x88] sm:$0xf]
        %v6861 = vld [vmem:[%s4545 + $0x8c] sm:$0xf]
        %v6862 = vld [vmem:[%s4545 + $0x90] sm:$0xf]
        %v6863 = vld [vmem:[%s4545 + $0x94] sm:$0xf]
        %v6864 = vld [vmem:[%s4545 + $0x98] sm:$0xf]
        %v6865 = vld [vmem:[%s4545 + $0x9c] sm:$0xf]
        %v6866 = vld [vmem:[%s4545 + $0xa0] sm:$0xf]
        %v6867 = vld [vmem:[%s4545 + $0xa4] sm:$0xf]
        %v6868 = vld [vmem:[%s4545 + $0xa8] sm:$0xf]
        %v6869 = vld [vmem:[%s4545 + $0xac] sm:$0xf]
        %v6870 = vld [vmem:[%s4545 + $0xb0] sm:$0xf]
        %v6871 = vld [vmem:[%s4545 + $0xb4] sm:$0xf]
        %v6872 = vld [vmem:[%s4545 + $0xb8] sm:$0xf]
        %v6873 = vld [vmem:[%s4545 + $0xbc] sm:$0xf]
        %v6874 = vld [vmem:[%s4545 + $0xc0] sm:$0xf]
        %v6875 = vld [vmem:[%s4545 + $0xc4] sm:$0xf]
        %v6876 = vld [vmem:[%s4545 + $0xc8] sm:$0xf]
        %v6877 = vld [vmem:[%s4545 + $0xcc] sm:$0xf]
        %v6878 = vld [vmem:[%s4545 + $0xd0] sm:$0xf]
        %v6879 = vld [vmem:[%s4545 + $0xd4] sm:$0xf]
        %v6880 = vld [vmem:[%s4545 + $0xd8] sm:$0xf]
        %v6881 = vld [vmem:[%s4545 + $0xdc] sm:$0xf]
        %v6882 = vld [vmem:[%s4545 + $0xe0] sm:$0xf]
        %v6883 = vld [vmem:[%s4545 + $0xe4] sm:$0xf]
        %v6884 = vld [vmem:[%s4545 + $0xe8] sm:$0xf]
        %v6885 = vld [vmem:[%s4545 + $0xec] sm:$0xf]
        %v6886 = vld [vmem:[%s4545 + $0xf0] sm:$0xf]
        %v6887 = vld [vmem:[%s4545 + $0xf4] sm:$0xf]
        %v6888 = vld [vmem:[%s4545 + $0xf8] sm:$0xf]
        %v6889 = vld [vmem:[%s4545 + $0xfc] sm:$0xf]
        %v6954 = vunpack.c.l.b16 %v6826
        %v6955 = vunpack.c.l.b16 %v6827
        %v6956 = vunpack.c.l.b16 %v6828
        %v6957 = vunpack.c.l.b16 %v6829
        %v6958 = vunpack.c.l.b16 %v6830
        %v6959 = vunpack.c.l.b16 %v6831
        %v6960 = vunpack.c.l.b16 %v6832
        %v6961 = vunpack.c.l.b16 %v6833
        %v6962 = vunpack.c.l.b16 %v6834
        %v6963 = vunpack.c.l.b16 %v6835
        %v6964 = vunpack.c.l.b16 %v6836
        %v6965 = vunpack.c.l.b16 %v6837
        %v6966 = vunpack.c.l.b16 %v6838
        %v6967 = vunpack.c.l.b16 %v6839
        %v6968 = vunpack.c.l.b16 %v6840
        %v6969 = vunpack.c.l.b16 %v6841
        %v6970 = vunpack.c.l.b16 %v6842
        %v6971 = vunpack.c.l.b16 %v6843
        %v6972 = vunpack.c.l.b16 %v6844
        %v6973 = vunpack.c.l.b16 %v6845
        %v6974 = vunpack.c.l.b16 %v6846
        %v6975 = vunpack.c.l.b16 %v6847
        %v6976 = vunpack.c.l.b16 %v6848
        %v6977 = vunpack.c.l.b16 %v6849
        %v6978 = vunpack.c.l.b16 %v6850
        %v6979 = vunpack.c.l.b16 %v6851
        %v6980 = vunpack.c.l.b16 %v6852
        %v6981 = vunpack.c.l.b16 %v6853
        %v6982 = vunpack.c.l.b16 %v6854
        %v6983 = vunpack.c.l.b16 %v6855
        %v6984 = vunpack.c.l.b16 %v6856
        %v6985 = vunpack.c.l.b16 %v6857
        %v6986 = vunpack.c.l.b16 %v6858
        %v6987 = vunpack.c.l.b16 %v6859
        %v6988 = vunpack.c.l.b16 %v6860
        %v6989 = vunpack.c.l.b16 %v6861
        %v6990 = vunpack.c.l.b16 %v6862
        %v6991 = vunpack.c.l.b16 %v6863
        %v6992 = vunpack.c.l.b16 %v6864
        %v6993 = vunpack.c.l.b16 %v6865
        %v6994 = vunpack.c.l.b16 %v6866
        %v6995 = vunpack.c.l.b16 %v6867
        %v6996 = vunpack.c.l.b16 %v6868
        %v6997 = vunpack.c.l.b16 %v6869
        %v6998 = vunpack.c.l.b16 %v6870
        %v6999 = vunpack.c.l.b16 %v6871
        %v7000 = vunpack.c.l.b16 %v6872
        %v7001 = vunpack.c.l.b16 %v6873
        %v7002 = vunpack.c.l.b16 %v6874
        %v7003 = vunpack.c.l.b16 %v6875
        %v7004 = vunpack.c.l.b16 %v6876
        %v7005 = vunpack.c.l.b16 %v6877
        %v7006 = vunpack.c.l.b16 %v6878
        %v7007 = vunpack.c.l.b16 %v6879
        %v7008 = vunpack.c.l.b16 %v6880
        %v7009 = vunpack.c.l.b16 %v6881
        %v7010 = vunpack.c.l.b16 %v6882
        %v7011 = vunpack.c.l.b16 %v6883
        %v7012 = vunpack.c.l.b16 %v6884
        %v7013 = vunpack.c.l.b16 %v6885
        %v7014 = vunpack.c.l.b16 %v6886
        %v7015 = vunpack.c.l.b16 %v6887
        %v7016 = vunpack.c.l.b16 %v6888
        %v7017 = vunpack.c.l.b16 %v6889
        %v7018 = vpack.c.b16 %v6955, %v6954
        %v7019 = vpack.c.b16 %v6957, %v6956
        %v7020 = vpack.c.b16 %v6959, %v6958
        %v7021 = vpack.c.b16 %v6961, %v6960
        %v7022 = vpack.c.b16 %v6963, %v6962
        %v7023 = vpack.c.b16 %v6965, %v6964
        %v7024 = vpack.c.b16 %v6967, %v6966
        %v7025 = vpack.c.b16 %v6969, %v6968
        %v7026 = vpack.c.b16 %v6971, %v6970
        %v7027 = vpack.c.b16 %v6973, %v6972
        %v7028 = vpack.c.b16 %v6975, %v6974
        %v7029 = vpack.c.b16 %v6977, %v6976
        %v7030 = vpack.c.b16 %v6979, %v6978
        %v7031 = vpack.c.b16 %v6981, %v6980
        %v7032 = vpack.c.b16 %v6983, %v6982
        %v7033 = vpack.c.b16 %v6985, %v6984
        %v7034 = vpack.c.b16 %v6987, %v6986
        %v7035 = vpack.c.b16 %v6989, %v6988
        %v7036 = vpack.c.b16 %v6991, %v6990
        %v7037 = vpack.c.b16 %v6993, %v6992
        %v7038 = vpack.c.b16 %v6995, %v6994
        %v7039 = vpack.c.b16 %v6997, %v6996
        %v7040 = vpack.c.b16 %v6999, %v6998
        %v7041 = vpack.c.b16 %v7001, %v7000
        %v7042 = vpack.c.b16 %v7003, %v7002
        %v7043 = vpack.c.b16 %v7005, %v7004
        %v7044 = vpack.c.b16 %v7007, %v7006
        %v7045 = vpack.c.b16 %v7009, %v7008
        %v7046 = vpack.c.b16 %v7011, %v7010
        %v7047 = vpack.c.b16 %v7013, %v7012
        %v7048 = vpack.c.b16 %v7015, %v7014
        %v7049 = vpack.c.b16 %v7017, %v7016
        %7082 = vmatprep.subr.bf16.mxu0 0
        %7083 = vmatpush1.bf16.msra.mxu0 %v7018
        %7084 = vmatprep.subr.bf16.mxu0 0
        %7085 = vmatpush1.bf16.msra.mxu0 %v7019
        %7086 = vmatprep.subr.bf16.mxu0 0
        %7087 = vmatpush1.bf16.msra.mxu0 %v7020
        %7088 = vmatprep.subr.bf16.mxu0 0
        %7089 = vmatpush1.bf16.msra.mxu0 %v7021
        %7090 = vmatprep.subr.bf16.mxu0 0
        %7091 = vmatpush1.bf16.msra.mxu0 %v7022
        %7092 = vmatprep.subr.bf16.mxu0 0
        %7093 = vmatpush1.bf16.msra.mxu0 %v7023
        %7094 = vmatprep.subr.bf16.mxu0 0
        %7095 = vmatpush1.bf16.msra.mxu0 %v7024
        %7096 = vmatprep.subr.bf16.mxu0 0
        %7097 = vmatpush1.bf16.msra.mxu0 %v7025
        %7098 = vmatprep.subr.bf16.mxu0 0
        %7099 = vmatpush1.bf16.msra.mxu0 %v7026
        %7100 = vmatprep.subr.bf16.mxu0 0
        %7101 = vmatpush1.bf16.msra.mxu0 %v7027
        %7102 = vmatprep.subr.bf16.mxu0 0
        %7103 = vmatpush1.bf16.msra.mxu0 %v7028
        %7104 = vmatprep.subr.bf16.mxu0 0
        %7105 = vmatpush1.bf16.msra.mxu0 %v7029
        %7106 = vmatprep.subr.bf16.mxu0 0
        %7107 = vmatpush1.bf16.msra.mxu0 %v7030
        %7108 = vmatprep.subr.bf16.mxu0 0
        %7109 = vmatpush1.bf16.msra.mxu0 %v7031
        %7110 = vmatprep.subr.bf16.mxu0 0
        %7111 = vmatpush1.bf16.msra.mxu0 %v7032
        %7112 = vmatprep.subr.bf16.mxu0 0
        %7113 = vmatpush1.bf16.msra.mxu0 %v7033
        %7114 = vmatprep.mubr.bf16.mxu0 %v6770
        %7115 = vmatmul.mubr.bf16.gmra.mrb[0].mxu0 %v6746
        %v7116 = vpop.f32.mrb[0].mxu0
        %v7117 = vadd.f32 0.0, %v7116
        %v7118 = vpop.f32.mrb[0].mxu0
        %v7119 = vpop.f32.mrb[0].mxu0
        %v7120 = vadd.f32 0.0, %v7119
        %v7121 = vpop.f32.mrb[0].mxu0
        %7122 = vmatprep.mubr.bf16.mxu0 %v6771
        %7123 = vmatmul.mubr.bf16.gmra.mrb[0].mxu0 %v6747
        %v7124 = vpop.f32.mrb[0].mxu0
        %v7125 = vadd.f32 0.0, %v7124
        %v7126 = vpop.f32.mrb[0].mxu0
        %v7127 = vpop.f32.mrb[0].mxu0
        %v7128 = vadd.f32 0.0, %v7127
        %v7129 = vpop.f32.mrb[0].mxu0
        %7130 = vmatprep.mubr.bf16.mxu0 %v6772
        %7131 = vmatmul.mubr.bf16.gmra.mrb[0].mxu0 %v6748
        %v7132 = vpop.f32.mrb[0].mxu0
        %v7133 = vadd.f32 0.0, %v7132
        %v7134 = vpop.f32.mrb[0].mxu0
        %v7135 = vpop.f32.mrb[0].mxu0
        %v7136 = vadd.f32 0.0, %v7135
        %v7137 = vpop.f32.mrb[0].mxu0
        %7138 = vmatprep.mubr.bf16.mxu0 %v6773
        %7139 = vmatmul.mubr.bf16.gmra.mrb[0].mxu0 %v6749
        %v7140 = vpop.f32.mrb[0].mxu0
        %v7141 = vadd.f32 0.0, %v7140
        %v7142 = vpop.f32.mrb[0].mxu0
        %v7143 = vpop.f32.mrb[0].mxu0
        %v7144 = vadd.f32 0.0, %v7143
        %v7145 = vpop.f32.mrb[0].mxu0
        %7146 = vmatprep.mubr.bf16.mxu0 %v6774
        %7147 = vmatmul.mubr.bf16.gmra.mrb[0].mxu0 %v6750
        %v7148 = vpop.f32.mrb[0].mxu0
        %v7149 = vadd.f32 0.0, %v7148
        %v7150 = vpop.f32.mrb[0].mxu0
        %v7151 = vpop.f32.mrb[0].mxu0
        %v7152 = vadd.f32 0.0, %v7151
        %v7153 = vpop.f32.mrb[0].mxu0
        %7154 = vmatprep.mubr.bf16.mxu0 %v6775
        %7155 = vmatmul.mubr.bf16.gmra.mrb[0].mxu0 %v6751
        %v7156 = vpop.f32.mrb[0].mxu0
        %v7157 = vadd.f32 0.0, %v7156
        %v7158 = vpop.f32.mrb[0].mxu0
        %v7159 = vpop.f32.mrb[0].mxu0
        %v7160 = vadd.f32 0.0, %v7159
        %v7161 = vpop.f32.mrb[0].mxu0
        %7162 = vmatprep.mubr.bf16.mxu0 %v6776
        %7163 = vmatmul.mubr.bf16.gmra.mrb[0].mxu0 %v6752
        %v7164 = vpop.f32.mrb[0].mxu0
        %v7165 = vadd.f32 0.0, %v7164
        %v7166 = vpop.f32.mrb[0].mxu0
        %v7167 = vpop.f32.mrb[0].mxu0
        %v7168 = vadd.f32 0.0, %v7167
        %v7169 = vpop.f32.mrb[0].mxu0
        %7170 = vmatprep.mubr.bf16.mxu0 %v6777
        %7171 = vmatmul.mubr.bf16.gmra.mrb[0].mxu0 %v6753
        %v7172 = vpop.f32.mrb[0].mxu0
        %v7173 = vadd.f32 0.0, %v7172
        %v7174 = vpop.f32.mrb[0].mxu0
        %v7175 = vpop.f32.mrb[0].mxu0
        %v7176 = vadd.f32 0.0, %v7175
        %v7177 = vpop.f32.mrb[0].mxu0
        %7178 = vdwg.mxu0
        %7179 = vmatprep.subr.bf16.mxu0 0
        %7180 = vmatpush1.bf16.msra.mxu0 %v7034
        %7181 = vmatprep.subr.bf16.mxu0 0
        %7182 = vmatpush1.bf16.msra.mxu0 %v7035
        %7183 = vmatprep.subr.bf16.mxu0 0
        %7184 = vmatpush1.bf16.msra.mxu0 %v7036
        %7185 = vmatprep.subr.bf16.mxu0 0
        %7186 = vmatpush1.bf16.msra.mxu0 %v7037
        %7187 = vmatprep.subr.bf16.mxu0 0
        %7188 = vmatpush1.bf16.msra.mxu0 %v7038
        %7189 = vmatprep.subr.bf16.mxu0 0
        %7190 = vmatpush1.bf16.msra.mxu0 %v7039
        %7191 = vmatprep.subr.bf16.mxu0 0
        %7192 = vmatpush1.bf16.msra.mxu0 %v7040
        %7193 = vmatprep.subr.bf16.mxu0 0
        %7194 = vmatpush1.bf16.msra.mxu0 %v7041
        %7195 = vmatprep.subr.bf16.mxu0 0
        %7196 = vmatpush1.bf16.msra.mxu0 %v7042
        %7197 = vmatprep.subr.bf16.mxu0 0
        %7198 = vmatpush1.bf16.msra.mxu0 %v7043
        %7199 = vmatprep.subr.bf16.mxu0 0
        %7200 = vmatpush1.bf16.msra.mxu0 %v7044
        %7201 = vmatprep.subr.bf16.mxu0 0
        %7202 = vmatpush1.bf16.msra.mxu0 %v7045
        %7203 = vmatprep.subr.bf16.mxu0 0
        %7204 = vmatpush1.bf16.msra.mxu0 %v7046
        %7205 = vmatprep.subr.bf16.mxu0 0
        %7206 = vmatpush1.bf16.msra.mxu0 %v7047
        %7207 = vmatprep.subr.bf16.mxu0 0
        %7208 = vmatpush1.bf16.msra.mxu0 %v7048
        %7209 = vmatprep.subr.bf16.mxu0 0
        %7210 = vmatpush1.bf16.msra.mxu0 %v7049
        %7211 = vmatprep.mubr.bf16.mxu0 %v6818
        %7212 = vmatmul.mubr.bf16.gmra.mrb[0].mxu0 %v6794
        %v7213 = vpop.f32.mrb[0].mxu0
        %v7214 = vadd.f32 %v7117, %v7213
        %v7215 = vpop.f32.mrb[0].mxu0
        %v7216 = vpop.f32.mrb[0].mxu0
        %v7217 = vadd.f32 %v7120, %v7216
        %v7218 = vpop.f32.mrb[0].mxu0
        %7219 = vmatprep.mubr.bf16.mxu0 %v6819
        %7220 = vmatmul.mubr.bf16.gmra.mrb[0].mxu0 %v6795
        %v7221 = vpop.f32.mrb[0].mxu0
        %v7222 = vadd.f32 %v7125, %v7221
        %v7223 = vpop.f32.mrb[0].mxu0
        %v7224 = vpop.f32.mrb[0].mxu0
        %v7225 = vadd.f32 %v7128, %v7224
        %v7226 = vpop.f32.mrb[0].mxu0
        %7227 = vmatprep.mubr.bf16.mxu0 %v6820
        %7228 = vmatmul.mubr.bf16.gmra.mrb[0].mxu0 %v6796
        %v7229 = vpop.f32.mrb[0].mxu0
        %v7230 = vadd.f32 %v7133, %v7229
        %v7231 = vpop.f32.mrb[0].mxu0
        %v7232 = vpop.f32.mrb[0].mxu0
        %v7233 = vadd.f32 %v7136, %v7232
        %v7234 = vpop.f32.mrb[0].mxu0
        %7235 = vmatprep.mubr.bf16.mxu0 %v6821
        %7236 = vmatmul.mubr.bf16.gmra.mrb[0].mxu0 %v6797
        %v7237 = vpop.f32.mrb[0].mxu0
        %v7238 = vadd.f32 %v7141, %v7237
        %v7239 = vpop.f32.mrb[0].mxu0
        %v7240 = vpop.f32.mrb[0].mxu0
        %v7241 = vadd.f32 %v7144, %v7240
        %v7242 = vpop.f32.mrb[0].mxu0
        %7243 = vmatprep.mubr.bf16.mxu0 %v6822
        %7244 = vmatmul.mubr.bf16.gmra.mrb[0].mxu0 %v6798
        %v7245 = vpop.f32.mrb[0].mxu0
        %v7246 = vadd.f32 %v7149, %v7245
        %v7247 = vpop.f32.mrb[0].mxu0
        %v7248 = vpop.f32.mrb[0].mxu0
        %v7249 = vadd.f32 %v7152, %v7248
        %v7250 = vpop.f32.mrb[0].mxu0
        %7251 = vmatprep.mubr.bf16.mxu0 %v6823
        %7252 = vmatmul.mubr.bf16.gmra.mrb[0].mxu0 %v6799
        %v7253 = vpop.f32.mrb[0].mxu0
        %v7254 = vadd.f32 %v7157, %v7253
        %v7255 = vpop.f32.mrb[0].mxu0
        %v7256 = vpop.f32.mrb[0].mxu0
        %v7257 = vadd.f32 %v7160, %v7256
        %v7258 = vpop.f32.mrb[0].mxu0
        %7259 = vmatprep.mubr.bf16.mxu0 %v6824
        %7260 = vmatmul.mubr.bf16.gmra.mrb[0].mxu0 %v6800
        %v7261 = vpop.f32.mrb[0].mxu0
        %v7262 = vadd.f32 %v7165, %v7261
        %v7263 = vpop.f32.mrb[0].mxu0
        %v7264 = vpop.f32.mrb[0].mxu0
        %v7265 = vadd.f32 %v7168, %v7264
        %v7266 = vpop.f32.mrb[0].mxu0
        %7267 = vmatprep.mubr.bf16.mxu0 %v6825
        %7268 = vmatmul.mubr.bf16.gmra.mrb[0].mxu0 %v6801
        %v7269 = vpop.f32.mrb[0].mxu0
        %v7270 = vadd.f32 %v7173, %v7269
        %v7271 = vpop.f32.mrb[0].mxu0
        %v7272 = vpop.f32.mrb[0].mxu0
        %v7273 = vadd.f32 %v7176, %v7272
        %v7274 = vpop.f32.mrb[0].mxu0
        %7275 = vdwg.mxu0
        %v7276 = vadd.f32 %v6712, %v7214
        %v7277 = vadd.f32 %v6713, %v7217
        %v7278 = vadd.f32 %v6714, %v7222
        %v7279 = vadd.f32 %v6715, %v7225
        %v7280 = vadd.f32 %v6716, %v7230
        %v7281 = vadd.f32 %v6717, %v7233
        %v7282 = vadd.f32 %v6718, %v7238
        %v7283 = vadd.f32 %v6719, %v7241
        %v7284 = vadd.f32 %v6720, %v7246
        %v7285 = vadd.f32 %v6721, %v7249
        %v7286 = vadd.f32 %v6722, %v7254
        %v7287 = vadd.f32 %v6723, %v7257
        %v7288 = vadd.f32 %v6724, %v7262
        %v7289 = vadd.f32 %v6725, %v7265
        %v7290 = vadd.f32 %v6726, %v7270
        %v7291 = vadd.f32 %v6727, %v7273
        %v7292 = vld [vmem:[%s4] sm:$0x1]
        %v7294 = vlaneseq
        %v7295 = vshrl.u32 %v7294, 7
        %v7296 = vsub.s32 0, %v7295
        %v7297 = vrot.slane %v7292, %v7296
        %v7299 = vadd.f32 %v7276, %v7297
        %v7300 = vadd.f32 %v7277, %v7297
        %v7301 = vadd.f32 %v7278, %v7297
        %v7302 = vadd.f32 %v7279, %v7297
        %v7303 = vadd.f32 %v7280, %v7297
        %v7304 = vadd.f32 %v7281, %v7297
        %v7305 = vadd.f32 %v7282, %v7297
        %v7306 = vadd.f32 %v7283, %v7297
        %v7307 = vadd.f32 %v7284, %v7297
        %v7308 = vadd.f32 %v7285, %v7297
        %v7309 = vadd.f32 %v7286, %v7297
        %v7310 = vadd.f32 %v7287, %v7297
        %v7311 = vadd.f32 %v7288, %v7297
        %v7312 = vadd.f32 %v7289, %v7297
        %v7313 = vadd.f32 %v7290, %v7297
        %v7314 = vadd.f32 %v7291, %v7297
        %v7315 = vmax.f32 %v7299, 0.0
        %v7316 = vmax.f32 %v7300, 0.0
        %v7317 = vmax.f32 %v7301, 0.0
        %v7318 = vmax.f32 %v7302, 0.0
        %v7319 = vmax.f32 %v7303, 0.0
        %v7320 = vmax.f32 %v7304, 0.0
        %v7321 = vmax.f32 %v7305, 0.0
        %v7322 = vmax.f32 %v7306, 0.0
        %v7323 = vmax.f32 %v7307, 0.0
        %v7324 = vmax.f32 %v7308, 0.0
        %v7325 = vmax.f32 %v7309, 0.0
        %v7326 = vmax.f32 %v7310, 0.0
        %v7327 = vmax.f32 %v7311, 0.0
        %v7328 = vmax.f32 %v7312, 0.0
        %v7329 = vmax.f32 %v7313, 0.0
        %v7330 = vmax.f32 %v7314, 0.0
        %s7331 = sadd.s32 128, %s655
        %s7332 = scalar_lea.vmem [#allocation3], %s7331
        %7333 = vst [vmem:[%s7332] sm:$0xff] %v7315
        %7334 = vst [vmem:[%s7332 + $0x8] sm:$0xff] %v7316
        %7335 = vst [vmem:[%s7332 + $0x10] sm:$0xff] %v7317
        %7336 = vst [vmem:[%s7332 + $0x18] sm:$0xff] %v7318
        %7337 = vst [vmem:[%s7332 + $0x20] sm:$0xff] %v7319
        %7338 = vst [vmem:[%s7332 + $0x28] sm:$0xff] %v7320
        %7339 = vst [vmem:[%s7332 + $0x30] sm:$0xff] %v7321
        %7340 = vst [vmem:[%s7332 + $0x38] sm:$0xff] %v7322
        %7341 = vst [vmem:[%s7332 + $0x40] sm:$0xff] %v7323
        %7342 = vst [vmem:[%s7332 + $0x48] sm:$0xff] %v7324
        %7343 = vst [vmem:[%s7332 + $0x50] sm:$0xff] %v7325
        %7344 = vst [vmem:[%s7332 + $0x58] sm:$0xff] %v7326
        %7345 = vst [vmem:[%s7332 + $0x60] sm:$0xff] %v7327
        %7346 = vst [vmem:[%s7332 + $0x68] sm:$0xff] %v7328
        %7347 = vst [vmem:[%s7332 + $0x70] sm:$0xff] %v7329
        %7348 = vst [vmem:[%s7332 + $0x78] sm:$0xff] %v7330
      $region69: #{equivalent_net_mnist.1} parent=63 // loop_footer
        %s654 = sadd.s32 1, %s650
      $region70: #{equivalent_net_mnist.1} parent=63 // loop_footer_branch
        %649 = sbr.rel target = $region66
      $region71: #{equivalent_net_mnist.1} parent=63 // loop_exit
        _
      %v7349 = vld [vmem:[#allocation3] sm:$0x7f]
      %v7350 = vld [vmem:[#allocation3 + $0x100] sm:$0x7f]
      %v7351 = vld [vmem:[#allocation3 + $0x200] sm:$0x7f]
      %v7352 = vld [vmem:[#allocation3 + $0x300] sm:$0x7f]
      %v7353 = vld [vmem:[#allocation3 + $0x400] sm:$0x7f]
      %v7354 = vld [vmem:[#allocation3 + $0x500] sm:$0x7f]
      %v7355 = vld [vmem:[#allocation3 + $0x600] sm:$0x7f]
      %v7356 = vld [vmem:[#allocation3 + $0x700] sm:$0x7f]
      %s7357 = scalar_lea.vmem [#allocation3], 16
      %v7358 = vld [vmem:[%s7357] sm:$0x7f]
      %v7359 = vld [vmem:[%s7357 + $0x100] sm:$0x7f]
      %v7360 = vld [vmem:[%s7357 + $0x200] sm:$0x7f]
      %v7361 = vld [vmem:[%s7357 + $0x300] sm:$0x7f]
      %v7362 = vld [vmem:[%s7357 + $0x400] sm:$0x7f]
      %v7363 = vld [vmem:[%s7357 + $0x500] sm:$0x7f]
      %v7364 = vld [vmem:[%s7357 + $0x600] sm:$0x7f]
      %v7365 = vld [vmem:[%s7357 + $0x700] sm:$0x7f]
      %v7366 = vmax.f32 %v7349, %v7358
      %v7367 = vmax.f32 %v7350, %v7359
      %v7368 = vmax.f32 %v7351, %v7360
      %v7369 = vmax.f32 %v7352, %v7361
      %v7370 = vmax.f32 %v7353, %v7362
      %v7371 = vmax.f32 %v7354, %v7363
      %v7372 = vmax.f32 %v7355, %v7364
      %v7373 = vmax.f32 %v7356, %v7365
      %v7382 = vrot.slane %v7366, 1
      %v7383 = vrot.slane %v7367, 1
      %v7384 = vrot.slane %v7368, 1
      %v7385 = vrot.slane %v7369, 1
      %v7386 = vrot.slane %v7370, 1
      %v7387 = vrot.slane %v7371, 1
      %v7388 = vrot.slane %v7372, 1
      %v7389 = vrot.slane %v7373, 1
      %v7398 = vmax.f32 %v7366, %v7382
      %v7399 = vmax.f32 %v7367, %v7383
      %v7400 = vmax.f32 %v7368, %v7384
      %v7401 = vmax.f32 %v7369, %v7385
      %v7402 = vmax.f32 %v7370, %v7386
      %v7403 = vmax.f32 %v7371, %v7387
      %v7404 = vmax.f32 %v7372, %v7388
      %v7405 = vmax.f32 %v7373, %v7389
      %v7414 = vrot.slane %v7398, 2
      %v7415 = vrot.slane %v7399, 2
      %v7416 = vrot.slane %v7400, 2
      %v7417 = vrot.slane %v7401, 2
      %v7418 = vrot.slane %v7402, 2
      %v7419 = vrot.slane %v7403, 2
      %v7420 = vrot.slane %v7404, 2
      %v7421 = vrot.slane %v7405, 2
      %v7430 = vadd.f32 %v7398, %v7414
      %v7431 = vadd.f32 %v7399, %v7415
      %v7432 = vadd.f32 %v7400, %v7416
      %v7433 = vadd.f32 %v7401, %v7417
      %v7434 = vadd.f32 %v7402, %v7418
      %v7435 = vadd.f32 %v7403, %v7419
      %v7436 = vadd.f32 %v7404, %v7420
      %v7437 = vadd.f32 %v7405, %v7421
      %v7438 = vrot.slane %v7398, 4
      %v7439 = vrot.slane %v7399, 4
      %v7440 = vrot.slane %v7400, 4
      %v7441 = vrot.slane %v7401, 4
      %v7442 = vrot.slane %v7402, 4
      %v7443 = vrot.slane %v7403, 4
      %v7444 = vrot.slane %v7404, 4
      %v7445 = vrot.slane %v7405, 4
      %v7454 = vadd.f32 %v7430, %v7438
      %v7455 = vadd.f32 %v7431, %v7439
      %v7456 = vadd.f32 %v7432, %v7440
      %v7457 = vadd.f32 %v7433, %v7441
      %v7458 = vadd.f32 %v7434, %v7442
      %v7459 = vadd.f32 %v7435, %v7443
      %v7460 = vadd.f32 %v7436, %v7444
      %v7461 = vadd.f32 %v7437, %v7445
      %s7462 = scalar_lea.vmem [#allocation3], 32
      %v7463 = vld [vmem:[%s7462] sm:$0x7f]
      %v7464 = vld [vmem:[%s7462 + $0x100] sm:$0x7f]
      %v7465 = vld [vmem:[%s7462 + $0x200] sm:$0x7f]
      %v7466 = vld [vmem:[%s7462 + $0x300] sm:$0x7f]
      %v7467 = vld [vmem:[%s7462 + $0x400] sm:$0x7f]
      %v7468 = vld [vmem:[%s7462 + $0x500] sm:$0x7f]
      %v7469 = vld [vmem:[%s7462 + $0x600] sm:$0x7f]
      %v7470 = vld [vmem:[%s7462 + $0x700] sm:$0x7f]
      %s7471 = scalar_lea.vmem [#allocation3], 48
      %v7472 = vld [vmem:[%s7471] sm:$0x7f]
      %v7473 = vld [vmem:[%s7471 + $0x100] sm:$0x7f]
      %v7474 = vld [vmem:[%s7471 + $0x200] sm:$0x7f]
      %v7475 = vld [vmem:[%s7471 + $0x300] sm:$0x7f]
      %v7476 = vld [vmem:[%s7471 + $0x400] sm:$0x7f]
      %v7477 = vld [vmem:[%s7471 + $0x500] sm:$0x7f]
      %v7478 = vld [vmem:[%s7471 + $0x600] sm:$0x7f]
      %v7479 = vld [vmem:[%s7471 + $0x700] sm:$0x7f]
      %v7480 = vmax.f32 %v7463, %v7472
      %v7481 = vmax.f32 %v7464, %v7473
      %v7482 = vmax.f32 %v7465, %v7474
      %v7483 = vmax.f32 %v7466, %v7475
      %v7484 = vmax.f32 %v7467, %v7476
      %v7485 = vmax.f32 %v7468, %v7477
      %v7486 = vmax.f32 %v7469, %v7478
      %v7487 = vmax.f32 %v7470, %v7479
      %v7496 = vrot.slane %v7480, 1
      %v7497 = vrot.slane %v7481, 1
      %v7498 = vrot.slane %v7482, 1
      %v7499 = vrot.slane %v7483, 1
      %v7500 = vrot.slane %v7484, 1
      %v7501 = vrot.slane %v7485, 1
      %v7502 = vrot.slane %v7486, 1
      %v7503 = vrot.slane %v7487, 1
      %v7512 = vmax.f32 %v7480, %v7496
      %v7513 = vmax.f32 %v7481, %v7497
      %v7514 = vmax.f32 %v7482, %v7498
      %v7515 = vmax.f32 %v7483, %v7499
      %v7516 = vmax.f32 %v7484, %v7500
      %v7517 = vmax.f32 %v7485, %v7501
      %v7518 = vmax.f32 %v7486, %v7502
      %v7519 = vmax.f32 %v7487, %v7503
      %v7528 = vrot.slane %v7512, 2
      %v7529 = vrot.slane %v7513, 2
      %v7530 = vrot.slane %v7514, 2
      %v7531 = vrot.slane %v7515, 2
      %v7532 = vrot.slane %v7516, 2
      %v7533 = vrot.slane %v7517, 2
      %v7534 = vrot.slane %v7518, 2
      %v7535 = vrot.slane %v7519, 2
      %v7544 = vadd.f32 %v7512, %v7528
      %v7545 = vadd.f32 %v7513, %v7529
      %v7546 = vadd.f32 %v7514, %v7530
      %v7547 = vadd.f32 %v7515, %v7531
      %v7548 = vadd.f32 %v7516, %v7532
      %v7549 = vadd.f32 %v7517, %v7533
      %v7550 = vadd.f32 %v7518, %v7534
      %v7551 = vadd.f32 %v7519, %v7535
      %v7552 = vrot.slane %v7512, 4
      %v7553 = vrot.slane %v7513, 4
      %v7554 = vrot.slane %v7514, 4
      %v7555 = vrot.slane %v7515, 4
      %v7556 = vrot.slane %v7516, 4
      %v7557 = vrot.slane %v7517, 4
      %v7558 = vrot.slane %v7518, 4
      %v7559 = vrot.slane %v7519, 4
      %v7568 = vadd.f32 %v7544, %v7552
      %v7569 = vadd.f32 %v7545, %v7553
      %v7570 = vadd.f32 %v7546, %v7554
      %v7571 = vadd.f32 %v7547, %v7555
      %v7572 = vadd.f32 %v7548, %v7556
      %v7573 = vadd.f32 %v7549, %v7557
      %v7574 = vadd.f32 %v7550, %v7558
      %v7575 = vadd.f32 %v7551, %v7559
      %v7576 = vadd.f32 %v7454, %v7568
      %v7577 = vadd.f32 %v7455, %v7569
      %v7578 = vadd.f32 %v7456, %v7570
      %v7579 = vadd.f32 %v7457, %v7571
      %v7580 = vadd.f32 %v7458, %v7572
      %v7581 = vadd.f32 %v7459, %v7573
      %v7582 = vadd.f32 %v7460, %v7574
      %v7583 = vadd.f32 %v7461, %v7575
      %s7584 = scalar_lea.vmem [#allocation3], 64
      %v7585 = vld [vmem:[%s7584] sm:$0x7f]
      %v7586 = vld [vmem:[%s7584 + $0x100] sm:$0x7f]
      %v7587 = vld [vmem:[%s7584 + $0x200] sm:$0x7f]
      %v7588 = vld [vmem:[%s7584 + $0x300] sm:$0x7f]
      %v7589 = vld [vmem:[%s7584 + $0x400] sm:$0x7f]
      %v7590 = vld [vmem:[%s7584 + $0x500] sm:$0x7f]
      %v7591 = vld [vmem:[%s7584 + $0x600] sm:$0x7f]
      %v7592 = vld [vmem:[%s7584 + $0x700] sm:$0x7f]
      %s7593 = scalar_lea.vmem [#allocation3], 80
      %v7594 = vld [vmem:[%s7593] sm:$0x7f]
      %v7595 = vld [vmem:[%s7593 + $0x100] sm:$0x7f]
      %v7596 = vld [vmem:[%s7593 + $0x200] sm:$0x7f]
      %v7597 = vld [vmem:[%s7593 + $0x300] sm:$0x7f]
      %v7598 = vld [vmem:[%s7593 + $0x400] sm:$0x7f]
      %v7599 = vld [vmem:[%s7593 + $0x500] sm:$0x7f]
      %v7600 = vld [vmem:[%s7593 + $0x600] sm:$0x7f]
      %v7601 = vld [vmem:[%s7593 + $0x700] sm:$0x7f]
      %v7602 = vmax.f32 %v7585, %v7594
      %v7603 = vmax.f32 %v7586, %v7595
      %v7604 = vmax.f32 %v7587, %v7596
      %v7605 = vmax.f32 %v7588, %v7597
      %v7606 = vmax.f32 %v7589, %v7598
      %v7607 = vmax.f32 %v7590, %v7599
      %v7608 = vmax.f32 %v7591, %v7600
      %v7609 = vmax.f32 %v7592, %v7601
      %v7618 = vrot.slane %v7602, 1
      %v7619 = vrot.slane %v7603, 1
      %v7620 = vrot.slane %v7604, 1
      %v7621 = vrot.slane %v7605, 1
      %v7622 = vrot.slane %v7606, 1
      %v7623 = vrot.slane %v7607, 1
      %v7624 = vrot.slane %v7608, 1
      %v7625 = vrot.slane %v7609, 1
      %v7634 = vmax.f32 %v7602, %v7618
      %v7635 = vmax.f32 %v7603, %v7619
      %v7636 = vmax.f32 %v7604, %v7620
      %v7637 = vmax.f32 %v7605, %v7621
      %v7638 = vmax.f32 %v7606, %v7622
      %v7639 = vmax.f32 %v7607, %v7623
      %v7640 = vmax.f32 %v7608, %v7624
      %v7641 = vmax.f32 %v7609, %v7625
      %v7650 = vrot.slane %v7634, 2
      %v7651 = vrot.slane %v7635, 2
      %v7652 = vrot.slane %v7636, 2
      %v7653 = vrot.slane %v7637, 2
      %v7654 = vrot.slane %v7638, 2
      %v7655 = vrot.slane %v7639, 2
      %v7656 = vrot.slane %v7640, 2
      %v7657 = vrot.slane %v7641, 2
      %v7666 = vadd.f32 %v7634, %v7650
      %v7667 = vadd.f32 %v7635, %v7651
      %v7668 = vadd.f32 %v7636, %v7652
      %v7669 = vadd.f32 %v7637, %v7653
      %v7670 = vadd.f32 %v7638, %v7654
      %v7671 = vadd.f32 %v7639, %v7655
      %v7672 = vadd.f32 %v7640, %v7656
      %v7673 = vadd.f32 %v7641, %v7657
      %v7674 = vrot.slane %v7634, 4
      %v7675 = vrot.slane %v7635, 4
      %v7676 = vrot.slane %v7636, 4
      %v7677 = vrot.slane %v7637, 4
      %v7678 = vrot.slane %v7638, 4
      %v7679 = vrot.slane %v7639, 4
      %v7680 = vrot.slane %v7640, 4
      %v7681 = vrot.slane %v7641, 4
      %v7690 = vadd.f32 %v7666, %v7674
      %v7691 = vadd.f32 %v7667, %v7675
      %v7692 = vadd.f32 %v7668, %v7676
      %v7693 = vadd.f32 %v7669, %v7677
      %v7694 = vadd.f32 %v7670, %v7678
      %v7695 = vadd.f32 %v7671, %v7679
      %v7696 = vadd.f32 %v7672, %v7680
      %v7697 = vadd.f32 %v7673, %v7681
      %v7698 = vadd.f32 %v7576, %v7690
      %v7699 = vadd.f32 %v7577, %v7691
      %v7700 = vadd.f32 %v7578, %v7692
      %v7701 = vadd.f32 %v7579, %v7693
      %v7702 = vadd.f32 %v7580, %v7694
      %v7703 = vadd.f32 %v7581, %v7695
      %v7704 = vadd.f32 %v7582, %v7696
      %v7705 = vadd.f32 %v7583, %v7697
      %v7706 = vld [vmem:[#allocation3 + $0x6] sm:$0x7f]
      %v7707 = vld [vmem:[#allocation3 + $0x106] sm:$0x7f]
      %v7708 = vld [vmem:[#allocation3 + $0x206] sm:$0x7f]
      %v7709 = vld [vmem:[#allocation3 + $0x306] sm:$0x7f]
      %v7710 = vld [vmem:[#allocation3 + $0x406] sm:$0x7f]
      %v7711 = vld [vmem:[#allocation3 + $0x506] sm:$0x7f]
      %v7712 = vld [vmem:[#allocation3 + $0x606] sm:$0x7f]
      %v7713 = vld [vmem:[#allocation3 + $0x706] sm:$0x7f]
      %v7714 = vld [vmem:[%s7357 + $0x6] sm:$0x7f]
      %v7715 = vld [vmem:[%s7357 + $0x106] sm:$0x7f]
      %v7716 = vld [vmem:[%s7357 + $0x206] sm:$0x7f]
      %v7717 = vld [vmem:[%s7357 + $0x306] sm:$0x7f]
      %v7718 = vld [vmem:[%s7357 + $0x406] sm:$0x7f]
      %v7719 = vld [vmem:[%s7357 + $0x506] sm:$0x7f]
      %v7720 = vld [vmem:[%s7357 + $0x606] sm:$0x7f]
      %v7721 = vld [vmem:[%s7357 + $0x706] sm:$0x7f]
      %v7722 = vmax.f32 %v7706, %v7714
      %v7723 = vmax.f32 %v7707, %v7715
      %v7724 = vmax.f32 %v7708, %v7716
      %v7725 = vmax.f32 %v7709, %v7717
      %v7726 = vmax.f32 %v7710, %v7718
      %v7727 = vmax.f32 %v7711, %v7719
      %v7728 = vmax.f32 %v7712, %v7720
      %v7729 = vmax.f32 %v7713, %v7721
      %v7738 = vrot.slane %v7722, 1
      %v7739 = vrot.slane %v7723, 1
      %v7740 = vrot.slane %v7724, 1
      %v7741 = vrot.slane %v7725, 1
      %v7742 = vrot.slane %v7726, 1
      %v7743 = vrot.slane %v7727, 1
      %v7744 = vrot.slane %v7728, 1
      %v7745 = vrot.slane %v7729, 1
      %v7754 = vmax.f32 %v7722, %v7738
      %v7755 = vmax.f32 %v7723, %v7739
      %v7756 = vmax.f32 %v7724, %v7740
      %v7757 = vmax.f32 %v7725, %v7741
      %v7758 = vmax.f32 %v7726, %v7742
      %v7759 = vmax.f32 %v7727, %v7743
      %v7760 = vmax.f32 %v7728, %v7744
      %v7761 = vmax.f32 %v7729, %v7745
      %v7770 = vrot.slane %v7754, 2
      %v7771 = vrot.slane %v7755, 2
      %v7772 = vrot.slane %v7756, 2
      %v7773 = vrot.slane %v7757, 2
      %v7774 = vrot.slane %v7758, 2
      %v7775 = vrot.slane %v7759, 2
      %v7776 = vrot.slane %v7760, 2
      %v7777 = vrot.slane %v7761, 2
      %v7786 = vadd.f32 %v7754, %v7770
      %v7787 = vadd.f32 %v7755, %v7771
      %v7788 = vadd.f32 %v7756, %v7772
      %v7789 = vadd.f32 %v7757, %v7773
      %v7790 = vadd.f32 %v7758, %v7774
      %v7791 = vadd.f32 %v7759, %v7775
      %v7792 = vadd.f32 %v7760, %v7776
      %v7793 = vadd.f32 %v7761, %v7777
      %v7794 = vrot.slane %v7754, 4
      %v7795 = vrot.slane %v7755, 4
      %v7796 = vrot.slane %v7756, 4
      %v7797 = vrot.slane %v7757, 4
      %v7798 = vrot.slane %v7758, 4
      %v7799 = vrot.slane %v7759, 4
      %v7800 = vrot.slane %v7760, 4
      %v7801 = vrot.slane %v7761, 4
      %v7810 = vadd.f32 %v7786, %v7794
      %v7811 = vadd.f32 %v7787, %v7795
      %v7812 = vadd.f32 %v7788, %v7796
      %v7813 = vadd.f32 %v7789, %v7797
      %v7814 = vadd.f32 %v7790, %v7798
      %v7815 = vadd.f32 %v7791, %v7799
      %v7816 = vadd.f32 %v7792, %v7800
      %v7817 = vadd.f32 %v7793, %v7801
      %v7818 = vld [vmem:[%s7462 + $0x6] sm:$0x7f]
      %v7819 = vld [vmem:[%s7462 + $0x106] sm:$0x7f]
      %v7820 = vld [vmem:[%s7462 + $0x206] sm:$0x7f]
      %v7821 = vld [vmem:[%s7462 + $0x306] sm:$0x7f]
      %v7822 = vld [vmem:[%s7462 + $0x406] sm:$0x7f]
      %v7823 = vld [vmem:[%s7462 + $0x506] sm:$0x7f]
      %v7824 = vld [vmem:[%s7462 + $0x606] sm:$0x7f]
      %v7825 = vld [vmem:[%s7462 + $0x706] sm:$0x7f]
      %v7826 = vld [vmem:[%s7471 + $0x6] sm:$0x7f]
      %v7827 = vld [vmem:[%s7471 + $0x106] sm:$0x7f]
      %v7828 = vld [vmem:[%s7471 + $0x206] sm:$0x7f]
      %v7829 = vld [vmem:[%s7471 + $0x306] sm:$0x7f]
      %v7830 = vld [vmem:[%s7471 + $0x406] sm:$0x7f]
      %v7831 = vld [vmem:[%s7471 + $0x506] sm:$0x7f]
      %v7832 = vld [vmem:[%s7471 + $0x606] sm:$0x7f]
      %v7833 = vld [vmem:[%s7471 + $0x706] sm:$0x7f]
      %v7834 = vmax.f32 %v7818, %v7826
      %v7835 = vmax.f32 %v7819, %v7827
      %v7836 = vmax.f32 %v7820, %v7828
      %v7837 = vmax.f32 %v7821, %v7829
      %v7838 = vmax.f32 %v7822, %v7830
      %v7839 = vmax.f32 %v7823, %v7831
      %v7840 = vmax.f32 %v7824, %v7832
      %v7841 = vmax.f32 %v7825, %v7833
      %v7850 = vrot.slane %v7834, 1
      %v7851 = vrot.slane %v7835, 1
      %v7852 = vrot.slane %v7836, 1
      %v7853 = vrot.slane %v7837, 1
      %v7854 = vrot.slane %v7838, 1
      %v7855 = vrot.slane %v7839, 1
      %v7856 = vrot.slane %v7840, 1
      %v7857 = vrot.slane %v7841, 1
      %v7866 = vmax.f32 %v7834, %v7850
      %v7867 = vmax.f32 %v7835, %v7851
      %v7868 = vmax.f32 %v7836, %v7852
      %v7869 = vmax.f32 %v7837, %v7853
      %v7870 = vmax.f32 %v7838, %v7854
      %v7871 = vmax.f32 %v7839, %v7855
      %v7872 = vmax.f32 %v7840, %v7856
      %v7873 = vmax.f32 %v7841, %v7857
      %v7882 = vrot.slane %v7866, 2
      %v7883 = vrot.slane %v7867, 2
      %v7884 = vrot.slane %v7868, 2
      %v7885 = vrot.slane %v7869, 2
      %v7886 = vrot.slane %v7870, 2
      %v7887 = vrot.slane %v7871, 2
      %v7888 = vrot.slane %v7872, 2
      %v7889 = vrot.slane %v7873, 2
      %v7898 = vadd.f32 %v7866, %v7882
      %v7899 = vadd.f32 %v7867, %v7883
      %v7900 = vadd.f32 %v7868, %v7884
      %v7901 = vadd.f32 %v7869, %v7885
      %v7902 = vadd.f32 %v7870, %v7886
      %v7903 = vadd.f32 %v7871, %v7887
      %v7904 = vadd.f32 %v7872, %v7888
      %v7905 = vadd.f32 %v7873, %v7889
      %v7906 = vrot.slane %v7866, 4
      %v7907 = vrot.slane %v7867, 4
      %v7908 = vrot.slane %v7868, 4
      %v7909 = vrot.slane %v7869, 4
      %v7910 = vrot.slane %v7870, 4
      %v7911 = vrot.slane %v7871, 4
      %v7912 = vrot.slane %v7872, 4
      %v7913 = vrot.slane %v7873, 4
      %v7922 = vadd.f32 %v7898, %v7906
      %v7923 = vadd.f32 %v7899, %v7907
      %v7924 = vadd.f32 %v7900, %v7908
      %v7925 = vadd.f32 %v7901, %v7909
      %v7926 = vadd.f32 %v7902, %v7910
      %v7927 = vadd.f32 %v7903, %v7911
      %v7928 = vadd.f32 %v7904, %v7912
      %v7929 = vadd.f32 %v7905, %v7913
      %v7930 = vadd.f32 %v7810, %v7922
      %v7931 = vadd.f32 %v7811, %v7923
      %v7932 = vadd.f32 %v7812, %v7924
      %v7933 = vadd.f32 %v7813, %v7925
      %v7934 = vadd.f32 %v7814, %v7926
      %v7935 = vadd.f32 %v7815, %v7927
      %v7936 = vadd.f32 %v7816, %v7928
      %v7937 = vadd.f32 %v7817, %v7929
      %v7938 = vld [vmem:[%s7584 + $0x6] sm:$0x7f]
      %v7939 = vld [vmem:[%s7584 + $0x106] sm:$0x7f]
      %v7940 = vld [vmem:[%s7584 + $0x206] sm:$0x7f]
      %v7941 = vld [vmem:[%s7584 + $0x306] sm:$0x7f]
      %v7942 = vld [vmem:[%s7584 + $0x406] sm:$0x7f]
      %v7943 = vld [vmem:[%s7584 + $0x506] sm:$0x7f]
      %v7944 = vld [vmem:[%s7584 + $0x606] sm:$0x7f]
      %v7945 = vld [vmem:[%s7584 + $0x706] sm:$0x7f]
      %v7946 = vld [vmem:[%s7593 + $0x6] sm:$0x7f]
      %v7947 = vld [vmem:[%s7593 + $0x106] sm:$0x7f]
      %v7948 = vld [vmem:[%s7593 + $0x206] sm:$0x7f]
      %v7949 = vld [vmem:[%s7593 + $0x306] sm:$0x7f]
      %v7950 = vld [vmem:[%s7593 + $0x406] sm:$0x7f]
      %v7951 = vld [vmem:[%s7593 + $0x506] sm:$0x7f]
      %v7952 = vld [vmem:[%s7593 + $0x606] sm:$0x7f]
      %v7953 = vld [vmem:[%s7593 + $0x706] sm:$0x7f]
      %v7954 = vmax.f32 %v7938, %v7946
      %v7955 = vmax.f32 %v7939, %v7947
      %v7956 = vmax.f32 %v7940, %v7948
      %v7957 = vmax.f32 %v7941, %v7949
      %v7958 = vmax.f32 %v7942, %v7950
      %v7959 = vmax.f32 %v7943, %v7951
      %v7960 = vmax.f32 %v7944, %v7952
      %v7961 = vmax.f32 %v7945, %v7953
      %v7970 = vrot.slane %v7954, 1
      %v7971 = vrot.slane %v7955, 1
      %v7972 = vrot.slane %v7956, 1
      %v7973 = vrot.slane %v7957, 1
      %v7974 = vrot.slane %v7958, 1
      %v7975 = vrot.slane %v7959, 1
      %v7976 = vrot.slane %v7960, 1
      %v7977 = vrot.slane %v7961, 1
      %v7986 = vmax.f32 %v7954, %v7970
      %v7987 = vmax.f32 %v7955, %v7971
      %v7988 = vmax.f32 %v7956, %v7972
      %v7989 = vmax.f32 %v7957, %v7973
      %v7990 = vmax.f32 %v7958, %v7974
      %v7991 = vmax.f32 %v7959, %v7975
      %v7992 = vmax.f32 %v7960, %v7976
      %v7993 = vmax.f32 %v7961, %v7977
      %v8002 = vrot.slane %v7986, 2
      %v8003 = vrot.slane %v7987, 2
      %v8004 = vrot.slane %v7988, 2
      %v8005 = vrot.slane %v7989, 2
      %v8006 = vrot.slane %v7990, 2
      %v8007 = vrot.slane %v7991, 2
      %v8008 = vrot.slane %v7992, 2
      %v8009 = vrot.slane %v7993, 2
      %v8018 = vadd.f32 %v7986, %v8002
      %v8019 = vadd.f32 %v7987, %v8003
      %v8020 = vadd.f32 %v7988, %v8004
      %v8021 = vadd.f32 %v7989, %v8005
      %v8022 = vadd.f32 %v7990, %v8006
      %v8023 = vadd.f32 %v7991, %v8007
      %v8024 = vadd.f32 %v7992, %v8008
      %v8025 = vadd.f32 %v7993, %v8009
      %v8026 = vrot.slane %v7986, 4
      %v8027 = vrot.slane %v7987, 4
      %v8028 = vrot.slane %v7988, 4
      %v8029 = vrot.slane %v7989, 4
      %v8030 = vrot.slane %v7990, 4
      %v8031 = vrot.slane %v7991, 4
      %v8032 = vrot.slane %v7992, 4
      %v8033 = vrot.slane %v7993, 4
      %v8042 = vadd.f32 %v8018, %v8026
      %v8043 = vadd.f32 %v8019, %v8027
      %v8044 = vadd.f32 %v8020, %v8028
      %v8045 = vadd.f32 %v8021, %v8029
      %v8046 = vadd.f32 %v8022, %v8030
      %v8047 = vadd.f32 %v8023, %v8031
      %v8048 = vadd.f32 %v8024, %v8032
      %v8049 = vadd.f32 %v8025, %v8033
      %v8050 = vadd.f32 %v7930, %v8042
      %v8051 = vadd.f32 %v7931, %v8043
      %v8052 = vadd.f32 %v7932, %v8044
      %v8053 = vadd.f32 %v7933, %v8045
      %v8054 = vadd.f32 %v7934, %v8046
      %v8055 = vadd.f32 %v7935, %v8047
      %v8056 = vadd.f32 %v7936, %v8048
      %v8057 = vadd.f32 %v7937, %v8049
      %s8058 = scalar_lea.vmem [#allocation3], 96
      %v8059 = vld [vmem:[%s8058] sm:$0x7f]
      %v8060 = vld [vmem:[%s8058 + $0x100] sm:$0x7f]
      %v8061 = vld [vmem:[%s8058 + $0x200] sm:$0x7f]
      %v8062 = vld [vmem:[%s8058 + $0x300] sm:$0x7f]
      %v8063 = vld [vmem:[%s8058 + $0x400] sm:$0x7f]
      %v8064 = vld [vmem:[%s8058 + $0x500] sm:$0x7f]
      %v8065 = vld [vmem:[%s8058 + $0x600] sm:$0x7f]
      %v8066 = vld [vmem:[%s8058 + $0x700] sm:$0x7f]
      %s8067 = scalar_lea.vmem [#allocation3], 112
      %v8068 = vld [vmem:[%s8067] sm:$0x7f]
      %v8069 = vld [vmem:[%s8067 + $0x100] sm:$0x7f]
      %v8070 = vld [vmem:[%s8067 + $0x200] sm:$0x7f]
      %v8071 = vld [vmem:[%s8067 + $0x300] sm:$0x7f]
      %v8072 = vld [vmem:[%s8067 + $0x400] sm:$0x7f]
      %v8073 = vld [vmem:[%s8067 + $0x500] sm:$0x7f]
      %v8074 = vld [vmem:[%s8067 + $0x600] sm:$0x7f]
      %v8075 = vld [vmem:[%s8067 + $0x700] sm:$0x7f]
      %v8076 = vmax.f32 %v8059, %v8068
      %v8077 = vmax.f32 %v8060, %v8069
      %v8078 = vmax.f32 %v8061, %v8070
      %v8079 = vmax.f32 %v8062, %v8071
      %v8080 = vmax.f32 %v8063, %v8072
      %v8081 = vmax.f32 %v8064, %v8073
      %v8082 = vmax.f32 %v8065, %v8074
      %v8083 = vmax.f32 %v8066, %v8075
      %v8092 = vrot.slane %v8076, 1
      %v8093 = vrot.slane %v8077, 1
      %v8094 = vrot.slane %v8078, 1
      %v8095 = vrot.slane %v8079, 1
      %v8096 = vrot.slane %v8080, 1
      %v8097 = vrot.slane %v8081, 1
      %v8098 = vrot.slane %v8082, 1
      %v8099 = vrot.slane %v8083, 1
      %v8108 = vmax.f32 %v8076, %v8092
      %v8109 = vmax.f32 %v8077, %v8093
      %v8110 = vmax.f32 %v8078, %v8094
      %v8111 = vmax.f32 %v8079, %v8095
      %v8112 = vmax.f32 %v8080, %v8096
      %v8113 = vmax.f32 %v8081, %v8097
      %v8114 = vmax.f32 %v8082, %v8098
      %v8115 = vmax.f32 %v8083, %v8099
      %v8124 = vrot.slane %v8108, 2
      %v8125 = vrot.slane %v8109, 2
      %v8126 = vrot.slane %v8110, 2
      %v8127 = vrot.slane %v8111, 2
      %v8128 = vrot.slane %v8112, 2
      %v8129 = vrot.slane %v8113, 2
      %v8130 = vrot.slane %v8114, 2
      %v8131 = vrot.slane %v8115, 2
      %v8140 = vadd.f32 %v8108, %v8124
      %v8141 = vadd.f32 %v8109, %v8125
      %v8142 = vadd.f32 %v8110, %v8126
      %v8143 = vadd.f32 %v8111, %v8127
      %v8144 = vadd.f32 %v8112, %v8128
      %v8145 = vadd.f32 %v8113, %v8129
      %v8146 = vadd.f32 %v8114, %v8130
      %v8147 = vadd.f32 %v8115, %v8131
      %v8148 = vrot.slane %v8108, 4
      %v8149 = vrot.slane %v8109, 4
      %v8150 = vrot.slane %v8110, 4
      %v8151 = vrot.slane %v8111, 4
      %v8152 = vrot.slane %v8112, 4
      %v8153 = vrot.slane %v8113, 4
      %v8154 = vrot.slane %v8114, 4
      %v8155 = vrot.slane %v8115, 4
      %v8164 = vadd.f32 %v8140, %v8148
      %v8165 = vadd.f32 %v8141, %v8149
      %v8166 = vadd.f32 %v8142, %v8150
      %v8167 = vadd.f32 %v8143, %v8151
      %v8168 = vadd.f32 %v8144, %v8152
      %v8169 = vadd.f32 %v8145, %v8153
      %v8170 = vadd.f32 %v8146, %v8154
      %v8171 = vadd.f32 %v8147, %v8155
      %s8172 = scalar_lea.vmem [#allocation3], 128
      %v8173 = vld [vmem:[%s8172] sm:$0x7f]
      %v8174 = vld [vmem:[%s8172 + $0x100] sm:$0x7f]
      %v8175 = vld [vmem:[%s8172 + $0x200] sm:$0x7f]
      %v8176 = vld [vmem:[%s8172 + $0x300] sm:$0x7f]
      %v8177 = vld [vmem:[%s8172 + $0x400] sm:$0x7f]
      %v8178 = vld [vmem:[%s8172 + $0x500] sm:$0x7f]
      %v8179 = vld [vmem:[%s8172 + $0x600] sm:$0x7f]
      %v8180 = vld [vmem:[%s8172 + $0x700] sm:$0x7f]
      %s8181 = scalar_lea.vmem [#allocation3], 144
      %v8182 = vld [vmem:[%s8181] sm:$0x7f]
      %v8183 = vld [vmem:[%s8181 + $0x100] sm:$0x7f]
      %v8184 = vld [vmem:[%s8181 + $0x200] sm:$0x7f]
      %v8185 = vld [vmem:[%s8181 + $0x300] sm:$0x7f]
      %v8186 = vld [vmem:[%s8181 + $0x400] sm:$0x7f]
      %v8187 = vld [vmem:[%s8181 + $0x500] sm:$0x7f]
      %v8188 = vld [vmem:[%s8181 + $0x600] sm:$0x7f]
      %v8189 = vld [vmem:[%s8181 + $0x700] sm:$0x7f]
      %v8190 = vmax.f32 %v8173, %v8182
      %v8191 = vmax.f32 %v8174, %v8183
      %v8192 = vmax.f32 %v8175, %v8184
      %v8193 = vmax.f32 %v8176, %v8185
      %v8194 = vmax.f32 %v8177, %v8186
      %v8195 = vmax.f32 %v8178, %v8187
      %v8196 = vmax.f32 %v8179, %v8188
      %v8197 = vmax.f32 %v8180, %v8189
      %v8206 = vrot.slane %v8190, 1
      %v8207 = vrot.slane %v8191, 1
      %v8208 = vrot.slane %v8192, 1
      %v8209 = vrot.slane %v8193, 1
      %v8210 = vrot.slane %v8194, 1
      %v8211 = vrot.slane %v8195, 1
      %v8212 = vrot.slane %v8196, 1
      %v8213 = vrot.slane %v8197, 1
      %v8222 = vmax.f32 %v8190, %v8206
      %v8223 = vmax.f32 %v8191, %v8207
      %v8224 = vmax.f32 %v8192, %v8208
      %v8225 = vmax.f32 %v8193, %v8209
      %v8226 = vmax.f32 %v8194, %v8210
      %v8227 = vmax.f32 %v8195, %v8211
      %v8228 = vmax.f32 %v8196, %v8212
      %v8229 = vmax.f32 %v8197, %v8213
      %v8238 = vrot.slane %v8222, 2
      %v8239 = vrot.slane %v8223, 2
      %v8240 = vrot.slane %v8224, 2
      %v8241 = vrot.slane %v8225, 2
      %v8242 = vrot.slane %v8226, 2
      %v8243 = vrot.slane %v8227, 2
      %v8244 = vrot.slane %v8228, 2
      %v8245 = vrot.slane %v8229, 2
      %v8254 = vadd.f32 %v8222, %v8238
      %v8255 = vadd.f32 %v8223, %v8239
      %v8256 = vadd.f32 %v8224, %v8240
      %v8257 = vadd.f32 %v8225, %v8241
      %v8258 = vadd.f32 %v8226, %v8242
      %v8259 = vadd.f32 %v8227, %v8243
      %v8260 = vadd.f32 %v8228, %v8244
      %v8261 = vadd.f32 %v8229, %v8245
      %v8262 = vrot.slane %v8222, 4
      %v8263 = vrot.slane %v8223, 4
      %v8264 = vrot.slane %v8224, 4
      %v8265 = vrot.slane %v8225, 4
      %v8266 = vrot.slane %v8226, 4
      %v8267 = vrot.slane %v8227, 4
      %v8268 = vrot.slane %v8228, 4
      %v8269 = vrot.slane %v8229, 4
      %v8278 = vadd.f32 %v8254, %v8262
      %v8279 = vadd.f32 %v8255, %v8263
      %v8280 = vadd.f32 %v8256, %v8264
      %v8281 = vadd.f32 %v8257, %v8265
      %v8282 = vadd.f32 %v8258, %v8266
      %v8283 = vadd.f32 %v8259, %v8267
      %v8284 = vadd.f32 %v8260, %v8268
      %v8285 = vadd.f32 %v8261, %v8269
      %v8286 = vadd.f32 %v8164, %v8278
      %v8287 = vadd.f32 %v8165, %v8279
      %v8288 = vadd.f32 %v8166, %v8280
      %v8289 = vadd.f32 %v8167, %v8281
      %v8290 = vadd.f32 %v8168, %v8282
      %v8291 = vadd.f32 %v8169, %v8283
      %v8292 = vadd.f32 %v8170, %v8284
      %v8293 = vadd.f32 %v8171, %v8285
      %s8294 = scalar_lea.vmem [#allocation3], 160
      %v8295 = vld [vmem:[%s8294] sm:$0x7f]
      %v8296 = vld [vmem:[%s8294 + $0x100] sm:$0x7f]
      %v8297 = vld [vmem:[%s8294 + $0x200] sm:$0x7f]
      %v8298 = vld [vmem:[%s8294 + $0x300] sm:$0x7f]
      %v8299 = vld [vmem:[%s8294 + $0x400] sm:$0x7f]
      %v8300 = vld [vmem:[%s8294 + $0x500] sm:$0x7f]
      %v8301 = vld [vmem:[%s8294 + $0x600] sm:$0x7f]
      %v8302 = vld [vmem:[%s8294 + $0x700] sm:$0x7f]
      %s8303 = scalar_lea.vmem [#allocation3], 176
      %v8304 = vld [vmem:[%s8303] sm:$0x7f]
      %v8305 = vld [vmem:[%s8303 + $0x100] sm:$0x7f]
      %v8306 = vld [vmem:[%s8303 + $0x200] sm:$0x7f]
      %v8307 = vld [vmem:[%s8303 + $0x300] sm:$0x7f]
      %v8308 = vld [vmem:[%s8303 + $0x400] sm:$0x7f]
      %v8309 = vld [vmem:[%s8303 + $0x500] sm:$0x7f]
      %v8310 = vld [vmem:[%s8303 + $0x600] sm:$0x7f]
      %v8311 = vld [vmem:[%s8303 + $0x700] sm:$0x7f]
      %v8312 = vmax.f32 %v8295, %v8304
      %v8313 = vmax.f32 %v8296, %v8305
      %v8314 = vmax.f32 %v8297, %v8306
      %v8315 = vmax.f32 %v8298, %v8307
      %v8316 = vmax.f32 %v8299, %v8308
      %v8317 = vmax.f32 %v8300, %v8309
      %v8318 = vmax.f32 %v8301, %v8310
      %v8319 = vmax.f32 %v8302, %v8311
      %v8328 = vrot.slane %v8312, 1
      %v8329 = vrot.slane %v8313, 1
      %v8330 = vrot.slane %v8314, 1
      %v8331 = vrot.slane %v8315, 1
      %v8332 = vrot.slane %v8316, 1
      %v8333 = vrot.slane %v8317, 1
      %v8334 = vrot.slane %v8318, 1
      %v8335 = vrot.slane %v8319, 1
      %v8344 = vmax.f32 %v8312, %v8328
      %v8345 = vmax.f32 %v8313, %v8329
      %v8346 = vmax.f32 %v8314, %v8330
      %v8347 = vmax.f32 %v8315, %v8331
      %v8348 = vmax.f32 %v8316, %v8332
      %v8349 = vmax.f32 %v8317, %v8333
      %v8350 = vmax.f32 %v8318, %v8334
      %v8351 = vmax.f32 %v8319, %v8335
      %v8360 = vrot.slane %v8344, 2
      %v8361 = vrot.slane %v8345, 2
      %v8362 = vrot.slane %v8346, 2
      %v8363 = vrot.slane %v8347, 2
      %v8364 = vrot.slane %v8348, 2
      %v8365 = vrot.slane %v8349, 2
      %v8366 = vrot.slane %v8350, 2
      %v8367 = vrot.slane %v8351, 2
      %v8376 = vadd.f32 %v8344, %v8360
      %v8377 = vadd.f32 %v8345, %v8361
      %v8378 = vadd.f32 %v8346, %v8362
      %v8379 = vadd.f32 %v8347, %v8363
      %v8380 = vadd.f32 %v8348, %v8364
      %v8381 = vadd.f32 %v8349, %v8365
      %v8382 = vadd.f32 %v8350, %v8366
      %v8383 = vadd.f32 %v8351, %v8367
      %v8384 = vrot.slane %v8344, 4
      %v8385 = vrot.slane %v8345, 4
      %v8386 = vrot.slane %v8346, 4
      %v8387 = vrot.slane %v8347, 4
      %v8388 = vrot.slane %v8348, 4
      %v8389 = vrot.slane %v8349, 4
      %v8390 = vrot.slane %v8350, 4
      %v8391 = vrot.slane %v8351, 4
      %v8400 = vadd.f32 %v8376, %v8384
      %v8401 = vadd.f32 %v8377, %v8385
      %v8402 = vadd.f32 %v8378, %v8386
      %v8403 = vadd.f32 %v8379, %v8387
      %v8404 = vadd.f32 %v8380, %v8388
      %v8405 = vadd.f32 %v8381, %v8389
      %v8406 = vadd.f32 %v8382, %v8390
      %v8407 = vadd.f32 %v8383, %v8391
      %v8408 = vadd.f32 %v8286, %v8400
      %v8409 = vadd.f32 %v8287, %v8401
      %v8410 = vadd.f32 %v8288, %v8402
      %v8411 = vadd.f32 %v8289, %v8403
      %v8412 = vadd.f32 %v8290, %v8404
      %v8413 = vadd.f32 %v8291, %v8405
      %v8414 = vadd.f32 %v8292, %v8406
      %v8415 = vadd.f32 %v8293, %v8407
      %v8416 = vld [vmem:[%s8058 + $0x6] sm:$0x7f]
      %v8417 = vld [vmem:[%s8058 + $0x106] sm:$0x7f]
      %v8418 = vld [vmem:[%s8058 + $0x206] sm:$0x7f]
      %v8419 = vld [vmem:[%s8058 + $0x306] sm:$0x7f]
      %v8420 = vld [vmem:[%s8058 + $0x406] sm:$0x7f]
      %v8421 = vld [vmem:[%s8058 + $0x506] sm:$0x7f]
      %v8422 = vld [vmem:[%s8058 + $0x606] sm:$0x7f]
      %v8423 = vld [vmem:[%s8058 + $0x706] sm:$0x7f]
      %v8424 = vld [vmem:[%s8067 + $0x6] sm:$0x7f]
      %v8425 = vld [vmem:[%s8067 + $0x106] sm:$0x7f]
      %v8426 = vld [vmem:[%s8067 + $0x206] sm:$0x7f]
      %v8427 = vld [vmem:[%s8067 + $0x306] sm:$0x7f]
      %v8428 = vld [vmem:[%s8067 + $0x406] sm:$0x7f]
      %v8429 = vld [vmem:[%s8067 + $0x506] sm:$0x7f]
      %v8430 = vld [vmem:[%s8067 + $0x606] sm:$0x7f]
      %v8431 = vld [vmem:[%s8067 + $0x706] sm:$0x7f]
      %v8432 = vmax.f32 %v8416, %v8424
      %v8433 = vmax.f32 %v8417, %v8425
      %v8434 = vmax.f32 %v8418, %v8426
      %v8435 = vmax.f32 %v8419, %v8427
      %v8436 = vmax.f32 %v8420, %v8428
      %v8437 = vmax.f32 %v8421, %v8429
      %v8438 = vmax.f32 %v8422, %v8430
      %v8439 = vmax.f32 %v8423, %v8431
      %v8448 = vrot.slane %v8432, 1
      %v8449 = vrot.slane %v8433, 1
      %v8450 = vrot.slane %v8434, 1
      %v8451 = vrot.slane %v8435, 1
      %v8452 = vrot.slane %v8436, 1
      %v8453 = vrot.slane %v8437, 1
      %v8454 = vrot.slane %v8438, 1
      %v8455 = vrot.slane %v8439, 1
      %v8464 = vmax.f32 %v8432, %v8448
      %v8465 = vmax.f32 %v8433, %v8449
      %v8466 = vmax.f32 %v8434, %v8450
      %v8467 = vmax.f32 %v8435, %v8451
      %v8468 = vmax.f32 %v8436, %v8452
      %v8469 = vmax.f32 %v8437, %v8453
      %v8470 = vmax.f32 %v8438, %v8454
      %v8471 = vmax.f32 %v8439, %v8455
      %v8480 = vrot.slane %v8464, 2
      %v8481 = vrot.slane %v8465, 2
      %v8482 = vrot.slane %v8466, 2
      %v8483 = vrot.slane %v8467, 2
      %v8484 = vrot.slane %v8468, 2
      %v8485 = vrot.slane %v8469, 2
      %v8486 = vrot.slane %v8470, 2
      %v8487 = vrot.slane %v8471, 2
      %v8496 = vadd.f32 %v8464, %v8480
      %v8497 = vadd.f32 %v8465, %v8481
      %v8498 = vadd.f32 %v8466, %v8482
      %v8499 = vadd.f32 %v8467, %v8483
      %v8500 = vadd.f32 %v8468, %v8484
      %v8501 = vadd.f32 %v8469, %v8485
      %v8502 = vadd.f32 %v8470, %v8486
      %v8503 = vadd.f32 %v8471, %v8487
      %v8504 = vrot.slane %v8464, 4
      %v8505 = vrot.slane %v8465, 4
      %v8506 = vrot.slane %v8466, 4
      %v8507 = vrot.slane %v8467, 4
      %v8508 = vrot.slane %v8468, 4
      %v8509 = vrot.slane %v8469, 4
      %v8510 = vrot.slane %v8470, 4
      %v8511 = vrot.slane %v8471, 4
      %v8520 = vadd.f32 %v8496, %v8504
      %v8521 = vadd.f32 %v8497, %v8505
      %v8522 = vadd.f32 %v8498, %v8506
      %v8523 = vadd.f32 %v8499, %v8507
      %v8524 = vadd.f32 %v8500, %v8508
      %v8525 = vadd.f32 %v8501, %v8509
      %v8526 = vadd.f32 %v8502, %v8510
      %v8527 = vadd.f32 %v8503, %v8511
      %v8528 = vld [vmem:[%s8172 + $0x6] sm:$0x7f]
      %v8529 = vld [vmem:[%s8172 + $0x106] sm:$0x7f]
      %v8530 = vld [vmem:[%s8172 + $0x206] sm:$0x7f]
      %v8531 = vld [vmem:[%s8172 + $0x306] sm:$0x7f]
      %v8532 = vld [vmem:[%s8172 + $0x406] sm:$0x7f]
      %v8533 = vld [vmem:[%s8172 + $0x506] sm:$0x7f]
      %v8534 = vld [vmem:[%s8172 + $0x606] sm:$0x7f]
      %v8535 = vld [vmem:[%s8172 + $0x706] sm:$0x7f]
      %v8536 = vld [vmem:[%s8181 + $0x6] sm:$0x7f]
      %v8537 = vld [vmem:[%s8181 + $0x106] sm:$0x7f]
      %v8538 = vld [vmem:[%s8181 + $0x206] sm:$0x7f]
      %v8539 = vld [vmem:[%s8181 + $0x306] sm:$0x7f]
      %v8540 = vld [vmem:[%s8181 + $0x406] sm:$0x7f]
      %v8541 = vld [vmem:[%s8181 + $0x506] sm:$0x7f]
      %v8542 = vld [vmem:[%s8181 + $0x606] sm:$0x7f]
      %v8543 = vld [vmem:[%s8181 + $0x706] sm:$0x7f]
      %v8544 = vmax.f32 %v8528, %v8536
      %v8545 = vmax.f32 %v8529, %v8537
      %v8546 = vmax.f32 %v8530, %v8538
      %v8547 = vmax.f32 %v8531, %v8539
      %v8548 = vmax.f32 %v8532, %v8540
      %v8549 = vmax.f32 %v8533, %v8541
      %v8550 = vmax.f32 %v8534, %v8542
      %v8551 = vmax.f32 %v8535, %v8543
      %v8560 = vrot.slane %v8544, 1
      %v8561 = vrot.slane %v8545, 1
      %v8562 = vrot.slane %v8546, 1
      %v8563 = vrot.slane %v8547, 1
      %v8564 = vrot.slane %v8548, 1
      %v8565 = vrot.slane %v8549, 1
      %v8566 = vrot.slane %v8550, 1
      %v8567 = vrot.slane %v8551, 1
      %v8576 = vmax.f32 %v8544, %v8560
      %v8577 = vmax.f32 %v8545, %v8561
      %v8578 = vmax.f32 %v8546, %v8562
      %v8579 = vmax.f32 %v8547, %v8563
      %v8580 = vmax.f32 %v8548, %v8564
      %v8581 = vmax.f32 %v8549, %v8565
      %v8582 = vmax.f32 %v8550, %v8566
      %v8583 = vmax.f32 %v8551, %v8567
      %v8592 = vrot.slane %v8576, 2
      %v8593 = vrot.slane %v8577, 2
      %v8594 = vrot.slane %v8578, 2
      %v8595 = vrot.slane %v8579, 2
      %v8596 = vrot.slane %v8580, 2
      %v8597 = vrot.slane %v8581, 2
      %v8598 = vrot.slane %v8582, 2
      %v8599 = vrot.slane %v8583, 2
      %v8608 = vadd.f32 %v8576, %v8592
      %v8609 = vadd.f32 %v8577, %v8593
      %v8610 = vadd.f32 %v8578, %v8594
      %v8611 = vadd.f32 %v8579, %v8595
      %v8612 = vadd.f32 %v8580, %v8596
      %v8613 = vadd.f32 %v8581, %v8597
      %v8614 = vadd.f32 %v8582, %v8598
      %v8615 = vadd.f32 %v8583, %v8599
      %v8616 = vrot.slane %v8576, 4
      %v8617 = vrot.slane %v8577, 4
      %v8618 = vrot.slane %v8578, 4
      %v8619 = vrot.slane %v8579, 4
      %v8620 = vrot.slane %v8580, 4
      %v8621 = vrot.slane %v8581, 4
      %v8622 = vrot.slane %v8582, 4
      %v8623 = vrot.slane %v8583, 4
      %v8632 = vadd.f32 %v8608, %v8616
      %v8633 = vadd.f32 %v8609, %v8617
      %v8634 = vadd.f32 %v8610, %v8618
      %v8635 = vadd.f32 %v8611, %v8619
      %v8636 = vadd.f32 %v8612, %v8620
      %v8637 = vadd.f32 %v8613, %v8621
      %v8638 = vadd.f32 %v8614, %v8622
      %v8639 = vadd.f32 %v8615, %v8623
      %v8640 = vadd.f32 %v8520, %v8632
      %v8641 = vadd.f32 %v8521, %v8633
      %v8642 = vadd.f32 %v8522, %v8634
      %v8643 = vadd.f32 %v8523, %v8635
      %v8644 = vadd.f32 %v8524, %v8636
      %v8645 = vadd.f32 %v8525, %v8637
      %v8646 = vadd.f32 %v8526, %v8638
      %v8647 = vadd.f32 %v8527, %v8639
      %v8648 = vld [vmem:[%s8294 + $0x6] sm:$0x7f]
      %v8649 = vld [vmem:[%s8294 + $0x106] sm:$0x7f]
      %v8650 = vld [vmem:[%s8294 + $0x206] sm:$0x7f]
      %v8651 = vld [vmem:[%s8294 + $0x306] sm:$0x7f]
      %v8652 = vld [vmem:[%s8294 + $0x406] sm:$0x7f]
      %v8653 = vld [vmem:[%s8294 + $0x506] sm:$0x7f]
      %v8654 = vld [vmem:[%s8294 + $0x606] sm:$0x7f]
      %v8655 = vld [vmem:[%s8294 + $0x706] sm:$0x7f]
      %v8656 = vld [vmem:[%s8303 + $0x6] sm:$0x7f]
      %v8657 = vld [vmem:[%s8303 + $0x106] sm:$0x7f]
      %v8658 = vld [vmem:[%s8303 + $0x206] sm:$0x7f]
      %v8659 = vld [vmem:[%s8303 + $0x306] sm:$0x7f]
      %v8660 = vld [vmem:[%s8303 + $0x406] sm:$0x7f]
      %v8661 = vld [vmem:[%s8303 + $0x506] sm:$0x7f]
      %v8662 = vld [vmem:[%s8303 + $0x606] sm:$0x7f]
      %v8663 = vld [vmem:[%s8303 + $0x706] sm:$0x7f]
      %v8664 = vmax.f32 %v8648, %v8656
      %v8665 = vmax.f32 %v8649, %v8657
      %v8666 = vmax.f32 %v8650, %v8658
      %v8667 = vmax.f32 %v8651, %v8659
      %v8668 = vmax.f32 %v8652, %v8660
      %v8669 = vmax.f32 %v8653, %v8661
      %v8670 = vmax.f32 %v8654, %v8662
      %v8671 = vmax.f32 %v8655, %v8663
      %v8680 = vrot.slane %v8664, 1
      %v8681 = vrot.slane %v8665, 1
      %v8682 = vrot.slane %v8666, 1
      %v8683 = vrot.slane %v8667, 1
      %v8684 = vrot.slane %v8668, 1
      %v8685 = vrot.slane %v8669, 1
      %v8686 = vrot.slane %v8670, 1
      %v8687 = vrot.slane %v8671, 1
      %v8696 = vmax.f32 %v8664, %v8680
      %v8697 = vmax.f32 %v8665, %v8681
      %v8698 = vmax.f32 %v8666, %v8682
      %v8699 = vmax.f32 %v8667, %v8683
      %v8700 = vmax.f32 %v8668, %v8684
      %v8701 = vmax.f32 %v8669, %v8685
      %v8702 = vmax.f32 %v8670, %v8686
      %v8703 = vmax.f32 %v8671, %v8687
      %v8712 = vrot.slane %v8696, 2
      %v8713 = vrot.slane %v8697, 2
      %v8714 = vrot.slane %v8698, 2
      %v8715 = vrot.slane %v8699, 2
      %v8716 = vrot.slane %v8700, 2
      %v8717 = vrot.slane %v8701, 2
      %v8718 = vrot.slane %v8702, 2
      %v8719 = vrot.slane %v8703, 2
      %v8728 = vadd.f32 %v8696, %v8712
      %v8729 = vadd.f32 %v8697, %v8713
      %v8730 = vadd.f32 %v8698, %v8714
      %v8731 = vadd.f32 %v8699, %v8715
      %v8732 = vadd.f32 %v8700, %v8716
      %v8733 = vadd.f32 %v8701, %v8717
      %v8734 = vadd.f32 %v8702, %v8718
      %v8735 = vadd.f32 %v8703, %v8719
      %v8736 = vrot.slane %v8696, 4
      %v8737 = vrot.slane %v8697, 4
      %v8738 = vrot.slane %v8698, 4
      %v8739 = vrot.slane %v8699, 4
      %v8740 = vrot.slane %v8700, 4
      %v8741 = vrot.slane %v8701, 4
      %v8742 = vrot.slane %v8702, 4
      %v8743 = vrot.slane %v8703, 4
      %v8752 = vadd.f32 %v8728, %v8736
      %v8753 = vadd.f32 %v8729, %v8737
      %v8754 = vadd.f32 %v8730, %v8738
      %v8755 = vadd.f32 %v8731, %v8739
      %v8756 = vadd.f32 %v8732, %v8740
      %v8757 = vadd.f32 %v8733, %v8741
      %v8758 = vadd.f32 %v8734, %v8742
      %v8759 = vadd.f32 %v8735, %v8743
      %v8760 = vadd.f32 %v8640, %v8752
      %v8761 = vadd.f32 %v8641, %v8753
      %v8762 = vadd.f32 %v8642, %v8754
      %v8763 = vadd.f32 %v8643, %v8755
      %v8764 = vadd.f32 %v8644, %v8756
      %v8765 = vadd.f32 %v8645, %v8757
      %v8766 = vadd.f32 %v8646, %v8758
      %v8767 = vadd.f32 %v8647, %v8759
      %v8776 = vrot.slane %v7699, 7
      %vm8777 = vcmask 1041409
      %v8778 = vsel %vm8777, %v8776, %v7698
      %v8779 = vrot.slane %v7700, 6
      %vm8780 = vcmask 1042434
      %v8781 = vsel %vm8780, %v8779, %v8778
      %v8782 = vrot.slane %v7701, 5
      %vm8783 = vcmask 1043459
      %v8784 = vsel %vm8783, %v8782, %v8781
      %v8785 = vrot.slane %v7702, 4
      %vm8786 = vcmask 1044484
      %v8787 = vsel %vm8786, %v8785, %v8784
      %v8788 = vrot.slane %v7703, 3
      %vm8789 = vcmask 1045509
      %v8790 = vsel %vm8789, %v8788, %v8787
      %v8791 = vrot.slane %v7704, 2
      %vm8792 = vcmask 1046534
      %v8793 = vsel %vm8792, %v8791, %v8790
      %v8794 = vrot.slane %v7705, 1
      %vm8795 = vcmask 1047559
      %v8796 = vsel %vm8795, %v8794, %v8793
      %v8806 = vrot.slane %v8051, 7
      %v8807 = vsel %vm8777, %v8806, %v8050
      %v8808 = vrot.slane %v8052, 6
      %v8809 = vsel %vm8780, %v8808, %v8807
      %v8810 = vrot.slane %v8053, 5
      %v8811 = vsel %vm8783, %v8810, %v8809
      %v8812 = vrot.slane %v8054, 4
      %v8813 = vsel %vm8786, %v8812, %v8811
      %v8814 = vrot.slane %v8055, 3
      %v8815 = vsel %vm8789, %v8814, %v8813
      %v8816 = vrot.slane %v8056, 2
      %v8817 = vsel %vm8792, %v8816, %v8815
      %v8818 = vrot.slane %v8057, 1
      %v8819 = vsel %vm8795, %v8818, %v8817
      %v8829 = vrot.slane %v8409, 7
      %v8830 = vsel %vm8777, %v8829, %v8408
      %v8831 = vrot.slane %v8410, 6
      %v8832 = vsel %vm8780, %v8831, %v8830
      %v8833 = vrot.slane %v8411, 5
      %v8834 = vsel %vm8783, %v8833, %v8832
      %v8835 = vrot.slane %v8412, 4
      %v8836 = vsel %vm8786, %v8835, %v8834
      %v8837 = vrot.slane %v8413, 3
      %v8838 = vsel %vm8789, %v8837, %v8836
      %v8839 = vrot.slane %v8414, 2
      %v8840 = vsel %vm8792, %v8839, %v8838
      %v8841 = vrot.slane %v8415, 1
      %v8842 = vsel %vm8795, %v8841, %v8840
      %v8852 = vrot.slane %v8761, 7
      %v8853 = vsel %vm8777, %v8852, %v8760
      %v8854 = vrot.slane %v8762, 6
      %v8855 = vsel %vm8780, %v8854, %v8853
      %v8856 = vrot.slane %v8763, 5
      %v8857 = vsel %vm8783, %v8856, %v8855
      %v8858 = vrot.slane %v8764, 4
      %v8859 = vsel %vm8786, %v8858, %v8857
      %v8860 = vrot.slane %v8765, 3
      %v8861 = vsel %vm8789, %v8860, %v8859
      %v8862 = vrot.slane %v8766, 2
      %v8863 = vsel %vm8792, %v8862, %v8861
      %v8864 = vrot.slane %v8767, 1
      %v8865 = vsel %vm8795, %v8864, %v8863
      %v8867 = vld [vmem:[%s6] sm:$0x1]
      %v8868 = vpack.c.bf16 %v8796, %v8796
      %v8869 = vpack.c.bf16 %v8819, %v8819
      %v8870 = vpack.c.bf16 %v8842, %v8842
      %v8871 = vpack.c.bf16 %v8865, %v8865
      %v8872 = vld [vmem:[%s5] sm:$0xf]
      %v8873 = vld [vmem:[%s5 + $0x4] sm:$0xf]
      %v8874 = vld [vmem:[%s5 + $0x8] sm:$0xf]
      %v8875 = vld [vmem:[%s5 + $0xc] sm:$0xf]
      %v8876 = vld [vmem:[%s5 + $0x10] sm:$0xf]
      %v8877 = vld [vmem:[%s5 + $0x14] sm:$0xf]
      %v8878 = vld [vmem:[%s5 + $0x18] sm:$0xf]
      %v8879 = vld [vmem:[%s5 + $0x1c] sm:$0xf]
      %v8880 = vld [vmem:[%s5 + $0x20] sm:$0xf]
      %v8881 = vld [vmem:[%s5 + $0x24] sm:$0xf]
      %v8882 = vld [vmem:[%s5 + $0x28] sm:$0xf]
      %v8883 = vld [vmem:[%s5 + $0x2c] sm:$0xf]
      %v8884 = vld [vmem:[%s5 + $0x30] sm:$0xf]
      %v8885 = vld [vmem:[%s5 + $0x34] sm:$0xf]
      %v8886 = vld [vmem:[%s5 + $0x38] sm:$0xf]
      %v8887 = vld [vmem:[%s5 + $0x3c] sm:$0xf]
      %v8888 = vld [vmem:[%s5 + $0x40] sm:$0xf]
      %v8889 = vld [vmem:[%s5 + $0x44] sm:$0xf]
      %v8890 = vld [vmem:[%s5 + $0x48] sm:$0xf]
      %v8891 = vld [vmem:[%s5 + $0x4c] sm:$0xf]
      %v8892 = vld [vmem:[%s5 + $0x50] sm:$0xf]
      %v8893 = vld [vmem:[%s5 + $0x54] sm:$0xf]
      %v8894 = vld [vmem:[%s5 + $0x58] sm:$0xf]
      %v8895 = vld [vmem:[%s5 + $0x5c] sm:$0xf]
      %v8896 = vld [vmem:[%s5 + $0x60] sm:$0xf]
      %v8897 = vld [vmem:[%s5 + $0x64] sm:$0xf]
      %v8898 = vld [vmem:[%s5 + $0x68] sm:$0xf]
      %v8899 = vld [vmem:[%s5 + $0x6c] sm:$0xf]
      %v8900 = vld [vmem:[%s5 + $0x70] sm:$0xf]
      %v8901 = vld [vmem:[%s5 + $0x74] sm:$0xf]
      %v8902 = vld [vmem:[%s5 + $0x78] sm:$0xf]
      %v8903 = vld [vmem:[%s5 + $0x7c] sm:$0xf]
      %v8904 = vld [vmem:[%s5 + $0x80] sm:$0xf]
      %v8905 = vld [vmem:[%s5 + $0x84] sm:$0xf]
      %v8906 = vld [vmem:[%s5 + $0x88] sm:$0xf]
      %v8907 = vld [vmem:[%s5 + $0x8c] sm:$0xf]
      %v8908 = vld [vmem:[%s5 + $0x90] sm:$0xf]
      %v8909 = vld [vmem:[%s5 + $0x94] sm:$0xf]
      %v8910 = vld [vmem:[%s5 + $0x98] sm:$0xf]
      %v8911 = vld [vmem:[%s5 + $0x9c] sm:$0xf]
      %v8912 = vld [vmem:[%s5 + $0xa0] sm:$0xf]
      %v8913 = vld [vmem:[%s5 + $0xa4] sm:$0xf]
      %v8914 = vld [vmem:[%s5 + $0xa8] sm:$0xf]
      %v8915 = vld [vmem:[%s5 + $0xac] sm:$0xf]
      %v8916 = vld [vmem:[%s5 + $0xb0] sm:$0xf]
      %v8917 = vld [vmem:[%s5 + $0xb4] sm:$0xf]
      %v8918 = vld [vmem:[%s5 + $0xb8] sm:$0xf]
      %v8919 = vld [vmem:[%s5 + $0xbc] sm:$0xf]
      %v8920 = vld [vmem:[%s5 + $0xc0] sm:$0xf]
      %v8921 = vld [vmem:[%s5 + $0xc4] sm:$0xf]
      %v8922 = vld [vmem:[%s5 + $0xc8] sm:$0xf]
      %v8923 = vld [vmem:[%s5 + $0xcc] sm:$0xf]
      %v8924 = vld [vmem:[%s5 + $0xd0] sm:$0xf]
      %v8925 = vld [vmem:[%s5 + $0xd4] sm:$0xf]
      %v8926 = vld [vmem:[%s5 + $0xd8] sm:$0xf]
      %v8927 = vld [vmem:[%s5 + $0xdc] sm:$0xf]
      %v8928 = vld [vmem:[%s5 + $0xe0] sm:$0xf]
      %v8929 = vld [vmem:[%s5 + $0xe4] sm:$0xf]
      %v8930 = vld [vmem:[%s5 + $0xe8] sm:$0xf]
      %v8931 = vld [vmem:[%s5 + $0xec] sm:$0xf]
      %v8932 = vld [vmem:[%s5 + $0xf0] sm:$0xf]
      %v8933 = vld [vmem:[%s5 + $0xf4] sm:$0xf]
      %v8934 = vld [vmem:[%s5 + $0xf8] sm:$0xf]
      %v8935 = vld [vmem:[%s5 + $0xfc] sm:$0xf]
      %v9000 = vunpack.c.l.b16 %v8872
      %v9001 = vunpack.c.l.b16 %v8873
      %v9002 = vunpack.c.l.b16 %v8874
      %v9003 = vunpack.c.l.b16 %v8875
      %v9004 = vunpack.c.l.b16 %v8876
      %v9005 = vunpack.c.l.b16 %v8877
      %v9006 = vunpack.c.l.b16 %v8878
      %v9007 = vunpack.c.l.b16 %v8879
      %v9008 = vunpack.c.l.b16 %v8880
      %v9009 = vunpack.c.l.b16 %v8881
      %v9010 = vunpack.c.l.b16 %v8882
      %v9011 = vunpack.c.l.b16 %v8883
      %v9012 = vunpack.c.l.b16 %v8884
      %v9013 = vunpack.c.l.b16 %v8885
      %v9014 = vunpack.c.l.b16 %v8886
      %v9015 = vunpack.c.l.b16 %v8887
      %v9016 = vunpack.c.l.b16 %v8888
      %v9017 = vunpack.c.l.b16 %v8889
      %v9018 = vunpack.c.l.b16 %v8890
      %v9019 = vunpack.c.l.b16 %v8891
      %v9020 = vunpack.c.l.b16 %v8892
      %v9021 = vunpack.c.l.b16 %v8893
      %v9022 = vunpack.c.l.b16 %v8894
      %v9023 = vunpack.c.l.b16 %v8895
      %v9024 = vunpack.c.l.b16 %v8896
      %v9025 = vunpack.c.l.b16 %v8897
      %v9026 = vunpack.c.l.b16 %v8898
      %v9027 = vunpack.c.l.b16 %v8899
      %v9028 = vunpack.c.l.b16 %v8900
      %v9029 = vunpack.c.l.b16 %v8901
      %v9030 = vunpack.c.l.b16 %v8902
      %v9031 = vunpack.c.l.b16 %v8903
      %v9032 = vunpack.c.l.b16 %v8904
      %v9033 = vunpack.c.l.b16 %v8905
      %v9034 = vunpack.c.l.b16 %v8906
      %v9035 = vunpack.c.l.b16 %v8907
      %v9036 = vunpack.c.l.b16 %v8908
      %v9037 = vunpack.c.l.b16 %v8909
      %v9038 = vunpack.c.l.b16 %v8910
      %v9039 = vunpack.c.l.b16 %v8911
      %v9040 = vunpack.c.l.b16 %v8912
      %v9041 = vunpack.c.l.b16 %v8913
      %v9042 = vunpack.c.l.b16 %v8914
      %v9043 = vunpack.c.l.b16 %v8915
      %v9044 = vunpack.c.l.b16 %v8916
      %v9045 = vunpack.c.l.b16 %v8917
      %v9046 = vunpack.c.l.b16 %v8918
      %v9047 = vunpack.c.l.b16 %v8919
      %v9048 = vunpack.c.l.b16 %v8920
      %v9049 = vunpack.c.l.b16 %v8921
      %v9050 = vunpack.c.l.b16 %v8922
      %v9051 = vunpack.c.l.b16 %v8923
      %v9052 = vunpack.c.l.b16 %v8924
      %v9053 = vunpack.c.l.b16 %v8925
      %v9054 = vunpack.c.l.b16 %v8926
      %v9055 = vunpack.c.l.b16 %v8927
      %v9056 = vunpack.c.l.b16 %v8928
      %v9057 = vunpack.c.l.b16 %v8929
      %v9058 = vunpack.c.l.b16 %v8930
      %v9059 = vunpack.c.l.b16 %v8931
      %v9060 = vunpack.c.l.b16 %v8932
      %v9061 = vunpack.c.l.b16 %v8933
      %v9062 = vunpack.c.l.b16 %v8934
      %v9063 = vunpack.c.l.b16 %v8935
      %v9064 = vpack.c.b16 %v9001, %v9000
      %v9065 = vpack.c.b16 %v9003, %v9002
      %v9066 = vpack.c.b16 %v9005, %v9004
      %v9067 = vpack.c.b16 %v9007, %v9006
      %v9068 = vpack.c.b16 %v9009, %v9008
      %v9069 = vpack.c.b16 %v9011, %v9010
      %v9070 = vpack.c.b16 %v9013, %v9012
      %v9071 = vpack.c.b16 %v9015, %v9014
      %v9072 = vpack.c.b16 %v9017, %v9016
      %v9073 = vpack.c.b16 %v9019, %v9018
      %v9074 = vpack.c.b16 %v9021, %v9020
      %v9075 = vpack.c.b16 %v9023, %v9022
      %v9076 = vpack.c.b16 %v9025, %v9024
      %v9077 = vpack.c.b16 %v9027, %v9026
      %v9078 = vpack.c.b16 %v9029, %v9028
      %v9079 = vpack.c.b16 %v9031, %v9030
      %v9080 = vpack.c.b16 %v9033, %v9032
      %v9081 = vpack.c.b16 %v9035, %v9034
      %v9082 = vpack.c.b16 %v9037, %v9036
      %v9083 = vpack.c.b16 %v9039, %v9038
      %v9084 = vpack.c.b16 %v9041, %v9040
      %v9085 = vpack.c.b16 %v9043, %v9042
      %v9086 = vpack.c.b16 %v9045, %v9044
      %v9087 = vpack.c.b16 %v9047, %v9046
      %v9088 = vpack.c.b16 %v9049, %v9048
      %v9089 = vpack.c.b16 %v9051, %v9050
      %v9090 = vpack.c.b16 %v9053, %v9052
      %v9091 = vpack.c.b16 %v9055, %v9054
      %v9092 = vpack.c.b16 %v9057, %v9056
      %v9093 = vpack.c.b16 %v9059, %v9058
      %v9094 = vpack.c.b16 %v9061, %v9060
      %v9095 = vpack.c.b16 %v9063, %v9062
      %9128 = vmatprep.subr.bf16.mxu0 0
      %9129 = vmatpush1.bf16.msra.mxu0 %v9064
      %9130 = vmatprep.subr.bf16.mxu0 0
      %9131 = vmatpush1.bf16.msra.mxu0 %v9065
      %9132 = vmatprep.subr.bf16.mxu0 0
      %9133 = vmatpush1.bf16.msra.mxu0 %v9066
      %9134 = vmatprep.subr.bf16.mxu0 0
      %9135 = vmatpush1.bf16.msra.mxu0 %v9067
      %9136 = vmatprep.subr.bf16.mxu0 0
      %9137 = vmatpush1.bf16.msra.mxu0 %v9068
      %9138 = vmatprep.subr.bf16.mxu0 0
      %9139 = vmatpush1.bf16.msra.mxu0 %v9069
      %9140 = vmatprep.subr.bf16.mxu0 0
      %9141 = vmatpush1.bf16.msra.mxu0 %v9070
      %9142 = vmatprep.subr.bf16.mxu0 0
      %9143 = vmatpush1.bf16.msra.mxu0 %v9071
      %9144 = vmatprep.subr.bf16.mxu0 0
      %9145 = vmatpush1.bf16.msra.mxu0 %v9072
      %9146 = vmatprep.subr.bf16.mxu0 0
      %9147 = vmatpush1.bf16.msra.mxu0 %v9073
      %9148 = vmatprep.subr.bf16.mxu0 0
      %9149 = vmatpush1.bf16.msra.mxu0 %v9074
      %9150 = vmatprep.subr.bf16.mxu0 0
      %9151 = vmatpush1.bf16.msra.mxu0 %v9075
      %9152 = vmatprep.subr.bf16.mxu0 0
      %9153 = vmatpush1.bf16.msra.mxu0 %v9076
      %9154 = vmatprep.subr.bf16.mxu0 0
      %9155 = vmatpush1.bf16.msra.mxu0 %v9077
      %9156 = vmatprep.subr.bf16.mxu0 0
      %9157 = vmatpush1.bf16.msra.mxu0 %v9078
      %9158 = vmatprep.subr.bf16.mxu0 0
      %9159 = vmatpush1.bf16.msra.mxu0 %v9079
      %9160 = vmatprep.mubr.bf16.mxu0 %v8869
      %9161 = vmatmul.mubr.bf16.gmra.mrb[0].mxu0 %v8868
      %v9162 = vpop.f32.mrb[0].mxu0
      %v9163 = vadd.f32 0.0, %v9162
      %v9164 = vpop.f32.mrb[0].mxu0
      %v9165 = vpop.f32.mrb[0].mxu0
      %v9166 = vpop.f32.mrb[0].mxu0
      %9167 = vdwg.mxu0
      %9168 = vmatprep.subr.bf16.mxu0 0
      %9169 = vmatpush1.bf16.msra.mxu0 %v9080
      %9170 = vmatprep.subr.bf16.mxu0 0
      %9171 = vmatpush1.bf16.msra.mxu0 %v9081
      %9172 = vmatprep.subr.bf16.mxu0 0
      %9173 = vmatpush1.bf16.msra.mxu0 %v9082
      %9174 = vmatprep.subr.bf16.mxu0 0
      %9175 = vmatpush1.bf16.msra.mxu0 %v9083
      %9176 = vmatprep.subr.bf16.mxu0 0
      %9177 = vmatpush1.bf16.msra.mxu0 %v9084
      %9178 = vmatprep.subr.bf16.mxu0 0
      %9179 = vmatpush1.bf16.msra.mxu0 %v9085
      %9180 = vmatprep.subr.bf16.mxu0 0
      %9181 = vmatpush1.bf16.msra.mxu0 %v9086
      %9182 = vmatprep.subr.bf16.mxu0 0
      %9183 = vmatpush1.bf16.msra.mxu0 %v9087
      %9184 = vmatprep.subr.bf16.mxu0 0
      %9185 = vmatpush1.bf16.msra.mxu0 %v9088
      %9186 = vmatprep.subr.bf16.mxu0 0
      %9187 = vmatpush1.bf16.msra.mxu0 %v9089
      %9188 = vmatprep.subr.bf16.mxu0 0
      %9189 = vmatpush1.bf16.msra.mxu0 %v9090
      %9190 = vmatprep.subr.bf16.mxu0 0
      %9191 = vmatpush1.bf16.msra.mxu0 %v9091
      %9192 = vmatprep.subr.bf16.mxu0 0
      %9193 = vmatpush1.bf16.msra.mxu0 %v9092
      %9194 = vmatprep.subr.bf16.mxu0 0
      %9195 = vmatpush1.bf16.msra.mxu0 %v9093
      %9196 = vmatprep.subr.bf16.mxu0 0
      %9197 = vmatpush1.bf16.msra.mxu0 %v9094
      %9198 = vmatprep.subr.bf16.mxu0 0
      %9199 = vmatpush1.bf16.msra.mxu0 %v9095
      %9200 = vmatprep.mubr.bf16.mxu0 %v8871
      %9201 = vmatmul.mubr.bf16.gmra.mrb[0].mxu0 %v8870
      %v9202 = vpop.f32.mrb[0].mxu0
      %v9203 = vadd.f32 %v9163, %v9202
      %v9204 = vpop.f32.mrb[0].mxu0
      %v9205 = vpop.f32.mrb[0].mxu0
      %v9206 = vpop.f32.mrb[0].mxu0
      %9207 = vdwg.mxu0
      %v9209 = vlaneseq
      %v9210 = vshrl.u32 %v9209, 7
      %v9211 = vsub.s32 0, %v9210
      %v9212 = vrot.slane %v8867, %v9211
      %v9214 = vadd.f32 %v9212, %v9203
      %v9215 = vmax.f32 %v9214, 0.0
      %v9216 = vld [vmem:[%s8] sm:$0x1]
      %v9217 = vpack.c.bf16 %v9215, %v9215
      %v9218 = vld [vmem:[%s7] sm:$0xf]
      %v9219 = vld [vmem:[%s7 + $0x4] sm:$0xf]
      %v9220 = vld [vmem:[%s7 + $0x8] sm:$0xf]
      %v9221 = vld [vmem:[%s7 + $0xc] sm:$0xf]
      %v9222 = vld [vmem:[%s7 + $0x10] sm:$0xf]
      %v9223 = vld [vmem:[%s7 + $0x14] sm:$0xf]
      %v9224 = vld [vmem:[%s7 + $0x18] sm:$0xf]
      %v9225 = vld [vmem:[%s7 + $0x1c] sm:$0xf]
      %v9226 = vld [vmem:[%s7 + $0x20] sm:$0xf]
      %v9227 = vld [vmem:[%s7 + $0x24] sm:$0xf]
      %v9228 = vld [vmem:[%s7 + $0x28] sm:$0xf]
      %v9229 = vld [vmem:[%s7 + $0x2c] sm:$0xf]
      %v9230 = vld [vmem:[%s7 + $0x30] sm:$0xf]
      %v9231 = vld [vmem:[%s7 + $0x34] sm:$0xf]
      %v9232 = vld [vmem:[%s7 + $0x38] sm:$0xf]
      %v9233 = vld [vmem:[%s7 + $0x3c] sm:$0xf]
      %v9250 = vunpack.c.l.b16 %v9218
      %v9251 = vunpack.c.l.b16 %v9219
      %v9252 = vunpack.c.l.b16 %v9220
      %v9253 = vunpack.c.l.b16 %v9221
      %v9254 = vunpack.c.l.b16 %v9222
      %v9255 = vunpack.c.l.b16 %v9223
      %v9256 = vunpack.c.l.b16 %v9224
      %v9257 = vunpack.c.l.b16 %v9225
      %v9258 = vunpack.c.l.b16 %v9226
      %v9259 = vunpack.c.l.b16 %v9227
      %v9260 = vunpack.c.l.b16 %v9228
      %v9261 = vunpack.c.l.b16 %v9229
      %v9262 = vunpack.c.l.b16 %v9230
      %v9263 = vunpack.c.l.b16 %v9231
      %v9264 = vunpack.c.l.b16 %v9232
      %v9265 = vunpack.c.l.b16 %v9233
      %v9266 = vpack.c.b16 %v9251, %v9250
      %v9267 = vpack.c.b16 %v9253, %v9252
      %v9268 = vpack.c.b16 %v9255, %v9254
      %v9269 = vpack.c.b16 %v9257, %v9256
      %v9270 = vpack.c.b16 %v9259, %v9258
      %v9271 = vpack.c.b16 %v9261, %v9260
      %v9272 = vpack.c.b16 %v9263, %v9262
      %v9273 = vpack.c.b16 %v9265, %v9264
      %9282 = vmatprep.subr.bf16.mxu0 0
      %9283 = vmatpush1.bf16.msra.mxu0 %v9266
      %9284 = vmatprep.subr.bf16.mxu0 0
      %9285 = vmatpush1.bf16.msra.mxu0 %v9267
      %9286 = vmatprep.subr.bf16.mxu0 0
      %9287 = vmatpush1.bf16.msra.mxu0 %v9268
      %9288 = vmatprep.subr.bf16.mxu0 0
      %9289 = vmatpush1.bf16.msra.mxu0 %v9269
      %9290 = vmatprep.subr.bf16.mxu0 0
      %9291 = vmatpush1.bf16.msra.mxu0 %v9270
      %9292 = vmatprep.subr.bf16.mxu0 0
      %9293 = vmatpush1.bf16.msra.mxu0 %v9271
      %9294 = vmatprep.subr.bf16.mxu0 0
      %9295 = vmatpush1.bf16.msra.mxu0 %v9272
      %9296 = vmatprep.subr.bf16.mxu0 0
      %9297 = vmatpush1.bf16.msra.mxu0 %v9273
      %9298 = vmatprep.subr.bf16.mxu0 0
      %9299 = vmatpush1.bf16.msra.mxu0 0
      %9300 = vmatprep.subr.bf16.mxu0 0
      %9301 = vmatpush1.bf16.msra.mxu0 0
      %9302 = vmatprep.subr.bf16.mxu0 0
      %9303 = vmatpush1.bf16.msra.mxu0 0
      %9304 = vmatprep.subr.bf16.mxu0 0
      %9305 = vmatpush1.bf16.msra.mxu0 0
      %9306 = vmatprep.subr.bf16.mxu0 0
      %9307 = vmatpush1.bf16.msra.mxu0 0
      %9308 = vmatprep.subr.bf16.mxu0 0
      %9309 = vmatpush1.bf16.msra.mxu0 0
      %9310 = vmatprep.subr.bf16.mxu0 0
      %9311 = vmatpush1.bf16.msra.mxu0 0
      %9312 = vmatprep.subr.bf16.mxu0 0
      %9313 = vmatpush1.bf16.msra.mxu0 0
      %9314 = vmatprep.mubr.bf16.mxu0 0
      %9315 = vmatmul.mubr.bf16.gmra.mrb[0].mxu0 %v9217
      %v9316 = vpop.f32.mrb[0].mxu0
      %v9317 = vadd.f32 0.0, %v9316
      %v9318 = vpop.f32.mrb[0].mxu0
      %v9319 = vpop.f32.mrb[0].mxu0
      %v9320 = vpop.f32.mrb[0].mxu0
      %9321 = vdwg.mxu0
      %v9323 = vlaneseq
      %v9324 = vshrl.u32 %v9323, 7
      %v9325 = vsub.s32 0, %v9324
      %v9326 = vrot.slane %v9216, %v9325
      %v9328 = vadd.f32 %v9326, %v9317
      %v9329 = vmax.f32 %v9328, 0.0
      %v9330 = vld [vmem:[%s10] sm:$0x1]
      %v9331 = vpack.c.bf16 %v9329, %v9329
      %v9332 = vld [vmem:[%s9] sm:$0xf]
      %v9333 = vld [vmem:[%s9 + $0x4] sm:$0xf]
      %v9334 = vld [vmem:[%s9 + $0x8] sm:$0xf]
      %v9335 = vld [vmem:[%s9 + $0xc] sm:$0xf]
      %v9336 = vld [vmem:[%s9 + $0x10] sm:$0xf]
      %v9337 = vld [vmem:[%s9 + $0x14] sm:$0xf]
      %v9338 = vld [vmem:[%s9 + $0x18] sm:$0xf]
      %v9339 = vld [vmem:[%s9 + $0x1c] sm:$0xf]
      %v9340 = vld [vmem:[%s9 + $0x20] sm:$0xf]
      %v9341 = vld [vmem:[%s9 + $0x24] sm:$0xf]
      %v9342 = vld [vmem:[%s9 + $0x28] sm:$0xf]
      %v9343 = vld [vmem:[%s9 + $0x2c] sm:$0xf]
      %v9344 = vld [vmem:[%s9 + $0x30] sm:$0xf]
      %v9345 = vld [vmem:[%s9 + $0x34] sm:$0xf]
      %v9346 = vld [vmem:[%s9 + $0x38] sm:$0xf]
      %v9347 = vld [vmem:[%s9 + $0x3c] sm:$0xf]
      %v9364 = vunpack.c.l.b16 %v9332
      %v9365 = vunpack.c.l.b16 %v9333
      %v9366 = vunpack.c.l.b16 %v9334
      %v9367 = vunpack.c.l.b16 %v9335
      %v9368 = vunpack.c.l.b16 %v9336
      %v9369 = vunpack.c.l.b16 %v9337
      %v9370 = vunpack.c.l.b16 %v9338
      %v9371 = vunpack.c.l.b16 %v9339
      %v9372 = vunpack.c.l.b16 %v9340
      %v9373 = vunpack.c.l.b16 %v9341
      %v9374 = vunpack.c.l.b16 %v9342
      %v9375 = vunpack.c.l.b16 %v9343
      %v9376 = vunpack.c.l.b16 %v9344
      %v9377 = vunpack.c.l.b16 %v9345
      %v9378 = vunpack.c.l.b16 %v9346
      %v9379 = vunpack.c.l.b16 %v9347
      %v9380 = vpack.c.b16 %v9365, %v9364
      %v9381 = vpack.c.b16 %v9367, %v9366
      %v9382 = vpack.c.b16 %v9369, %v9368
      %v9383 = vpack.c.b16 %v9371, %v9370
      %v9384 = vpack.c.b16 %v9373, %v9372
      %v9385 = vpack.c.b16 %v9375, %v9374
      %v9386 = vpack.c.b16 %v9377, %v9376
      %v9387 = vpack.c.b16 %v9379, %v9378
      %9396 = vmatprep.subr.bf16.mxu0 0
      %9397 = vmatpush1.bf16.msra.mxu0 %v9380
      %9398 = vmatprep.subr.bf16.mxu0 0
      %9399 = vmatpush1.bf16.msra.mxu0 %v9381
      %9400 = vmatprep.subr.bf16.mxu0 0
      %9401 = vmatpush1.bf16.msra.mxu0 %v9382
      %9402 = vmatprep.subr.bf16.mxu0 0
      %9403 = vmatpush1.bf16.msra.mxu0 %v9383
      %9404 = vmatprep.subr.bf16.mxu0 0
      %9405 = vmatpush1.bf16.msra.mxu0 %v9384
      %9406 = vmatprep.subr.bf16.mxu0 0
      %9407 = vmatpush1.bf16.msra.mxu0 %v9385
      %9408 = vmatprep.subr.bf16.mxu0 0
      %9409 = vmatpush1.bf16.msra.mxu0 %v9386
      %9410 = vmatprep.subr.bf16.mxu0 0
      %9411 = vmatpush1.bf16.msra.mxu0 %v9387
      %9412 = vmatprep.subr.bf16.mxu0 0
      %9413 = vmatpush1.bf16.msra.mxu0 0
      %9414 = vmatprep.subr.bf16.mxu0 0
      %9415 = vmatpush1.bf16.msra.mxu0 0
      %9416 = vmatprep.subr.bf16.mxu0 0
      %9417 = vmatpush1.bf16.msra.mxu0 0
      %9418 = vmatprep.subr.bf16.mxu0 0
      %9419 = vmatpush1.bf16.msra.mxu0 0
      %9420 = vmatprep.subr.bf16.mxu0 0
      %9421 = vmatpush1.bf16.msra.mxu0 0
      %9422 = vmatprep.subr.bf16.mxu0 0
      %9423 = vmatpush1.bf16.msra.mxu0 0
      %9424 = vmatprep.subr.bf16.mxu0 0
      %9425 = vmatpush1.bf16.msra.mxu0 0
      %9426 = vmatprep.subr.bf16.mxu0 0
      %9427 = vmatpush1.bf16.msra.mxu0 0
      %9428 = vmatprep.mubr.bf16.mxu0 0
      %9429 = vmatmul.mubr.bf16.gmra.mrb[0].mxu0 %v9331
      %v9430 = vpop.f32.mrb[0].mxu0
      %v9431 = vadd.f32 0.0, %v9430
      %v9432 = vpop.f32.mrb[0].mxu0
      %v9433 = vpop.f32.mrb[0].mxu0
      %v9434 = vpop.f32.mrb[0].mxu0
      %9435 = vdwg.mxu0
      %v9437 = vlaneseq
      %v9438 = vshrl.u32 %v9437, 7
      %v9439 = vsub.s32 0, %v9438
      %v9440 = vrot.slane %v9330, %v9439
      %v9442 = vadd.f32 %v9440, %v9431
      %9443 = vst [vmem:[%s389] sm:$0xff] %v9442
      %p9444 = scmp.lt.s32.totalorder %s22, 1
      %s9445 = scalar_select %p9444, %s22, 1
      %s9446 = smul.addr %s9445, 8
      %s9447 = scalar_lea.vmem %s11, %s9446
      // Predicated region
      $region72: #{equivalent_net_mnist.1} parent=63 // pred_check
        %p9448 = pneg %p276
      $region73: #{equivalent_net_mnist.1} parent=63 // pred_check_branch
        %9450 = sbr.rel (%p9448) target = $region75
      $region74: #{equivalent_net_mnist.1} parent=63 // pred_region
        _
      $region75: #{equivalent_net_mnist.1} parent=63 // pred_fallthru
        _
    $region64: #{equivalent_net_mnist.1} parent=5 // pred_fallthru
      _
    %p9451 = scmp.le.s32.totalorder 2, %s17
    // Predicated region
    $region76: #{equivalent_net_mnist.1} parent=5 // pred_check
      %p9452 = pneg %p9451
    $region77: #{equivalent_net_mnist.1} parent=5 // pred_check_branch
      %9454 = sbr.rel (%p9452) target = $region79
    $region78: #{equivalent_net_mnist.1} parent=5 // pred_region
      %s9455 = ssub.s32 %s17, 2
      // Predicated region
      $region80: #{equivalent_net_mnist.1} parent=78 // pred_check
        %p9456 = pneg %p282
      $region81: #{equivalent_net_mnist.1} parent=78 // pred_check_branch
        %9458 = sbr.rel (%p9456) target = $region83
      $region82: #{equivalent_net_mnist.1} parent=78 // pred_region
        %p9459 = scmp.lt.s32.totalorder %s23, 1
        %s9460 = scalar_select %p9459, %s23, 1
        %s9461 = smul.addr %s9460, 8
        %s9462 = scalar_lea.vmem %s11, %s9461
      $region83: #{equivalent_net_mnist.1} parent=78 // pred_fallthru
        _
    $region79: #{equivalent_net_mnist.1} parent=5 // pred_fallthru
      _
  $region6: #{equivalent_net_mnist.1} parent=0 // loop_footer
    %s21 = sadd.s32 1, %s17
  $region7: #{equivalent_net_mnist.1} parent=0 // loop_footer_branch
    %16 = sbr.rel target = $region3
  $region8: #{equivalent_net_mnist.1} parent=0 // loop_exit
    _

</llo_original>
